<compile_context>
chip_gen: v7x
topology: tpu7x:2x2x1
jax: 0.10.0
libtpu: 0.0.40
codegen_flags: <defaults>
</compile_context>

<pallas_src>
import math
import numpy as np
import jax
import jax.numpy as jnp
from jax import lax
from jax.experimental import pallas as pl
from jax.experimental.pallas import tpu as pltpu

EPS = 1e-5        # nn.BatchNorm2d default
ROW_TILE = 128    # demo-sized so the test exercises the grid; use 1024-2048 in
                  # production (size per generation: v7x VMEM is 64 MiB).


def _round_up(x, m):
  return (x + m - 1) // m * m


# ----------------------------------------------------------------------------
# Kernel A: fused spatial 3x3 convs (reflect-padded input, halo sliced in-kernel)
#   out[..., :out_cl] = convl2l(x_l) + convg2l(x_g)
#   out[..., out_cl:] = convl2g(x_l)
# Weights: w_l (9, Cl, Cout_tot) = [l2l | l2g];  w_g (9, Cg, Cout_tot) with the
# g->g columns zeroed (free on the MXU, avoids any lane slicing/concat).
# ----------------------------------------------------------------------------
def _spatial_conv_kernel(xl_ref, xg_ref, wl_ref, wg_ref, out_ref):
  h = out_ref.shape[1]
  w_ = out_ref.shape[2]
  co = out_ref.shape[3]
  xl = xl_ref[0]                               # (H+2, W+2, Cl)
  xg = xg_ref[0]                               # (H+2, W+2, Cg)
  acc = jnp.zeros((h * w_, co), jnp.float32)
  k = 0
  for ky in range(3):
    for kx in range(3):
      pat_l = xl[ky:ky + h, kx:kx + w_, :].reshape(h * w_, xl.shape[-1])
      pat_g = xg[ky:ky + h, kx:kx + w_, :].reshape(h * w_, xg.shape[-1])
      acc = acc + jnp.dot(pat_l, wl_ref[k], preferred_element_type=jnp.float32)
      acc = acc + jnp.dot(pat_g, wg_ref[k], preferred_element_type=jnp.float32)
      k += 1
  out_ref[...] = acc.reshape(1, h, w_, co)


def _spatial_convs(xl, xg, w_l, w_g):
  n, h, w, cl = xl.shape
  cg = xg.shape[-1]
  co = w_l.shape[-1]
  xl_p = jnp.pad(xl, ((0, 0), (1, 1), (1, 1), (0, 0)), mode='reflect')
  xg_p = jnp.pad(xg, ((0, 0), (1, 1), (1, 1), (0, 0)), mode='reflect')
  return pl.pallas_call(
      _spatial_conv_kernel,
      out_shape=jax.ShapeDtypeStruct((n, h, w, co), jnp.float32),
      grid=(n,),
      in_specs=[
          pl.BlockSpec((1, h + 2, w + 2, cl), lambda i: (i, 0, 0, 0)),
          pl.BlockSpec((1, h + 2, w + 2, cg), lambda i: (i, 0, 0, 0)),
          pl.BlockSpec((9, cl, co), lambda i: (0, 0, 0)),   # resident weights
          pl.BlockSpec((9, cg, co), lambda i: (0, 0, 0)),
      ],
      out_specs=pl.BlockSpec((1, h, w, co), lambda i: (i, 0, 0, 0)),
      compiler_params=pltpu.CompilerParams(
          dimension_semantics=("parallel",)),
  )(xl_p, xg_p, w_l, w_g)


# ----------------------------------------------------------------------------
# Kernel B: 1x1 conv (bias-free) + BatchNorm (training batch stats) + ReLU
# Two gridded passes over row tiles (stats stay global per channel).
# ----------------------------------------------------------------------------
def _matmul_stats_kernel(x_ref, w_ref, sum_ref, ssq_ref):
  @pl.when(pl.program_id(0) == 0)
  def _():
    sum_ref[...] = jnp.zeros_like(sum_ref)
    ssq_ref[...] = jnp.zeros_like(ssq_ref)
  y = jnp.dot(x_ref[...], w_ref[...], preferred_element_type=jnp.float32)
  sum_ref[...] += jnp.sum(y, axis=0, keepdims=True)
  ssq_ref[...] += jnp.sum(y * y, axis=0, keepdims=True)


def _matmul_bn_relu_kernel(x_ref, w_ref, scale_ref, shift_ref, out_ref):
  # Re-computing the tiny 1x1 matmul here is cheaper than round-tripping the
  # unnormalized intermediate through HBM.
  y = jnp.dot(x_ref[...], w_ref[...], preferred_element_type=jnp.float32)
  out_ref[...] = jnp.maximum(y * scale_ref[...] + shift_ref[...], 0.0)


def _conv1x1_bn_relu(x2d, w, gamma, beta):
  """x2d: (R, Cin) rows = N*H*W (or N*H*Wr); w: (Cin, Cout)."""
  r, cin = x2d.shape
  cout = w.shape[1]
  tr = min(_round_up(r, 8), ROW_TILE)
  ntiles = -(-r // tr)
  rp = ntiles * tr
  # Zero-padded rows contribute nothing to the bias-free conv, so dividing the
  # accumulated sums by the true row count keeps the batch statistics exact.
  xp = jnp.pad(x2d, ((0, rp - r), (0, 0))) if rp != r else x2d

  x_spec = pl.BlockSpec((tr, cin), lambda i: (i, 0))
  w_spec = pl.BlockSpec((cin, cout), lambda i: (0, 0))
  vec_spec = pl.BlockSpec((1, cout), lambda i: (0, 0))

  ssum, ssq = pl.pallas_call(
      _matmul_stats_kernel,
      out_shape=(jax.ShapeDtypeStruct((1, cout), jnp.float32),
                 jax.ShapeDtypeStruct((1, cout), jnp.float32)),
      grid=(ntiles,),
      in_specs=[x_spec, w_spec],
      out_specs=(vec_spec, vec_spec),
      compiler_params=pltpu.CompilerParams(
          dimension_semantics=("arbitrary",)),
  )(xp, w)

  inv_r = 1.0 / float(r)
  mu = ssum * inv_r
  var = ssq * inv_r - mu * mu                 # single-pass E[x^2] - mu^2
  scale = gamma * lax.rsqrt(var + EPS)
  shift = beta - mu * scale

  out = pl.pallas_call(
      _matmul_bn_relu_kernel,
      out_shape=jax.ShapeDtypeStruct((rp, cout), jnp.float32),
      grid=(ntiles,),
      in_specs=[x_spec, w_spec, vec_spec, vec_spec],
      out_specs=pl.BlockSpec((tr, cout), lambda i: (i, 0)),
      compiler_params=pltpu.CompilerParams(
          dimension_semantics=("parallel",)),
  )(xp, w, scale, shift)
  return out[:r]


# ----------------------------------------------------------------------------
# Kernel C: SpectralTransform.conv2 fused with the 3-way add and the l2g
# residual of the FFC output:  out = (x1 + fu + lfu) @ W2 + convl2g(x_l)
# ----------------------------------------------------------------------------
def _conv2_fused_kernel(a_ref, b_ref, c_ref, res_ref, w_ref, out_ref):
  s = a_ref[...] + b_ref[...] + c_ref[...]
  out_ref[...] = (jnp.dot(s, w_ref[...], preferred_element_type=jnp.float32)
                  + res_ref[...])


def _conv2_fused(a, b, c, res, w):
  r, cin = a.shape
  cout = w.shape[1]
  tr = min(_round_up(r, 8), ROW_TILE)
  ntiles = -(-r // tr)
  rp = ntiles * tr
  pad = (lambda t: jnp.pad(t, ((0, rp - r), (0, 0)))) if rp != r else (lambda t: t)
  in_spec_a = pl.BlockSpec((tr, cin), lambda i: (i, 0))
  in_spec_r = pl.BlockSpec((tr, cout), lambda i: (i, 0))
  out = pl.pallas_call(
      _conv2_fused_kernel,
      out_shape=jax.ShapeDtypeStruct((rp, cout), jnp.float32),
      grid=(ntiles,),
      in_specs=[in_spec_a, in_spec_a, in_spec_a, in_spec_r,
                pl.BlockSpec((cin, cout), lambda i: (0, 0))],
      out_specs=pl.BlockSpec((tr, cout), lambda i: (i, 0)),
      compiler_params=pltpu.CompilerParams(
          dimension_semantics=("parallel",)),
  )(pad(a), pad(b), pad(c), pad(res), w)
  return out[:r]


# ----------------------------------------------------------------------------
# FourierUnit / SpectralTransform / FFC (NHWC internally)
# ----------------------------------------------------------------------------
def _fourier_unit(x, p):
  n, h, w, c = x.shape
  ff = jnp.fft.rfftn(x, axes=(1, 2), norm='ortho')           # (N,H,Wr,C) c64
  wr = ff.shape[2]
  ffr = jnp.stack([jnp.real(ff), jnp.imag(ff)], axis=-1)      # (N,H,Wr,C,2)
  ffr = ffr.reshape(n, h, wr, 2 * c)                          # [re c0, im c0, ...]
  y = _conv1x1_bn_relu(ffr.reshape(-1, 2 * c), p['w'], p['gamma'], p['beta'])
  y = y.reshape(n, h, wr, c, 2)
  comp = lax.complex(y[..., 0], y[..., 1])
  out = jnp.fft.irfftn(comp, s=(h, w), axes=(1, 2), norm='ortho')
  return out.astype(jnp.float32)


def _spectral_transform(xg, p, l2g_flat, out_cg):
  n, h, w, cg = xg.shape
  c2 = out_cg // 2
  x1 = _conv1x1_bn_relu(xg.reshape(-1, cg), p['w1'], p['bn1_gamma'],
                        p['bn1_beta']).reshape(n, h, w, c2)
  fu_out = _fourier_unit(x1, p['fu'])
  # LFU: 2x2 spatial split of the first c2//4 channels -> FourierUnit -> tile
  c4 = c2 // 4
  x4 = x1[..., :c4]
  xs = jnp.concatenate([x4[:, :h // 2], x4[:, h // 2:]], axis=-1)
  xs = jnp.concatenate([xs[:, :, :w // 2], xs[:, :, w // 2:]], axis=-1)
  xs = _fourier_unit(xs, p['lfu'])
  xs = jnp.tile(xs, (1, 2, 2, 1))
  out = _conv2_fused(x1.reshape(-1, c2), fu_out.reshape(-1, c2),
                     xs.reshape(-1, c2), l2g_flat, p['w2'])
  return out.reshape(n, h, w, out_cg)


def ffc_forward(x_l_nchw, x_g_nchw, params):
  """FFC forward.  Inputs NCHW float32; returns (out_xl, out_xg) in NCHW."""
  xl = jnp.transpose(x_l_nchw, (0, 2, 3, 1)).astype(jnp.float32)
  xg = jnp.transpose(x_g_nchw, (0, 2, 3, 1)).astype(jnp.float32)
  n, h, w, in_cl = xl.shape
  in_cg = xg.shape[-1]
  out_cl = params['w_l2l'].shape[-1]
  out_cg = params['w_l2g'].shape[-1]
  co = out_cl + out_cg

  w_lpath = jnp.concatenate([params['w_l2l'], params['w_l2g']],
                            axis=-1).reshape(9, in_cl, co)
  w_gpath = jnp.concatenate(
      [params['w_g2l'], jnp.zeros((3, 3, in_cg, out_cg), jnp.float32)],
      axis=-1).reshape(9, in_cg, co)

  spat = _spatial_convs(xl, xg, w_lpath, w_gpath)
  out_xl = spat[..., :out_cl]                       # convl2l(x_l)+convg2l(x_g)
  l2g = spat[..., out_cl:]                          # convl2g(x_l)

  out_xg = _spectral_transform(xg, params['st'], l2g.reshape(-1, out_cg),
                               out_cg)

  return (jnp.transpose(out_xl, (0, 3, 1, 2)),
          jnp.transpose(out_xg, (0, 3, 1, 2)))


# ----------------------------------------------------------------------------
# Deterministic parameter init (PyTorch-like shapes / scales; synthetic values)
# ----------------------------------------------------------------------------
def init_ffc_params(key, in_channels, out_channels, ratio_gin=0.5,
                    ratio_gout=0.5):
  in_cg = int(in_channels * ratio_gin)
  in_cl = in_channels - in_cg
  out_cg = int(out_channels * ratio_gout)
  out_cl = out_channels - out_cg
  c2 = out_cg // 2
  ks = jax.random.split(key, 7)

  def conv_w(k, shape, fan_in):
    bound = 1.0 / math.sqrt(fan_in)
    return jax.random.uniform(k, shape, jnp.float32, -bound, bound)

  params = {
      'w_l2l': conv_w(ks[0], (3, 3, in_cl, out_cl), 9 * in_cl),
      'w_l2g': conv_w(ks[1], (3, 3, in_cl, out_cg), 9 * in_cl),
      'w_g2l': conv_w(ks[2], (3, 3, in_cg, out_cl), 9 * in_cg),
      'st': {
          'w1': conv_w(ks[3], (in_cg, c2), in_cg),
          'bn1_gamma': jnp.ones((1, c2), jnp.float32),
          'bn1_beta': jnp.zeros((1, c2), jnp.float32),
          'fu': {'w': conv_w(ks[4], (2 * c2, 2 * c2), 2 * c2),
                 'gamma': jnp.ones((1, 2 * c2), jnp.float32),
                 'beta': jnp.zeros((1, 2 * c2), jnp.float32)},
          'lfu': {'w': conv_w(ks[5], (2 * c2, 2 * c2), 2 * c2),
                  'gamma': jnp.ones((1, 2 * c2), jnp.float32),
                  'beta': jnp.zeros((1, 2 * c2), jnp.float32)},
          'w2': conv_w(ks[6], (c2, out_cg), c2),
      },
  }
  return params, (in_cl, in_cg, out_cl, out_cg)


# ----------------------------------------------------------------------------
# Pure-JAX (XLA) reference mirroring the PyTorch op sequence — sanity check only
# ----------------------------------------------------------------------------
def _ref_conv3x3_reflect(x, w):
  xp = jnp.pad(x, ((0, 0), (1, 1), (1, 1), (0, 0)), mode='reflect')
  return lax.conv_general_dilated(xp, w, (1, 1), 'VALID',
                                  dimension_numbers=('NHWC', 'HWIO', 'NHWC'))


def _ref_conv1x1_bn_relu(x, w, gamma, beta):
  y = jnp.einsum('nhwc,cd->nhwd', x, w)
  mu = y.mean(axis=(0, 1, 2), keepdims=True)
  var = jnp.square(y - mu).mean(axis=(0, 1, 2), keepdims=True)
  yn = (y - mu) / jnp.sqrt(var + EPS) * gamma.reshape(1, 1, 1, -1) \
      + beta.reshape(1, 1, 1, -1)
  return jnp.maximum(yn, 0.0)


def _ref_fourier_unit(x, p):
  n, h, w, c = x.shape
  ff = jnp.fft.rfftn(x, axes=(1, 2), norm='ortho')
  wr = ff.shape[2]
  ffr = jnp.stack([jnp.real(ff), jnp.imag(ff)], axis=-1).reshape(n, h, wr, 2 * c)
  y = _ref_conv1x1_bn_relu(ffr, p['w'], p['gamma'], p['beta'])
  y = y.reshape(n, h, wr, c, 2)
  comp = lax.complex(y[..., 0], y[..., 1])
  return jnp.fft.irfftn(comp, s=(h, w), axes=(1, 2),
                        norm='ortho').astype(jnp.float32)


def ffc_reference(x_l_nchw, x_g_nchw, params):
  xl = jnp.transpose(x_l_nchw, (0, 2, 3, 1))
  xg = jnp.transpose(x_g_nchw, (0, 2, 3, 1))
  n, h, w, _ = xl.shape
  out_cg = params['w_l2g'].shape[-1]
  st = params['st']
  c2 = out_cg // 2

  out_xl = _ref_conv3x3_reflect(xl, params['w_l2l']) \
      + _ref_conv3x3_reflect(xg, params['w_g2l'])
  l2g = _ref_conv3x3_reflect(xl, params['w_l2g'])

  x1 = _ref_conv1x1_bn_relu(xg, st['w1'], st['bn1_gamma'], st['bn1_beta'])
  fu_out = _ref_fourier_unit(x1, st['fu'])
  c4 = c2 // 4
  x4 = x1[..., :c4]
  xs = jnp.concatenate([x4[:, :h // 2], x4[:, h // 2:]], axis=-1)
  xs = jnp.concatenate([xs[:, :, :w // 2], xs[:, :, w // 2:]], axis=-1)
  xs = _ref_fourier_unit(xs, st['lfu'])
  xs = jnp.tile(xs, (1, 2, 2, 1))
  out_xg = l2g + jnp.einsum('nhwc,cd->nhwd', x1 + fu_out + xs, st['w2'])

  return (jnp.transpose(out_xl, (0, 3, 1, 2)),
          jnp.transpose(out_xg, (0, 3, 1, 2)))


# ----------------------------------------------------------------------------
if __name__ == "__main__":
  key = jax.random.PRNGKey(0)
  k1, k2, kp = jax.random.split(key, 3)
  N, H, W = 2, 16, 16
  IN_CH, OUT_CH = 16, 16          # ratio 0.5 -> 8 local / 8 global channels
                                  # (out_cg=8 so the LFU split has >=4 channels)

  params, (in_cl, in_cg, out_cl, out_cg) = init_ffc_params(kp, IN_CH, OUT_CH)
  x_l = jax.random.normal(k1, (N, in_cl, H, W), jnp.float32)
  x_g = jax.random.normal(k2, (N, in_cg, H, W), jnp.float32)

  fwd = jax.jit(ffc_forward)
  out_xl, out_xg = jax.block_until_ready(fwd(x_l, x_g, params))
  assert out_xl.shape == (N, out_cl, H, W) and out_xl.dtype == jnp.float32
  assert out_xg.shape == (N, out_cg, H, W) and out_xg.dtype == jnp.float32

  ref_xl, ref_xg = jax.block_until_ready(ffc_reference(x_l, x_g, params))
  np.testing.assert_allclose(np.asarray(out_xl), np.asarray(ref_xl),
                             rtol=2e-2, atol=2e-2)
  np.testing.assert_allclose(np.asarray(out_xg), np.asarray(ref_xg),
                             rtol=2e-2, atol=2e-2)

  print("KERNEL_OK")
</pallas_src>

<mosaic_0001>
module attributes {stable_mosaic.version = 11 : i64} {
  func.func @_spatial_conv_kernel(%arg0: i32, %arg1: memref<1x18x18x8xf32, #tpu.memory_space<vmem>>, %arg2: memref<1x18x18x8xf32, #tpu.memory_space<vmem>>, %arg3: memref<9x8x16xf32, #tpu.memory_space<vmem>>, %arg4: memref<9x8x16xf32, #tpu.memory_space<vmem>>, %arg5: memref<1x16x16x16xf32, #tpu.memory_space<vmem>>) attributes {dimension_semantics = [#tpu.dimension_semantics<parallel>], iteration_bounds = array<i64: 2>, scalar_prefetch = 0 : i64, scratch_operands = 0 : i64, tpu.core_type = #tpu.core_type<tc>, window_params = [{transform_indices = @transform_0, window_bounds = array<i64: 1, 18, 18, 8>}, {transform_indices = @transform_1, window_bounds = array<i64: 1, 18, 18, 8>}, {pipeline_mode = #tpu.pipeline_mode<synchronous>, transform_indices = @transform_2, window_bounds = array<i64: 9, 8, 16>}, {pipeline_mode = #tpu.pipeline_mode<synchronous>, transform_indices = @transform_3, window_bounds = array<i64: 9, 8, 16>}, {transform_indices = @transform_4, window_bounds = array<i64: 1, 16, 16, 16>}]} {
    %c0 = arith.constant 0 : index
    %c0_0 = arith.constant 0 : index
    %c0_1 = arith.constant 0 : index
    %c0_2 = arith.constant 0 : index
    %0 = vector.load %arg1[%c0, %c0_0, %c0_1, %c0_2] : memref<1x18x18x8xf32, #tpu.memory_space<vmem>>, vector<1x18x18x8xf32>
    %1 = vector.shape_cast %0 : vector<1x18x18x8xf32> to vector<18x18x8xf32>
    %c0_3 = arith.constant 0 : index
    %c0_4 = arith.constant 0 : index
    %c0_5 = arith.constant 0 : index
    %c0_6 = arith.constant 0 : index
    %2 = vector.load %arg2[%c0_3, %c0_4, %c0_5, %c0_6] : memref<1x18x18x8xf32, #tpu.memory_space<vmem>>, vector<1x18x18x8xf32>
    %3 = vector.shape_cast %2 : vector<1x18x18x8xf32> to vector<18x18x8xf32>
    %cst = arith.constant 0.000000e+00 : f32
    %4 = vector.broadcast %cst : f32 to vector<256x16xf32>
    %5 = vector.extract_strided_slice %1 {offsets = [0, 0, 0], sizes = [16, 16, 8], strides = [1, 1, 1]} : vector<18x18x8xf32> to vector<16x16x8xf32>
    %6 = vector.shape_cast %5 : vector<16x16x8xf32> to vector<256x8xf32>
    %7 = vector.extract_strided_slice %3 {offsets = [0, 0, 0], sizes = [16, 16, 8], strides = [1, 1, 1]} : vector<18x18x8xf32> to vector<16x16x8xf32>
    %8 = vector.shape_cast %7 : vector<16x16x8xf32> to vector<256x8xf32>
    %c0_7 = arith.constant 0 : index
    %c0_8 = arith.constant 0 : index
    %c0_9 = arith.constant 0 : index
    %9 = vector.load %arg3[%c0_7, %c0_8, %c0_9] : memref<9x8x16xf32, #tpu.memory_space<vmem>>, vector<1x8x16xf32>
    %10 = vector.shape_cast %9 : vector<1x8x16xf32> to vector<8x16xf32>
    %cst_10 = arith.constant dense<0.000000e+00> : vector<256x16xf32>
    %11 = tpu.matmul %6, %10, %cst_10 {dimension_numbers = #tpu.dot_dimension_numbers<[1], [0], [0], [1], [0, 0, 1, 1], [], []>} : vector<256x8xf32>, vector<8x16xf32>, vector<256x16xf32> -> vector<256x16xf32>
    %12 = arith.addf %4, %11 : vector<256x16xf32>
    %c0_11 = arith.constant 0 : index
    %c0_12 = arith.constant 0 : index
    %c0_13 = arith.constant 0 : index
    %13 = vector.load %arg4[%c0_11, %c0_12, %c0_13] : memref<9x8x16xf32, #tpu.memory_space<vmem>>, vector<1x8x16xf32>
    %14 = vector.shape_cast %13 : vector<1x8x16xf32> to vector<8x16xf32>
    %cst_14 = arith.constant dense<0.000000e+00> : vector<256x16xf32>
    %15 = tpu.matmul %8, %14, %cst_14 {dimension_numbers = #tpu.dot_dimension_numbers<[1], [0], [0], [1], [0, 0, 1, 1], [], []>} : vector<256x8xf32>, vector<8x16xf32>, vector<256x16xf32> -> vector<256x16xf32>
    %16 = arith.addf %12, %15 : vector<256x16xf32>
    %17 = vector.extract_strided_slice %1 {offsets = [0, 1, 0], sizes = [16, 16, 8], strides = [1, 1, 1]} : vector<18x18x8xf32> to vector<16x16x8xf32>
    %18 = vector.shape_cast %17 : vector<16x16x8xf32> to vector<256x8xf32>
    %19 = vector.extract_strided_slice %3 {offsets = [0, 1, 0], sizes = [16, 16, 8], strides = [1, 1, 1]} : vector<18x18x8xf32> to vector<16x16x8xf32>
    %20 = vector.shape_cast %19 : vector<16x16x8xf32> to vector<256x8xf32>
    %c1 = arith.constant 1 : index
    %c0_15 = arith.constant 0 : index
    %c0_16 = arith.constant 0 : index
    %21 = vector.load %arg3[%c1, %c0_15, %c0_16] : memref<9x8x16xf32, #tpu.memory_space<vmem>>, vector<1x8x16xf32>
    %22 = vector.shape_cast %21 : vector<1x8x16xf32> to vector<8x16xf32>
    %cst_17 = arith.constant dense<0.000000e+00> : vector<256x16xf32>
    %23 = tpu.matmul %18, %22, %cst_17 {dimension_numbers = #tpu.dot_dimension_numbers<[1], [0], [0], [1], [0, 0, 1, 1], [], []>} : vector<256x8xf32>, vector<8x16xf32>, vector<256x16xf32> -> vector<256x16xf32>
    %24 = arith.addf %16, %23 : vector<256x16xf32>
    %c1_18 = arith.constant 1 : index
    %c0_19 = arith.constant 0 : index
    %c0_20 = arith.constant 0 : index
    %25 = vector.load %arg4[%c1_18, %c0_19, %c0_20] : memref<9x8x16xf32, #tpu.memory_space<vmem>>, vector<1x8x16xf32>
    %26 = vector.shape_cast %25 : vector<1x8x16xf32> to vector<8x16xf32>
    %cst_21 = arith.constant dense<0.000000e+00> : vector<256x16xf32>
    %27 = tpu.matmul %20, %26, %cst_21 {dimension_numbers = #tpu.dot_dimension_numbers<[1], [0], [0], [1], [0, 0, 1, 1], [], []>} : vector<256x8xf32>, vector<8x16xf32>, vector<256x16xf32> -> vector<256x16xf32>
    %28 = arith.addf %24, %27 : vector<256x16xf32>
    %29 = vector.extract_strided_slice %1 {offsets = [0, 2, 0], sizes = [16, 16, 8], strides = [1, 1, 1]} : vector<18x18x8xf32> to vector<16x16x8xf32>
    %30 = vector.shape_cast %29 : vector<16x16x8xf32> to vector<256x8xf32>
    %31 = vector.extract_strided_slice %3 {offsets = [0, 2, 0], sizes = [16, 16, 8], strides = [1, 1, 1]} : vector<18x18x8xf32> to vector<16x16x8xf32>
    %32 = vector.shape_cast %31 : vector<16x16x8xf32> to vector<256x8xf32>
    %c2 = arith.constant 2 : index
    %c0_22 = arith.constant 0 : index
    %c0_23 = arith.constant 0 : index
    %33 = vector.load %arg3[%c2, %c0_22, %c0_23] : memref<9x8x16xf32, #tpu.memory_space<vmem>>, vector<1x8x16xf32>
    %34 = vector.shape_cast %33 : vector<1x8x16xf32> to vector<8x16xf32>
    %cst_24 = arith.constant dense<0.000000e+00> : vector<256x16xf32>
    %35 = tpu.matmul %30, %34, %cst_24 {dimension_numbers = #tpu.dot_dimension_numbers<[1], [0], [0], [1], [0, 0, 1, 1], [], []>} : vector<256x8xf32>, vector<8x16xf32>, vector<256x16xf32> -> vector<256x16xf32>
    %36 = arith.addf %28, %35 : vector<256x16xf32>
    %c2_25 = arith.constant 2 : index
    %c0_26 = arith.constant 0 : index
    %c0_27 = arith.constant 0 : index
    %37 = vector.load %arg4[%c2_25, %c0_26, %c0_27] : memref<9x8x16xf32, #tpu.memory_space<vmem>>, vector<1x8x16xf32>
    %38 = vector.shape_cast %37 : vector<1x8x16xf32> to vector<8x16xf32>
    %cst_28 = arith.constant dense<0.000000e+00> : vector<256x16xf32>
    %39 = tpu.matmul %32, %38, %cst_28 {dimension_numbers = #tpu.dot_dimension_numbers<[1], [0], [0], [1], [0, 0, 1, 1], [], []>} : vector<256x8xf32>, vector<8x16xf32>, vector<256x16xf32> -> vector<256x16xf32>
    %40 = arith.addf %36, %39 : vector<256x16xf32>
    %41 = vector.extract_strided_slice %1 {offsets = [1, 0, 0], sizes = [16, 16, 8], strides = [1, 1, 1]} : vector<18x18x8xf32> to vector<16x16x8xf32>
    %42 = vector.shape_cast %41 : vector<16x16x8xf32> to vector<256x8xf32>
    %43 = vector.extract_strided_slice %3 {offsets = [1, 0, 0], sizes = [16, 16, 8], strides = [1, 1, 1]} : vector<18x18x8xf32> to vector<16x16x8xf32>
    %44 = vector.shape_cast %43 : vector<16x16x8xf32> to vector<256x8xf32>
    %c3 = arith.constant 3 : index
    %c0_29 = arith.constant 0 : index
    %c0_30 = arith.constant 0 : index
    %45 = vector.load %arg3[%c3, %c0_29, %c0_30] : memref<9x8x16xf32, #tpu.memory_space<vmem>>, vector<1x8x16xf32>
    %46 = vector.shape_cast %45 : vector<1x8x16xf32> to vector<8x16xf32>
    %cst_31 = arith.constant dense<0.000000e+00> : vector<256x16xf32>
    %47 = tpu.matmul %42, %46, %cst_31 {dimension_numbers = #tpu.dot_dimension_numbers<[1], [0], [0], [1], [0, 0, 1, 1], [], []>} : vector<256x8xf32>, vector<8x16xf32>, vector<256x16xf32> -> vector<256x16xf32>
    %48 = arith.addf %40, %47 : vector<256x16xf32>
    %c3_32 = arith.constant 3 : index
    %c0_33 = arith.constant 0 : index
    %c0_34 = arith.constant 0 : index
    %49 = vector.load %arg4[%c3_32, %c0_33, %c0_34] : memref<9x8x16xf32, #tpu.memory_space<vmem>>, vector<1x8x16xf32>
    %50 = vector.shape_cast %49 : vector<1x8x16xf32> to vector<8x16xf32>
    %cst_35 = arith.constant dense<0.000000e+00> : vector<256x16xf32>
    %51 = tpu.matmul %44, %50, %cst_35 {dimension_numbers = #tpu.dot_dimension_numbers<[1], [0], [0], [1], [0, 0, 1, 1], [], []>} : vector<256x8xf32>, vector<8x16xf32>, vector<256x16xf32> -> vector<256x16xf32>
    %52 = arith.addf %48, %51 : vector<256x16xf32>
    %53 = vector.extract_strided_slice %1 {offsets = [1, 1, 0], sizes = [16, 16, 8], strides = [1, 1, 1]} : vector<18x18x8xf32> to vector<16x16x8xf32>
    %54 = vector.shape_cast %53 : vector<16x16x8xf32> to vector<256x8xf32>
    %55 = vector.extract_strided_slice %3 {offsets = [1, 1, 0], sizes = [16, 16, 8], strides = [1, 1, 1]} : vector<18x18x8xf32> to vector<16x16x8xf32>
    %56 = vector.shape_cast %55 : vector<16x16x8xf32> to vector<256x8xf32>
    %c4 = arith.constant 4 : index
    %c0_36 = arith.constant 0 : index
    %c0_37 = arith.constant 0 : index
    %57 = vector.load %arg3[%c4, %c0_36, %c0_37] : memref<9x8x16xf32, #tpu.memory_space<vmem>>, vector<1x8x16xf32>
    %58 = vector.shape_cast %57 : vector<1x8x16xf32> to vector<8x16xf32>
    %cst_38 = arith.constant dense<0.000000e+00> : vector<256x16xf32>
    %59 = tpu.matmul %54, %58, %cst_38 {dimension_numbers = #tpu.dot_dimension_numbers<[1], [0], [0], [1], [0, 0, 1, 1], [], []>} : vector<256x8xf32>, vector<8x16xf32>, vector<256x16xf32> -> vector<256x16xf32>
    %60 = arith.addf %52, %59 : vector<256x16xf32>
    %c4_39 = arith.constant 4 : index
    %c0_40 = arith.constant 0 : index
    %c0_41 = arith.constant 0 : index
    %61 = vector.load %arg4[%c4_39, %c0_40, %c0_41] : memref<9x8x16xf32, #tpu.memory_space<vmem>>, vector<1x8x16xf32>
    %62 = vector.shape_cast %61 : vector<1x8x16xf32> to vector<8x16xf32>
    %cst_42 = arith.constant dense<0.000000e+00> : vector<256x16xf32>
    %63 = tpu.matmul %56, %62, %cst_42 {dimension_numbers = #tpu.dot_dimension_numbers<[1], [0], [0], [1], [0, 0, 1, 1], [], []>} : vector<256x8xf32>, vector<8x16xf32>, vector<256x16xf32> -> vector<256x16xf32>
    %64 = arith.addf %60, %63 : vector<256x16xf32>
    %65 = vector.extract_strided_slice %1 {offsets = [1, 2, 0], sizes = [16, 16, 8], strides = [1, 1, 1]} : vector<18x18x8xf32> to vector<16x16x8xf32>
    %66 = vector.shape_cast %65 : vector<16x16x8xf32> to vector<256x8xf32>
    %67 = vector.extract_strided_slice %3 {offsets = [1, 2, 0], sizes = [16, 16, 8], strides = [1, 1, 1]} : vector<18x18x8xf32> to vector<16x16x8xf32>
    %68 = vector.shape_cast %67 : vector<16x16x8xf32> to vector<256x8xf32>
    %c5 = arith.constant 5 : index
    %c0_43 = arith.constant 0 : index
    %c0_44 = arith.constant 0 : index
    %69 = vector.load %arg3[%c5, %c0_43, %c0_44] : memref<9x8x16xf32, #tpu.memory_space<vmem>>, vector<1x8x16xf32>
    %70 = vector.shape_cast %69 : vector<1x8x16xf32> to vector<8x16xf32>
    %cst_45 = arith.constant dense<0.000000e+00> : vector<256x16xf32>
    %71 = tpu.matmul %66, %70, %cst_45 {dimension_numbers = #tpu.dot_dimension_numbers<[1], [0], [0], [1], [0, 0, 1, 1], [], []>} : vector<256x8xf32>, vector<8x16xf32>, vector<256x16xf32> -> vector<256x16xf32>
    %72 = arith.addf %64, %71 : vector<256x16xf32>
    %c5_46 = arith.constant 5 : index
    %c0_47 = arith.constant 0 : index
    %c0_48 = arith.constant 0 : index
    %73 = vector.load %arg4[%c5_46, %c0_47, %c0_48] : memref<9x8x16xf32, #tpu.memory_space<vmem>>, vector<1x8x16xf32>
    %74 = vector.shape_cast %73 : vector<1x8x16xf32> to vector<8x16xf32>
    %cst_49 = arith.constant dense<0.000000e+00> : vector<256x16xf32>
    %75 = tpu.matmul %68, %74, %cst_49 {dimension_numbers = #tpu.dot_dimension_numbers<[1], [0], [0], [1], [0, 0, 1, 1], [], []>} : vector<256x8xf32>, vector<8x16xf32>, vector<256x16xf32> -> vector<256x16xf32>
    %76 = arith.addf %72, %75 : vector<256x16xf32>
    %77 = vector.extract_strided_slice %1 {offsets = [2, 0, 0], sizes = [16, 16, 8], strides = [1, 1, 1]} : vector<18x18x8xf32> to vector<16x16x8xf32>
    %78 = vector.shape_cast %77 : vector<16x16x8xf32> to vector<256x8xf32>
    %79 = vector.extract_strided_slice %3 {offsets = [2, 0, 0], sizes = [16, 16, 8], strides = [1, 1, 1]} : vector<18x18x8xf32> to vector<16x16x8xf32>
    %80 = vector.shape_cast %79 : vector<16x16x8xf32> to vector<256x8xf32>
    %c6 = arith.constant 6 : index
    %c0_50 = arith.constant 0 : index
    %c0_51 = arith.constant 0 : index
    %81 = vector.load %arg3[%c6, %c0_50, %c0_51] : memref<9x8x16xf32, #tpu.memory_space<vmem>>, vector<1x8x16xf32>
    %82 = vector.shape_cast %81 : vector<1x8x16xf32> to vector<8x16xf32>
    %cst_52 = arith.constant dense<0.000000e+00> : vector<256x16xf32>
    %83 = tpu.matmul %78, %82, %cst_52 {dimension_numbers = #tpu.dot_dimension_numbers<[1], [0], [0], [1], [0, 0, 1, 1], [], []>} : vector<256x8xf32>, vector<8x16xf32>, vector<256x16xf32> -> vector<256x16xf32>
    %84 = arith.addf %76, %83 : vector<256x16xf32>
    %c6_53 = arith.constant 6 : index
    %c0_54 = arith.constant 0 : index
    %c0_55 = arith.constant 0 : index
    %85 = vector.load %arg4[%c6_53, %c0_54, %c0_55] : memref<9x8x16xf32, #tpu.memory_space<vmem>>, vector<1x8x16xf32>
    %86 = vector.shape_cast %85 : vector<1x8x16xf32> to vector<8x16xf32>
    %cst_56 = arith.constant dense<0.000000e+00> : vector<256x16xf32>
    %87 = tpu.matmul %80, %86, %cst_56 {dimension_numbers = #tpu.dot_dimension_numbers<[1], [0], [0], [1], [0, 0, 1, 1], [], []>} : vector<256x8xf32>, vector<8x16xf32>, vector<256x16xf32> -> vector<256x16xf32>
    %88 = arith.addf %84, %87 : vector<256x16xf32>
    %89 = vector.extract_strided_slice %1 {offsets = [2, 1, 0], sizes = [16, 16, 8], strides = [1, 1, 1]} : vector<18x18x8xf32> to vector<16x16x8xf32>
    %90 = vector.shape_cast %89 : vector<16x16x8xf32> to vector<256x8xf32>
    %91 = vector.extract_strided_slice %3 {offsets = [2, 1, 0], sizes = [16, 16, 8], strides = [1, 1, 1]} : vector<18x18x8xf32> to vector<16x16x8xf32>
    %92 = vector.shape_cast %91 : vector<16x16x8xf32> to vector<256x8xf32>
    %c7 = arith.constant 7 : index
    %c0_57 = arith.constant 0 : index
    %c0_58 = arith.constant 0 : index
    %93 = vector.load %arg3[%c7, %c0_57, %c0_58] : memref<9x8x16xf32, #tpu.memory_space<vmem>>, vector<1x8x16xf32>
    %94 = vector.shape_cast %93 : vector<1x8x16xf32> to vector<8x16xf32>
    %cst_59 = arith.constant dense<0.000000e+00> : vector<256x16xf32>
    %95 = tpu.matmul %90, %94, %cst_59 {dimension_numbers = #tpu.dot_dimension_numbers<[1], [0], [0], [1], [0, 0, 1, 1], [], []>} : vector<256x8xf32>, vector<8x16xf32>, vector<256x16xf32> -> vector<256x16xf32>
    %96 = arith.addf %88, %95 : vector<256x16xf32>
    %c7_60 = arith.constant 7 : index
    %c0_61 = arith.constant 0 : index
    %c0_62 = arith.constant 0 : index
    %97 = vector.load %arg4[%c7_60, %c0_61, %c0_62] : memref<9x8x16xf32, #tpu.memory_space<vmem>>, vector<1x8x16xf32>
    %98 = vector.shape_cast %97 : vector<1x8x16xf32> to vector<8x16xf32>
    %cst_63 = arith.constant dense<0.000000e+00> : vector<256x16xf32>
    %99 = tpu.matmul %92, %98, %cst_63 {dimension_numbers = #tpu.dot_dimension_numbers<[1], [0], [0], [1], [0, 0, 1, 1], [], []>} : vector<256x8xf32>, vector<8x16xf32>, vector<256x16xf32> -> vector<256x16xf32>
    %100 = arith.addf %96, %99 : vector<256x16xf32>
    %101 = vector.extract_strided_slice %1 {offsets = [2, 2, 0], sizes = [16, 16, 8], strides = [1, 1, 1]} : vector<18x18x8xf32> to vector<16x16x8xf32>
    %102 = vector.shape_cast %101 : vector<16x16x8xf32> to vector<256x8xf32>
    %103 = vector.extract_strided_slice %3 {offsets = [2, 2, 0], sizes = [16, 16, 8], strides = [1, 1, 1]} : vector<18x18x8xf32> to vector<16x16x8xf32>
    %104 = vector.shape_cast %103 : vector<16x16x8xf32> to vector<256x8xf32>
    %c8 = arith.constant 8 : index
    %c0_64 = arith.constant 0 : index
    %c0_65 = arith.constant 0 : index
    %105 = vector.load %arg3[%c8, %c0_64, %c0_65] : memref<9x8x16xf32, #tpu.memory_space<vmem>>, vector<1x8x16xf32>
    %106 = vector.shape_cast %105 : vector<1x8x16xf32> to vector<8x16xf32>
    %cst_66 = arith.constant dense<0.000000e+00> : vector<256x16xf32>
    %107 = tpu.matmul %102, %106, %cst_66 {dimension_numbers = #tpu.dot_dimension_numbers<[1], [0], [0], [1], [0, 0, 1, 1], [], []>} : vector<256x8xf32>, vector<8x16xf32>, vector<256x16xf32> -> vector<256x16xf32>
    %108 = arith.addf %100, %107 : vector<256x16xf32>
    %c8_67 = arith.constant 8 : index
    %c0_68 = arith.constant 0 : index
    %c0_69 = arith.constant 0 : index
    %109 = vector.load %arg4[%c8_67, %c0_68, %c0_69] : memref<9x8x16xf32, #tpu.memory_space<vmem>>, vector<1x8x16xf32>
    %110 = vector.shape_cast %109 : vector<1x8x16xf32> to vector<8x16xf32>
    %cst_70 = arith.constant dense<0.000000e+00> : vector<256x16xf32>
    %111 = tpu.matmul %104, %110, %cst_70 {dimension_numbers = #tpu.dot_dimension_numbers<[1], [0], [0], [1], [0, 0, 1, 1], [], []>} : vector<256x8xf32>, vector<8x16xf32>, vector<256x16xf32> -> vector<256x16xf32>
    %112 = arith.addf %108, %111 : vector<256x16xf32>
    %113 = vector.shape_cast %112 : vector<256x16xf32> to vector<1x16x16x16xf32>
    %c0_71 = arith.constant 0 : index
    %c0_72 = arith.constant 0 : index
    %c0_73 = arith.constant 0 : index
    %c0_74 = arith.constant 0 : index
    %114 = vector.load %arg5[%c0_71, %c0_72, %c0_73, %c0_74] : memref<1x16x16x16xf32, #tpu.memory_space<vmem>>, vector<1x16x16x16xf32>
    tpu.vector_store %arg5[%c0_71, %c0_72, %c0_73, %c0_74], %113 {strides = array<i32>} : memref<1x16x16x16xf32, #tpu.memory_space<vmem>>, vector<1x16x16x16xf32>,
    return
  }
  func.func @transform_0(%arg0: i32) -> (i32, i32, i32, i32) {
    %c0_i32 = arith.constant 0 : i32
    %c0_i32_0 = arith.constant 0 : i32
    %c0_i32_1 = arith.constant 0 : i32
    %c0_i32_2 = arith.constant 0 : i32
    return %arg0, %c0_i32, %c0_i32_0, %c0_i32_1 : i32, i32, i32, i32
  }
  func.func @transform_1(%arg0: i32) -> (i32, i32, i32, i32) {
    %c0_i32 = arith.constant 0 : i32
    %c0_i32_0 = arith.constant 0 : i32
    %c0_i32_1 = arith.constant 0 : i32
    %c0_i32_2 = arith.constant 0 : i32
    return %arg0, %c0_i32, %c0_i32_0, %c0_i32_1 : i32, i32, i32, i32
  }
  func.func @transform_2(%arg0: i32) -> (i32, i32, i32) {
    %c0_i32 = arith.constant 0 : i32
    %c0_i32_0 = arith.constant 0 : i32
    %c0_i32_1 = arith.constant 0 : i32
    %c0_i32_2 = arith.constant 0 : i32
    return %c0_i32, %c0_i32_0, %c0_i32_1 : i32, i32, i32
  }
  func.func @transform_3(%arg0: i32) -> (i32, i32, i32) {
    %c0_i32 = arith.constant 0 : i32
    %c0_i32_0 = arith.constant 0 : i32
    %c0_i32_1 = arith.constant 0 : i32
    %c0_i32_2 = arith.constant 0 : i32
    return %c0_i32, %c0_i32_0, %c0_i32_1 : i32, i32, i32
  }
  func.func @transform_4(%arg0: i32) -> (i32, i32, i32, i32) {
    %c0_i32 = arith.constant 0 : i32
    %c0_i32_0 = arith.constant 0 : i32
    %c0_i32_1 = arith.constant 0 : i32
    %c0_i32_2 = arith.constant 0 : i32
    return %arg0, %c0_i32, %c0_i32_0, %c0_i32_1 : i32, i32, i32, i32
  }
}

module attributes {stable_mosaic.version = 11 : i64} {
  func.func @_matmul_stats_kernel(%arg0: i32, %arg1: memref<128x8xf32, #tpu.memory_space<vmem>>, %arg2: memref<8x4xf32, #tpu.memory_space<vmem>>, %arg3: memref<1x4xf32, #tpu.memory_space<vmem>>, %arg4: memref<1x4xf32, #tpu.memory_space<vmem>>) attributes {dimension_semantics = [#tpu.dimension_semantics<arbitrary>], iteration_bounds = array<i64: 4>, scalar_prefetch = 0 : i64, scratch_operands = 0 : i64, tpu.core_type = #tpu.core_type<tc>, window_params = [{transform_indices = @transform_0, window_bounds = array<i64: 128, 8>}, {pipeline_mode = #tpu.pipeline_mode<synchronous>, transform_indices = @transform_1, window_bounds = array<i64: 8, 4>}, {pipeline_mode = #tpu.pipeline_mode<synchronous>, transform_indices = @transform_2, window_bounds = array<i64: 1, 4>}, {pipeline_mode = #tpu.pipeline_mode<synchronous>, transform_indices = @transform_3, window_bounds = array<i64: 1, 4>}]} {
    %c0_i32 = arith.constant 0 : i32
    %0 = arith.cmpi eq, %arg0, %c0_i32 : i32
    %1 = arith.extui %0 : i1 to i32
    %c0_i32_0 = arith.constant 0 : i32
    %2 = arith.cmpi ne, %1, %c0_i32_0 : i32
    scf.if %2 {
      %cst_14 = arith.constant 0.000000e+00 : f32
      %17 = vector.broadcast %cst_14 : f32 to vector<1x4xf32>
      %c0_15 = arith.constant 0 : index
      %c0_16 = arith.constant 0 : index
      %18 = vector.load %arg3[%c0_15, %c0_16] : memref<1x4xf32, #tpu.memory_space<vmem>>, vector<1x4xf32>
      tpu.vector_store %arg3[%c0_15, %c0_16], %17 {strides = array<i32>} : memref<1x4xf32, #tpu.memory_space<vmem>>, vector<1x4xf32>,
      %cst_17 = arith.constant 0.000000e+00 : f32
      %19 = vector.broadcast %cst_17 : f32 to vector<1x4xf32>
      %c0_18 = arith.constant 0 : index
      %c0_19 = arith.constant 0 : index
      %20 = vector.load %arg4[%c0_18, %c0_19] : memref<1x4xf32, #tpu.memory_space<vmem>>, vector<1x4xf32>
      tpu.vector_store %arg4[%c0_18, %c0_19], %19 {strides = array<i32>} : memref<1x4xf32, #tpu.memory_space<vmem>>, vector<1x4xf32>,
    } else {
    }
    %c0 = arith.constant 0 : index
    %c0_1 = arith.constant 0 : index
    %3 = vector.load %arg1[%c0, %c0_1] : memref<128x8xf32, #tpu.memory_space<vmem>>, vector<128x8xf32>
    %c0_2 = arith.constant 0 : index
    %c0_3 = arith.constant 0 : index
    %4 = vector.load %arg2[%c0_2, %c0_3] : memref<8x4xf32, #tpu.memory_space<vmem>>, vector<8x4xf32>
    %cst = arith.constant dense<0.000000e+00> : vector<128x4xf32>
    %5 = tpu.matmul %3, %4, %cst {dimension_numbers = #tpu.dot_dimension_numbers<[1], [0], [0], [1], [0, 0, 1, 1], [], []>} : vector<128x8xf32>, vector<8x4xf32>, vector<128x4xf32> -> vector<128x4xf32>
    %c0_4 = arith.constant 0 : index
    %c0_5 = arith.constant 0 : index
    %6 = vector.load %arg3[%c0_4, %c0_5] : memref<1x4xf32, #tpu.memory_space<vmem>>, vector<1x4xf32>
    %cst_6 = arith.constant dense<0.000000e+00> : vector<4xf32>
    %7 = vector.multi_reduction <add>, %5, %cst_6 [0] : vector<128x4xf32> to vector<4xf32>
    %8 = vector.shape_cast %7 : vector<4xf32> to vector<1x4xf32>
    %9 = arith.addf %6, %8 : vector<1x4xf32>
    %c0_7 = arith.constant 0 : index
    %c0_8 = arith.constant 0 : index
    %10 = vector.load %arg3[%c0_7, %c0_8] : memref<1x4xf32, #tpu.memory_space<vmem>>, vector<1x4xf32>
    tpu.vector_store %arg3[%c0_7, %c0_8], %9 {strides = array<i32>} : memref<1x4xf32, #tpu.memory_space<vmem>>, vector<1x4xf32>,
    %c0_9 = arith.constant 0 : index
    %c0_10 = arith.constant 0 : index
    %11 = vector.load %arg4[%c0_9, %c0_10] : memref<1x4xf32, #tpu.memory_space<vmem>>, vector<1x4xf32>
    %12 = arith.mulf %5, %5 : vector<128x4xf32>
    %cst_11 = arith.constant dense<0.000000e+00> : vector<4xf32>
    %13 = vector.multi_reduction <add>, %12, %cst_11 [0] : vector<128x4xf32> to vector<4xf32>
    %14 = vector.shape_cast %13 : vector<4xf32> to vector<1x4xf32>
    %15 = arith.addf %11, %14 : vector<1x4xf32>
    %c0_12 = arith.constant 0 : index
    %c0_13 = arith.constant 0 : index
    %16 = vector.load %arg4[%c0_12, %c0_13] : memref<1x4xf32, #tpu.memory_space<vmem>>, vector<1x4xf32>
    tpu.vector_store %arg4[%c0_12, %c0_13], %15 {strides = array<i32>} : memref<1x4xf32, #tpu.memory_space<vmem>>, vector<1x4xf32>,
    return
  }
  func.func @transform_0(%arg0: i32) -> (i32, i32) {
    %c0_i32 = arith.constant 0 : i32
    %c0_i32_0 = arith.constant 0 : i32
    return %arg0, %c0_i32 : i32, i32
  }
  func.func @transform_1(%arg0: i32) -> (i32, i32) {
    %c0_i32 = arith.constant 0 : i32
    %c0_i32_0 = arith.constant 0 : i32
    %c0_i32_1 = arith.constant 0 : i32
    return %c0_i32, %c0_i32_0 : i32, i32
  }
  func.func @transform_2(%arg0: i32) -> (i32, i32) {
    %c0_i32 = arith.constant 0 : i32
    %c0_i32_0 = arith.constant 0 : i32
    %c0_i32_1 = arith.constant 0 : i32
    return %c0_i32, %c0_i32_0 : i32, i32
  }
  func.func @transform_3(%arg0: i32) -> (i32, i32) {
    %c0_i32 = arith.constant 0 : i32
    %c0_i32_0 = arith.constant 0 : i32
    %c0_i32_1 = arith.constant 0 : i32
    return %c0_i32, %c0_i32_0 : i32, i32
  }
}

module attributes {stable_mosaic.version = 11 : i64} {
  func.func @_matmul_bn_relu_kernel(%arg0: i32, %arg1: memref<128x8xf32, #tpu.memory_space<vmem>>, %arg2: memref<8x4xf32, #tpu.memory_space<vmem>>, %arg3: memref<1x4xf32, #tpu.memory_space<vmem>>, %arg4: memref<1x4xf32, #tpu.memory_space<vmem>>, %arg5: memref<128x4xf32, #tpu.memory_space<vmem>>) attributes {dimension_semantics = [#tpu.dimension_semantics<parallel>], iteration_bounds = array<i64: 4>, scalar_prefetch = 0 : i64, scratch_operands = 0 : i64, tpu.core_type = #tpu.core_type<tc>, window_params = [{transform_indices = @transform_0, window_bounds = array<i64: 128, 8>}, {pipeline_mode = #tpu.pipeline_mode<synchronous>, transform_indices = @transform_1, window_bounds = array<i64: 8, 4>}, {pipeline_mode = #tpu.pipeline_mode<synchronous>, transform_indices = @transform_2, window_bounds = array<i64: 1, 4>}, {pipeline_mode = #tpu.pipeline_mode<synchronous>, transform_indices = @transform_3, window_bounds = array<i64: 1, 4>}, {transform_indices = @transform_4, window_bounds = array<i64: 128, 4>}]} {
    %c0 = arith.constant 0 : index
    %c0_0 = arith.constant 0 : index
    %0 = vector.load %arg1[%c0, %c0_0] : memref<128x8xf32, #tpu.memory_space<vmem>>, vector<128x8xf32>
    %c0_1 = arith.constant 0 : index
    %c0_2 = arith.constant 0 : index
    %1 = vector.load %arg2[%c0_1, %c0_2] : memref<8x4xf32, #tpu.memory_space<vmem>>, vector<8x4xf32>
    %cst = arith.constant dense<0.000000e+00> : vector<128x4xf32>
    %2 = tpu.matmul %0, %1, %cst {dimension_numbers = #tpu.dot_dimension_numbers<[1], [0], [0], [1], [0, 0, 1, 1], [], []>} : vector<128x8xf32>, vector<8x4xf32>, vector<128x4xf32> -> vector<128x4xf32>
    %c0_3 = arith.constant 0 : index
    %c0_4 = arith.constant 0 : index
    %3 = vector.load %arg3[%c0_3, %c0_4] : memref<1x4xf32, #tpu.memory_space<vmem>>, vector<1x4xf32>
    %4 = vector.broadcast %3 : vector<1x4xf32> to vector<128x4xf32>
    %5 = arith.mulf %2, %4 : vector<128x4xf32>
    %c0_5 = arith.constant 0 : index
    %c0_6 = arith.constant 0 : index
    %6 = vector.load %arg4[%c0_5, %c0_6] : memref<1x4xf32, #tpu.memory_space<vmem>>, vector<1x4xf32>
    %7 = vector.broadcast %6 : vector<1x4xf32> to vector<128x4xf32>
    %8 = arith.addf %5, %7 : vector<128x4xf32>
    %cst_7 = arith.constant 0.000000e+00 : f32
    %9 = vector.broadcast %cst_7 : f32 to vector<128x4xf32>
    %10 = arith.maximumf %8, %9 : vector<128x4xf32>
    %c0_8 = arith.constant 0 : index
    %c0_9 = arith.constant 0 : index
    %11 = vector.load %arg5[%c0_8, %c0_9] : memref<128x4xf32, #tpu.memory_space<vmem>>, vector<128x4xf32>
    tpu.vector_store %arg5[%c0_8, %c0_9], %10 {strides = array<i32>} : memref<128x4xf32, #tpu.memory_space<vmem>>, vector<128x4xf32>,
    return
  }
  func.func @transform_0(%arg0: i32) -> (i32, i32) {
    %c0_i32 = arith.constant 0 : i32
    %c0_i32_0 = arith.constant 0 : i32
    return %arg0, %c0_i32 : i32, i32
  }
  func.func @transform_1(%arg0: i32) -> (i32, i32) {
    %c0_i32 = arith.constant 0 : i32
    %c0_i32_0 = arith.constant 0 : i32
    %c0_i32_1 = arith.constant 0 : i32
    return %c0_i32, %c0_i32_0 : i32, i32
  }
  func.func @transform_2(%arg0: i32) -> (i32, i32) {
    %c0_i32 = arith.constant 0 : i32
    %c0_i32_0 = arith.constant 0 : i32
    %c0_i32_1 = arith.constant 0 : i32
    return %c0_i32, %c0_i32_0 : i32, i32
  }
  func.func @transform_3(%arg0: i32) -> (i32, i32) {
    %c0_i32 = arith.constant 0 : i32
    %c0_i32_0 = arith.constant 0 : i32
    %c0_i32_1 = arith.constant 0 : i32
    return %c0_i32, %c0_i32_0 : i32, i32
  }
  func.func @transform_4(%arg0: i32) -> (i32, i32) {
    %c0_i32 = arith.constant 0 : i32
    %c0_i32_0 = arith.constant 0 : i32
    return %arg0, %c0_i32 : i32, i32
  }
}

module attributes {stable_mosaic.version = 11 : i64} {
  func.func @_matmul_stats_kernel(%arg0: i32, %arg1: memref<128x8xf32, #tpu.memory_space<vmem>>, %arg2: memref<8x8xf32, #tpu.memory_space<vmem>>, %arg3: memref<1x8xf32, #tpu.memory_space<vmem>>, %arg4: memref<1x8xf32, #tpu.memory_space<vmem>>) attributes {dimension_semantics = [#tpu.dimension_semantics<arbitrary>], iteration_bounds = array<i64: 3>, scalar_prefetch = 0 : i64, scratch_operands = 0 : i64, tpu.core_type = #tpu.core_type<tc>, window_params = [{transform_indices = @transform_0, window_bounds = array<i64: 128, 8>}, {pipeline_mode = #tpu.pipeline_mode<synchronous>, transform_indices = @transform_1, window_bounds = array<i64: 8, 8>}, {pipeline_mode = #tpu.pipeline_mode<synchronous>, transform_indices = @transform_2, window_bounds = array<i64: 1, 8>}, {pipeline_mode = #tpu.pipeline_mode<synchronous>, transform_indices = @transform_3, window_bounds = array<i64: 1, 8>}]} {
    %c0_i32 = arith.constant 0 : i32
    %0 = arith.cmpi eq, %arg0, %c0_i32 : i32
    %1 = arith.extui %0 : i1 to i32
    %c0_i32_0 = arith.constant 0 : i32
    %2 = arith.cmpi ne, %1, %c0_i32_0 : i32
    scf.if %2 {
      %cst_14 = arith.constant 0.000000e+00 : f32
      %17 = vector.broadcast %cst_14 : f32 to vector<1x8xf32>
      %c0_15 = arith.constant 0 : index
      %c0_16 = arith.constant 0 : index
      %18 = vector.load %arg3[%c0_15, %c0_16] : memref<1x8xf32, #tpu.memory_space<vmem>>, vector<1x8xf32>
      tpu.vector_store %arg3[%c0_15, %c0_16], %17 {strides = array<i32>} : memref<1x8xf32, #tpu.memory_space<vmem>>, vector<1x8xf32>,
      %cst_17 = arith.constant 0.000000e+00 : f32
      %19 = vector.broadcast %cst_17 : f32 to vector<1x8xf32>
      %c0_18 = arith.constant 0 : index
      %c0_19 = arith.constant 0 : index
      %20 = vector.load %arg4[%c0_18, %c0_19] : memref<1x8xf32, #tpu.memory_space<vmem>>, vector<1x8xf32>
      tpu.vector_store %arg4[%c0_18, %c0_19], %19 {strides = array<i32>} : memref<1x8xf32, #tpu.memory_space<vmem>>, vector<1x8xf32>,
    } else {
    }
    %c0 = arith.constant 0 : index
    %c0_1 = arith.constant 0 : index
    %3 = vector.load %arg1[%c0, %c0_1] : memref<128x8xf32, #tpu.memory_space<vmem>>, vector<128x8xf32>
    %c0_2 = arith.constant 0 : index
    %c0_3 = arith.constant 0 : index
    %4 = vector.load %arg2[%c0_2, %c0_3] : memref<8x8xf32, #tpu.memory_space<vmem>>, vector<8x8xf32>
    %cst = arith.constant dense<0.000000e+00> : vector<128x8xf32>
    %5 = tpu.matmul %3, %4, %cst {dimension_numbers = #tpu.dot_dimension_numbers<[1], [0], [0], [1], [0, 0, 1, 1], [], []>} : vector<128x8xf32>, vector<8x8xf32>, vector<128x8xf32> -> vector<128x8xf32>
    %c0_4 = arith.constant 0 : index
    %c0_5 = arith.constant 0 : index
    %6 = vector.load %arg3[%c0_4, %c0_5] : memref<1x8xf32, #tpu.memory_space<vmem>>, vector<1x8xf32>
    %cst_6 = arith.constant dense<0.000000e+00> : vector<8xf32>
    %7 = vector.multi_reduction <add>, %5, %cst_6 [0] : vector<128x8xf32> to vector<8xf32>
    %8 = vector.shape_cast %7 : vector<8xf32> to vector<1x8xf32>
    %9 = arith.addf %6, %8 : vector<1x8xf32>
    %c0_7 = arith.constant 0 : index
    %c0_8 = arith.constant 0 : index
    %10 = vector.load %arg3[%c0_7, %c0_8] : memref<1x8xf32, #tpu.memory_space<vmem>>, vector<1x8xf32>
    tpu.vector_store %arg3[%c0_7, %c0_8], %9 {strides = array<i32>} : memref<1x8xf32, #tpu.memory_space<vmem>>, vector<1x8xf32>,
    %c0_9 = arith.constant 0 : index
    %c0_10 = arith.constant 0 : index
    %11 = vector.load %arg4[%c0_9, %c0_10] : memref<1x8xf32, #tpu.memory_space<vmem>>, vector<1x8xf32>
    %12 = arith.mulf %5, %5 : vector<128x8xf32>
    %cst_11 = arith.constant dense<0.000000e+00> : vector<8xf32>
    %13 = vector.multi_reduction <add>, %12, %cst_11 [0] : vector<128x8xf32> to vector<8xf32>
    %14 = vector.shape_cast %13 : vector<8xf32> to vector<1x8xf32>
    %15 = arith.addf %11, %14 : vector<1x8xf32>
    %c0_12 = arith.constant 0 : index
    %c0_13 = arith.constant 0 : index
    %16 = vector.load %arg4[%c0_12, %c0_13] : memref<1x8xf32, #tpu.memory_space<vmem>>, vector<1x8xf32>
    tpu.vector_store %arg4[%c0_12, %c0_13], %15 {strides = array<i32>} : memref<1x8xf32, #tpu.memory_space<vmem>>, vector<1x8xf32>,
    return
  }
  func.func @transform_0(%arg0: i32) -> (i32, i32) {
    %c0_i32 = arith.constant 0 : i32
    %c0_i32_0 = arith.constant 0 : i32
    return %arg0, %c0_i32 : i32, i32
  }
  func.func @transform_1(%arg0: i32) -> (i32, i32) {
    %c0_i32 = arith.constant 0 : i32
    %c0_i32_0 = arith.constant 0 : i32
    %c0_i32_1 = arith.constant 0 : i32
    return %c0_i32, %c0_i32_0 : i32, i32
  }
  func.func @transform_2(%arg0: i32) -> (i32, i32) {
    %c0_i32 = arith.constant 0 : i32
    %c0_i32_0 = arith.constant 0 : i32
    %c0_i32_1 = arith.constant 0 : i32
    return %c0_i32, %c0_i32_0 : i32, i32
  }
  func.func @transform_3(%arg0: i32) -> (i32, i32) {
    %c0_i32 = arith.constant 0 : i32
    %c0_i32_0 = arith.constant 0 : i32
    %c0_i32_1 = arith.constant 0 : i32
    return %c0_i32, %c0_i32_0 : i32, i32
  }
}

module attributes {stable_mosaic.version = 11 : i64} {
  func.func @_matmul_bn_relu_kernel(%arg0: i32, %arg1: memref<128x8xf32, #tpu.memory_space<vmem>>, %arg2: memref<8x8xf32, #tpu.memory_space<vmem>>, %arg3: memref<1x8xf32, #tpu.memory_space<vmem>>, %arg4: memref<1x8xf32, #tpu.memory_space<vmem>>, %arg5: memref<128x8xf32, #tpu.memory_space<vmem>>) attributes {dimension_semantics = [#tpu.dimension_semantics<parallel>], iteration_bounds = array<i64: 3>, scalar_prefetch = 0 : i64, scratch_operands = 0 : i64, tpu.core_type = #tpu.core_type<tc>, window_params = [{transform_indices = @transform_0, window_bounds = array<i64: 128, 8>}, {pipeline_mode = #tpu.pipeline_mode<synchronous>, transform_indices = @transform_1, window_bounds = array<i64: 8, 8>}, {pipeline_mode = #tpu.pipeline_mode<synchronous>, transform_indices = @transform_2, window_bounds = array<i64: 1, 8>}, {pipeline_mode = #tpu.pipeline_mode<synchronous>, transform_indices = @transform_3, window_bounds = array<i64: 1, 8>}, {transform_indices = @transform_4, window_bounds = array<i64: 128, 8>}]} {
    %c0 = arith.constant 0 : index
    %c0_0 = arith.constant 0 : index
    %0 = vector.load %arg1[%c0, %c0_0] : memref<128x8xf32, #tpu.memory_space<vmem>>, vector<128x8xf32>
    %c0_1 = arith.constant 0 : index
    %c0_2 = arith.constant 0 : index
    %1 = vector.load %arg2[%c0_1, %c0_2] : memref<8x8xf32, #tpu.memory_space<vmem>>, vector<8x8xf32>
    %cst = arith.constant dense<0.000000e+00> : vector<128x8xf32>
    %2 = tpu.matmul %0, %1, %cst {dimension_numbers = #tpu.dot_dimension_numbers<[1], [0], [0], [1], [0, 0, 1, 1], [], []>} : vector<128x8xf32>, vector<8x8xf32>, vector<128x8xf32> -> vector<128x8xf32>
    %c0_3 = arith.constant 0 : index
    %c0_4 = arith.constant 0 : index
    %3 = vector.load %arg3[%c0_3, %c0_4] : memref<1x8xf32, #tpu.memory_space<vmem>>, vector<1x8xf32>
    %4 = vector.broadcast %3 : vector<1x8xf32> to vector<128x8xf32>
    %5 = arith.mulf %2, %4 : vector<128x8xf32>
    %c0_5 = arith.constant 0 : index
    %c0_6 = arith.constant 0 : index
    %6 = vector.load %arg4[%c0_5, %c0_6] : memref<1x8xf32, #tpu.memory_space<vmem>>, vector<1x8xf32>
    %7 = vector.broadcast %6 : vector<1x8xf32> to vector<128x8xf32>
    %8 = arith.addf %5, %7 : vector<128x8xf32>
    %cst_7 = arith.constant 0.000000e+00 : f32
    %9 = vector.broadcast %cst_7 : f32 to vector<128x8xf32>
    %10 = arith.maximumf %8, %9 : vector<128x8xf32>
    %c0_8 = arith.constant 0 : index
    %c0_9 = arith.constant 0 : index
    %11 = vector.load %arg5[%c0_8, %c0_9] : memref<128x8xf32, #tpu.memory_space<vmem>>, vector<128x8xf32>
    tpu.vector_store %arg5[%c0_8, %c0_9], %10 {strides = array<i32>} : memref<128x8xf32, #tpu.memory_space<vmem>>, vector<128x8xf32>,
    return
  }
  func.func @transform_0(%arg0: i32) -> (i32, i32) {
    %c0_i32 = arith.constant 0 : i32
    %c0_i32_0 = arith.constant 0 : i32
    return %arg0, %c0_i32 : i32, i32
  }
  func.func @transform_1(%arg0: i32) -> (i32, i32) {
    %c0_i32 = arith.constant 0 : i32
    %c0_i32_0 = arith.constant 0 : i32
    %c0_i32_1 = arith.constant 0 : i32
    return %c0_i32, %c0_i32_0 : i32, i32
  }
  func.func @transform_2(%arg0: i32) -> (i32, i32) {
    %c0_i32 = arith.constant 0 : i32
    %c0_i32_0 = arith.constant 0 : i32
    %c0_i32_1 = arith.constant 0 : i32
    return %c0_i32, %c0_i32_0 : i32, i32
  }
  func.func @transform_3(%arg0: i32) -> (i32, i32) {
    %c0_i32 = arith.constant 0 : i32
    %c0_i32_0 = arith.constant 0 : i32
    %c0_i32_1 = arith.constant 0 : i32
    return %c0_i32, %c0_i32_0 : i32, i32
  }
  func.func @transform_4(%arg0: i32) -> (i32, i32) {
    %c0_i32 = arith.constant 0 : i32
    %c0_i32_0 = arith.constant 0 : i32
    return %arg0, %c0_i32 : i32, i32
  }
}

module attributes {stable_mosaic.version = 11 : i64} {
  func.func @_matmul_stats_kernel(%arg0: i32, %arg1: memref<80x8xf32, #tpu.memory_space<vmem>>, %arg2: memref<8x8xf32, #tpu.memory_space<vmem>>, %arg3: memref<1x8xf32, #tpu.memory_space<vmem>>, %arg4: memref<1x8xf32, #tpu.memory_space<vmem>>) attributes {dimension_semantics = [#tpu.dimension_semantics<arbitrary>], iteration_bounds = array<i64: 1>, scalar_prefetch = 0 : i64, scratch_operands = 0 : i64, tpu.core_type = #tpu.core_type<tc>, window_params = [{transform_indices = @transform_0, window_bounds = array<i64: 80, 8>}, {pipeline_mode = #tpu.pipeline_mode<synchronous>, transform_indices = @transform_1, window_bounds = array<i64: 8, 8>}, {pipeline_mode = #tpu.pipeline_mode<synchronous>, transform_indices = @transform_2, window_bounds = array<i64: 1, 8>}, {pipeline_mode = #tpu.pipeline_mode<synchronous>, transform_indices = @transform_3, window_bounds = array<i64: 1, 8>}]} {
    %c0_i32 = arith.constant 0 : i32
    %0 = arith.cmpi eq, %arg0, %c0_i32 : i32
    %1 = arith.extui %0 : i1 to i32
    %c0_i32_0 = arith.constant 0 : i32
    %2 = arith.cmpi ne, %1, %c0_i32_0 : i32
    scf.if %2 {
      %cst_14 = arith.constant 0.000000e+00 : f32
      %17 = vector.broadcast %cst_14 : f32 to vector<1x8xf32>
      %c0_15 = arith.constant 0 : index
      %c0_16 = arith.constant 0 : index
      %18 = vector.load %arg3[%c0_15, %c0_16] : memref<1x8xf32, #tpu.memory_space<vmem>>, vector<1x8xf32>
      tpu.vector_store %arg3[%c0_15, %c0_16], %17 {strides = array<i32>} : memref<1x8xf32, #tpu.memory_space<vmem>>, vector<1x8xf32>,
      %cst_17 = arith.constant 0.000000e+00 : f32
      %19 = vector.broadcast %cst_17 : f32 to vector<1x8xf32>
      %c0_18 = arith.constant 0 : index
      %c0_19 = arith.constant 0 : index
      %20 = vector.load %arg4[%c0_18, %c0_19] : memref<1x8xf32, #tpu.memory_space<vmem>>, vector<1x8xf32>
      tpu.vector_store %arg4[%c0_18, %c0_19], %19 {strides = array<i32>} : memref<1x8xf32, #tpu.memory_space<vmem>>, vector<1x8xf32>,
    } else {
    }
    %c0 = arith.constant 0 : index
    %c0_1 = arith.constant 0 : index
    %3 = vector.load %arg1[%c0, %c0_1] : memref<80x8xf32, #tpu.memory_space<vmem>>, vector<80x8xf32>
    %c0_2 = arith.constant 0 : index
    %c0_3 = arith.constant 0 : index
    %4 = vector.load %arg2[%c0_2, %c0_3] : memref<8x8xf32, #tpu.memory_space<vmem>>, vector<8x8xf32>
    %cst = arith.constant dense<0.000000e+00> : vector<80x8xf32>
    %5 = tpu.matmul %3, %4, %cst {dimension_numbers = #tpu.dot_dimension_numbers<[1], [0], [0], [1], [0, 0, 1, 1], [], []>} : vector<80x8xf32>, vector<8x8xf32>, vector<80x8xf32> -> vector<80x8xf32>
    %c0_4 = arith.constant 0 : index
    %c0_5 = arith.constant 0 : index
    %6 = vector.load %arg3[%c0_4, %c0_5] : memref<1x8xf32, #tpu.memory_space<vmem>>, vector<1x8xf32>
    %cst_6 = arith.constant dense<0.000000e+00> : vector<8xf32>
    %7 = vector.multi_reduction <add>, %5, %cst_6 [0] : vector<80x8xf32> to vector<8xf32>
    %8 = vector.shape_cast %7 : vector<8xf32> to vector<1x8xf32>
    %9 = arith.addf %6, %8 : vector<1x8xf32>
    %c0_7 = arith.constant 0 : index
    %c0_8 = arith.constant 0 : index
    %10 = vector.load %arg3[%c0_7, %c0_8] : memref<1x8xf32, #tpu.memory_space<vmem>>, vector<1x8xf32>
    tpu.vector_store %arg3[%c0_7, %c0_8], %9 {strides = array<i32>} : memref<1x8xf32, #tpu.memory_space<vmem>>, vector<1x8xf32>,
    %c0_9 = arith.constant 0 : index
    %c0_10 = arith.constant 0 : index
    %11 = vector.load %arg4[%c0_9, %c0_10] : memref<1x8xf32, #tpu.memory_space<vmem>>, vector<1x8xf32>
    %12 = arith.mulf %5, %5 : vector<80x8xf32>
    %cst_11 = arith.constant dense<0.000000e+00> : vector<8xf32>
    %13 = vector.multi_reduction <add>, %12, %cst_11 [0] : vector<80x8xf32> to vector<8xf32>
    %14 = vector.shape_cast %13 : vector<8xf32> to vector<1x8xf32>
    %15 = arith.addf %11, %14 : vector<1x8xf32>
    %c0_12 = arith.constant 0 : index
    %c0_13 = arith.constant 0 : index
    %16 = vector.load %arg4[%c0_12, %c0_13] : memref<1x8xf32, #tpu.memory_space<vmem>>, vector<1x8xf32>
    tpu.vector_store %arg4[%c0_12, %c0_13], %15 {strides = array<i32>} : memref<1x8xf32, #tpu.memory_space<vmem>>, vector<1x8xf32>,
    return
  }
  func.func @transform_0(%arg0: i32) -> (i32, i32) {
    %c0_i32 = arith.constant 0 : i32
    %c0_i32_0 = arith.constant 0 : i32
    return %arg0, %c0_i32 : i32, i32
  }
  func.func @transform_1(%arg0: i32) -> (i32, i32) {
    %c0_i32 = arith.constant 0 : i32
    %c0_i32_0 = arith.constant 0 : i32
    %c0_i32_1 = arith.constant 0 : i32
    return %c0_i32, %c0_i32_0 : i32, i32
  }
  func.func @transform_2(%arg0: i32) -> (i32, i32) {
    %c0_i32 = arith.constant 0 : i32
    %c0_i32_0 = arith.constant 0 : i32
    %c0_i32_1 = arith.constant 0 : i32
    return %c0_i32, %c0_i32_0 : i32, i32
  }
  func.func @transform_3(%arg0: i32) -> (i32, i32) {
    %c0_i32 = arith.constant 0 : i32
    %c0_i32_0 = arith.constant 0 : i32
    %c0_i32_1 = arith.constant 0 : i32
    return %c0_i32, %c0_i32_0 : i32, i32
  }
}

module attributes {stable_mosaic.version = 11 : i64} {
  func.func @_matmul_bn_relu_kernel(%arg0: i32, %arg1: memref<80x8xf32, #tpu.memory_space<vmem>>, %arg2: memref<8x8xf32, #tpu.memory_space<vmem>>, %arg3: memref<1x8xf32, #tpu.memory_space<vmem>>, %arg4: memref<1x8xf32, #tpu.memory_space<vmem>>, %arg5: memref<80x8xf32, #tpu.memory_space<vmem>>) attributes {dimension_semantics = [#tpu.dimension_semantics<parallel>], iteration_bounds = array<i64: 1>, scalar_prefetch = 0 : i64, scratch_operands = 0 : i64, tpu.core_type = #tpu.core_type<tc>, window_params = [{transform_indices = @transform_0, window_bounds = array<i64: 80, 8>}, {pipeline_mode = #tpu.pipeline_mode<synchronous>, transform_indices = @transform_1, window_bounds = array<i64: 8, 8>}, {pipeline_mode = #tpu.pipeline_mode<synchronous>, transform_indices = @transform_2, window_bounds = array<i64: 1, 8>}, {pipeline_mode = #tpu.pipeline_mode<synchronous>, transform_indices = @transform_3, window_bounds = array<i64: 1, 8>}, {transform_indices = @transform_4, window_bounds = array<i64: 80, 8>}]} {
    %c0 = arith.constant 0 : index
    %c0_0 = arith.constant 0 : index
    %0 = vector.load %arg1[%c0, %c0_0] : memref<80x8xf32, #tpu.memory_space<vmem>>, vector<80x8xf32>
    %c0_1 = arith.constant 0 : index
    %c0_2 = arith.constant 0 : index
    %1 = vector.load %arg2[%c0_1, %c0_2] : memref<8x8xf32, #tpu.memory_space<vmem>>, vector<8x8xf32>
    %cst = arith.constant dense<0.000000e+00> : vector<80x8xf32>
    %2 = tpu.matmul %0, %1, %cst {dimension_numbers = #tpu.dot_dimension_numbers<[1], [0], [0], [1], [0, 0, 1, 1], [], []>} : vector<80x8xf32>, vector<8x8xf32>, vector<80x8xf32> -> vector<80x8xf32>
    %c0_3 = arith.constant 0 : index
    %c0_4 = arith.constant 0 : index
    %3 = vector.load %arg3[%c0_3, %c0_4] : memref<1x8xf32, #tpu.memory_space<vmem>>, vector<1x8xf32>
    %4 = vector.broadcast %3 : vector<1x8xf32> to vector<80x8xf32>
    %5 = arith.mulf %2, %4 : vector<80x8xf32>
    %c0_5 = arith.constant 0 : index
    %c0_6 = arith.constant 0 : index
    %6 = vector.load %arg4[%c0_5, %c0_6] : memref<1x8xf32, #tpu.memory_space<vmem>>, vector<1x8xf32>
    %7 = vector.broadcast %6 : vector<1x8xf32> to vector<80x8xf32>
    %8 = arith.addf %5, %7 : vector<80x8xf32>
    %cst_7 = arith.constant 0.000000e+00 : f32
    %9 = vector.broadcast %cst_7 : f32 to vector<80x8xf32>
    %10 = arith.maximumf %8, %9 : vector<80x8xf32>
    %c0_8 = arith.constant 0 : index
    %c0_9 = arith.constant 0 : index
    %11 = vector.load %arg5[%c0_8, %c0_9] : memref<80x8xf32, #tpu.memory_space<vmem>>, vector<80x8xf32>
    tpu.vector_store %arg5[%c0_8, %c0_9], %10 {strides = array<i32>} : memref<80x8xf32, #tpu.memory_space<vmem>>, vector<80x8xf32>,
    return
  }
  func.func @transform_0(%arg0: i32) -> (i32, i32) {
    %c0_i32 = arith.constant 0 : i32
    %c0_i32_0 = arith.constant 0 : i32
    return %arg0, %c0_i32 : i32, i32
  }
  func.func @transform_1(%arg0: i32) -> (i32, i32) {
    %c0_i32 = arith.constant 0 : i32
    %c0_i32_0 = arith.constant 0 : i32
    %c0_i32_1 = arith.constant 0 : i32
    return %c0_i32, %c0_i32_0 : i32, i32
  }
  func.func @transform_2(%arg0: i32) -> (i32, i32) {
    %c0_i32 = arith.constant 0 : i32
    %c0_i32_0 = arith.constant 0 : i32
    %c0_i32_1 = arith.constant 0 : i32
    return %c0_i32, %c0_i32_0 : i32, i32
  }
  func.func @transform_3(%arg0: i32) -> (i32, i32) {
    %c0_i32 = arith.constant 0 : i32
    %c0_i32_0 = arith.constant 0 : i32
    %c0_i32_1 = arith.constant 0 : i32
    return %c0_i32, %c0_i32_0 : i32, i32
  }
  func.func @transform_4(%arg0: i32) -> (i32, i32) {
    %c0_i32 = arith.constant 0 : i32
    %c0_i32_0 = arith.constant 0 : i32
    return %arg0, %c0_i32 : i32, i32
  }
}

module attributes {stable_mosaic.version = 11 : i64} {
  func.func @_conv2_fused_kernel(%arg0: i32, %arg1: memref<128x4xf32, #tpu.memory_space<vmem>>, %arg2: memref<128x4xf32, #tpu.memory_space<vmem>>, %arg3: memref<128x4xf32, #tpu.memory_space<vmem>>, %arg4: memref<128x8xf32, #tpu.memory_space<vmem>>, %arg5: memref<4x8xf32, #tpu.memory_space<vmem>>, %arg6: memref<128x8xf32, #tpu.memory_space<vmem>>) attributes {dimension_semantics = [#tpu.dimension_semantics<parallel>], iteration_bounds = array<i64: 4>, scalar_prefetch = 0 : i64, scratch_operands = 0 : i64, tpu.core_type = #tpu.core_type<tc>, window_params = [{transform_indices = @transform_0, window_bounds = array<i64: 128, 4>}, {transform_indices = @transform_1, window_bounds = array<i64: 128, 4>}, {transform_indices = @transform_2, window_bounds = array<i64: 128, 4>}, {transform_indices = @transform_3, window_bounds = array<i64: 128, 8>}, {pipeline_mode = #tpu.pipeline_mode<synchronous>, transform_indices = @transform_4, window_bounds = array<i64: 4, 8>}, {transform_indices = @transform_5, window_bounds = array<i64: 128, 8>}]} {
    %c0 = arith.constant 0 : index
    %c0_0 = arith.constant 0 : index
    %0 = vector.load %arg1[%c0, %c0_0] : memref<128x4xf32, #tpu.memory_space<vmem>>, vector<128x4xf32>
    %c0_1 = arith.constant 0 : index
    %c0_2 = arith.constant 0 : index
    %1 = vector.load %arg2[%c0_1, %c0_2] : memref<128x4xf32, #tpu.memory_space<vmem>>, vector<128x4xf32>
    %2 = arith.addf %0, %1 : vector<128x4xf32>
    %c0_3 = arith.constant 0 : index
    %c0_4 = arith.constant 0 : index
    %3 = vector.load %arg3[%c0_3, %c0_4] : memref<128x4xf32, #tpu.memory_space<vmem>>, vector<128x4xf32>
    %4 = arith.addf %2, %3 : vector<128x4xf32>
    %c0_5 = arith.constant 0 : index
    %c0_6 = arith.constant 0 : index
    %5 = vector.load %arg5[%c0_5, %c0_6] : memref<4x8xf32, #tpu.memory_space<vmem>>, vector<4x8xf32>
    %cst = arith.constant dense<0.000000e+00> : vector<128x8xf32>
    %6 = tpu.matmul %4, %5, %cst {dimension_numbers = #tpu.dot_dimension_numbers<[1], [0], [0], [1], [0, 0, 1, 1], [], []>} : vector<128x4xf32>, vector<4x8xf32>, vector<128x8xf32> -> vector<128x8xf32>
    %c0_7 = arith.constant 0 : index
    %c0_8 = arith.constant 0 : index
    %7 = vector.load %arg4[%c0_7, %c0_8] : memref<128x8xf32, #tpu.memory_space<vmem>>, vector<128x8xf32>
    %8 = arith.addf %6, %7 : vector<128x8xf32>
    %c0_9 = arith.constant 0 : index
    %c0_10 = arith.constant 0 : index
    %9 = vector.load %arg6[%c0_9, %c0_10] : memref<128x8xf32, #tpu.memory_space<vmem>>, vector<128x8xf32>
    tpu.vector_store %arg6[%c0_9, %c0_10], %8 {strides = array<i32>} : memref<128x8xf32, #tpu.memory_space<vmem>>, vector<128x8xf32>,
    return
  }
  func.func @transform_0(%arg0: i32) -> (i32, i32) {
    %c0_i32 = arith.constant 0 : i32
    %c0_i32_0 = arith.constant 0 : i32
    return %arg0, %c0_i32 : i32, i32
  }
  func.func @transform_1(%arg0: i32) -> (i32, i32) {
    %c0_i32 = arith.constant 0 : i32
    %c0_i32_0 = arith.constant 0 : i32
    return %arg0, %c0_i32 : i32, i32
  }
  func.func @transform_2(%arg0: i32) -> (i32, i32) {
    %c0_i32 = arith.constant 0 : i32
    %c0_i32_0 = arith.constant 0 : i32
    return %arg0, %c0_i32 : i32, i32
  }
  func.func @transform_3(%arg0: i32) -> (i32, i32) {
    %c0_i32 = arith.constant 0 : i32
    %c0_i32_0 = arith.constant 0 : i32
    return %arg0, %c0_i32 : i32, i32
  }
  func.func @transform_4(%arg0: i32) -> (i32, i32) {
    %c0_i32 = arith.constant 0 : i32
    %c0_i32_0 = arith.constant 0 : i32
    %c0_i32_1 = arith.constant 0 : i32
    return %c0_i32, %c0_i32_0 : i32, i32
  }
  func.func @transform_5(%arg0: i32) -> (i32, i32) {
    %c0_i32 = arith.constant 0 : i32
    %c0_i32_0 = arith.constant 0 : i32
    return %arg0, %c0_i32 : i32, i32
  }
}

</mosaic_0001>

<llo_original>
// kernel: ffc_forward.9
$region0: #{ffc_forward.9}
  #allocation0 [shape = 'u32[]', space=smem, size = 0x4, offset = 0x4, fixed_abs, tag = 'smem constant byte address 0x4 - core index']
  #allocation1 [shape = 'u32[144,128]{1,0:T(1,128)}', space=vmem, size = 0x12000, scoped, tag = 'internal scratch']
  %s0 = inlined_call_operand.vmem [shape: f32[512,8], index: 0, kind: input, shape index: {}]
  %s1 = inlined_call_operand.vmem [shape: f32[8,4], index: 1, kind: input, shape index: {}]
  %s2 = inlined_call_operand.vmem [shape: f32[1,4], index: 2, kind: output, shape index: {0}]
  %s3 = inlined_call_operand.vmem [shape: f32[1,4], index: 3, kind: output, shape index: {1}]
  %4 = xla_tuple %s2, %s3
  %s5 = sld [smem:[#allocation0]]
  $region53: #{ffc_forward.9} parent=0
    _
  %s7 = ssub.s32 1, %s5
  %s8 = scalar_select 0, %s7, %s5
  loop: start=0, step=1, limit=6
  $region2: #{ffc_forward.9} parent=0 // loop_pre_header
    _
  $region3: #{ffc_forward.9} parent=0 // loop_header
    %s10 = sphi 0, %s14
    %p11 = scmp.ge.s32.totalorder %s10, 6
    %s20 = sphi 0, %s22
    %s23 = sphi 0, %s20
    %s24 = sphi 0, %s23
    %s40 = sphi 0, %s24
    %s44 = sphi 0, %s44
    %s46 = sphi 0, %s44
    %s47 = sphi 0, %s46
    %s61 = sphi 0, %s47
    %s65 = sphi 0, %s65
    %s67 = sphi 0, %s65
    %s68 = sphi 0, %s67
    %s82 = sphi 0, %s68
    %s86 = sphi 0, %s86
    %s88 = sphi 0, %s86
    %s89 = sphi 0, %s88
    %s103 = sphi 0, %s89
  $region4: #{ffc_forward.9} parent=0 // loop_header_branch
    %13 = sbr.rel (%p11) target = $region8
  $region5: #{ffc_forward.9} parent=0 // loop_body
    %s15 = ssub.s32 %s10, 1
    %s16 = ssub.s32 %s10, 2
    %s17 = sadd.s32 %s10, 1
    %s18 = ssub.s32 %s10, %s17
    %p19 = scmp.eq.s32.totalorder %s18, 0
    %s21 = sadd.s32 %s20, 1
    %s22 = scalar_select %p19, %s20, %s21
    %p25 = pneg %p19
    %p26 = scmp.eq.s32.totalorder %s10, 3
    %p27 = por %p25, %p26
    %p28 = scmp.ne.s32.totalorder %s20, %s23
    %p29 = scmp.eq.s32.totalorder %s10, 0
    %p30 = por %p28, %p29
    %p31 = scmp.ne.s32.totalorder %s20, %s23
    %p32 = scmp.eq.s32.totalorder %s15, 3
    %p33 = por %p31, %p32
    %p34 = scmp.ne.s32.totalorder %s23, %s24
    %p35 = scmp.eq.s32.totalorder %s15, 0
    %p36 = por %p34, %p35
    %p37 = scmp.ne.s32.totalorder %s23, %s24
    %p38 = scmp.eq.s32.totalorder %s16, 3
    %p39 = por %p37, %p38
    %p41 = scmp.ne.s32.totalorder %s24, %s40
    %p42 = scmp.eq.s32.totalorder %s16, 0
    %p43 = por %p41, %p42
    %s45 = sadd.s32 %s44, 1
    %p48 = scmp.eq.s32.totalorder %s10, 3
    %p49 = scmp.ne.s32.totalorder %s44, %s46
    %p50 = scmp.eq.s32.totalorder %s10, 0
    %p51 = por %p49, %p50
    %p52 = scmp.ne.s32.totalorder %s44, %s46
    %p53 = scmp.eq.s32.totalorder %s15, 3
    %p54 = por %p52, %p53
    %p55 = scmp.ne.s32.totalorder %s46, %s47
    %p56 = scmp.eq.s32.totalorder %s15, 0
    %p57 = por %p55, %p56
    %p58 = scmp.ne.s32.totalorder %s46, %s47
    %p59 = scmp.eq.s32.totalorder %s16, 3
    %p60 = por %p58, %p59
    %p62 = scmp.ne.s32.totalorder %s47, %s61
    %p63 = scmp.eq.s32.totalorder %s16, 0
    %p64 = por %p62, %p63
    %s66 = sadd.s32 %s65, 1
    %p69 = scmp.eq.s32.totalorder %s10, 3
    %p70 = scmp.ne.s32.totalorder %s65, %s67
    %p71 = scmp.eq.s32.totalorder %s10, 0
    %p72 = por %p70, %p71
    %p73 = scmp.ne.s32.totalorder %s65, %s67
    %p74 = scmp.eq.s32.totalorder %s15, 3
    %p75 = por %p73, %p74
    %p76 = scmp.ne.s32.totalorder %s67, %s68
    %p77 = scmp.eq.s32.totalorder %s15, 0
    %p78 = por %p76, %p77
    %p79 = scmp.ne.s32.totalorder %s67, %s68
    %p80 = scmp.eq.s32.totalorder %s16, 3
    %p81 = por %p79, %p80
    %p83 = scmp.ne.s32.totalorder %s68, %s82
    %p84 = scmp.eq.s32.totalorder %s16, 0
    %p85 = por %p83, %p84
    %s87 = sadd.s32 %s86, 1
    %p90 = scmp.eq.s32.totalorder %s10, 3
    %p91 = scmp.ne.s32.totalorder %s86, %s88
    %p92 = scmp.eq.s32.totalorder %s10, 0
    %p93 = por %p91, %p92
    %p94 = scmp.ne.s32.totalorder %s86, %s88
    %p95 = scmp.eq.s32.totalorder %s15, 3
    %p96 = por %p94, %p95
    %p97 = scmp.ne.s32.totalorder %s88, %s89
    %p98 = scmp.eq.s32.totalorder %s15, 0
    %p99 = por %p97, %p98
    %p100 = scmp.ne.s32.totalorder %s88, %s89
    %p101 = scmp.eq.s32.totalorder %s16, 3
    %p102 = por %p100, %p101
    %p104 = scmp.ne.s32.totalorder %s89, %s103
    %p105 = scmp.eq.s32.totalorder %s16, 0
    %p106 = por %p104, %p105
    %p107 = scmp.le.s32.totalorder 1, %s10
    %p108 = scmp.lt.s32.totalorder %s10, 5
    %p109 = pnand %p107, %p108
    %p110 = pneg %p109
    // Predicated region
    $region9: #{ffc_forward.9} parent=5 // pred_check
      _
    $region10: #{ffc_forward.9} parent=5 // pred_check_branch
      %112 = sbr.rel (%p109) target = $region12
    $region11: #{ffc_forward.9} parent=5 // pred_region
      %s113 = ssub.s32 %s10, 1
      // Predicated region
      $region13: #{ffc_forward.9} parent=11 // pred_check
        %p114 = pneg %p57
      $region14: #{ffc_forward.9} parent=11 // pred_check_branch
        %116 = sbr.rel (%p114) target = $region16
      $region15: #{ffc_forward.9} parent=11 // pred_region
        _
      $region16: #{ffc_forward.9} parent=11 // pred_fallthru
        _
    $region12: #{ffc_forward.9} parent=5 // pred_fallthru
      _
    %p117 = scmp.lt.s32.totalorder %s10, 4
    // Predicated region
    $region17: #{ffc_forward.9} parent=5 // pred_check
      %p118 = pneg %p117
    $region18: #{ffc_forward.9} parent=5 // pred_check_branch
      %120 = sbr.rel (%p118) target = $region20
    $region19: #{ffc_forward.9} parent=5 // pred_region
      // Predicated region
      $region21: #{ffc_forward.9} parent=19 // pred_check
        %p121 = pneg %p30
      $region22: #{ffc_forward.9} parent=19 // pred_check_branch
        %123 = sbr.rel (%p121) target = $region24
      $region23: #{ffc_forward.9} parent=19 // pred_region
        %s124 = smul.u32 16, %s10
        %p125 = scmp.lt.s32.totalorder %s124, 63
        %s126 = scalar_select %p125, %s124, 63
        %s127 = smul.addr %s126, 8
        %s128 = scalar_lea.vmem %s0, %s127
        %s129 = smul.u32 16, %s10
      $region24: #{ffc_forward.9} parent=19 // pred_fallthru
        _
    $region20: #{ffc_forward.9} parent=5 // pred_fallthru
      _
    %p130 = scmp.le.s32.totalorder 1, %s10
    %p131 = scmp.lt.s32.totalorder %s10, 5
    %p132 = pnand %p130, %p131
    %p133 = pneg %p132
    // Predicated region
    $region25: #{ffc_forward.9} parent=5 // pred_check
      _
    $region26: #{ffc_forward.9} parent=5 // pred_check_branch
      %135 = sbr.rel (%p132) target = $region28
    $region27: #{ffc_forward.9} parent=5 // pred_region
      %s136 = ssub.s32 %s10, 1
      %s137 = smul.u32 16, %s15
      %p138 = scmp.lt.s32.totalorder %s137, 63
      %s139 = scalar_select %p138, %s137, 63
      %s140 = smul.addr %s139, 8
      %s141 = scalar_lea.vmem %s0, %s140
      %p142 = pneg %p36
      %p143 = pneg %p33
      %p144 = pneg %p57
      %p145 = pneg %p54
      %p146 = pneg %p78
      %p147 = pneg %p75
      %p148 = pneg %p99
      %p149 = pneg %p96
      %s150 = smul.u32 16, %s15
      %p151 = scmp.lt.s32.totalorder %s150, 63
      %s152 = scalar_select %p151, %s150, 63
      %s153 = smul.addr %s152, 8
      %s154 = scalar_lea.vmem %s0, %s153
      %s155 = smul.u32 16, %s15
      %p156 = scmp.eq.s32.totalorder %s15, 0
      // Predicated region
      $region29: #{ffc_forward.9} parent=27 // pred_check
        %p157 = pneg %p156
      $region30: #{ffc_forward.9} parent=27 // pred_check_branch
        %159 = sbr.rel (%p157) target = $region32
      $region31: #{ffc_forward.9} parent=27 // pred_region
        %vm160 = vcmask 24576
        %161 = vst.msk [vmem:[%s2] sm:$0x1] %vm160, 0.0
        %162 = vst.msk [vmem:[%s3] sm:$0x1] %vm160, 0.0
      $region32: #{ffc_forward.9} parent=27 // pred_fallthru
        _
      %v163 = vld [vmem:[%s154] sm:$0xff]
      %v164 = vld [vmem:[%s154 + $0x8] sm:$0xff]
      %v165 = vld [vmem:[%s154 + $0x10] sm:$0xff]
      %v166 = vld [vmem:[%s154 + $0x18] sm:$0xff]
      %v167 = vld [vmem:[%s154 + $0x20] sm:$0xff]
      %v168 = vld [vmem:[%s154 + $0x28] sm:$0xff]
      %v169 = vld [vmem:[%s154 + $0x30] sm:$0xff]
      %v170 = vld [vmem:[%s154 + $0x38] sm:$0xff]
      %v171 = vld [vmem:[%s154 + $0x40] sm:$0xff]
      %v172 = vld [vmem:[%s154 + $0x48] sm:$0xff]
      %v173 = vld [vmem:[%s154 + $0x50] sm:$0xff]
      %v174 = vld [vmem:[%s154 + $0x58] sm:$0xff]
      %v175 = vld [vmem:[%s154 + $0x60] sm:$0xff]
      %v176 = vld [vmem:[%s154 + $0x68] sm:$0xff]
      %v177 = vld [vmem:[%s154 + $0x70] sm:$0xff]
      %v178 = vld [vmem:[%s154 + $0x78] sm:$0xff]
      %v179 = vld [vmem:[%s1] sm:$0xff]
      %vm180 = vcmask 64512
      %v182 = vsel %vm180, %v163, 0
      %v185 = vsel %vm180, %v164, 0
      %v188 = vsel %vm180, %v165, 0
      %v191 = vsel %vm180, %v166, 0
      %v194 = vsel %vm180, %v167, 0
      %v197 = vsel %vm180, %v168, 0
      %v200 = vsel %vm180, %v169, 0
      %v203 = vsel %vm180, %v170, 0
      %v206 = vsel %vm180, %v171, 0
      %v209 = vsel %vm180, %v172, 0
      %v212 = vsel %vm180, %v173, 0
      %v215 = vsel %vm180, %v174, 0
      %v218 = vsel %vm180, %v175, 0
      %v221 = vsel %vm180, %v176, 0
      %v224 = vsel %vm180, %v177, 0
      %v227 = vsel %vm180, %v178, 0
      %229 = vmatprep.subr.mxu0 0.0
      %230 = vmatpush1.msra.mxu0 %v179
      %231 = vmatprep.subr.mxu0 0.0
      %232 = vmatpush1.msra.mxu0 0.0
      %233 = vmatprep.subr.mxu0 0.0
      %234 = vmatpush1.msra.mxu0 0.0
      %235 = vmatprep.subr.mxu0 0.0
      %236 = vmatpush1.msra.mxu0 0.0
      %237 = vmatprep.subr.mxu0 0.0
      %238 = vmatpush1.msra.mxu0 0.0
      %239 = vmatprep.subr.mxu0 0.0
      %240 = vmatpush1.msra.mxu0 0.0
      %241 = vmatprep.subr.mxu0 0.0
      %242 = vmatpush1.msra.mxu0 0.0
      %243 = vmatprep.subr.mxu0 0.0
      %244 = vmatpush1.msra.mxu0 0.0
      %245 = vmatprep.subr.mxu0 0.0
      %246 = vmatpush1.msra.mxu0 0.0
      %247 = vmatprep.subr.mxu0 0.0
      %248 = vmatpush1.msra.mxu0 0.0
      %249 = vmatprep.subr.mxu0 0.0
      %250 = vmatpush1.msra.mxu0 0.0
      %251 = vmatprep.subr.mxu0 0.0
      %252 = vmatpush1.msra.mxu0 0.0
      %253 = vmatprep.subr.mxu0 0.0
      %254 = vmatpush1.msra.mxu0 0.0
      %255 = vmatprep.subr.mxu0 0.0
      %256 = vmatpush1.msra.mxu0 0.0
      %257 = vmatprep.subr.mxu0 0.0
      %258 = vmatpush1.msra.mxu0 0.0
      %259 = vmatprep.subr.mxu0 0.0
      %260 = vmatpush1.msra.mxu0 0.0
      %261 = vmatprep.subr.mxu0 0.0
      %262 = vmatpush1.msra.mxu0 0.0
      %263 = vmatprep.subr.mxu0 0.0
      %264 = vmatpush1.msra.mxu0 0.0
      %265 = vmatprep.subr.mxu0 0.0
      %266 = vmatpush1.msra.mxu0 0.0
      %267 = vmatprep.subr.mxu0 0.0
      %268 = vmatpush1.msra.mxu0 0.0
      %269 = vmatprep.subr.mxu0 0.0
      %270 = vmatpush1.msra.mxu0 0.0
      %271 = vmatprep.subr.mxu0 0.0
      %272 = vmatpush1.msra.mxu0 0.0
      %273 = vmatprep.subr.mxu0 0.0
      %274 = vmatpush1.msra.mxu0 0.0
      %275 = vmatprep.subr.mxu0 0.0
      %276 = vmatpush1.msra.mxu0 0.0
      %277 = vmatprep.subr.mxu0 0.0
      %278 = vmatpush1.msra.mxu0 0.0
      %279 = vmatprep.subr.mxu0 0.0
      %280 = vmatpush1.msra.mxu0 0.0
      %281 = vmatprep.subr.mxu0 0.0
      %282 = vmatpush1.msra.mxu0 0.0
      %283 = vmatprep.subr.mxu0 0.0
      %284 = vmatpush1.msra.mxu0 0.0
      %285 = vmatprep.subr.mxu0 0.0
      %286 = vmatpush1.msra.mxu0 0.0
      %287 = vmatprep.subr.mxu0 0.0
      %288 = vmatpush1.msra.mxu0 0.0
      %289 = vmatprep.subr.mxu0 0.0
      %290 = vmatpush1.msra.mxu0 0.0
      %291 = vmatprep.subr.mxu0 0.0
      %292 = vmatpush1.msra.mxu0 0.0
      %293 = vmatprep.mubr.f32.mxu0 0.0
      %294 = vmatmul.mubr.f32.gmra.mrb[0].mxu0 %v182
      %v295 = vpop.f32.mrb[0].mxu0
      %v296 = vadd.f32 0.0, %v295
      %v297 = vpop.f32.mrb[0].mxu0
      %298 = vmatprep.mubr.f32.mxu0 0.0
      %299 = vmatmul.mubr.f32.gmra.mrb[0].mxu0 %v185
      %v300 = vpop.f32.mrb[0].mxu0
      %v301 = vadd.f32 0.0, %v300
      %v302 = vpop.f32.mrb[0].mxu0
      %303 = vmatprep.mubr.f32.mxu0 0.0
      %304 = vmatmul.mubr.f32.gmra.mrb[0].mxu0 %v188
      %v305 = vpop.f32.mrb[0].mxu0
      %v306 = vadd.f32 0.0, %v305
      %v307 = vpop.f32.mrb[0].mxu0
      %308 = vmatprep.mubr.f32.mxu0 0.0
      %309 = vmatmul.mubr.f32.gmra.mrb[0].mxu0 %v191
      %v310 = vpop.f32.mrb[0].mxu0
      %v311 = vadd.f32 0.0, %v310
      %v312 = vpop.f32.mrb[0].mxu0
      %313 = vmatprep.mubr.f32.mxu0 0.0
      %314 = vmatmul.mubr.f32.gmra.mrb[0].mxu0 %v194
      %v315 = vpop.f32.mrb[0].mxu0
      %v316 = vadd.f32 0.0, %v315
      %v317 = vpop.f32.mrb[0].mxu0
      %318 = vmatprep.mubr.f32.mxu0 0.0
      %319 = vmatmul.mubr.f32.gmra.mrb[0].mxu0 %v197
      %v320 = vpop.f32.mrb[0].mxu0
      %v321 = vadd.f32 0.0, %v320
      %v322 = vpop.f32.mrb[0].mxu0
      %323 = vmatprep.mubr.f32.mxu0 0.0
      %324 = vmatmul.mubr.f32.gmra.mrb[0].mxu0 %v200
      %v325 = vpop.f32.mrb[0].mxu0
      %v326 = vadd.f32 0.0, %v325
      %v327 = vpop.f32.mrb[0].mxu0
      %328 = vmatprep.mubr.f32.mxu0 0.0
      %329 = vmatmul.mubr.f32.gmra.mrb[0].mxu0 %v203
      %v330 = vpop.f32.mrb[0].mxu0
      %v331 = vadd.f32 0.0, %v330
      %v332 = vpop.f32.mrb[0].mxu0
      %333 = vmatprep.mubr.f32.mxu0 0.0
      %334 = vmatmul.mubr.f32.gmra.mrb[0].mxu0 %v206
      %v335 = vpop.f32.mrb[0].mxu0
      %v336 = vadd.f32 0.0, %v335
      %v337 = vpop.f32.mrb[0].mxu0
      %338 = vmatprep.mubr.f32.mxu0 0.0
      %339 = vmatmul.mubr.f32.gmra.mrb[0].mxu0 %v209
      %v340 = vpop.f32.mrb[0].mxu0
      %v341 = vadd.f32 0.0, %v340
      %v342 = vpop.f32.mrb[0].mxu0
      %343 = vmatprep.mubr.f32.mxu0 0.0
      %344 = vmatmul.mubr.f32.gmra.mrb[0].mxu0 %v212
      %v345 = vpop.f32.mrb[0].mxu0
      %v346 = vadd.f32 0.0, %v345
      %v347 = vpop.f32.mrb[0].mxu0
      %348 = vmatprep.mubr.f32.mxu0 0.0
      %349 = vmatmul.mubr.f32.gmra.mrb[0].mxu0 %v215
      %v350 = vpop.f32.mrb[0].mxu0
      %v351 = vadd.f32 0.0, %v350
      %v352 = vpop.f32.mrb[0].mxu0
      %353 = vmatprep.mubr.f32.mxu0 0.0
      %354 = vmatmul.mubr.f32.gmra.mrb[0].mxu0 %v218
      %v355 = vpop.f32.mrb[0].mxu0
      %v356 = vadd.f32 0.0, %v355
      %v357 = vpop.f32.mrb[0].mxu0
      %358 = vmatprep.mubr.f32.mxu0 0.0
      %359 = vmatmul.mubr.f32.gmra.mrb[0].mxu0 %v221
      %v360 = vpop.f32.mrb[0].mxu0
      %v361 = vadd.f32 0.0, %v360
      %v362 = vpop.f32.mrb[0].mxu0
      %363 = vmatprep.mubr.f32.mxu0 0.0
      %364 = vmatmul.mubr.f32.gmra.mrb[0].mxu0 %v224
      %v365 = vpop.f32.mrb[0].mxu0
      %v366 = vadd.f32 0.0, %v365
      %v367 = vpop.f32.mrb[0].mxu0
      %368 = vmatprep.mubr.f32.mxu0 0.0
      %369 = vmatmul.mubr.f32.gmra.mrb[0].mxu0 %v227
      %v370 = vpop.f32.mrb[0].mxu0
      %v371 = vadd.f32 0.0, %v370
      %v372 = vpop.f32.mrb[0].mxu0
      %373 = vdwg.mxu0
      %v374 = vld [vmem:[%s2] sm:$0x1]
      %vm375 = vcmask 31744
      %v376 = vsel %vm375, %v296, 0.0
      %v377 = vsel %vm375, %v301, 0.0
      %v378 = vadd.f32 %v376, %v377
      %v379 = vsel %vm375, %v306, 0.0
      %v380 = vadd.f32 %v378, %v379
      %v381 = vsel %vm375, %v311, 0.0
      %v382 = vadd.f32 %v380, %v381
      %v383 = vsel %vm375, %v316, 0.0
      %v384 = vadd.f32 %v382, %v383
      %v385 = vsel %vm375, %v321, 0.0
      %v386 = vadd.f32 %v384, %v385
      %v387 = vsel %vm375, %v326, 0.0
      %v388 = vadd.f32 %v386, %v387
      %v389 = vsel %vm375, %v331, 0.0
      %v390 = vadd.f32 %v388, %v389
      %v391 = vsel %vm375, %v336, 0.0
      %v392 = vadd.f32 %v390, %v391
      %v393 = vsel %vm375, %v341, 0.0
      %v394 = vadd.f32 %v392, %v393
      %v395 = vsel %vm375, %v346, 0.0
      %v396 = vadd.f32 %v394, %v395
      %v397 = vsel %vm375, %v351, 0.0
      %v398 = vadd.f32 %v396, %v397
      %v399 = vsel %vm375, %v356, 0.0
      %v400 = vadd.f32 %v398, %v399
      %v401 = vsel %vm375, %v361, 0.0
      %v402 = vadd.f32 %v400, %v401
      %v403 = vsel %vm375, %v366, 0.0
      %v404 = vadd.f32 %v402, %v403
      %v405 = vsel %vm375, %v371, 0.0
      %v406 = vadd.f32 %v404, %v405
      %v407 = vrot.slane %v406, 4
      %v408 = vadd.f32 %v406, %v407
      %v409 = vrot.slane %v408, 2
      %v410 = vadd.f32 %v408, %v409
      %v411 = vrot.slane %v410, 1
      %v412 = vadd.f32 %v410, %v411
      %v413 = vadd.f32 %v374, %v412
      %vm414 = vcmask 24576
      %415 = vst.msk [vmem:[%s2] sm:$0x1] %vm414, %v413
      %v416 = vld [vmem:[%s3] sm:$0x1]
      %v417 = vmul.f32 %v296, %v296
      %v418 = vmul.f32 %v301, %v301
      %v419 = vmul.f32 %v306, %v306
      %v420 = vmul.f32 %v311, %v311
      %v421 = vmul.f32 %v316, %v316
      %v422 = vmul.f32 %v321, %v321
      %v423 = vmul.f32 %v326, %v326
      %v424 = vmul.f32 %v331, %v331
      %v425 = vmul.f32 %v336, %v336
      %v426 = vmul.f32 %v341, %v341
      %v427 = vmul.f32 %v346, %v346
      %v428 = vmul.f32 %v351, %v351
      %v429 = vmul.f32 %v356, %v356
      %v430 = vmul.f32 %v361, %v361
      %v431 = vmul.f32 %v366, %v366
      %v432 = vmul.f32 %v371, %v371
      %v433 = vsel %vm375, %v417, 0.0
      %v434 = vsel %vm375, %v418, 0.0
      %v435 = vadd.f32 %v433, %v434
      %v436 = vsel %vm375, %v419, 0.0
      %v437 = vadd.f32 %v435, %v436
      %v438 = vsel %vm375, %v420, 0.0
      %v439 = vadd.f32 %v437, %v438
      %v440 = vsel %vm375, %v421, 0.0
      %v441 = vadd.f32 %v439, %v440
      %v442 = vsel %vm375, %v422, 0.0
      %v443 = vadd.f32 %v441, %v442
      %v444 = vsel %vm375, %v423, 0.0
      %v445 = vadd.f32 %v443, %v444
      %v446 = vsel %vm375, %v424, 0.0
      %v447 = vadd.f32 %v445, %v446
      %v448 = vsel %vm375, %v425, 0.0
      %v449 = vadd.f32 %v447, %v448
      %v450 = vsel %vm375, %v426, 0.0
      %v451 = vadd.f32 %v449, %v450
      %v452 = vsel %vm375, %v427, 0.0
      %v453 = vadd.f32 %v451, %v452
      %v454 = vsel %vm375, %v428, 0.0
      %v455 = vadd.f32 %v453, %v454
      %v456 = vsel %vm375, %v429, 0.0
      %v457 = vadd.f32 %v455, %v456
      %v458 = vsel %vm375, %v430, 0.0
      %v459 = vadd.f32 %v457, %v458
      %v460 = vsel %vm375, %v431, 0.0
      %v461 = vadd.f32 %v459, %v460
      %v462 = vsel %vm375, %v432, 0.0
      %v463 = vadd.f32 %v461, %v462
      %v464 = vrot.slane %v463, 4
      %v465 = vadd.f32 %v463, %v464
      %v466 = vrot.slane %v465, 2
      %v467 = vadd.f32 %v465, %v466
      %v468 = vrot.slane %v467, 1
      %v469 = vadd.f32 %v467, %v468
      %v470 = vadd.f32 %v416, %v469
      %471 = vst.msk [vmem:[%s3] sm:$0x1] %vm414, %v470
      // Predicated region
      $region33: #{ffc_forward.9} parent=27 // pred_check
        %p472 = pneg %p75
      $region34: #{ffc_forward.9} parent=27 // pred_check_branch
        %474 = sbr.rel (%p472) target = $region36
      $region35: #{ffc_forward.9} parent=27 // pred_region
        _
      $region36: #{ffc_forward.9} parent=27 // pred_fallthru
        _
      // Predicated region
      $region37: #{ffc_forward.9} parent=27 // pred_check
        %p475 = pneg %p96
      $region38: #{ffc_forward.9} parent=27 // pred_check_branch
        %477 = sbr.rel (%p475) target = $region40
      $region39: #{ffc_forward.9} parent=27 // pred_region
        _
      $region40: #{ffc_forward.9} parent=27 // pred_fallthru
        _
      // Predicated region
      $region41: #{ffc_forward.9} parent=27 // pred_check
        %p478 = pneg %p75
      $region42: #{ffc_forward.9} parent=27 // pred_check_branch
        %480 = sbr.rel (%p478) target = $region44
      $region43: #{ffc_forward.9} parent=27 // pred_region
        _
      $region44: #{ffc_forward.9} parent=27 // pred_fallthru
        _
      // Predicated region
      $region45: #{ffc_forward.9} parent=27 // pred_check
        %p481 = pneg %p96
      $region46: #{ffc_forward.9} parent=27 // pred_check_branch
        %483 = sbr.rel (%p481) target = $region48
      $region47: #{ffc_forward.9} parent=27 // pred_region
        _
      $region48: #{ffc_forward.9} parent=27 // pred_fallthru
        _
    $region28: #{ffc_forward.9} parent=5 // pred_fallthru
      _
    %p484 = scmp.le.s32.totalorder 2, %s10
    // Predicated region
    $region49: #{ffc_forward.9} parent=5 // pred_check
      %p485 = pneg %p484
    $region50: #{ffc_forward.9} parent=5 // pred_check_branch
      %487 = sbr.rel (%p485) target = $region52
    $region51: #{ffc_forward.9} parent=5 // pred_region
      %s488 = ssub.s32 %s10, 2
    $region52: #{ffc_forward.9} parent=5 // pred_fallthru
      _
  $region6: #{ffc_forward.9} parent=0 // loop_footer
    %s14 = sadd.s32 1, %s10
  $region7: #{ffc_forward.9} parent=0 // loop_footer_branch
    %9 = sbr.rel target = $region3
  $region8: #{ffc_forward.9} parent=0 // loop_exit
    _

// kernel: ffc_forward.10
$region0: #{ffc_forward.10}
  #allocation0 [shape = 'u32[]', space=smem, size = 0x4, offset = 0x4, fixed_abs, tag = 'smem constant byte address 0x4 - core index']
  #allocation1 [shape = 'u32[144,128]{1,0:T(1,128)}', space=vmem, size = 0x12000, scoped, tag = 'internal scratch']
  %s0 = inlined_call_operand.vmem [shape: f32[512,8], index: 0, kind: input, shape index: {}]
  %s1 = inlined_call_operand.vmem [shape: f32[8,4], index: 1, kind: input, shape index: {}]
  %s2 = inlined_call_operand.vmem [shape: f32[1,4], index: 2, kind: input, shape index: {}]
  %s3 = inlined_call_operand.vmem [shape: f32[1,4], index: 3, kind: input, shape index: {}]
  %s4 = inlined_call_operand.vmem [shape: f32[512,4], index: 4, kind: output, shape index: {}]
  %s5 = sld [smem:[#allocation0]]
  $region49: #{ffc_forward.10} parent=0
    _
  %s7 = ssub.s32 1, %s5
  %s8 = scalar_select 0, %s7, %s5
  loop: start=0, step=1, limit=6
  $region2: #{ffc_forward.10} parent=0 // loop_pre_header
    _
  $region3: #{ffc_forward.10} parent=0 // loop_header
    %s10 = sphi 0, %s14
    %p11 = scmp.ge.s32.totalorder %s10, 6
    %s20 = sphi 0, %s22
    %s23 = sphi 0, %s20
    %s24 = sphi 0, %s23
    %s40 = sphi 0, %s24
    %s44 = sphi 0, %s44
    %s46 = sphi 0, %s44
    %s47 = sphi 0, %s46
    %s61 = sphi 0, %s47
    %s65 = sphi 0, %s65
    %s67 = sphi 0, %s65
    %s68 = sphi 0, %s67
    %s82 = sphi 0, %s68
    %s86 = sphi 0, %s86
    %s88 = sphi 0, %s86
    %s89 = sphi 0, %s88
    %s103 = sphi 0, %s89
    %s109 = sphi 0, %s111
    %s112 = sphi 0, %s109
    %s113 = sphi 0, %s112
    %s129 = sphi 0, %s113
  $region4: #{ffc_forward.10} parent=0 // loop_header_branch
    %13 = sbr.rel (%p11) target = $region8
  $region5: #{ffc_forward.10} parent=0 // loop_body
    %s15 = ssub.s32 %s10, 1
    %s16 = ssub.s32 %s10, 2
    %s17 = sadd.s32 %s10, 1
    %s18 = ssub.s32 %s10, %s17
    %p19 = scmp.eq.s32.totalorder %s18, 0
    %s21 = sadd.s32 %s20, 1
    %s22 = scalar_select %p19, %s20, %s21
    %p25 = pneg %p19
    %p26 = scmp.eq.s32.totalorder %s10, 3
    %p27 = por %p25, %p26
    %p28 = scmp.ne.s32.totalorder %s20, %s23
    %p29 = scmp.eq.s32.totalorder %s10, 0
    %p30 = por %p28, %p29
    %p31 = scmp.ne.s32.totalorder %s20, %s23
    %p32 = scmp.eq.s32.totalorder %s15, 3
    %p33 = por %p31, %p32
    %p34 = scmp.ne.s32.totalorder %s23, %s24
    %p35 = scmp.eq.s32.totalorder %s15, 0
    %p36 = por %p34, %p35
    %p37 = scmp.ne.s32.totalorder %s23, %s24
    %p38 = scmp.eq.s32.totalorder %s16, 3
    %p39 = por %p37, %p38
    %p41 = scmp.ne.s32.totalorder %s24, %s40
    %p42 = scmp.eq.s32.totalorder %s16, 0
    %p43 = por %p41, %p42
    %s45 = sadd.s32 %s44, 1
    %p48 = scmp.eq.s32.totalorder %s10, 3
    %p49 = scmp.ne.s32.totalorder %s44, %s46
    %p50 = scmp.eq.s32.totalorder %s10, 0
    %p51 = por %p49, %p50
    %p52 = scmp.ne.s32.totalorder %s44, %s46
    %p53 = scmp.eq.s32.totalorder %s15, 3
    %p54 = por %p52, %p53
    %p55 = scmp.ne.s32.totalorder %s46, %s47
    %p56 = scmp.eq.s32.totalorder %s15, 0
    %p57 = por %p55, %p56
    %p58 = scmp.ne.s32.totalorder %s46, %s47
    %p59 = scmp.eq.s32.totalorder %s16, 3
    %p60 = por %p58, %p59
    %p62 = scmp.ne.s32.totalorder %s47, %s61
    %p63 = scmp.eq.s32.totalorder %s16, 0
    %p64 = por %p62, %p63
    %s66 = sadd.s32 %s65, 1
    %p69 = scmp.eq.s32.totalorder %s10, 3
    %p70 = scmp.ne.s32.totalorder %s65, %s67
    %p71 = scmp.eq.s32.totalorder %s10, 0
    %p72 = por %p70, %p71
    %p73 = scmp.ne.s32.totalorder %s65, %s67
    %p74 = scmp.eq.s32.totalorder %s15, 3
    %p75 = por %p73, %p74
    %p76 = scmp.ne.s32.totalorder %s67, %s68
    %p77 = scmp.eq.s32.totalorder %s15, 0
    %p78 = por %p76, %p77
    %p79 = scmp.ne.s32.totalorder %s67, %s68
    %p80 = scmp.eq.s32.totalorder %s16, 3
    %p81 = por %p79, %p80
    %p83 = scmp.ne.s32.totalorder %s68, %s82
    %p84 = scmp.eq.s32.totalorder %s16, 0
    %p85 = por %p83, %p84
    %s87 = sadd.s32 %s86, 1
    %p90 = scmp.eq.s32.totalorder %s10, 3
    %p91 = scmp.ne.s32.totalorder %s86, %s88
    %p92 = scmp.eq.s32.totalorder %s10, 0
    %p93 = por %p91, %p92
    %p94 = scmp.ne.s32.totalorder %s86, %s88
    %p95 = scmp.eq.s32.totalorder %s15, 3
    %p96 = por %p94, %p95
    %p97 = scmp.ne.s32.totalorder %s88, %s89
    %p98 = scmp.eq.s32.totalorder %s15, 0
    %p99 = por %p97, %p98
    %p100 = scmp.ne.s32.totalorder %s88, %s89
    %p101 = scmp.eq.s32.totalorder %s16, 3
    %p102 = por %p100, %p101
    %p104 = scmp.ne.s32.totalorder %s89, %s103
    %p105 = scmp.eq.s32.totalorder %s16, 0
    %p106 = por %p104, %p105
    %s107 = ssub.s32 %s10, %s17
    %p108 = scmp.eq.s32.totalorder %s107, 0
    %s110 = sadd.s32 %s109, 1
    %s111 = scalar_select %p108, %s109, %s110
    %p114 = pneg %p108
    %p115 = scmp.eq.s32.totalorder %s10, 3
    %p116 = por %p114, %p115
    %p117 = scmp.ne.s32.totalorder %s109, %s112
    %p118 = scmp.eq.s32.totalorder %s10, 0
    %p119 = por %p117, %p118
    %p120 = scmp.ne.s32.totalorder %s109, %s112
    %p121 = scmp.eq.s32.totalorder %s15, 3
    %p122 = por %p120, %p121
    %p123 = scmp.ne.s32.totalorder %s112, %s113
    %p124 = scmp.eq.s32.totalorder %s15, 0
    %p125 = por %p123, %p124
    %p126 = scmp.ne.s32.totalorder %s112, %s113
    %p127 = scmp.eq.s32.totalorder %s16, 3
    %p128 = por %p126, %p127
    %p130 = scmp.ne.s32.totalorder %s113, %s129
    %p131 = scmp.eq.s32.totalorder %s16, 0
    %p132 = por %p130, %p131
    %p133 = scmp.le.s32.totalorder 1, %s10
    %p134 = scmp.lt.s32.totalorder %s10, 5
    %p135 = pnand %p133, %p134
    %p136 = pneg %p135
    // Predicated region
    $region9: #{ffc_forward.10} parent=5 // pred_check
      _
    $region10: #{ffc_forward.10} parent=5 // pred_check_branch
      %138 = sbr.rel (%p135) target = $region12
    $region11: #{ffc_forward.10} parent=5 // pred_region
      %s139 = ssub.s32 %s10, 1
      // Predicated region
      $region13: #{ffc_forward.10} parent=11 // pred_check
        %p140 = pneg %p57
      $region14: #{ffc_forward.10} parent=11 // pred_check_branch
        %142 = sbr.rel (%p140) target = $region16
      $region15: #{ffc_forward.10} parent=11 // pred_region
        _
      $region16: #{ffc_forward.10} parent=11 // pred_fallthru
        _
      // Predicated region
      $region17: #{ffc_forward.10} parent=11 // pred_check
        %p143 = pneg %p78
      $region18: #{ffc_forward.10} parent=11 // pred_check_branch
        %145 = sbr.rel (%p143) target = $region20
      $region19: #{ffc_forward.10} parent=11 // pred_region
        _
      $region20: #{ffc_forward.10} parent=11 // pred_fallthru
        _
      // Predicated region
      $region21: #{ffc_forward.10} parent=11 // pred_check
        %p146 = pneg %p99
      $region22: #{ffc_forward.10} parent=11 // pred_check_branch
        %148 = sbr.rel (%p146) target = $region24
      $region23: #{ffc_forward.10} parent=11 // pred_region
        _
      $region24: #{ffc_forward.10} parent=11 // pred_fallthru
        _
    $region12: #{ffc_forward.10} parent=5 // pred_fallthru
      _
    %p149 = scmp.lt.s32.totalorder %s10, 4
    // Predicated region
    $region25: #{ffc_forward.10} parent=5 // pred_check
      %p150 = pneg %p149
    $region26: #{ffc_forward.10} parent=5 // pred_check_branch
      %152 = sbr.rel (%p150) target = $region28
    $region27: #{ffc_forward.10} parent=5 // pred_region
      // Predicated region
      $region29: #{ffc_forward.10} parent=27 // pred_check
        %p153 = pneg %p30
      $region30: #{ffc_forward.10} parent=27 // pred_check_branch
        %155 = sbr.rel (%p153) target = $region32
      $region31: #{ffc_forward.10} parent=27 // pred_region
        %s156 = smul.u32 16, %s10
        %p157 = scmp.lt.s32.totalorder %s156, 63
        %s158 = scalar_select %p157, %s156, 63
        %s159 = smul.addr %s158, 8
        %s160 = scalar_lea.vmem %s0, %s159
        %s161 = smul.u32 16, %s10
      $region32: #{ffc_forward.10} parent=27 // pred_fallthru
        _
    $region28: #{ffc_forward.10} parent=5 // pred_fallthru
      _
    %p162 = scmp.le.s32.totalorder 1, %s10
    %p163 = scmp.lt.s32.totalorder %s10, 5
    %p164 = pnand %p162, %p163
    %p165 = pneg %p164
    // Predicated region
    $region33: #{ffc_forward.10} parent=5 // pred_check
      _
    $region34: #{ffc_forward.10} parent=5 // pred_check_branch
      %167 = sbr.rel (%p164) target = $region36
    $region35: #{ffc_forward.10} parent=5 // pred_region
      %s168 = ssub.s32 %s10, 1
      %s169 = smul.u32 16, %s15
      %p170 = scmp.lt.s32.totalorder %s169, 63
      %s171 = scalar_select %p170, %s169, 63
      %s172 = smul.addr %s171, 8
      %s173 = scalar_lea.vmem %s0, %s172
      %p174 = pneg %p36
      %p175 = pneg %p33
      %p176 = pneg %p57
      %p177 = pneg %p54
      %p178 = pneg %p78
      %p179 = pneg %p75
      %p180 = pneg %p99
      %p181 = pneg %p96
      %p182 = pneg %p125
      %p183 = pneg %p122
      %s184 = smul.u32 16, %s15
      %p185 = scmp.lt.s32.totalorder %s184, 63
      %s186 = scalar_select %p185, %s184, 63
      %s187 = smul.addr %s186, 8
      %s188 = scalar_lea.vmem %s4, %s187
      %s189 = smul.u32 16, %s15
      %p190 = scmp.lt.s32.totalorder %s189, 63
      %s191 = scalar_select %p190, %s189, 63
      %s192 = smul.addr %s191, 8
      %s193 = scalar_lea.vmem %s0, %s192
      %s194 = smul.u32 16, %s15
      %s195 = smul.u32 16, %s15
      %p196 = scmp.lt.s32.totalorder %s195, 63
      %s197 = scalar_select %p196, %s195, 63
      %s198 = smul.addr %s197, 8
      %s199 = scalar_lea.vmem %s4, %s198
      %s200 = smul.u32 16, %s15
      %v201 = vld [vmem:[%s193] sm:$0xff]
      %v202 = vld [vmem:[%s193 + $0x8] sm:$0xff]
      %v203 = vld [vmem:[%s193 + $0x10] sm:$0xff]
      %v204 = vld [vmem:[%s193 + $0x18] sm:$0xff]
      %v205 = vld [vmem:[%s193 + $0x20] sm:$0xff]
      %v206 = vld [vmem:[%s193 + $0x28] sm:$0xff]
      %v207 = vld [vmem:[%s193 + $0x30] sm:$0xff]
      %v208 = vld [vmem:[%s193 + $0x38] sm:$0xff]
      %v209 = vld [vmem:[%s193 + $0x40] sm:$0xff]
      %v210 = vld [vmem:[%s193 + $0x48] sm:$0xff]
      %v211 = vld [vmem:[%s193 + $0x50] sm:$0xff]
      %v212 = vld [vmem:[%s193 + $0x58] sm:$0xff]
      %v213 = vld [vmem:[%s193 + $0x60] sm:$0xff]
      %v214 = vld [vmem:[%s193 + $0x68] sm:$0xff]
      %v215 = vld [vmem:[%s193 + $0x70] sm:$0xff]
      %v216 = vld [vmem:[%s193 + $0x78] sm:$0xff]
      %v217 = vld [vmem:[%s1] sm:$0xff]
      %vm218 = vcmask 64512
      %v220 = vsel %vm218, %v201, 0
      %v223 = vsel %vm218, %v202, 0
      %v226 = vsel %vm218, %v203, 0
      %v229 = vsel %vm218, %v204, 0
      %v232 = vsel %vm218, %v205, 0
      %v235 = vsel %vm218, %v206, 0
      %v238 = vsel %vm218, %v207, 0
      %v241 = vsel %vm218, %v208, 0
      %v244 = vsel %vm218, %v209, 0
      %v247 = vsel %vm218, %v210, 0
      %v250 = vsel %vm218, %v211, 0
      %v253 = vsel %vm218, %v212, 0
      %v256 = vsel %vm218, %v213, 0
      %v259 = vsel %vm218, %v214, 0
      %v262 = vsel %vm218, %v215, 0
      %v265 = vsel %vm218, %v216, 0
      %267 = vmatprep.subr.mxu0 0.0
      %268 = vmatpush1.msra.mxu0 %v217
      %269 = vmatprep.subr.mxu0 0.0
      %270 = vmatpush1.msra.mxu0 0.0
      %271 = vmatprep.subr.mxu0 0.0
      %272 = vmatpush1.msra.mxu0 0.0
      %273 = vmatprep.subr.mxu0 0.0
      %274 = vmatpush1.msra.mxu0 0.0
      %275 = vmatprep.subr.mxu0 0.0
      %276 = vmatpush1.msra.mxu0 0.0
      %277 = vmatprep.subr.mxu0 0.0
      %278 = vmatpush1.msra.mxu0 0.0
      %279 = vmatprep.subr.mxu0 0.0
      %280 = vmatpush1.msra.mxu0 0.0
      %281 = vmatprep.subr.mxu0 0.0
      %282 = vmatpush1.msra.mxu0 0.0
      %283 = vmatprep.subr.mxu0 0.0
      %284 = vmatpush1.msra.mxu0 0.0
      %285 = vmatprep.subr.mxu0 0.0
      %286 = vmatpush1.msra.mxu0 0.0
      %287 = vmatprep.subr.mxu0 0.0
      %288 = vmatpush1.msra.mxu0 0.0
      %289 = vmatprep.subr.mxu0 0.0
      %290 = vmatpush1.msra.mxu0 0.0
      %291 = vmatprep.subr.mxu0 0.0
      %292 = vmatpush1.msra.mxu0 0.0
      %293 = vmatprep.subr.mxu0 0.0
      %294 = vmatpush1.msra.mxu0 0.0
      %295 = vmatprep.subr.mxu0 0.0
      %296 = vmatpush1.msra.mxu0 0.0
      %297 = vmatprep.subr.mxu0 0.0
      %298 = vmatpush1.msra.mxu0 0.0
      %299 = vmatprep.subr.mxu0 0.0
      %300 = vmatpush1.msra.mxu0 0.0
      %301 = vmatprep.subr.mxu0 0.0
      %302 = vmatpush1.msra.mxu0 0.0
      %303 = vmatprep.subr.mxu0 0.0
      %304 = vmatpush1.msra.mxu0 0.0
      %305 = vmatprep.subr.mxu0 0.0
      %306 = vmatpush1.msra.mxu0 0.0
      %307 = vmatprep.subr.mxu0 0.0
      %308 = vmatpush1.msra.mxu0 0.0
      %309 = vmatprep.subr.mxu0 0.0
      %310 = vmatpush1.msra.mxu0 0.0
      %311 = vmatprep.subr.mxu0 0.0
      %312 = vmatpush1.msra.mxu0 0.0
      %313 = vmatprep.subr.mxu0 0.0
      %314 = vmatpush1.msra.mxu0 0.0
      %315 = vmatprep.subr.mxu0 0.0
      %316 = vmatpush1.msra.mxu0 0.0
      %317 = vmatprep.subr.mxu0 0.0
      %318 = vmatpush1.msra.mxu0 0.0
      %319 = vmatprep.subr.mxu0 0.0
      %320 = vmatpush1.msra.mxu0 0.0
      %321 = vmatprep.subr.mxu0 0.0
      %322 = vmatpush1.msra.mxu0 0.0
      %323 = vmatprep.subr.mxu0 0.0
      %324 = vmatpush1.msra.mxu0 0.0
      %325 = vmatprep.subr.mxu0 0.0
      %326 = vmatpush1.msra.mxu0 0.0
      %327 = vmatprep.subr.mxu0 0.0
      %328 = vmatpush1.msra.mxu0 0.0
      %329 = vmatprep.subr.mxu0 0.0
      %330 = vmatpush1.msra.mxu0 0.0
      %331 = vmatprep.mubr.f32.mxu0 0.0
      %332 = vmatmul.mubr.f32.gmra.mrb[0].mxu0 %v220
      %v333 = vpop.f32.mrb[0].mxu0
      %v334 = vadd.f32 0.0, %v333
      %v335 = vpop.f32.mrb[0].mxu0
      %336 = vmatprep.mubr.f32.mxu0 0.0
      %337 = vmatmul.mubr.f32.gmra.mrb[0].mxu0 %v223
      %v338 = vpop.f32.mrb[0].mxu0
      %v339 = vadd.f32 0.0, %v338
      %v340 = vpop.f32.mrb[0].mxu0
      %341 = vmatprep.mubr.f32.mxu0 0.0
      %342 = vmatmul.mubr.f32.gmra.mrb[0].mxu0 %v226
      %v343 = vpop.f32.mrb[0].mxu0
      %v344 = vadd.f32 0.0, %v343
      %v345 = vpop.f32.mrb[0].mxu0
      %346 = vmatprep.mubr.f32.mxu0 0.0
      %347 = vmatmul.mubr.f32.gmra.mrb[0].mxu0 %v229
      %v348 = vpop.f32.mrb[0].mxu0
      %v349 = vadd.f32 0.0, %v348
      %v350 = vpop.f32.mrb[0].mxu0
      %351 = vmatprep.mubr.f32.mxu0 0.0
      %352 = vmatmul.mubr.f32.gmra.mrb[0].mxu0 %v232
      %v353 = vpop.f32.mrb[0].mxu0
      %v354 = vadd.f32 0.0, %v353
      %v355 = vpop.f32.mrb[0].mxu0
      %356 = vmatprep.mubr.f32.mxu0 0.0
      %357 = vmatmul.mubr.f32.gmra.mrb[0].mxu0 %v235
      %v358 = vpop.f32.mrb[0].mxu0
      %v359 = vadd.f32 0.0, %v358
      %v360 = vpop.f32.mrb[0].mxu0
      %361 = vmatprep.mubr.f32.mxu0 0.0
      %362 = vmatmul.mubr.f32.gmra.mrb[0].mxu0 %v238
      %v363 = vpop.f32.mrb[0].mxu0
      %v364 = vadd.f32 0.0, %v363
      %v365 = vpop.f32.mrb[0].mxu0
      %366 = vmatprep.mubr.f32.mxu0 0.0
      %367 = vmatmul.mubr.f32.gmra.mrb[0].mxu0 %v241
      %v368 = vpop.f32.mrb[0].mxu0
      %v369 = vadd.f32 0.0, %v368
      %v370 = vpop.f32.mrb[0].mxu0
      %371 = vmatprep.mubr.f32.mxu0 0.0
      %372 = vmatmul.mubr.f32.gmra.mrb[0].mxu0 %v244
      %v373 = vpop.f32.mrb[0].mxu0
      %v374 = vadd.f32 0.0, %v373
      %v375 = vpop.f32.mrb[0].mxu0
      %376 = vmatprep.mubr.f32.mxu0 0.0
      %377 = vmatmul.mubr.f32.gmra.mrb[0].mxu0 %v247
      %v378 = vpop.f32.mrb[0].mxu0
      %v379 = vadd.f32 0.0, %v378
      %v380 = vpop.f32.mrb[0].mxu0
      %381 = vmatprep.mubr.f32.mxu0 0.0
      %382 = vmatmul.mubr.f32.gmra.mrb[0].mxu0 %v250
      %v383 = vpop.f32.mrb[0].mxu0
      %v384 = vadd.f32 0.0, %v383
      %v385 = vpop.f32.mrb[0].mxu0
      %386 = vmatprep.mubr.f32.mxu0 0.0
      %387 = vmatmul.mubr.f32.gmra.mrb[0].mxu0 %v253
      %v388 = vpop.f32.mrb[0].mxu0
      %v389 = vadd.f32 0.0, %v388
      %v390 = vpop.f32.mrb[0].mxu0
      %391 = vmatprep.mubr.f32.mxu0 0.0
      %392 = vmatmul.mubr.f32.gmra.mrb[0].mxu0 %v256
      %v393 = vpop.f32.mrb[0].mxu0
      %v394 = vadd.f32 0.0, %v393
      %v395 = vpop.f32.mrb[0].mxu0
      %396 = vmatprep.mubr.f32.mxu0 0.0
      %397 = vmatmul.mubr.f32.gmra.mrb[0].mxu0 %v259
      %v398 = vpop.f32.mrb[0].mxu0
      %v399 = vadd.f32 0.0, %v398
      %v400 = vpop.f32.mrb[0].mxu0
      %401 = vmatprep.mubr.f32.mxu0 0.0
      %402 = vmatmul.mubr.f32.gmra.mrb[0].mxu0 %v262
      %v403 = vpop.f32.mrb[0].mxu0
      %v404 = vadd.f32 0.0, %v403
      %v405 = vpop.f32.mrb[0].mxu0
      %406 = vmatprep.mubr.f32.mxu0 0.0
      %407 = vmatmul.mubr.f32.gmra.mrb[0].mxu0 %v265
      %v408 = vpop.f32.mrb[0].mxu0
      %v409 = vadd.f32 0.0, %v408
      %v410 = vpop.f32.mrb[0].mxu0
      %411 = vdwg.mxu0
      %v412 = vld [vmem:[%s2] sm:$0x1]
      %v414 = vlaneseq
      %v415 = vshrl.u32 %v414, 7
      %v416 = vsub.s32 0, %v415
      %v417 = vrot.slane %v412, %v416
      %v419 = vmul.f32 %v334, %v417
      %v420 = vmul.f32 %v339, %v417
      %v421 = vmul.f32 %v344, %v417
      %v422 = vmul.f32 %v349, %v417
      %v423 = vmul.f32 %v354, %v417
      %v424 = vmul.f32 %v359, %v417
      %v425 = vmul.f32 %v364, %v417
      %v426 = vmul.f32 %v369, %v417
      %v427 = vmul.f32 %v374, %v417
      %v428 = vmul.f32 %v379, %v417
      %v429 = vmul.f32 %v384, %v417
      %v430 = vmul.f32 %v389, %v417
      %v431 = vmul.f32 %v394, %v417
      %v432 = vmul.f32 %v399, %v417
      %v433 = vmul.f32 %v404, %v417
      %v434 = vmul.f32 %v409, %v417
      %v435 = vld [vmem:[%s3] sm:$0x1]
      %v437 = vlaneseq
      %v438 = vshrl.u32 %v437, 7
      %v439 = vsub.s32 0, %v438
      %v440 = vrot.slane %v435, %v439
      %v442 = vadd.f32 %v419, %v440
      %v443 = vadd.f32 %v420, %v440
      %v444 = vadd.f32 %v421, %v440
      %v445 = vadd.f32 %v422, %v440
      %v446 = vadd.f32 %v423, %v440
      %v447 = vadd.f32 %v424, %v440
      %v448 = vadd.f32 %v425, %v440
      %v449 = vadd.f32 %v426, %v440
      %v450 = vadd.f32 %v427, %v440
      %v451 = vadd.f32 %v428, %v440
      %v452 = vadd.f32 %v429, %v440
      %v453 = vadd.f32 %v430, %v440
      %v454 = vadd.f32 %v431, %v440
      %v455 = vadd.f32 %v432, %v440
      %v456 = vadd.f32 %v433, %v440
      %v457 = vadd.f32 %v434, %v440
      %v458 = vmax.f32 %v442, 0.0
      %v459 = vmax.f32 %v443, 0.0
      %v460 = vmax.f32 %v444, 0.0
      %v461 = vmax.f32 %v445, 0.0
      %v462 = vmax.f32 %v446, 0.0
      %v463 = vmax.f32 %v447, 0.0
      %v464 = vmax.f32 %v448, 0.0
      %v465 = vmax.f32 %v449, 0.0
      %v466 = vmax.f32 %v450, 0.0
      %v467 = vmax.f32 %v451, 0.0
      %v468 = vmax.f32 %v452, 0.0
      %v469 = vmax.f32 %v453, 0.0
      %v470 = vmax.f32 %v454, 0.0
      %v471 = vmax.f32 %v455, 0.0
      %v472 = vmax.f32 %v456, 0.0
      %v473 = vmax.f32 %v457, 0.0
      %vm474 = vcmask 31744
      %475 = vst.msk [vmem:[%s199] sm:$0xff] %vm474, %v458
      %476 = vst.msk [vmem:[%s199 + $0x8] sm:$0xff] %vm474, %v459
      %477 = vst.msk [vmem:[%s199 + $0x10] sm:$0xff] %vm474, %v460
      %478 = vst.msk [vmem:[%s199 + $0x18] sm:$0xff] %vm474, %v461
      %479 = vst.msk [vmem:[%s199 + $0x20] sm:$0xff] %vm474, %v462
      %480 = vst.msk [vmem:[%s199 + $0x28] sm:$0xff] %vm474, %v463
      %481 = vst.msk [vmem:[%s199 + $0x30] sm:$0xff] %vm474, %v464
      %482 = vst.msk [vmem:[%s199 + $0x38] sm:$0xff] %vm474, %v465
      %483 = vst.msk [vmem:[%s199 + $0x40] sm:$0xff] %vm474, %v466
      %484 = vst.msk [vmem:[%s199 + $0x48] sm:$0xff] %vm474, %v467
      %485 = vst.msk [vmem:[%s199 + $0x50] sm:$0xff] %vm474, %v468
      %486 = vst.msk [vmem:[%s199 + $0x58] sm:$0xff] %vm474, %v469
      %487 = vst.msk [vmem:[%s199 + $0x60] sm:$0xff] %vm474, %v470
      %488 = vst.msk [vmem:[%s199 + $0x68] sm:$0xff] %vm474, %v471
      %489 = vst.msk [vmem:[%s199 + $0x70] sm:$0xff] %vm474, %v472
      %490 = vst.msk [vmem:[%s199 + $0x78] sm:$0xff] %vm474, %v473
      %s491 = smul.u32 16, %s15
      %p492 = scmp.lt.s32.totalorder %s491, 63
      %s493 = scalar_select %p492, %s491, 63
      %s494 = smul.addr %s493, 8
      %s495 = scalar_lea.vmem %s4, %s494
      // Predicated region
      $region37: #{ffc_forward.10} parent=35 // pred_check
        %p496 = pneg %p122
      $region38: #{ffc_forward.10} parent=35 // pred_check_branch
        %498 = sbr.rel (%p496) target = $region40
      $region39: #{ffc_forward.10} parent=35 // pred_region
        %s499 = smul.u32 16, %s15
      $region40: #{ffc_forward.10} parent=35 // pred_fallthru
        _
    $region36: #{ffc_forward.10} parent=5 // pred_fallthru
      _
    %p500 = scmp.le.s32.totalorder 2, %s10
    // Predicated region
    $region41: #{ffc_forward.10} parent=5 // pred_check
      %p501 = pneg %p500
    $region42: #{ffc_forward.10} parent=5 // pred_check_branch
      %503 = sbr.rel (%p501) target = $region44
    $region43: #{ffc_forward.10} parent=5 // pred_region
      %s504 = ssub.s32 %s10, 2
      // Predicated region
      $region45: #{ffc_forward.10} parent=43 // pred_check
        %p505 = pneg %p128
      $region46: #{ffc_forward.10} parent=43 // pred_check_branch
        %507 = sbr.rel (%p505) target = $region48
      $region47: #{ffc_forward.10} parent=43 // pred_region
        %s508 = smul.u32 16, %s16
        %p509 = scmp.lt.s32.totalorder %s508, 63
        %s510 = scalar_select %p509, %s508, 63
        %s511 = smul.addr %s510, 8
        %s512 = scalar_lea.vmem %s4, %s511
      $region48: #{ffc_forward.10} parent=43 // pred_fallthru
        _
    $region44: #{ffc_forward.10} parent=5 // pred_fallthru
      _
  $region6: #{ffc_forward.10} parent=0 // loop_footer
    %s14 = sadd.s32 1, %s10
  $region7: #{ffc_forward.10} parent=0 // loop_footer_branch
    %9 = sbr.rel target = $region3
  $region8: #{ffc_forward.10} parent=0 // loop_exit
    _

// kernel: ffc_forward.11
$region0: #{ffc_forward.11}
  #allocation0 [shape = 'u32[]', space=smem, size = 0x4, offset = 0x4, fixed_abs, tag = 'smem constant byte address 0x4 - core index']
  #allocation1 [shape = 'u32[144,128]{1,0:T(1,128)}', space=vmem, size = 0x12000, scoped, tag = 'internal scratch']
  %s0 = inlined_call_operand.vmem [shape: f32[384,8], index: 0, kind: input, shape index: {}]
  %s1 = inlined_call_operand.vmem [shape: f32[8,8], index: 1, kind: input, shape index: {}]
  %s2 = inlined_call_operand.vmem [shape: f32[1,8], index: 2, kind: output, shape index: {0}]
  %s3 = inlined_call_operand.vmem [shape: f32[1,8], index: 3, kind: output, shape index: {1}]
  %4 = xla_tuple %s2, %s3
  %s5 = sld [smem:[#allocation0]]
  $region53: #{ffc_forward.11} parent=0
    _
  %s7 = ssub.s32 1, %s5
  %s8 = scalar_select 0, %s7, %s5
  loop: start=0, step=1, limit=5
  $region2: #{ffc_forward.11} parent=0 // loop_pre_header
    _
  $region3: #{ffc_forward.11} parent=0 // loop_header
    %s10 = sphi 0, %s14
    %p11 = scmp.ge.s32.totalorder %s10, 5
    %s20 = sphi 0, %s22
    %s23 = sphi 0, %s20
    %s24 = sphi 0, %s23
    %s40 = sphi 0, %s24
    %s44 = sphi 0, %s44
    %s46 = sphi 0, %s44
    %s47 = sphi 0, %s46
    %s61 = sphi 0, %s47
    %s65 = sphi 0, %s65
    %s67 = sphi 0, %s65
    %s68 = sphi 0, %s67
    %s82 = sphi 0, %s68
    %s86 = sphi 0, %s86
    %s88 = sphi 0, %s86
    %s89 = sphi 0, %s88
    %s103 = sphi 0, %s89
  $region4: #{ffc_forward.11} parent=0 // loop_header_branch
    %13 = sbr.rel (%p11) target = $region8
  $region5: #{ffc_forward.11} parent=0 // loop_body
    %s15 = ssub.s32 %s10, 1
    %s16 = ssub.s32 %s10, 2
    %s17 = sadd.s32 %s10, 1
    %s18 = ssub.s32 %s10, %s17
    %p19 = scmp.eq.s32.totalorder %s18, 0
    %s21 = sadd.s32 %s20, 1
    %s22 = scalar_select %p19, %s20, %s21
    %p25 = pneg %p19
    %p26 = scmp.eq.s32.totalorder %s10, 2
    %p27 = por %p25, %p26
    %p28 = scmp.ne.s32.totalorder %s20, %s23
    %p29 = scmp.eq.s32.totalorder %s10, 0
    %p30 = por %p28, %p29
    %p31 = scmp.ne.s32.totalorder %s20, %s23
    %p32 = scmp.eq.s32.totalorder %s15, 2
    %p33 = por %p31, %p32
    %p34 = scmp.ne.s32.totalorder %s23, %s24
    %p35 = scmp.eq.s32.totalorder %s15, 0
    %p36 = por %p34, %p35
    %p37 = scmp.ne.s32.totalorder %s23, %s24
    %p38 = scmp.eq.s32.totalorder %s16, 2
    %p39 = por %p37, %p38
    %p41 = scmp.ne.s32.totalorder %s24, %s40
    %p42 = scmp.eq.s32.totalorder %s16, 0
    %p43 = por %p41, %p42
    %s45 = sadd.s32 %s44, 1
    %p48 = scmp.eq.s32.totalorder %s10, 2
    %p49 = scmp.ne.s32.totalorder %s44, %s46
    %p50 = scmp.eq.s32.totalorder %s10, 0
    %p51 = por %p49, %p50
    %p52 = scmp.ne.s32.totalorder %s44, %s46
    %p53 = scmp.eq.s32.totalorder %s15, 2
    %p54 = por %p52, %p53
    %p55 = scmp.ne.s32.totalorder %s46, %s47
    %p56 = scmp.eq.s32.totalorder %s15, 0
    %p57 = por %p55, %p56
    %p58 = scmp.ne.s32.totalorder %s46, %s47
    %p59 = scmp.eq.s32.totalorder %s16, 2
    %p60 = por %p58, %p59
    %p62 = scmp.ne.s32.totalorder %s47, %s61
    %p63 = scmp.eq.s32.totalorder %s16, 0
    %p64 = por %p62, %p63
    %s66 = sadd.s32 %s65, 1
    %p69 = scmp.eq.s32.totalorder %s10, 2
    %p70 = scmp.ne.s32.totalorder %s65, %s67
    %p71 = scmp.eq.s32.totalorder %s10, 0
    %p72 = por %p70, %p71
    %p73 = scmp.ne.s32.totalorder %s65, %s67
    %p74 = scmp.eq.s32.totalorder %s15, 2
    %p75 = por %p73, %p74
    %p76 = scmp.ne.s32.totalorder %s67, %s68
    %p77 = scmp.eq.s32.totalorder %s15, 0
    %p78 = por %p76, %p77
    %p79 = scmp.ne.s32.totalorder %s67, %s68
    %p80 = scmp.eq.s32.totalorder %s16, 2
    %p81 = por %p79, %p80
    %p83 = scmp.ne.s32.totalorder %s68, %s82
    %p84 = scmp.eq.s32.totalorder %s16, 0
    %p85 = por %p83, %p84
    %s87 = sadd.s32 %s86, 1
    %p90 = scmp.eq.s32.totalorder %s10, 2
    %p91 = scmp.ne.s32.totalorder %s86, %s88
    %p92 = scmp.eq.s32.totalorder %s10, 0
    %p93 = por %p91, %p92
    %p94 = scmp.ne.s32.totalorder %s86, %s88
    %p95 = scmp.eq.s32.totalorder %s15, 2
    %p96 = por %p94, %p95
    %p97 = scmp.ne.s32.totalorder %s88, %s89
    %p98 = scmp.eq.s32.totalorder %s15, 0
    %p99 = por %p97, %p98
    %p100 = scmp.ne.s32.totalorder %s88, %s89
    %p101 = scmp.eq.s32.totalorder %s16, 2
    %p102 = por %p100, %p101
    %p104 = scmp.ne.s32.totalorder %s89, %s103
    %p105 = scmp.eq.s32.totalorder %s16, 0
    %p106 = por %p104, %p105
    %p107 = scmp.le.s32.totalorder 1, %s10
    %p108 = scmp.lt.s32.totalorder %s10, 4
    %p109 = pnand %p107, %p108
    %p110 = pneg %p109
    // Predicated region
    $region9: #{ffc_forward.11} parent=5 // pred_check
      _
    $region10: #{ffc_forward.11} parent=5 // pred_check_branch
      %112 = sbr.rel (%p109) target = $region12
    $region11: #{ffc_forward.11} parent=5 // pred_region
      %s113 = ssub.s32 %s10, 1
      // Predicated region
      $region13: #{ffc_forward.11} parent=11 // pred_check
        %p114 = pneg %p57
      $region14: #{ffc_forward.11} parent=11 // pred_check_branch
        %116 = sbr.rel (%p114) target = $region16
      $region15: #{ffc_forward.11} parent=11 // pred_region
        _
      $region16: #{ffc_forward.11} parent=11 // pred_fallthru
        _
    $region12: #{ffc_forward.11} parent=5 // pred_fallthru
      _
    %p117 = scmp.lt.s32.totalorder %s10, 3
    // Predicated region
    $region17: #{ffc_forward.11} parent=5 // pred_check
      %p118 = pneg %p117
    $region18: #{ffc_forward.11} parent=5 // pred_check_branch
      %120 = sbr.rel (%p118) target = $region20
    $region19: #{ffc_forward.11} parent=5 // pred_region
      // Predicated region
      $region21: #{ffc_forward.11} parent=19 // pred_check
        %p121 = pneg %p30
      $region22: #{ffc_forward.11} parent=19 // pred_check_branch
        %123 = sbr.rel (%p121) target = $region24
      $region23: #{ffc_forward.11} parent=19 // pred_region
        %s124 = smul.u32 16, %s10
        %p125 = scmp.lt.s32.totalorder %s124, 47
        %s126 = scalar_select %p125, %s124, 47
        %s127 = smul.addr %s126, 8
        %s128 = scalar_lea.vmem %s0, %s127
        %s129 = smul.u32 16, %s10
      $region24: #{ffc_forward.11} parent=19 // pred_fallthru
        _
    $region20: #{ffc_forward.11} parent=5 // pred_fallthru
      _
    %p130 = scmp.le.s32.totalorder 1, %s10
    %p131 = scmp.lt.s32.totalorder %s10, 4
    %p132 = pnand %p130, %p131
    %p133 = pneg %p132
    // Predicated region
    $region25: #{ffc_forward.11} parent=5 // pred_check
      _
    $region26: #{ffc_forward.11} parent=5 // pred_check_branch
      %135 = sbr.rel (%p132) target = $region28
    $region27: #{ffc_forward.11} parent=5 // pred_region
      %s136 = ssub.s32 %s10, 1
      %s137 = smul.u32 16, %s15
      %p138 = scmp.lt.s32.totalorder %s137, 47
      %s139 = scalar_select %p138, %s137, 47
      %s140 = smul.addr %s139, 8
      %s141 = scalar_lea.vmem %s0, %s140
      %p142 = pneg %p36
      %p143 = pneg %p33
      %p144 = pneg %p57
      %p145 = pneg %p54
      %p146 = pneg %p78
      %p147 = pneg %p75
      %p148 = pneg %p99
      %p149 = pneg %p96
      %s150 = smul.u32 16, %s15
      %p151 = scmp.lt.s32.totalorder %s150, 47
      %s152 = scalar_select %p151, %s150, 47
      %s153 = smul.addr %s152, 8
      %s154 = scalar_lea.vmem %s0, %s153
      %s155 = smul.u32 16, %s15
      %p156 = scmp.eq.s32.totalorder %s15, 0
      // Predicated region
      $region29: #{ffc_forward.11} parent=27 // pred_check
        %p157 = pneg %p156
      $region30: #{ffc_forward.11} parent=27 // pred_check_branch
        %159 = sbr.rel (%p157) target = $region32
      $region31: #{ffc_forward.11} parent=27 // pred_region
        %vm160 = vcmask 57344
        %161 = vst.msk [vmem:[%s2] sm:$0x1] %vm160, 0.0
        %162 = vst.msk [vmem:[%s3] sm:$0x1] %vm160, 0.0
      $region32: #{ffc_forward.11} parent=27 // pred_fallthru
        _
      %v163 = vld [vmem:[%s154] sm:$0xff]
      %v164 = vld [vmem:[%s154 + $0x8] sm:$0xff]
      %v165 = vld [vmem:[%s154 + $0x10] sm:$0xff]
      %v166 = vld [vmem:[%s154 + $0x18] sm:$0xff]
      %v167 = vld [vmem:[%s154 + $0x20] sm:$0xff]
      %v168 = vld [vmem:[%s154 + $0x28] sm:$0xff]
      %v169 = vld [vmem:[%s154 + $0x30] sm:$0xff]
      %v170 = vld [vmem:[%s154 + $0x38] sm:$0xff]
      %v171 = vld [vmem:[%s154 + $0x40] sm:$0xff]
      %v172 = vld [vmem:[%s154 + $0x48] sm:$0xff]
      %v173 = vld [vmem:[%s154 + $0x50] sm:$0xff]
      %v174 = vld [vmem:[%s154 + $0x58] sm:$0xff]
      %v175 = vld [vmem:[%s154 + $0x60] sm:$0xff]
      %v176 = vld [vmem:[%s154 + $0x68] sm:$0xff]
      %v177 = vld [vmem:[%s154 + $0x70] sm:$0xff]
      %v178 = vld [vmem:[%s154 + $0x78] sm:$0xff]
      %v179 = vld [vmem:[%s1] sm:$0xff]
      %vm180 = vcmask 64512
      %v182 = vsel %vm180, %v163, 0
      %v185 = vsel %vm180, %v164, 0
      %v188 = vsel %vm180, %v165, 0
      %v191 = vsel %vm180, %v166, 0
      %v194 = vsel %vm180, %v167, 0
      %v197 = vsel %vm180, %v168, 0
      %v200 = vsel %vm180, %v169, 0
      %v203 = vsel %vm180, %v170, 0
      %v206 = vsel %vm180, %v171, 0
      %v209 = vsel %vm180, %v172, 0
      %v212 = vsel %vm180, %v173, 0
      %v215 = vsel %vm180, %v174, 0
      %v218 = vsel %vm180, %v175, 0
      %v221 = vsel %vm180, %v176, 0
      %v224 = vsel %vm180, %v177, 0
      %v227 = vsel %vm180, %v178, 0
      %229 = vmatprep.subr.mxu0 0.0
      %230 = vmatpush1.msra.mxu0 %v179
      %231 = vmatprep.subr.mxu0 0.0
      %232 = vmatpush1.msra.mxu0 0.0
      %233 = vmatprep.subr.mxu0 0.0
      %234 = vmatpush1.msra.mxu0 0.0
      %235 = vmatprep.subr.mxu0 0.0
      %236 = vmatpush1.msra.mxu0 0.0
      %237 = vmatprep.subr.mxu0 0.0
      %238 = vmatpush1.msra.mxu0 0.0
      %239 = vmatprep.subr.mxu0 0.0
      %240 = vmatpush1.msra.mxu0 0.0
      %241 = vmatprep.subr.mxu0 0.0
      %242 = vmatpush1.msra.mxu0 0.0
      %243 = vmatprep.subr.mxu0 0.0
      %244 = vmatpush1.msra.mxu0 0.0
      %245 = vmatprep.subr.mxu0 0.0
      %246 = vmatpush1.msra.mxu0 0.0
      %247 = vmatprep.subr.mxu0 0.0
      %248 = vmatpush1.msra.mxu0 0.0
      %249 = vmatprep.subr.mxu0 0.0
      %250 = vmatpush1.msra.mxu0 0.0
      %251 = vmatprep.subr.mxu0 0.0
      %252 = vmatpush1.msra.mxu0 0.0
      %253 = vmatprep.subr.mxu0 0.0
      %254 = vmatpush1.msra.mxu0 0.0
      %255 = vmatprep.subr.mxu0 0.0
      %256 = vmatpush1.msra.mxu0 0.0
      %257 = vmatprep.subr.mxu0 0.0
      %258 = vmatpush1.msra.mxu0 0.0
      %259 = vmatprep.subr.mxu0 0.0
      %260 = vmatpush1.msra.mxu0 0.0
      %261 = vmatprep.subr.mxu0 0.0
      %262 = vmatpush1.msra.mxu0 0.0
      %263 = vmatprep.subr.mxu0 0.0
      %264 = vmatpush1.msra.mxu0 0.0
      %265 = vmatprep.subr.mxu0 0.0
      %266 = vmatpush1.msra.mxu0 0.0
      %267 = vmatprep.subr.mxu0 0.0
      %268 = vmatpush1.msra.mxu0 0.0
      %269 = vmatprep.subr.mxu0 0.0
      %270 = vmatpush1.msra.mxu0 0.0
      %271 = vmatprep.subr.mxu0 0.0
      %272 = vmatpush1.msra.mxu0 0.0
      %273 = vmatprep.subr.mxu0 0.0
      %274 = vmatpush1.msra.mxu0 0.0
      %275 = vmatprep.subr.mxu0 0.0
      %276 = vmatpush1.msra.mxu0 0.0
      %277 = vmatprep.subr.mxu0 0.0
      %278 = vmatpush1.msra.mxu0 0.0
      %279 = vmatprep.subr.mxu0 0.0
      %280 = vmatpush1.msra.mxu0 0.0
      %281 = vmatprep.subr.mxu0 0.0
      %282 = vmatpush1.msra.mxu0 0.0
      %283 = vmatprep.subr.mxu0 0.0
      %284 = vmatpush1.msra.mxu0 0.0
      %285 = vmatprep.subr.mxu0 0.0
      %286 = vmatpush1.msra.mxu0 0.0
      %287 = vmatprep.subr.mxu0 0.0
      %288 = vmatpush1.msra.mxu0 0.0
      %289 = vmatprep.subr.mxu0 0.0
      %290 = vmatpush1.msra.mxu0 0.0
      %291 = vmatprep.subr.mxu0 0.0
      %292 = vmatpush1.msra.mxu0 0.0
      %293 = vmatprep.mubr.f32.mxu0 0.0
      %294 = vmatmul.mubr.f32.gmra.mrb[0].mxu0 %v182
      %v295 = vpop.f32.mrb[0].mxu0
      %v296 = vadd.f32 0.0, %v295
      %v297 = vpop.f32.mrb[0].mxu0
      %298 = vmatprep.mubr.f32.mxu0 0.0
      %299 = vmatmul.mubr.f32.gmra.mrb[0].mxu0 %v185
      %v300 = vpop.f32.mrb[0].mxu0
      %v301 = vadd.f32 0.0, %v300
      %v302 = vpop.f32.mrb[0].mxu0
      %303 = vmatprep.mubr.f32.mxu0 0.0
      %304 = vmatmul.mubr.f32.gmra.mrb[0].mxu0 %v188
      %v305 = vpop.f32.mrb[0].mxu0
      %v306 = vadd.f32 0.0, %v305
      %v307 = vpop.f32.mrb[0].mxu0
      %308 = vmatprep.mubr.f32.mxu0 0.0
      %309 = vmatmul.mubr.f32.gmra.mrb[0].mxu0 %v191
      %v310 = vpop.f32.mrb[0].mxu0
      %v311 = vadd.f32 0.0, %v310
      %v312 = vpop.f32.mrb[0].mxu0
      %313 = vmatprep.mubr.f32.mxu0 0.0
      %314 = vmatmul.mubr.f32.gmra.mrb[0].mxu0 %v194
      %v315 = vpop.f32.mrb[0].mxu0
      %v316 = vadd.f32 0.0, %v315
      %v317 = vpop.f32.mrb[0].mxu0
      %318 = vmatprep.mubr.f32.mxu0 0.0
      %319 = vmatmul.mubr.f32.gmra.mrb[0].mxu0 %v197
      %v320 = vpop.f32.mrb[0].mxu0
      %v321 = vadd.f32 0.0, %v320
      %v322 = vpop.f32.mrb[0].mxu0
      %323 = vmatprep.mubr.f32.mxu0 0.0
      %324 = vmatmul.mubr.f32.gmra.mrb[0].mxu0 %v200
      %v325 = vpop.f32.mrb[0].mxu0
      %v326 = vadd.f32 0.0, %v325
      %v327 = vpop.f32.mrb[0].mxu0
      %328 = vmatprep.mubr.f32.mxu0 0.0
      %329 = vmatmul.mubr.f32.gmra.mrb[0].mxu0 %v203
      %v330 = vpop.f32.mrb[0].mxu0
      %v331 = vadd.f32 0.0, %v330
      %v332 = vpop.f32.mrb[0].mxu0
      %333 = vmatprep.mubr.f32.mxu0 0.0
      %334 = vmatmul.mubr.f32.gmra.mrb[0].mxu0 %v206
      %v335 = vpop.f32.mrb[0].mxu0
      %v336 = vadd.f32 0.0, %v335
      %v337 = vpop.f32.mrb[0].mxu0
      %338 = vmatprep.mubr.f32.mxu0 0.0
      %339 = vmatmul.mubr.f32.gmra.mrb[0].mxu0 %v209
      %v340 = vpop.f32.mrb[0].mxu0
      %v341 = vadd.f32 0.0, %v340
      %v342 = vpop.f32.mrb[0].mxu0
      %343 = vmatprep.mubr.f32.mxu0 0.0
      %344 = vmatmul.mubr.f32.gmra.mrb[0].mxu0 %v212
      %v345 = vpop.f32.mrb[0].mxu0
      %v346 = vadd.f32 0.0, %v345
      %v347 = vpop.f32.mrb[0].mxu0
      %348 = vmatprep.mubr.f32.mxu0 0.0
      %349 = vmatmul.mubr.f32.gmra.mrb[0].mxu0 %v215
      %v350 = vpop.f32.mrb[0].mxu0
      %v351 = vadd.f32 0.0, %v350
      %v352 = vpop.f32.mrb[0].mxu0
      %353 = vmatprep.mubr.f32.mxu0 0.0
      %354 = vmatmul.mubr.f32.gmra.mrb[0].mxu0 %v218
      %v355 = vpop.f32.mrb[0].mxu0
      %v356 = vadd.f32 0.0, %v355
      %v357 = vpop.f32.mrb[0].mxu0
      %358 = vmatprep.mubr.f32.mxu0 0.0
      %359 = vmatmul.mubr.f32.gmra.mrb[0].mxu0 %v221
      %v360 = vpop.f32.mrb[0].mxu0
      %v361 = vadd.f32 0.0, %v360
      %v362 = vpop.f32.mrb[0].mxu0
      %363 = vmatprep.mubr.f32.mxu0 0.0
      %364 = vmatmul.mubr.f32.gmra.mrb[0].mxu0 %v224
      %v365 = vpop.f32.mrb[0].mxu0
      %v366 = vadd.f32 0.0, %v365
      %v367 = vpop.f32.mrb[0].mxu0
      %368 = vmatprep.mubr.f32.mxu0 0.0
      %369 = vmatmul.mubr.f32.gmra.mrb[0].mxu0 %v227
      %v370 = vpop.f32.mrb[0].mxu0
      %v371 = vadd.f32 0.0, %v370
      %v372 = vpop.f32.mrb[0].mxu0
      %373 = vdwg.mxu0
      %v374 = vld [vmem:[%s2] sm:$0x1]
      %v375 = vsel %vm180, %v296, 0.0
      %v376 = vsel %vm180, %v301, 0.0
      %v377 = vadd.f32 %v375, %v376
      %v378 = vsel %vm180, %v306, 0.0
      %v379 = vadd.f32 %v377, %v378
      %v380 = vsel %vm180, %v311, 0.0
      %v381 = vadd.f32 %v379, %v380
      %v382 = vsel %vm180, %v316, 0.0
      %v383 = vadd.f32 %v381, %v382
      %v384 = vsel %vm180, %v321, 0.0
      %v385 = vadd.f32 %v383, %v384
      %v386 = vsel %vm180, %v326, 0.0
      %v387 = vadd.f32 %v385, %v386
      %v388 = vsel %vm180, %v331, 0.0
      %v389 = vadd.f32 %v387, %v388
      %v390 = vsel %vm180, %v336, 0.0
      %v391 = vadd.f32 %v389, %v390
      %v392 = vsel %vm180, %v341, 0.0
      %v393 = vadd.f32 %v391, %v392
      %v394 = vsel %vm180, %v346, 0.0
      %v395 = vadd.f32 %v393, %v394
      %v396 = vsel %vm180, %v351, 0.0
      %v397 = vadd.f32 %v395, %v396
      %v398 = vsel %vm180, %v356, 0.0
      %v399 = vadd.f32 %v397, %v398
      %v400 = vsel %vm180, %v361, 0.0
      %v401 = vadd.f32 %v399, %v400
      %v402 = vsel %vm180, %v366, 0.0
      %v403 = vadd.f32 %v401, %v402
      %v404 = vsel %vm180, %v371, 0.0
      %v405 = vadd.f32 %v403, %v404
      %v406 = vrot.slane %v405, 4
      %v407 = vadd.f32 %v405, %v406
      %v408 = vrot.slane %v407, 2
      %v409 = vadd.f32 %v407, %v408
      %v410 = vrot.slane %v409, 1
      %v411 = vadd.f32 %v409, %v410
      %v412 = vadd.f32 %v374, %v411
      %vm413 = vcmask 57344
      %414 = vst.msk [vmem:[%s2] sm:$0x1] %vm413, %v412
      %v415 = vld [vmem:[%s3] sm:$0x1]
      %v416 = vmul.f32 %v296, %v296
      %v417 = vmul.f32 %v301, %v301
      %v418 = vmul.f32 %v306, %v306
      %v419 = vmul.f32 %v311, %v311
      %v420 = vmul.f32 %v316, %v316
      %v421 = vmul.f32 %v321, %v321
      %v422 = vmul.f32 %v326, %v326
      %v423 = vmul.f32 %v331, %v331
      %v424 = vmul.f32 %v336, %v336
      %v425 = vmul.f32 %v341, %v341
      %v426 = vmul.f32 %v346, %v346
      %v427 = vmul.f32 %v351, %v351
      %v428 = vmul.f32 %v356, %v356
      %v429 = vmul.f32 %v361, %v361
      %v430 = vmul.f32 %v366, %v366
      %v431 = vmul.f32 %v371, %v371
      %v432 = vsel %vm180, %v416, 0.0
      %v433 = vsel %vm180, %v417, 0.0
      %v434 = vadd.f32 %v432, %v433
      %v435 = vsel %vm180, %v418, 0.0
      %v436 = vadd.f32 %v434, %v435
      %v437 = vsel %vm180, %v419, 0.0
      %v438 = vadd.f32 %v436, %v437
      %v439 = vsel %vm180, %v420, 0.0
      %v440 = vadd.f32 %v438, %v439
      %v441 = vsel %vm180, %v421, 0.0
      %v442 = vadd.f32 %v440, %v441
      %v443 = vsel %vm180, %v422, 0.0
      %v444 = vadd.f32 %v442, %v443
      %v445 = vsel %vm180, %v423, 0.0
      %v446 = vadd.f32 %v444, %v445
      %v447 = vsel %vm180, %v424, 0.0
      %v448 = vadd.f32 %v446, %v447
      %v449 = vsel %vm180, %v425, 0.0
      %v450 = vadd.f32 %v448, %v449
      %v451 = vsel %vm180, %v426, 0.0
      %v452 = vadd.f32 %v450, %v451
      %v453 = vsel %vm180, %v427, 0.0
      %v454 = vadd.f32 %v452, %v453
      %v455 = vsel %vm180, %v428, 0.0
      %v456 = vadd.f32 %v454, %v455
      %v457 = vsel %vm180, %v429, 0.0
      %v458 = vadd.f32 %v456, %v457
      %v459 = vsel %vm180, %v430, 0.0
      %v460 = vadd.f32 %v458, %v459
      %v461 = vsel %vm180, %v431, 0.0
      %v462 = vadd.f32 %v460, %v461
      %v463 = vrot.slane %v462, 4
      %v464 = vadd.f32 %v462, %v463
      %v465 = vrot.slane %v464, 2
      %v466 = vadd.f32 %v464, %v465
      %v467 = vrot.slane %v466, 1
      %v468 = vadd.f32 %v466, %v467
      %v469 = vadd.f32 %v415, %v468
      %470 = vst.msk [vmem:[%s3] sm:$0x1] %vm413, %v469
      // Predicated region
      $region33: #{ffc_forward.11} parent=27 // pred_check
        %p471 = pneg %p75
      $region34: #{ffc_forward.11} parent=27 // pred_check_branch
        %473 = sbr.rel (%p471) target = $region36
      $region35: #{ffc_forward.11} parent=27 // pred_region
        _
      $region36: #{ffc_forward.11} parent=27 // pred_fallthru
        _
      // Predicated region
      $region37: #{ffc_forward.11} parent=27 // pred_check
        %p474 = pneg %p96
      $region38: #{ffc_forward.11} parent=27 // pred_check_branch
        %476 = sbr.rel (%p474) target = $region40
      $region39: #{ffc_forward.11} parent=27 // pred_region
        _
      $region40: #{ffc_forward.11} parent=27 // pred_fallthru
        _
      // Predicated region
      $region41: #{ffc_forward.11} parent=27 // pred_check
        %p477 = pneg %p75
      $region42: #{ffc_forward.11} parent=27 // pred_check_branch
        %479 = sbr.rel (%p477) target = $region44
      $region43: #{ffc_forward.11} parent=27 // pred_region
        _
      $region44: #{ffc_forward.11} parent=27 // pred_fallthru
        _
      // Predicated region
      $region45: #{ffc_forward.11} parent=27 // pred_check
        %p480 = pneg %p96
      $region46: #{ffc_forward.11} parent=27 // pred_check_branch
        %482 = sbr.rel (%p480) target = $region48
      $region47: #{ffc_forward.11} parent=27 // pred_region
        _
      $region48: #{ffc_forward.11} parent=27 // pred_fallthru
        _
    $region28: #{ffc_forward.11} parent=5 // pred_fallthru
      _
    %p483 = scmp.le.s32.totalorder 2, %s10
    // Predicated region
    $region49: #{ffc_forward.11} parent=5 // pred_check
      %p484 = pneg %p483
    $region50: #{ffc_forward.11} parent=5 // pred_check_branch
      %486 = sbr.rel (%p484) target = $region52
    $region51: #{ffc_forward.11} parent=5 // pred_region
      %s487 = ssub.s32 %s10, 2
    $region52: #{ffc_forward.11} parent=5 // pred_fallthru
      _
  $region6: #{ffc_forward.11} parent=0 // loop_footer
    %s14 = sadd.s32 1, %s10
  $region7: #{ffc_forward.11} parent=0 // loop_footer_branch
    %9 = sbr.rel target = $region3
  $region8: #{ffc_forward.11} parent=0 // loop_exit
    _

// kernel: ffc_forward.8
$region0: #{ffc_forward.8}
  #allocation0 [shape = 'u32[]', space=smem, size = 0x4, offset = 0x4, fixed_abs, tag = 'smem constant byte address 0x4 - core index']
  #allocation1 [shape = 'u32[144,128]{1,0:T(1,128)}', space=vmem, size = 0x12000, scoped, tag = 'internal scratch']
  %s0 = inlined_call_operand.vmem [shape: f32[2,18,18,8], index: 0, kind: input, shape index: {}]
  %s1 = inlined_call_operand.vmem [shape: f32[2,18,18,8], index: 1, kind: input, shape index: {}]
  %s2 = inlined_call_operand.vmem [shape: f32[9,8,16], index: 2, kind: input, shape index: {}]
  %s3 = inlined_call_operand.vmem [shape: f32[9,8,16], index: 3, kind: input, shape index: {}]
  %s4 = inlined_call_operand.vmem [shape: f32[2,16,16,16], index: 4, kind: output, shape index: {}]
  %s5 = sld [smem:[#allocation0]]
  $region49: #{ffc_forward.8} parent=0
    _
  %s7 = ssub.s32 1, %s5
  %s8 = scalar_select 0, %s7, %s5
  loop: start=0, step=1, limit=4
  $region2: #{ffc_forward.8} parent=0 // loop_pre_header
    _
  $region3: #{ffc_forward.8} parent=0 // loop_header
    %s10 = sphi 0, %s14
    %p11 = scmp.ge.s32.totalorder %s10, 4
    %s20 = sphi 0, %s22
    %s23 = sphi 0, %s20
    %s24 = sphi 0, %s23
    %s40 = sphi 0, %s24
    %s46 = sphi 0, %s48
    %s49 = sphi 0, %s46
    %s50 = sphi 0, %s49
    %s66 = sphi 0, %s50
    %s70 = sphi 0, %s70
    %s72 = sphi 0, %s70
    %s73 = sphi 0, %s72
    %s87 = sphi 0, %s73
    %s91 = sphi 0, %s91
    %s93 = sphi 0, %s91
    %s94 = sphi 0, %s93
    %s108 = sphi 0, %s94
    %s114 = sphi 0, %s116
    %s117 = sphi 0, %s114
    %s118 = sphi 0, %s117
    %s134 = sphi 0, %s118
  $region4: #{ffc_forward.8} parent=0 // loop_header_branch
    %13 = sbr.rel (%p11) target = $region8
  $region5: #{ffc_forward.8} parent=0 // loop_body
    %s15 = ssub.s32 %s10, 1
    %s16 = ssub.s32 %s10, 2
    %s17 = sadd.s32 %s10, 1
    %s18 = ssub.s32 %s10, %s17
    %p19 = scmp.eq.s32.totalorder %s18, 0
    %s21 = sadd.s32 %s20, 1
    %s22 = scalar_select %p19, %s20, %s21
    %p25 = pneg %p19
    %p26 = scmp.eq.s32.totalorder %s10, 1
    %p27 = por %p25, %p26
    %p28 = scmp.ne.s32.totalorder %s20, %s23
    %p29 = scmp.eq.s32.totalorder %s10, 0
    %p30 = por %p28, %p29
    %p31 = scmp.ne.s32.totalorder %s20, %s23
    %p32 = scmp.eq.s32.totalorder %s15, 1
    %p33 = por %p31, %p32
    %p34 = scmp.ne.s32.totalorder %s23, %s24
    %p35 = scmp.eq.s32.totalorder %s15, 0
    %p36 = por %p34, %p35
    %p37 = scmp.ne.s32.totalorder %s23, %s24
    %p38 = scmp.eq.s32.totalorder %s16, 1
    %p39 = por %p37, %p38
    %p41 = scmp.ne.s32.totalorder %s24, %s40
    %p42 = scmp.eq.s32.totalorder %s16, 0
    %p43 = por %p41, %p42
    %s44 = ssub.s32 %s10, %s17
    %p45 = scmp.eq.s32.totalorder %s44, 0
    %s47 = sadd.s32 %s46, 1
    %s48 = scalar_select %p45, %s46, %s47
    %p51 = pneg %p45
    %p52 = scmp.eq.s32.totalorder %s10, 1
    %p53 = por %p51, %p52
    %p54 = scmp.ne.s32.totalorder %s46, %s49
    %p55 = scmp.eq.s32.totalorder %s10, 0
    %p56 = por %p54, %p55
    %p57 = scmp.ne.s32.totalorder %s46, %s49
    %p58 = scmp.eq.s32.totalorder %s15, 1
    %p59 = por %p57, %p58
    %p60 = scmp.ne.s32.totalorder %s49, %s50
    %p61 = scmp.eq.s32.totalorder %s15, 0
    %p62 = por %p60, %p61
    %p63 = scmp.ne.s32.totalorder %s49, %s50
    %p64 = scmp.eq.s32.totalorder %s16, 1
    %p65 = por %p63, %p64
    %p67 = scmp.ne.s32.totalorder %s50, %s66
    %p68 = scmp.eq.s32.totalorder %s16, 0
    %p69 = por %p67, %p68
    %s71 = sadd.s32 %s70, 1
    %p74 = scmp.eq.s32.totalorder %s10, 1
    %p75 = scmp.ne.s32.totalorder %s70, %s72
    %p76 = scmp.eq.s32.totalorder %s10, 0
    %p77 = por %p75, %p76
    %p78 = scmp.ne.s32.totalorder %s70, %s72
    %p79 = scmp.eq.s32.totalorder %s15, 1
    %p80 = por %p78, %p79
    %p81 = scmp.ne.s32.totalorder %s72, %s73
    %p82 = scmp.eq.s32.totalorder %s15, 0
    %p83 = por %p81, %p82
    %p84 = scmp.ne.s32.totalorder %s72, %s73
    %p85 = scmp.eq.s32.totalorder %s16, 1
    %p86 = por %p84, %p85
    %p88 = scmp.ne.s32.totalorder %s73, %s87
    %p89 = scmp.eq.s32.totalorder %s16, 0
    %p90 = por %p88, %p89
    %s92 = sadd.s32 %s91, 1
    %p95 = scmp.eq.s32.totalorder %s10, 1
    %p96 = scmp.ne.s32.totalorder %s91, %s93
    %p97 = scmp.eq.s32.totalorder %s10, 0
    %p98 = por %p96, %p97
    %p99 = scmp.ne.s32.totalorder %s91, %s93
    %p100 = scmp.eq.s32.totalorder %s15, 1
    %p101 = por %p99, %p100
    %p102 = scmp.ne.s32.totalorder %s93, %s94
    %p103 = scmp.eq.s32.totalorder %s15, 0
    %p104 = por %p102, %p103
    %p105 = scmp.ne.s32.totalorder %s93, %s94
    %p106 = scmp.eq.s32.totalorder %s16, 1
    %p107 = por %p105, %p106
    %p109 = scmp.ne.s32.totalorder %s94, %s108
    %p110 = scmp.eq.s32.totalorder %s16, 0
    %p111 = por %p109, %p110
    %s112 = ssub.s32 %s10, %s17
    %p113 = scmp.eq.s32.totalorder %s112, 0
    %s115 = sadd.s32 %s114, 1
    %s116 = scalar_select %p113, %s114, %s115
    %p119 = pneg %p113
    %p120 = scmp.eq.s32.totalorder %s10, 1
    %p121 = por %p119, %p120
    %p122 = scmp.ne.s32.totalorder %s114, %s117
    %p123 = scmp.eq.s32.totalorder %s10, 0
    %p124 = por %p122, %p123
    %p125 = scmp.ne.s32.totalorder %s114, %s117
    %p126 = scmp.eq.s32.totalorder %s15, 1
    %p127 = por %p125, %p126
    %p128 = scmp.ne.s32.totalorder %s117, %s118
    %p129 = scmp.eq.s32.totalorder %s15, 0
    %p130 = por %p128, %p129
    %p131 = scmp.ne.s32.totalorder %s117, %s118
    %p132 = scmp.eq.s32.totalorder %s16, 1
    %p133 = por %p131, %p132
    %p135 = scmp.ne.s32.totalorder %s118, %s134
    %p136 = scmp.eq.s32.totalorder %s16, 0
    %p137 = por %p135, %p136
    %p138 = scmp.le.s32.totalorder 1, %s10
    %p139 = scmp.lt.s32.totalorder %s10, 3
    %p140 = pnand %p138, %p139
    %p141 = pneg %p140
    // Predicated region
    $region9: #{ffc_forward.8} parent=5 // pred_check
      _
    $region10: #{ffc_forward.8} parent=5 // pred_check_branch
      %143 = sbr.rel (%p140) target = $region12
    $region11: #{ffc_forward.8} parent=5 // pred_region
      %s144 = ssub.s32 %s10, 1
      // Predicated region
      $region13: #{ffc_forward.8} parent=11 // pred_check
        %p145 = pneg %p83
      $region14: #{ffc_forward.8} parent=11 // pred_check_branch
        %147 = sbr.rel (%p145) target = $region16
      $region15: #{ffc_forward.8} parent=11 // pred_region
        _
      $region16: #{ffc_forward.8} parent=11 // pred_fallthru
        _
      // Predicated region
      $region17: #{ffc_forward.8} parent=11 // pred_check
        %p148 = pneg %p104
      $region18: #{ffc_forward.8} parent=11 // pred_check_branch
        %150 = sbr.rel (%p148) target = $region20
      $region19: #{ffc_forward.8} parent=11 // pred_region
        _
      $region20: #{ffc_forward.8} parent=11 // pred_fallthru
        _
    $region12: #{ffc_forward.8} parent=5 // pred_fallthru
      _
    %p151 = scmp.lt.s32.totalorder %s10, 2
    // Predicated region
    $region21: #{ffc_forward.8} parent=5 // pred_check
      %p152 = pneg %p151
    $region22: #{ffc_forward.8} parent=5 // pred_check_branch
      %154 = sbr.rel (%p152) target = $region24
    $region23: #{ffc_forward.8} parent=5 // pred_region
      // Predicated region
      $region25: #{ffc_forward.8} parent=23 // pred_check
        %p155 = pneg %p30
      $region26: #{ffc_forward.8} parent=23 // pred_check_branch
        %157 = sbr.rel (%p155) target = $region28
      $region27: #{ffc_forward.8} parent=23 // pred_region
        %p158 = scmp.lt.s32.totalorder %s10, 1
        %s159 = scalar_select %p158, %s10, 1
        %s160 = smul.addr %s159, 54
        %s161 = smul.addr %s160, 8
        %s162 = scalar_lea.vmem %s0, %s161
      $region28: #{ffc_forward.8} parent=23 // pred_fallthru
        _
      // Predicated region
      $region29: #{ffc_forward.8} parent=23 // pred_check
        %p163 = pneg %p56
      $region30: #{ffc_forward.8} parent=23 // pred_check_branch
        %165 = sbr.rel (%p163) target = $region32
      $region31: #{ffc_forward.8} parent=23 // pred_region
        %p166 = scmp.lt.s32.totalorder %s10, 1
        %s167 = scalar_select %p166, %s10, 1
        %s168 = smul.addr %s167, 54
        %s169 = smul.addr %s168, 8
        %s170 = scalar_lea.vmem %s1, %s169
      $region32: #{ffc_forward.8} parent=23 // pred_fallthru
        _
    $region24: #{ffc_forward.8} parent=5 // pred_fallthru
      _
    %p171 = scmp.le.s32.totalorder 1, %s10
    %p172 = scmp.lt.s32.totalorder %s10, 3
    %p173 = pnand %p171, %p172
    %p174 = pneg %p173
    // Predicated region
    $region33: #{ffc_forward.8} parent=5 // pred_check
      _
    $region34: #{ffc_forward.8} parent=5 // pred_check_branch
      %176 = sbr.rel (%p173) target = $region36
    $region35: #{ffc_forward.8} parent=5 // pred_region
      %s177 = ssub.s32 %s10, 1
      %p178 = scmp.lt.s32.totalorder %s15, 1
      %s179 = scalar_select %p178, %s15, 1
      %s180 = smul.addr %s179, 54
      %s181 = smul.addr %s180, 8
      %s182 = scalar_lea.vmem %s0, %s181
      %p183 = pneg %p36
      %p184 = pneg %p33
      %p185 = scmp.lt.s32.totalorder %s15, 1
      %s186 = scalar_select %p185, %s15, 1
      %s187 = smul.addr %s186, 54
      %s188 = smul.addr %s187, 8
      %s189 = scalar_lea.vmem %s1, %s188
      %p190 = pneg %p62
      %p191 = pneg %p59
      %p192 = pneg %p83
      %p193 = pneg %p80
      %p194 = pneg %p104
      %p195 = pneg %p101
      %p196 = pneg %p130
      %p197 = pneg %p127
      %p198 = scmp.lt.s32.totalorder %s15, 1
      %s199 = scalar_select %p198, %s15, 1
      %s200 = smul.addr %s199, 32
      %s201 = smul.addr %s200, 8
      %s202 = scalar_lea.vmem %s4, %s201
      %p203 = scmp.lt.s32.totalorder %s15, 1
      %s204 = scalar_select %p203, %s15, 1
      %s205 = smul.addr %s204, 54
      %s206 = smul.addr %s205, 8
      %s207 = scalar_lea.vmem %s0, %s206
      %p208 = scmp.lt.s32.totalorder %s15, 1
      %s209 = scalar_select %p208, %s15, 1
      %s210 = smul.addr %s209, 54
      %s211 = smul.addr %s210, 8
      %s212 = scalar_lea.vmem %s1, %s211
      %p213 = scmp.lt.s32.totalorder %s15, 1
      %s214 = scalar_select %p213, %s15, 1
      %s215 = smul.addr %s214, 32
      %s216 = smul.addr %s215, 8
      %s217 = scalar_lea.vmem %s4, %s216
      %v218 = vld [vmem:[%s207] sm:$0xff]
      %v219 = vld [vmem:[%s207 + $0x8] sm:$0xff]
      %v220 = vld [vmem:[%s207 + $0x10] sm:$0x3]
      %v221 = vld [vmem:[%s207 + $0x18] sm:$0xff]
      %v222 = vld [vmem:[%s207 + $0x20] sm:$0xff]
      %v223 = vld [vmem:[%s207 + $0x28] sm:$0x3]
      %v224 = vld [vmem:[%s207 + $0x30] sm:$0xff]
      %v225 = vld [vmem:[%s207 + $0x38] sm:$0xff]
      %v226 = vld [vmem:[%s207 + $0x40] sm:$0x3]
      %v227 = vld [vmem:[%s207 + $0x48] sm:$0xff]
      %v228 = vld [vmem:[%s207 + $0x50] sm:$0xff]
      %v229 = vld [vmem:[%s207 + $0x58] sm:$0x3]
      %v230 = vld [vmem:[%s207 + $0x60] sm:$0xff]
      %v231 = vld [vmem:[%s207 + $0x68] sm:$0xff]
      %v232 = vld [vmem:[%s207 + $0x70] sm:$0x3]
      %v233 = vld [vmem:[%s207 + $0x78] sm:$0xff]
      %v234 = vld [vmem:[%s207 + $0x80] sm:$0xff]
      %v235 = vld [vmem:[%s207 + $0x88] sm:$0x3]
      %v236 = vld [vmem:[%s207 + $0x90] sm:$0xff]
      %v237 = vld [vmem:[%s207 + $0x98] sm:$0xff]
      %v238 = vld [vmem:[%s207 + $0xa0] sm:$0x3]
      %v239 = vld [vmem:[%s207 + $0xa8] sm:$0xff]
      %v240 = vld [vmem:[%s207 + $0xb0] sm:$0xff]
      %v241 = vld [vmem:[%s207 + $0xb8] sm:$0x3]
      %v242 = vld [vmem:[%s207 + $0xc0] sm:$0xff]
      %v243 = vld [vmem:[%s207 + $0xc8] sm:$0xff]
      %v244 = vld [vmem:[%s207 + $0xd0] sm:$0x3]
      %v245 = vld [vmem:[%s207 + $0xd8] sm:$0xff]
      %v246 = vld [vmem:[%s207 + $0xe0] sm:$0xff]
      %v247 = vld [vmem:[%s207 + $0xe8] sm:$0x3]
      %v248 = vld [vmem:[%s207 + $0xf0] sm:$0xff]
      %v249 = vld [vmem:[%s207 + $0xf8] sm:$0xff]
      %v250 = vld [vmem:[%s207 + $0x100] sm:$0x3]
      %v251 = vld [vmem:[%s207 + $0x108] sm:$0xff]
      %v252 = vld [vmem:[%s207 + $0x110] sm:$0xff]
      %v253 = vld [vmem:[%s207 + $0x118] sm:$0x3]
      %v254 = vld [vmem:[%s207 + $0x120] sm:$0xff]
      %v255 = vld [vmem:[%s207 + $0x128] sm:$0xff]
      %v256 = vld [vmem:[%s207 + $0x130] sm:$0x3]
      %v257 = vld [vmem:[%s207 + $0x138] sm:$0xff]
      %v258 = vld [vmem:[%s207 + $0x140] sm:$0xff]
      %v259 = vld [vmem:[%s207 + $0x148] sm:$0x3]
      %v260 = vld [vmem:[%s207 + $0x150] sm:$0xff]
      %v261 = vld [vmem:[%s207 + $0x158] sm:$0xff]
      %v262 = vld [vmem:[%s207 + $0x160] sm:$0x3]
      %v263 = vld [vmem:[%s207 + $0x168] sm:$0xff]
      %v264 = vld [vmem:[%s207 + $0x170] sm:$0xff]
      %v265 = vld [vmem:[%s207 + $0x178] sm:$0x3]
      %v266 = vld [vmem:[%s207 + $0x180] sm:$0xff]
      %v267 = vld [vmem:[%s207 + $0x188] sm:$0xff]
      %v268 = vld [vmem:[%s207 + $0x190] sm:$0x3]
      %v269 = vld [vmem:[%s207 + $0x198] sm:$0xff]
      %v270 = vld [vmem:[%s207 + $0x1a0] sm:$0xff]
      %v271 = vld [vmem:[%s207 + $0x1a8] sm:$0x3]
      %v272 = vld [vmem:[%s212] sm:$0xff]
      %v273 = vld [vmem:[%s212 + $0x8] sm:$0xff]
      %v274 = vld [vmem:[%s212 + $0x10] sm:$0x3]
      %v275 = vld [vmem:[%s212 + $0x18] sm:$0xff]
      %v276 = vld [vmem:[%s212 + $0x20] sm:$0xff]
      %v277 = vld [vmem:[%s212 + $0x28] sm:$0x3]
      %v278 = vld [vmem:[%s212 + $0x30] sm:$0xff]
      %v279 = vld [vmem:[%s212 + $0x38] sm:$0xff]
      %v280 = vld [vmem:[%s212 + $0x40] sm:$0x3]
      %v281 = vld [vmem:[%s212 + $0x48] sm:$0xff]
      %v282 = vld [vmem:[%s212 + $0x50] sm:$0xff]
      %v283 = vld [vmem:[%s212 + $0x58] sm:$0x3]
      %v284 = vld [vmem:[%s212 + $0x60] sm:$0xff]
      %v285 = vld [vmem:[%s212 + $0x68] sm:$0xff]
      %v286 = vld [vmem:[%s212 + $0x70] sm:$0x3]
      %v287 = vld [vmem:[%s212 + $0x78] sm:$0xff]
      %v288 = vld [vmem:[%s212 + $0x80] sm:$0xff]
      %v289 = vld [vmem:[%s212 + $0x88] sm:$0x3]
      %v290 = vld [vmem:[%s212 + $0x90] sm:$0xff]
      %v291 = vld [vmem:[%s212 + $0x98] sm:$0xff]
      %v292 = vld [vmem:[%s212 + $0xa0] sm:$0x3]
      %v293 = vld [vmem:[%s212 + $0xa8] sm:$0xff]
      %v294 = vld [vmem:[%s212 + $0xb0] sm:$0xff]
      %v295 = vld [vmem:[%s212 + $0xb8] sm:$0x3]
      %v296 = vld [vmem:[%s212 + $0xc0] sm:$0xff]
      %v297 = vld [vmem:[%s212 + $0xc8] sm:$0xff]
      %v298 = vld [vmem:[%s212 + $0xd0] sm:$0x3]
      %v299 = vld [vmem:[%s212 + $0xd8] sm:$0xff]
      %v300 = vld [vmem:[%s212 + $0xe0] sm:$0xff]
      %v301 = vld [vmem:[%s212 + $0xe8] sm:$0x3]
      %v302 = vld [vmem:[%s212 + $0xf0] sm:$0xff]
      %v303 = vld [vmem:[%s212 + $0xf8] sm:$0xff]
      %v304 = vld [vmem:[%s212 + $0x100] sm:$0x3]
      %v305 = vld [vmem:[%s212 + $0x108] sm:$0xff]
      %v306 = vld [vmem:[%s212 + $0x110] sm:$0xff]
      %v307 = vld [vmem:[%s212 + $0x118] sm:$0x3]
      %v308 = vld [vmem:[%s212 + $0x120] sm:$0xff]
      %v309 = vld [vmem:[%s212 + $0x128] sm:$0xff]
      %v310 = vld [vmem:[%s212 + $0x130] sm:$0x3]
      %v311 = vld [vmem:[%s212 + $0x138] sm:$0xff]
      %v312 = vld [vmem:[%s212 + $0x140] sm:$0xff]
      %v313 = vld [vmem:[%s212 + $0x148] sm:$0x3]
      %v314 = vld [vmem:[%s212 + $0x150] sm:$0xff]
      %v315 = vld [vmem:[%s212 + $0x158] sm:$0xff]
      %v316 = vld [vmem:[%s212 + $0x160] sm:$0x3]
      %v317 = vld [vmem:[%s212 + $0x168] sm:$0xff]
      %v318 = vld [vmem:[%s212 + $0x170] sm:$0xff]
      %v319 = vld [vmem:[%s212 + $0x178] sm:$0x3]
      %v320 = vld [vmem:[%s212 + $0x180] sm:$0xff]
      %v321 = vld [vmem:[%s212 + $0x188] sm:$0xff]
      %v322 = vld [vmem:[%s212 + $0x190] sm:$0x3]
      %v323 = vld [vmem:[%s212 + $0x198] sm:$0xff]
      %v324 = vld [vmem:[%s212 + $0x1a0] sm:$0xff]
      %v325 = vld [vmem:[%s212 + $0x1a8] sm:$0x3]
      %v326 = vld [vmem:[%s2] sm:$0xff]
      %v327 = vld [vmem:[%s3] sm:$0xff]
      %vm328 = vcmask 64512
      %v330 = vsel %vm328, %v272, 0
      %v333 = vsel %vm328, %v273, 0
      %v336 = vsel %vm328, %v275, 0
      %v339 = vsel %vm328, %v276, 0
      %v342 = vsel %vm328, %v278, 0
      %v345 = vsel %vm328, %v279, 0
      %v348 = vsel %vm328, %v281, 0
      %v351 = vsel %vm328, %v282, 0
      %v354 = vsel %vm328, %v284, 0
      %v357 = vsel %vm328, %v285, 0
      %v360 = vsel %vm328, %v287, 0
      %v363 = vsel %vm328, %v288, 0
      %v366 = vsel %vm328, %v290, 0
      %v369 = vsel %vm328, %v291, 0
      %v372 = vsel %vm328, %v293, 0
      %v375 = vsel %vm328, %v294, 0
      %v378 = vsel %vm328, %v296, 0
      %v381 = vsel %vm328, %v297, 0
      %v384 = vsel %vm328, %v299, 0
      %v387 = vsel %vm328, %v300, 0
      %v390 = vsel %vm328, %v302, 0
      %v393 = vsel %vm328, %v303, 0
      %v396 = vsel %vm328, %v305, 0
      %v399 = vsel %vm328, %v306, 0
      %v402 = vsel %vm328, %v308, 0
      %v405 = vsel %vm328, %v309, 0
      %v408 = vsel %vm328, %v311, 0
      %v411 = vsel %vm328, %v312, 0
      %v414 = vsel %vm328, %v314, 0
      %v417 = vsel %vm328, %v315, 0
      %v420 = vsel %vm328, %v317, 0
      %v423 = vsel %vm328, %v318, 0
      %425 = vmatprep.subr.mxu0 0.0
      %426 = vmatpush1.msra.mxu0 %v327
      %427 = vmatprep.subr.mxu0 0.0
      %428 = vmatpush1.msra.mxu0 0.0
      %429 = vmatprep.subr.mxu0 0.0
      %430 = vmatpush1.msra.mxu0 0.0
      %431 = vmatprep.subr.mxu0 0.0
      %432 = vmatpush1.msra.mxu0 0.0
      %433 = vmatprep.subr.mxu0 0.0
      %434 = vmatpush1.msra.mxu0 0.0
      %435 = vmatprep.subr.mxu0 0.0
      %436 = vmatpush1.msra.mxu0 0.0
      %437 = vmatprep.subr.mxu0 0.0
      %438 = vmatpush1.msra.mxu0 0.0
      %439 = vmatprep.subr.mxu0 0.0
      %440 = vmatpush1.msra.mxu0 0.0
      %441 = vmatprep.subr.mxu0 0.0
      %442 = vmatpush1.msra.mxu0 0.0
      %443 = vmatprep.subr.mxu0 0.0
      %444 = vmatpush1.msra.mxu0 0.0
      %445 = vmatprep.subr.mxu0 0.0
      %446 = vmatpush1.msra.mxu0 0.0
      %447 = vmatprep.subr.mxu0 0.0
      %448 = vmatpush1.msra.mxu0 0.0
      %449 = vmatprep.subr.mxu0 0.0
      %450 = vmatpush1.msra.mxu0 0.0
      %451 = vmatprep.subr.mxu0 0.0
      %452 = vmatpush1.msra.mxu0 0.0
      %453 = vmatprep.subr.mxu0 0.0
      %454 = vmatpush1.msra.mxu0 0.0
      %455 = vmatprep.subr.mxu0 0.0
      %456 = vmatpush1.msra.mxu0 0.0
      %457 = vmatprep.subr.mxu0 0.0
      %458 = vmatpush1.msra.mxu0 0.0
      %459 = vmatprep.subr.mxu0 0.0
      %460 = vmatpush1.msra.mxu0 0.0
      %461 = vmatprep.subr.mxu0 0.0
      %462 = vmatpush1.msra.mxu0 0.0
      %463 = vmatprep.subr.mxu0 0.0
      %464 = vmatpush1.msra.mxu0 0.0
      %465 = vmatprep.subr.mxu0 0.0
      %466 = vmatpush1.msra.mxu0 0.0
      %467 = vmatprep.subr.mxu0 0.0
      %468 = vmatpush1.msra.mxu0 0.0
      %469 = vmatprep.subr.mxu0 0.0
      %470 = vmatpush1.msra.mxu0 0.0
      %471 = vmatprep.subr.mxu0 0.0
      %472 = vmatpush1.msra.mxu0 0.0
      %473 = vmatprep.subr.mxu0 0.0
      %474 = vmatpush1.msra.mxu0 0.0
      %475 = vmatprep.subr.mxu0 0.0
      %476 = vmatpush1.msra.mxu0 0.0
      %477 = vmatprep.subr.mxu0 0.0
      %478 = vmatpush1.msra.mxu0 0.0
      %479 = vmatprep.subr.mxu0 0.0
      %480 = vmatpush1.msra.mxu0 0.0
      %481 = vmatprep.subr.mxu0 0.0
      %482 = vmatpush1.msra.mxu0 0.0
      %483 = vmatprep.subr.mxu0 0.0
      %484 = vmatpush1.msra.mxu0 0.0
      %485 = vmatprep.subr.mxu0 0.0
      %486 = vmatpush1.msra.mxu0 0.0
      %487 = vmatprep.subr.mxu0 0.0
      %488 = vmatpush1.msra.mxu0 0.0
      %489 = vmatprep.mubr.f32.mxu0 0.0
      %490 = vmatmul.mubr.f32.gmra.mrb[0].mxu0 %v330
      %v491 = vpop.f32.mrb[0].mxu0
      %v492 = vadd.f32 0.0, %v491
      %v493 = vpop.f32.mrb[0].mxu0
      %494 = vmatprep.mubr.f32.mxu0 0.0
      %495 = vmatmul.mubr.f32.gmra.mrb[0].mxu0 %v333
      %v496 = vpop.f32.mrb[0].mxu0
      %v497 = vadd.f32 0.0, %v496
      %v498 = vpop.f32.mrb[0].mxu0
      %499 = vmatprep.mubr.f32.mxu0 0.0
      %500 = vmatmul.mubr.f32.gmra.mrb[0].mxu0 %v336
      %v501 = vpop.f32.mrb[0].mxu0
      %v502 = vadd.f32 0.0, %v501
      %v503 = vpop.f32.mrb[0].mxu0
      %504 = vmatprep.mubr.f32.mxu0 0.0
      %505 = vmatmul.mubr.f32.gmra.mrb[0].mxu0 %v339
      %v506 = vpop.f32.mrb[0].mxu0
      %v507 = vadd.f32 0.0, %v506
      %v508 = vpop.f32.mrb[0].mxu0
      %509 = vmatprep.mubr.f32.mxu0 0.0
      %510 = vmatmul.mubr.f32.gmra.mrb[0].mxu0 %v342
      %v511 = vpop.f32.mrb[0].mxu0
      %v512 = vadd.f32 0.0, %v511
      %v513 = vpop.f32.mrb[0].mxu0
      %514 = vmatprep.mubr.f32.mxu0 0.0
      %515 = vmatmul.mubr.f32.gmra.mrb[0].mxu0 %v345
      %v516 = vpop.f32.mrb[0].mxu0
      %v517 = vadd.f32 0.0, %v516
      %v518 = vpop.f32.mrb[0].mxu0
      %519 = vmatprep.mubr.f32.mxu0 0.0
      %520 = vmatmul.mubr.f32.gmra.mrb[0].mxu0 %v348
      %v521 = vpop.f32.mrb[0].mxu0
      %v522 = vadd.f32 0.0, %v521
      %v523 = vpop.f32.mrb[0].mxu0
      %524 = vmatprep.mubr.f32.mxu0 0.0
      %525 = vmatmul.mubr.f32.gmra.mrb[0].mxu0 %v351
      %v526 = vpop.f32.mrb[0].mxu0
      %v527 = vadd.f32 0.0, %v526
      %v528 = vpop.f32.mrb[0].mxu0
      %529 = vmatprep.mubr.f32.mxu0 0.0
      %530 = vmatmul.mubr.f32.gmra.mrb[0].mxu0 %v354
      %v531 = vpop.f32.mrb[0].mxu0
      %v532 = vadd.f32 0.0, %v531
      %v533 = vpop.f32.mrb[0].mxu0
      %534 = vmatprep.mubr.f32.mxu0 0.0
      %535 = vmatmul.mubr.f32.gmra.mrb[0].mxu0 %v357
      %v536 = vpop.f32.mrb[0].mxu0
      %v537 = vadd.f32 0.0, %v536
      %v538 = vpop.f32.mrb[0].mxu0
      %539 = vmatprep.mubr.f32.mxu0 0.0
      %540 = vmatmul.mubr.f32.gmra.mrb[0].mxu0 %v360
      %v541 = vpop.f32.mrb[0].mxu0
      %v542 = vadd.f32 0.0, %v541
      %v543 = vpop.f32.mrb[0].mxu0
      %544 = vmatprep.mubr.f32.mxu0 0.0
      %545 = vmatmul.mubr.f32.gmra.mrb[0].mxu0 %v363
      %v546 = vpop.f32.mrb[0].mxu0
      %v547 = vadd.f32 0.0, %v546
      %v548 = vpop.f32.mrb[0].mxu0
      %549 = vmatprep.mubr.f32.mxu0 0.0
      %550 = vmatmul.mubr.f32.gmra.mrb[0].mxu0 %v366
      %v551 = vpop.f32.mrb[0].mxu0
      %v552 = vadd.f32 0.0, %v551
      %v553 = vpop.f32.mrb[0].mxu0
      %554 = vmatprep.mubr.f32.mxu0 0.0
      %555 = vmatmul.mubr.f32.gmra.mrb[0].mxu0 %v369
      %v556 = vpop.f32.mrb[0].mxu0
      %v557 = vadd.f32 0.0, %v556
      %v558 = vpop.f32.mrb[0].mxu0
      %559 = vmatprep.mubr.f32.mxu0 0.0
      %560 = vmatmul.mubr.f32.gmra.mrb[0].mxu0 %v372
      %v561 = vpop.f32.mrb[0].mxu0
      %v562 = vadd.f32 0.0, %v561
      %v563 = vpop.f32.mrb[0].mxu0
      %564 = vmatprep.mubr.f32.mxu0 0.0
      %565 = vmatmul.mubr.f32.gmra.mrb[0].mxu0 %v375
      %v566 = vpop.f32.mrb[0].mxu0
      %v567 = vadd.f32 0.0, %v566
      %v568 = vpop.f32.mrb[0].mxu0
      %569 = vmatprep.mubr.f32.mxu0 0.0
      %570 = vmatmul.mubr.f32.gmra.mrb[0].mxu0 %v378
      %v571 = vpop.f32.mrb[0].mxu0
      %v572 = vadd.f32 0.0, %v571
      %v573 = vpop.f32.mrb[0].mxu0
      %574 = vmatprep.mubr.f32.mxu0 0.0
      %575 = vmatmul.mubr.f32.gmra.mrb[0].mxu0 %v381
      %v576 = vpop.f32.mrb[0].mxu0
      %v577 = vadd.f32 0.0, %v576
      %v578 = vpop.f32.mrb[0].mxu0
      %579 = vmatprep.mubr.f32.mxu0 0.0
      %580 = vmatmul.mubr.f32.gmra.mrb[0].mxu0 %v384
      %v581 = vpop.f32.mrb[0].mxu0
      %v582 = vadd.f32 0.0, %v581
      %v583 = vpop.f32.mrb[0].mxu0
      %584 = vmatprep.mubr.f32.mxu0 0.0
      %585 = vmatmul.mubr.f32.gmra.mrb[0].mxu0 %v387
      %v586 = vpop.f32.mrb[0].mxu0
      %v587 = vadd.f32 0.0, %v586
      %v588 = vpop.f32.mrb[0].mxu0
      %589 = vmatprep.mubr.f32.mxu0 0.0
      %590 = vmatmul.mubr.f32.gmra.mrb[0].mxu0 %v390
      %v591 = vpop.f32.mrb[0].mxu0
      %v592 = vadd.f32 0.0, %v591
      %v593 = vpop.f32.mrb[0].mxu0
      %594 = vmatprep.mubr.f32.mxu0 0.0
      %595 = vmatmul.mubr.f32.gmra.mrb[0].mxu0 %v393
      %v596 = vpop.f32.mrb[0].mxu0
      %v597 = vadd.f32 0.0, %v596
      %v598 = vpop.f32.mrb[0].mxu0
      %599 = vmatprep.mubr.f32.mxu0 0.0
      %600 = vmatmul.mubr.f32.gmra.mrb[0].mxu0 %v396
      %v601 = vpop.f32.mrb[0].mxu0
      %v602 = vadd.f32 0.0, %v601
      %v603 = vpop.f32.mrb[0].mxu0
      %604 = vmatprep.mubr.f32.mxu0 0.0
      %605 = vmatmul.mubr.f32.gmra.mrb[0].mxu0 %v399
      %v606 = vpop.f32.mrb[0].mxu0
      %v607 = vadd.f32 0.0, %v606
      %v608 = vpop.f32.mrb[0].mxu0
      %609 = vmatprep.mubr.f32.mxu0 0.0
      %610 = vmatmul.mubr.f32.gmra.mrb[0].mxu0 %v402
      %v611 = vpop.f32.mrb[0].mxu0
      %v612 = vadd.f32 0.0, %v611
      %v613 = vpop.f32.mrb[0].mxu0
      %614 = vmatprep.mubr.f32.mxu0 0.0
      %615 = vmatmul.mubr.f32.gmra.mrb[0].mxu0 %v405
      %v616 = vpop.f32.mrb[0].mxu0
      %v617 = vadd.f32 0.0, %v616
      %v618 = vpop.f32.mrb[0].mxu0
      %619 = vmatprep.mubr.f32.mxu0 0.0
      %620 = vmatmul.mubr.f32.gmra.mrb[0].mxu0 %v408
      %v621 = vpop.f32.mrb[0].mxu0
      %v622 = vadd.f32 0.0, %v621
      %v623 = vpop.f32.mrb[0].mxu0
      %624 = vmatprep.mubr.f32.mxu0 0.0
      %625 = vmatmul.mubr.f32.gmra.mrb[0].mxu0 %v411
      %v626 = vpop.f32.mrb[0].mxu0
      %v627 = vadd.f32 0.0, %v626
      %v628 = vpop.f32.mrb[0].mxu0
      %629 = vmatprep.mubr.f32.mxu0 0.0
      %630 = vmatmul.mubr.f32.gmra.mrb[0].mxu0 %v414
      %v631 = vpop.f32.mrb[0].mxu0
      %v632 = vadd.f32 0.0, %v631
      %v633 = vpop.f32.mrb[0].mxu0
      %634 = vmatprep.mubr.f32.mxu0 0.0
      %635 = vmatmul.mubr.f32.gmra.mrb[0].mxu0 %v417
      %v636 = vpop.f32.mrb[0].mxu0
      %v637 = vadd.f32 0.0, %v636
      %v638 = vpop.f32.mrb[0].mxu0
      %639 = vmatprep.mubr.f32.mxu0 0.0
      %640 = vmatmul.mubr.f32.gmra.mrb[0].mxu0 %v420
      %v641 = vpop.f32.mrb[0].mxu0
      %v642 = vadd.f32 0.0, %v641
      %v643 = vpop.f32.mrb[0].mxu0
      %644 = vmatprep.mubr.f32.mxu0 0.0
      %645 = vmatmul.mubr.f32.gmra.mrb[0].mxu0 %v423
      %v646 = vpop.f32.mrb[0].mxu0
      %v647 = vadd.f32 0.0, %v646
      %v648 = vpop.f32.mrb[0].mxu0
      %649 = vdwg.mxu0
      %v651 = vsel %vm328, %v218, 0
      %v654 = vsel %vm328, %v219, 0
      %v657 = vsel %vm328, %v221, 0
      %v660 = vsel %vm328, %v222, 0
      %v663 = vsel %vm328, %v224, 0
      %v666 = vsel %vm328, %v225, 0
      %v669 = vsel %vm328, %v227, 0
      %v672 = vsel %vm328, %v228, 0
      %v675 = vsel %vm328, %v230, 0
      %v678 = vsel %vm328, %v231, 0
      %v681 = vsel %vm328, %v233, 0
      %v684 = vsel %vm328, %v234, 0
      %v687 = vsel %vm328, %v236, 0
      %v690 = vsel %vm328, %v237, 0
      %v693 = vsel %vm328, %v239, 0
      %v696 = vsel %vm328, %v240, 0
      %v699 = vsel %vm328, %v242, 0
      %v702 = vsel %vm328, %v243, 0
      %v705 = vsel %vm328, %v245, 0
      %v708 = vsel %vm328, %v246, 0
      %v711 = vsel %vm328, %v248, 0
      %v714 = vsel %vm328, %v249, 0
      %v717 = vsel %vm328, %v251, 0
      %v720 = vsel %vm328, %v252, 0
      %v723 = vsel %vm328, %v254, 0
      %v726 = vsel %vm328, %v255, 0
      %v729 = vsel %vm328, %v257, 0
      %v732 = vsel %vm328, %v258, 0
      %v735 = vsel %vm328, %v260, 0
      %v738 = vsel %vm328, %v261, 0
      %v741 = vsel %vm328, %v263, 0
      %v744 = vsel %vm328, %v264, 0
      %746 = vmatprep.subr.mxu0 0.0
      %747 = vmatpush1.msra.mxu0 %v326
      %748 = vmatprep.subr.mxu0 0.0
      %749 = vmatpush1.msra.mxu0 0.0
      %750 = vmatprep.subr.mxu0 0.0
      %751 = vmatpush1.msra.mxu0 0.0
      %752 = vmatprep.subr.mxu0 0.0
      %753 = vmatpush1.msra.mxu0 0.0
      %754 = vmatprep.subr.mxu0 0.0
      %755 = vmatpush1.msra.mxu0 0.0
      %756 = vmatprep.subr.mxu0 0.0
      %757 = vmatpush1.msra.mxu0 0.0
      %758 = vmatprep.subr.mxu0 0.0
      %759 = vmatpush1.msra.mxu0 0.0
      %760 = vmatprep.subr.mxu0 0.0
      %761 = vmatpush1.msra.mxu0 0.0
      %762 = vmatprep.subr.mxu0 0.0
      %763 = vmatpush1.msra.mxu0 0.0
      %764 = vmatprep.subr.mxu0 0.0
      %765 = vmatpush1.msra.mxu0 0.0
      %766 = vmatprep.subr.mxu0 0.0
      %767 = vmatpush1.msra.mxu0 0.0
      %768 = vmatprep.subr.mxu0 0.0
      %769 = vmatpush1.msra.mxu0 0.0
      %770 = vmatprep.subr.mxu0 0.0
      %771 = vmatpush1.msra.mxu0 0.0
      %772 = vmatprep.subr.mxu0 0.0
      %773 = vmatpush1.msra.mxu0 0.0
      %774 = vmatprep.subr.mxu0 0.0
      %775 = vmatpush1.msra.mxu0 0.0
      %776 = vmatprep.subr.mxu0 0.0
      %777 = vmatpush1.msra.mxu0 0.0
      %778 = vmatprep.subr.mxu0 0.0
      %779 = vmatpush1.msra.mxu0 0.0
      %780 = vmatprep.subr.mxu0 0.0
      %781 = vmatpush1.msra.mxu0 0.0
      %782 = vmatprep.subr.mxu0 0.0
      %783 = vmatpush1.msra.mxu0 0.0
      %784 = vmatprep.subr.mxu0 0.0
      %785 = vmatpush1.msra.mxu0 0.0
      %786 = vmatprep.subr.mxu0 0.0
      %787 = vmatpush1.msra.mxu0 0.0
      %788 = vmatprep.subr.mxu0 0.0
      %789 = vmatpush1.msra.mxu0 0.0
      %790 = vmatprep.subr.mxu0 0.0
      %791 = vmatpush1.msra.mxu0 0.0
      %792 = vmatprep.subr.mxu0 0.0
      %793 = vmatpush1.msra.mxu0 0.0
      %794 = vmatprep.subr.mxu0 0.0
      %795 = vmatpush1.msra.mxu0 0.0
      %796 = vmatprep.subr.mxu0 0.0
      %797 = vmatpush1.msra.mxu0 0.0
      %798 = vmatprep.subr.mxu0 0.0
      %799 = vmatpush1.msra.mxu0 0.0
      %800 = vmatprep.subr.mxu0 0.0
      %801 = vmatpush1.msra.mxu0 0.0
      %802 = vmatprep.subr.mxu0 0.0
      %803 = vmatpush1.msra.mxu0 0.0
      %804 = vmatprep.subr.mxu0 0.0
      %805 = vmatpush1.msra.mxu0 0.0
      %806 = vmatprep.subr.mxu0 0.0
      %807 = vmatpush1.msra.mxu0 0.0
      %808 = vmatprep.subr.mxu0 0.0
      %809 = vmatpush1.msra.mxu0 0.0
      %810 = vmatprep.mubr.f32.mxu0 0.0
      %811 = vmatmul.mubr.f32.gmra.mrb[0].mxu0 %v651
      %v812 = vpop.f32.mrb[0].mxu0
      %v813 = vadd.f32 %v492, %v812
      %v814 = vpop.f32.mrb[0].mxu0
      %815 = vmatprep.mubr.f32.mxu0 0.0
      %816 = vmatmul.mubr.f32.gmra.mrb[0].mxu0 %v654
      %v817 = vpop.f32.mrb[0].mxu0
      %v818 = vadd.f32 %v497, %v817
      %v819 = vpop.f32.mrb[0].mxu0
      %820 = vmatprep.mubr.f32.mxu0 0.0
      %821 = vmatmul.mubr.f32.gmra.mrb[0].mxu0 %v657
      %v822 = vpop.f32.mrb[0].mxu0
      %v823 = vadd.f32 %v502, %v822
      %v824 = vpop.f32.mrb[0].mxu0
      %825 = vmatprep.mubr.f32.mxu0 0.0
      %826 = vmatmul.mubr.f32.gmra.mrb[0].mxu0 %v660
      %v827 = vpop.f32.mrb[0].mxu0
      %v828 = vadd.f32 %v507, %v827
      %v829 = vpop.f32.mrb[0].mxu0
      %830 = vmatprep.mubr.f32.mxu0 0.0
      %831 = vmatmul.mubr.f32.gmra.mrb[0].mxu0 %v663
      %v832 = vpop.f32.mrb[0].mxu0
      %v833 = vadd.f32 %v512, %v832
      %v834 = vpop.f32.mrb[0].mxu0
      %835 = vmatprep.mubr.f32.mxu0 0.0
      %836 = vmatmul.mubr.f32.gmra.mrb[0].mxu0 %v666
      %v837 = vpop.f32.mrb[0].mxu0
      %v838 = vadd.f32 %v517, %v837
      %v839 = vpop.f32.mrb[0].mxu0
      %840 = vmatprep.mubr.f32.mxu0 0.0
      %841 = vmatmul.mubr.f32.gmra.mrb[0].mxu0 %v669
      %v842 = vpop.f32.mrb[0].mxu0
      %v843 = vadd.f32 %v522, %v842
      %v844 = vpop.f32.mrb[0].mxu0
      %845 = vmatprep.mubr.f32.mxu0 0.0
      %846 = vmatmul.mubr.f32.gmra.mrb[0].mxu0 %v672
      %v847 = vpop.f32.mrb[0].mxu0
      %v848 = vadd.f32 %v527, %v847
      %v849 = vpop.f32.mrb[0].mxu0
      %850 = vmatprep.mubr.f32.mxu0 0.0
      %851 = vmatmul.mubr.f32.gmra.mrb[0].mxu0 %v675
      %v852 = vpop.f32.mrb[0].mxu0
      %v853 = vadd.f32 %v532, %v852
      %v854 = vpop.f32.mrb[0].mxu0
      %855 = vmatprep.mubr.f32.mxu0 0.0
      %856 = vmatmul.mubr.f32.gmra.mrb[0].mxu0 %v678
      %v857 = vpop.f32.mrb[0].mxu0
      %v858 = vadd.f32 %v537, %v857
      %v859 = vpop.f32.mrb[0].mxu0
      %860 = vmatprep.mubr.f32.mxu0 0.0
      %861 = vmatmul.mubr.f32.gmra.mrb[0].mxu0 %v681
      %v862 = vpop.f32.mrb[0].mxu0
      %v863 = vadd.f32 %v542, %v862
      %v864 = vpop.f32.mrb[0].mxu0
      %865 = vmatprep.mubr.f32.mxu0 0.0
      %866 = vmatmul.mubr.f32.gmra.mrb[0].mxu0 %v684
      %v867 = vpop.f32.mrb[0].mxu0
      %v868 = vadd.f32 %v547, %v867
      %v869 = vpop.f32.mrb[0].mxu0
      %870 = vmatprep.mubr.f32.mxu0 0.0
      %871 = vmatmul.mubr.f32.gmra.mrb[0].mxu0 %v687
      %v872 = vpop.f32.mrb[0].mxu0
      %v873 = vadd.f32 %v552, %v872
      %v874 = vpop.f32.mrb[0].mxu0
      %875 = vmatprep.mubr.f32.mxu0 0.0
      %876 = vmatmul.mubr.f32.gmra.mrb[0].mxu0 %v690
      %v877 = vpop.f32.mrb[0].mxu0
      %v878 = vadd.f32 %v557, %v877
      %v879 = vpop.f32.mrb[0].mxu0
      %880 = vmatprep.mubr.f32.mxu0 0.0
      %881 = vmatmul.mubr.f32.gmra.mrb[0].mxu0 %v693
      %v882 = vpop.f32.mrb[0].mxu0
      %v883 = vadd.f32 %v562, %v882
      %v884 = vpop.f32.mrb[0].mxu0
      %885 = vmatprep.mubr.f32.mxu0 0.0
      %886 = vmatmul.mubr.f32.gmra.mrb[0].mxu0 %v696
      %v887 = vpop.f32.mrb[0].mxu0
      %v888 = vadd.f32 %v567, %v887
      %v889 = vpop.f32.mrb[0].mxu0
      %890 = vmatprep.mubr.f32.mxu0 0.0
      %891 = vmatmul.mubr.f32.gmra.mrb[0].mxu0 %v699
      %v892 = vpop.f32.mrb[0].mxu0
      %v893 = vadd.f32 %v572, %v892
      %v894 = vpop.f32.mrb[0].mxu0
      %895 = vmatprep.mubr.f32.mxu0 0.0
      %896 = vmatmul.mubr.f32.gmra.mrb[0].mxu0 %v702
      %v897 = vpop.f32.mrb[0].mxu0
      %v898 = vadd.f32 %v577, %v897
      %v899 = vpop.f32.mrb[0].mxu0
      %900 = vmatprep.mubr.f32.mxu0 0.0
      %901 = vmatmul.mubr.f32.gmra.mrb[0].mxu0 %v705
      %v902 = vpop.f32.mrb[0].mxu0
      %v903 = vadd.f32 %v582, %v902
      %v904 = vpop.f32.mrb[0].mxu0
      %905 = vmatprep.mubr.f32.mxu0 0.0
      %906 = vmatmul.mubr.f32.gmra.mrb[0].mxu0 %v708
      %v907 = vpop.f32.mrb[0].mxu0
      %v908 = vadd.f32 %v587, %v907
      %v909 = vpop.f32.mrb[0].mxu0
      %910 = vmatprep.mubr.f32.mxu0 0.0
      %911 = vmatmul.mubr.f32.gmra.mrb[0].mxu0 %v711
      %v912 = vpop.f32.mrb[0].mxu0
      %v913 = vadd.f32 %v592, %v912
      %v914 = vpop.f32.mrb[0].mxu0
      %915 = vmatprep.mubr.f32.mxu0 0.0
      %916 = vmatmul.mubr.f32.gmra.mrb[0].mxu0 %v714
      %v917 = vpop.f32.mrb[0].mxu0
      %v918 = vadd.f32 %v597, %v917
      %v919 = vpop.f32.mrb[0].mxu0
      %920 = vmatprep.mubr.f32.mxu0 0.0
      %921 = vmatmul.mubr.f32.gmra.mrb[0].mxu0 %v717
      %v922 = vpop.f32.mrb[0].mxu0
      %v923 = vadd.f32 %v602, %v922
      %v924 = vpop.f32.mrb[0].mxu0
      %925 = vmatprep.mubr.f32.mxu0 0.0
      %926 = vmatmul.mubr.f32.gmra.mrb[0].mxu0 %v720
      %v927 = vpop.f32.mrb[0].mxu0
      %v928 = vadd.f32 %v607, %v927
      %v929 = vpop.f32.mrb[0].mxu0
      %930 = vmatprep.mubr.f32.mxu0 0.0
      %931 = vmatmul.mubr.f32.gmra.mrb[0].mxu0 %v723
      %v932 = vpop.f32.mrb[0].mxu0
      %v933 = vadd.f32 %v612, %v932
      %v934 = vpop.f32.mrb[0].mxu0
      %935 = vmatprep.mubr.f32.mxu0 0.0
      %936 = vmatmul.mubr.f32.gmra.mrb[0].mxu0 %v726
      %v937 = vpop.f32.mrb[0].mxu0
      %v938 = vadd.f32 %v617, %v937
      %v939 = vpop.f32.mrb[0].mxu0
      %940 = vmatprep.mubr.f32.mxu0 0.0
      %941 = vmatmul.mubr.f32.gmra.mrb[0].mxu0 %v729
      %v942 = vpop.f32.mrb[0].mxu0
      %v943 = vadd.f32 %v622, %v942
      %v944 = vpop.f32.mrb[0].mxu0
      %945 = vmatprep.mubr.f32.mxu0 0.0
      %946 = vmatmul.mubr.f32.gmra.mrb[0].mxu0 %v732
      %v947 = vpop.f32.mrb[0].mxu0
      %v948 = vadd.f32 %v627, %v947
      %v949 = vpop.f32.mrb[0].mxu0
      %950 = vmatprep.mubr.f32.mxu0 0.0
      %951 = vmatmul.mubr.f32.gmra.mrb[0].mxu0 %v735
      %v952 = vpop.f32.mrb[0].mxu0
      %v953 = vadd.f32 %v632, %v952
      %v954 = vpop.f32.mrb[0].mxu0
      %955 = vmatprep.mubr.f32.mxu0 0.0
      %956 = vmatmul.mubr.f32.gmra.mrb[0].mxu0 %v738
      %v957 = vpop.f32.mrb[0].mxu0
      %v958 = vadd.f32 %v637, %v957
      %v959 = vpop.f32.mrb[0].mxu0
      %960 = vmatprep.mubr.f32.mxu0 0.0
      %961 = vmatmul.mubr.f32.gmra.mrb[0].mxu0 %v741
      %v962 = vpop.f32.mrb[0].mxu0
      %v963 = vadd.f32 %v642, %v962
      %v964 = vpop.f32.mrb[0].mxu0
      %965 = vmatprep.mubr.f32.mxu0 0.0
      %966 = vmatmul.mubr.f32.gmra.mrb[0].mxu0 %v744
      %v967 = vpop.f32.mrb[0].mxu0
      %v968 = vadd.f32 %v647, %v967
      %v969 = vpop.f32.mrb[0].mxu0
      %970 = vdwg.mxu0
      %vm987 = vcmask 1046528
      %v988 = vrot.slane %v218, 1
      %v989 = vrot.slane %v219, 1
      %v990 = vsel %vm987, %v988, %v989
      %v991 = vrot.slane %v220, 1
      %v992 = vsel %vm987, %v989, %v991
      %v993 = vrot.slane %v221, 1
      %v994 = vrot.slane %v222, 1
      %v995 = vsel %vm987, %v993, %v994
      %v996 = vrot.slane %v223, 1
      %v997 = vsel %vm987, %v994, %v996
      %v998 = vrot.slane %v224, 1
      %v999 = vrot.slane %v225, 1
      %v1000 = vsel %vm987, %v998, %v999
      %v1001 = vrot.slane %v226, 1
      %v1002 = vsel %vm987, %v999, %v1001
      %v1003 = vrot.slane %v227, 1
      %v1004 = vrot.slane %v228, 1
      %v1005 = vsel %vm987, %v1003, %v1004
      %v1006 = vrot.slane %v229, 1
      %v1007 = vsel %vm987, %v1004, %v1006
      %v1008 = vrot.slane %v230, 1
      %v1009 = vrot.slane %v231, 1
      %v1010 = vsel %vm987, %v1008, %v1009
      %v1011 = vrot.slane %v232, 1
      %v1012 = vsel %vm987, %v1009, %v1011
      %v1013 = vrot.slane %v233, 1
      %v1014 = vrot.slane %v234, 1
      %v1015 = vsel %vm987, %v1013, %v1014
      %v1016 = vrot.slane %v235, 1
      %v1017 = vsel %vm987, %v1014, %v1016
      %v1018 = vrot.slane %v236, 1
      %v1019 = vrot.slane %v237, 1
      %v1020 = vsel %vm987, %v1018, %v1019
      %v1021 = vrot.slane %v238, 1
      %v1022 = vsel %vm987, %v1019, %v1021
      %v1023 = vrot.slane %v239, 1
      %v1024 = vrot.slane %v240, 1
      %v1025 = vsel %vm987, %v1023, %v1024
      %v1026 = vrot.slane %v241, 1
      %v1027 = vsel %vm987, %v1024, %v1026
      %v1028 = vrot.slane %v242, 1
      %v1029 = vrot.slane %v243, 1
      %v1030 = vsel %vm987, %v1028, %v1029
      %v1031 = vrot.slane %v244, 1
      %v1032 = vsel %vm987, %v1029, %v1031
      %v1033 = vrot.slane %v245, 1
      %v1034 = vrot.slane %v246, 1
      %v1035 = vsel %vm987, %v1033, %v1034
      %v1036 = vrot.slane %v247, 1
      %v1037 = vsel %vm987, %v1034, %v1036
      %v1038 = vrot.slane %v248, 1
      %v1039 = vrot.slane %v249, 1
      %v1040 = vsel %vm987, %v1038, %v1039
      %v1041 = vrot.slane %v250, 1
      %v1042 = vsel %vm987, %v1039, %v1041
      %v1043 = vrot.slane %v251, 1
      %v1044 = vrot.slane %v252, 1
      %v1045 = vsel %vm987, %v1043, %v1044
      %v1046 = vrot.slane %v253, 1
      %v1047 = vsel %vm987, %v1044, %v1046
      %v1048 = vrot.slane %v254, 1
      %v1049 = vrot.slane %v255, 1
      %v1050 = vsel %vm987, %v1048, %v1049
      %v1051 = vrot.slane %v256, 1
      %v1052 = vsel %vm987, %v1049, %v1051
      %v1053 = vrot.slane %v257, 1
      %v1054 = vrot.slane %v258, 1
      %v1055 = vsel %vm987, %v1053, %v1054
      %v1056 = vrot.slane %v259, 1
      %v1057 = vsel %vm987, %v1054, %v1056
      %v1058 = vrot.slane %v260, 1
      %v1059 = vrot.slane %v261, 1
      %v1060 = vsel %vm987, %v1058, %v1059
      %v1061 = vrot.slane %v262, 1
      %v1062 = vsel %vm987, %v1059, %v1061
      %v1063 = vrot.slane %v263, 1
      %v1064 = vrot.slane %v264, 1
      %v1065 = vsel %vm987, %v1063, %v1064
      %v1066 = vrot.slane %v265, 1
      %v1067 = vsel %vm987, %v1064, %v1066
      %v1084 = vrot.slane %v272, 1
      %v1085 = vrot.slane %v273, 1
      %v1086 = vsel %vm987, %v1084, %v1085
      %v1087 = vrot.slane %v274, 1
      %v1088 = vsel %vm987, %v1085, %v1087
      %v1089 = vrot.slane %v275, 1
      %v1090 = vrot.slane %v276, 1
      %v1091 = vsel %vm987, %v1089, %v1090
      %v1092 = vrot.slane %v277, 1
      %v1093 = vsel %vm987, %v1090, %v1092
      %v1094 = vrot.slane %v278, 1
      %v1095 = vrot.slane %v279, 1
      %v1096 = vsel %vm987, %v1094, %v1095
      %v1097 = vrot.slane %v280, 1
      %v1098 = vsel %vm987, %v1095, %v1097
      %v1099 = vrot.slane %v281, 1
      %v1100 = vrot.slane %v282, 1
      %v1101 = vsel %vm987, %v1099, %v1100
      %v1102 = vrot.slane %v283, 1
      %v1103 = vsel %vm987, %v1100, %v1102
      %v1104 = vrot.slane %v284, 1
      %v1105 = vrot.slane %v285, 1
      %v1106 = vsel %vm987, %v1104, %v1105
      %v1107 = vrot.slane %v286, 1
      %v1108 = vsel %vm987, %v1105, %v1107
      %v1109 = vrot.slane %v287, 1
      %v1110 = vrot.slane %v288, 1
      %v1111 = vsel %vm987, %v1109, %v1110
      %v1112 = vrot.slane %v289, 1
      %v1113 = vsel %vm987, %v1110, %v1112
      %v1114 = vrot.slane %v290, 1
      %v1115 = vrot.slane %v291, 1
      %v1116 = vsel %vm987, %v1114, %v1115
      %v1117 = vrot.slane %v292, 1
      %v1118 = vsel %vm987, %v1115, %v1117
      %v1119 = vrot.slane %v293, 1
      %v1120 = vrot.slane %v294, 1
      %v1121 = vsel %vm987, %v1119, %v1120
      %v1122 = vrot.slane %v295, 1
      %v1123 = vsel %vm987, %v1120, %v1122
      %v1124 = vrot.slane %v296, 1
      %v1125 = vrot.slane %v297, 1
      %v1126 = vsel %vm987, %v1124, %v1125
      %v1127 = vrot.slane %v298, 1
      %v1128 = vsel %vm987, %v1125, %v1127
      %v1129 = vrot.slane %v299, 1
      %v1130 = vrot.slane %v300, 1
      %v1131 = vsel %vm987, %v1129, %v1130
      %v1132 = vrot.slane %v301, 1
      %v1133 = vsel %vm987, %v1130, %v1132
      %v1134 = vrot.slane %v302, 1
      %v1135 = vrot.slane %v303, 1
      %v1136 = vsel %vm987, %v1134, %v1135
      %v1137 = vrot.slane %v304, 1
      %v1138 = vsel %vm987, %v1135, %v1137
      %v1139 = vrot.slane %v305, 1
      %v1140 = vrot.slane %v306, 1
      %v1141 = vsel %vm987, %v1139, %v1140
      %v1142 = vrot.slane %v307, 1
      %v1143 = vsel %vm987, %v1140, %v1142
      %v1144 = vrot.slane %v308, 1
      %v1145 = vrot.slane %v309, 1
      %v1146 = vsel %vm987, %v1144, %v1145
      %v1147 = vrot.slane %v310, 1
      %v1148 = vsel %vm987, %v1145, %v1147
      %v1149 = vrot.slane %v311, 1
      %v1150 = vrot.slane %v312, 1
      %v1151 = vsel %vm987, %v1149, %v1150
      %v1152 = vrot.slane %v313, 1
      %v1153 = vsel %vm987, %v1150, %v1152
      %v1154 = vrot.slane %v314, 1
      %v1155 = vrot.slane %v315, 1
      %v1156 = vsel %vm987, %v1154, %v1155
      %v1157 = vrot.slane %v316, 1
      %v1158 = vsel %vm987, %v1155, %v1157
      %v1159 = vrot.slane %v317, 1
      %v1160 = vrot.slane %v318, 1
      %v1161 = vsel %vm987, %v1159, %v1160
      %v1162 = vrot.slane %v319, 1
      %v1163 = vsel %vm987, %v1160, %v1162
      %s1164 = scalar_lea.vmem %s2, 8
      %v1165 = vld [vmem:[%s1164] sm:$0xff]
      %v1166 = vsel %vm328, %v990, 0
      %v1168 = vsel %vm328, %v992, 0
      %v1170 = vsel %vm328, %v995, 0
      %v1172 = vsel %vm328, %v997, 0
      %v1174 = vsel %vm328, %v1000, 0
      %v1176 = vsel %vm328, %v1002, 0
      %v1178 = vsel %vm328, %v1005, 0
      %v1180 = vsel %vm328, %v1007, 0
      %v1182 = vsel %vm328, %v1010, 0
      %v1184 = vsel %vm328, %v1012, 0
      %v1186 = vsel %vm328, %v1015, 0
      %v1188 = vsel %vm328, %v1017, 0
      %v1190 = vsel %vm328, %v1020, 0
      %v1192 = vsel %vm328, %v1022, 0
      %v1194 = vsel %vm328, %v1025, 0
      %v1196 = vsel %vm328, %v1027, 0
      %v1198 = vsel %vm328, %v1030, 0
      %v1200 = vsel %vm328, %v1032, 0
      %v1202 = vsel %vm328, %v1035, 0
      %v1204 = vsel %vm328, %v1037, 0
      %v1206 = vsel %vm328, %v1040, 0
      %v1208 = vsel %vm328, %v1042, 0
      %v1210 = vsel %vm328, %v1045, 0
      %v1212 = vsel %vm328, %v1047, 0
      %v1214 = vsel %vm328, %v1050, 0
      %v1216 = vsel %vm328, %v1052, 0
      %v1218 = vsel %vm328, %v1055, 0
      %v1220 = vsel %vm328, %v1057, 0
      %v1222 = vsel %vm328, %v1060, 0
      %v1224 = vsel %vm328, %v1062, 0
      %v1226 = vsel %vm328, %v1065, 0
      %v1228 = vsel %vm328, %v1067, 0
      %1230 = vmatprep.subr.mxu0 0.0
      %1231 = vmatpush1.msra.mxu0 %v1165
      %1232 = vmatprep.subr.mxu0 0.0
      %1233 = vmatpush1.msra.mxu0 0.0
      %1234 = vmatprep.subr.mxu0 0.0
      %1235 = vmatpush1.msra.mxu0 0.0
      %1236 = vmatprep.subr.mxu0 0.0
      %1237 = vmatpush1.msra.mxu0 0.0
      %1238 = vmatprep.subr.mxu0 0.0
      %1239 = vmatpush1.msra.mxu0 0.0
      %1240 = vmatprep.subr.mxu0 0.0
      %1241 = vmatpush1.msra.mxu0 0.0
      %1242 = vmatprep.subr.mxu0 0.0
      %1243 = vmatpush1.msra.mxu0 0.0
      %1244 = vmatprep.subr.mxu0 0.0
      %1245 = vmatpush1.msra.mxu0 0.0
      %1246 = vmatprep.subr.mxu0 0.0
      %1247 = vmatpush1.msra.mxu0 0.0
      %1248 = vmatprep.subr.mxu0 0.0
      %1249 = vmatpush1.msra.mxu0 0.0
      %1250 = vmatprep.subr.mxu0 0.0
      %1251 = vmatpush1.msra.mxu0 0.0
      %1252 = vmatprep.subr.mxu0 0.0
      %1253 = vmatpush1.msra.mxu0 0.0
      %1254 = vmatprep.subr.mxu0 0.0
      %1255 = vmatpush1.msra.mxu0 0.0
      %1256 = vmatprep.subr.mxu0 0.0
      %1257 = vmatpush1.msra.mxu0 0.0
      %1258 = vmatprep.subr.mxu0 0.0
      %1259 = vmatpush1.msra.mxu0 0.0
      %1260 = vmatprep.subr.mxu0 0.0
      %1261 = vmatpush1.msra.mxu0 0.0
      %1262 = vmatprep.subr.mxu0 0.0
      %1263 = vmatpush1.msra.mxu0 0.0
      %1264 = vmatprep.subr.mxu0 0.0
      %1265 = vmatpush1.msra.mxu0 0.0
      %1266 = vmatprep.subr.mxu0 0.0
      %1267 = vmatpush1.msra.mxu0 0.0
      %1268 = vmatprep.subr.mxu0 0.0
      %1269 = vmatpush1.msra.mxu0 0.0
      %1270 = vmatprep.subr.mxu0 0.0
      %1271 = vmatpush1.msra.mxu0 0.0
      %1272 = vmatprep.subr.mxu0 0.0
      %1273 = vmatpush1.msra.mxu0 0.0
      %1274 = vmatprep.subr.mxu0 0.0
      %1275 = vmatpush1.msra.mxu0 0.0
      %1276 = vmatprep.subr.mxu0 0.0
      %1277 = vmatpush1.msra.mxu0 0.0
      %1278 = vmatprep.subr.mxu0 0.0
      %1279 = vmatpush1.msra.mxu0 0.0
      %1280 = vmatprep.subr.mxu0 0.0
      %1281 = vmatpush1.msra.mxu0 0.0
      %1282 = vmatprep.subr.mxu0 0.0
      %1283 = vmatpush1.msra.mxu0 0.0
      %1284 = vmatprep.subr.mxu0 0.0
      %1285 = vmatpush1.msra.mxu0 0.0
      %1286 = vmatprep.subr.mxu0 0.0
      %1287 = vmatpush1.msra.mxu0 0.0
      %1288 = vmatprep.subr.mxu0 0.0
      %1289 = vmatpush1.msra.mxu0 0.0
      %1290 = vmatprep.subr.mxu0 0.0
      %1291 = vmatpush1.msra.mxu0 0.0
      %1292 = vmatprep.subr.mxu0 0.0
      %1293 = vmatpush1.msra.mxu0 0.0
      %1294 = vmatprep.mubr.f32.mxu0 0.0
      %1295 = vmatmul.mubr.f32.gmra.mrb[0].mxu0 %v1166
      %v1296 = vpop.f32.mrb[0].mxu0
      %v1297 = vadd.f32 0.0, %v1296
      %v1298 = vpop.f32.mrb[0].mxu0
      %1299 = vmatprep.mubr.f32.mxu0 0.0
      %1300 = vmatmul.mubr.f32.gmra.mrb[0].mxu0 %v1168
      %v1301 = vpop.f32.mrb[0].mxu0
      %v1302 = vadd.f32 0.0, %v1301
      %v1303 = vpop.f32.mrb[0].mxu0
      %1304 = vmatprep.mubr.f32.mxu0 0.0
      %1305 = vmatmul.mubr.f32.gmra.mrb[0].mxu0 %v1170
      %v1306 = vpop.f32.mrb[0].mxu0
      %v1307 = vadd.f32 0.0, %v1306
      %v1308 = vpop.f32.mrb[0].mxu0
      %1309 = vmatprep.mubr.f32.mxu0 0.0
      %1310 = vmatmul.mubr.f32.gmra.mrb[0].mxu0 %v1172
      %v1311 = vpop.f32.mrb[0].mxu0
      %v1312 = vadd.f32 0.0, %v1311
      %v1313 = vpop.f32.mrb[0].mxu0
      %1314 = vmatprep.mubr.f32.mxu0 0.0
      %1315 = vmatmul.mubr.f32.gmra.mrb[0].mxu0 %v1174
      %v1316 = vpop.f32.mrb[0].mxu0
      %v1317 = vadd.f32 0.0, %v1316
      %v1318 = vpop.f32.mrb[0].mxu0
      %1319 = vmatprep.mubr.f32.mxu0 0.0
      %1320 = vmatmul.mubr.f32.gmra.mrb[0].mxu0 %v1176
      %v1321 = vpop.f32.mrb[0].mxu0
      %v1322 = vadd.f32 0.0, %v1321
      %v1323 = vpop.f32.mrb[0].mxu0
      %1324 = vmatprep.mubr.f32.mxu0 0.0
      %1325 = vmatmul.mubr.f32.gmra.mrb[0].mxu0 %v1178
      %v1326 = vpop.f32.mrb[0].mxu0
      %v1327 = vadd.f32 0.0, %v1326
      %v1328 = vpop.f32.mrb[0].mxu0
      %1329 = vmatprep.mubr.f32.mxu0 0.0
      %1330 = vmatmul.mubr.f32.gmra.mrb[0].mxu0 %v1180
      %v1331 = vpop.f32.mrb[0].mxu0
      %v1332 = vadd.f32 0.0, %v1331
      %v1333 = vpop.f32.mrb[0].mxu0
      %1334 = vmatprep.mubr.f32.mxu0 0.0
      %1335 = vmatmul.mubr.f32.gmra.mrb[0].mxu0 %v1182
      %v1336 = vpop.f32.mrb[0].mxu0
      %v1337 = vadd.f32 0.0, %v1336
      %v1338 = vpop.f32.mrb[0].mxu0
      %1339 = vmatprep.mubr.f32.mxu0 0.0
      %1340 = vmatmul.mubr.f32.gmra.mrb[0].mxu0 %v1184
      %v1341 = vpop.f32.mrb[0].mxu0
      %v1342 = vadd.f32 0.0, %v1341
      %v1343 = vpop.f32.mrb[0].mxu0
      %1344 = vmatprep.mubr.f32.mxu0 0.0
      %1345 = vmatmul.mubr.f32.gmra.mrb[0].mxu0 %v1186
      %v1346 = vpop.f32.mrb[0].mxu0
      %v1347 = vadd.f32 0.0, %v1346
      %v1348 = vpop.f32.mrb[0].mxu0
      %1349 = vmatprep.mubr.f32.mxu0 0.0
      %1350 = vmatmul.mubr.f32.gmra.mrb[0].mxu0 %v1188
      %v1351 = vpop.f32.mrb[0].mxu0
      %v1352 = vadd.f32 0.0, %v1351
      %v1353 = vpop.f32.mrb[0].mxu0
      %1354 = vmatprep.mubr.f32.mxu0 0.0
      %1355 = vmatmul.mubr.f32.gmra.mrb[0].mxu0 %v1190
      %v1356 = vpop.f32.mrb[0].mxu0
      %v1357 = vadd.f32 0.0, %v1356
      %v1358 = vpop.f32.mrb[0].mxu0
      %1359 = vmatprep.mubr.f32.mxu0 0.0
      %1360 = vmatmul.mubr.f32.gmra.mrb[0].mxu0 %v1192
      %v1361 = vpop.f32.mrb[0].mxu0
      %v1362 = vadd.f32 0.0, %v1361
      %v1363 = vpop.f32.mrb[0].mxu0
      %1364 = vmatprep.mubr.f32.mxu0 0.0
      %1365 = vmatmul.mubr.f32.gmra.mrb[0].mxu0 %v1194
      %v1366 = vpop.f32.mrb[0].mxu0
      %v1367 = vadd.f32 0.0, %v1366
      %v1368 = vpop.f32.mrb[0].mxu0
      %1369 = vmatprep.mubr.f32.mxu0 0.0
      %1370 = vmatmul.mubr.f32.gmra.mrb[0].mxu0 %v1196
      %v1371 = vpop.f32.mrb[0].mxu0
      %v1372 = vadd.f32 0.0, %v1371
      %v1373 = vpop.f32.mrb[0].mxu0
      %1374 = vmatprep.mubr.f32.mxu0 0.0
      %1375 = vmatmul.mubr.f32.gmra.mrb[0].mxu0 %v1198
      %v1376 = vpop.f32.mrb[0].mxu0
      %v1377 = vadd.f32 0.0, %v1376
      %v1378 = vpop.f32.mrb[0].mxu0
      %1379 = vmatprep.mubr.f32.mxu0 0.0
      %1380 = vmatmul.mubr.f32.gmra.mrb[0].mxu0 %v1200
      %v1381 = vpop.f32.mrb[0].mxu0
      %v1382 = vadd.f32 0.0, %v1381
      %v1383 = vpop.f32.mrb[0].mxu0
      %1384 = vmatprep.mubr.f32.mxu0 0.0
      %1385 = vmatmul.mubr.f32.gmra.mrb[0].mxu0 %v1202
      %v1386 = vpop.f32.mrb[0].mxu0
      %v1387 = vadd.f32 0.0, %v1386
      %v1388 = vpop.f32.mrb[0].mxu0
      %1389 = vmatprep.mubr.f32.mxu0 0.0
      %1390 = vmatmul.mubr.f32.gmra.mrb[0].mxu0 %v1204
      %v1391 = vpop.f32.mrb[0].mxu0
      %v1392 = vadd.f32 0.0, %v1391
      %v1393 = vpop.f32.mrb[0].mxu0
      %1394 = vmatprep.mubr.f32.mxu0 0.0
      %1395 = vmatmul.mubr.f32.gmra.mrb[0].mxu0 %v1206
      %v1396 = vpop.f32.mrb[0].mxu0
      %v1397 = vadd.f32 0.0, %v1396
      %v1398 = vpop.f32.mrb[0].mxu0
      %1399 = vmatprep.mubr.f32.mxu0 0.0
      %1400 = vmatmul.mubr.f32.gmra.mrb[0].mxu0 %v1208
      %v1401 = vpop.f32.mrb[0].mxu0
      %v1402 = vadd.f32 0.0, %v1401
      %v1403 = vpop.f32.mrb[0].mxu0
      %1404 = vmatprep.mubr.f32.mxu0 0.0
      %1405 = vmatmul.mubr.f32.gmra.mrb[0].mxu0 %v1210
      %v1406 = vpop.f32.mrb[0].mxu0
      %v1407 = vadd.f32 0.0, %v1406
      %v1408 = vpop.f32.mrb[0].mxu0
      %1409 = vmatprep.mubr.f32.mxu0 0.0
      %1410 = vmatmul.mubr.f32.gmra.mrb[0].mxu0 %v1212
      %v1411 = vpop.f32.mrb[0].mxu0
      %v1412 = vadd.f32 0.0, %v1411
      %v1413 = vpop.f32.mrb[0].mxu0
      %1414 = vmatprep.mubr.f32.mxu0 0.0
      %1415 = vmatmul.mubr.f32.gmra.mrb[0].mxu0 %v1214
      %v1416 = vpop.f32.mrb[0].mxu0
      %v1417 = vadd.f32 0.0, %v1416
      %v1418 = vpop.f32.mrb[0].mxu0
      %1419 = vmatprep.mubr.f32.mxu0 0.0
      %1420 = vmatmul.mubr.f32.gmra.mrb[0].mxu0 %v1216
      %v1421 = vpop.f32.mrb[0].mxu0
      %v1422 = vadd.f32 0.0, %v1421
      %v1423 = vpop.f32.mrb[0].mxu0
      %1424 = vmatprep.mubr.f32.mxu0 0.0
      %1425 = vmatmul.mubr.f32.gmra.mrb[0].mxu0 %v1218
      %v1426 = vpop.f32.mrb[0].mxu0
      %v1427 = vadd.f32 0.0, %v1426
      %v1428 = vpop.f32.mrb[0].mxu0
      %1429 = vmatprep.mubr.f32.mxu0 0.0
      %1430 = vmatmul.mubr.f32.gmra.mrb[0].mxu0 %v1220
      %v1431 = vpop.f32.mrb[0].mxu0
      %v1432 = vadd.f32 0.0, %v1431
      %v1433 = vpop.f32.mrb[0].mxu0
      %1434 = vmatprep.mubr.f32.mxu0 0.0
      %1435 = vmatmul.mubr.f32.gmra.mrb[0].mxu0 %v1222
      %v1436 = vpop.f32.mrb[0].mxu0
      %v1437 = vadd.f32 0.0, %v1436
      %v1438 = vpop.f32.mrb[0].mxu0
      %1439 = vmatprep.mubr.f32.mxu0 0.0
      %1440 = vmatmul.mubr.f32.gmra.mrb[0].mxu0 %v1224
      %v1441 = vpop.f32.mrb[0].mxu0
      %v1442 = vadd.f32 0.0, %v1441
      %v1443 = vpop.f32.mrb[0].mxu0
      %1444 = vmatprep.mubr.f32.mxu0 0.0
      %1445 = vmatmul.mubr.f32.gmra.mrb[0].mxu0 %v1226
      %v1446 = vpop.f32.mrb[0].mxu0
      %v1447 = vadd.f32 0.0, %v1446
      %v1448 = vpop.f32.mrb[0].mxu0
      %1449 = vmatprep.mubr.f32.mxu0 0.0
      %1450 = vmatmul.mubr.f32.gmra.mrb[0].mxu0 %v1228
      %v1451 = vpop.f32.mrb[0].mxu0
      %v1452 = vadd.f32 0.0, %v1451
      %v1453 = vpop.f32.mrb[0].mxu0
      %1454 = vdwg.mxu0
      %v1455 = vadd.f32 %v813, %v1297
      %v1456 = vadd.f32 %v818, %v1302
      %v1457 = vadd.f32 %v823, %v1307
      %v1458 = vadd.f32 %v828, %v1312
      %v1459 = vadd.f32 %v833, %v1317
      %v1460 = vadd.f32 %v838, %v1322
      %v1461 = vadd.f32 %v843, %v1327
      %v1462 = vadd.f32 %v848, %v1332
      %v1463 = vadd.f32 %v853, %v1337
      %v1464 = vadd.f32 %v858, %v1342
      %v1465 = vadd.f32 %v863, %v1347
      %v1466 = vadd.f32 %v868, %v1352
      %v1467 = vadd.f32 %v873, %v1357
      %v1468 = vadd.f32 %v878, %v1362
      %v1469 = vadd.f32 %v883, %v1367
      %v1470 = vadd.f32 %v888, %v1372
      %v1471 = vadd.f32 %v893, %v1377
      %v1472 = vadd.f32 %v898, %v1382
      %v1473 = vadd.f32 %v903, %v1387
      %v1474 = vadd.f32 %v908, %v1392
      %v1475 = vadd.f32 %v913, %v1397
      %v1476 = vadd.f32 %v918, %v1402
      %v1477 = vadd.f32 %v923, %v1407
      %v1478 = vadd.f32 %v928, %v1412
      %v1479 = vadd.f32 %v933, %v1417
      %v1480 = vadd.f32 %v938, %v1422
      %v1481 = vadd.f32 %v943, %v1427
      %v1482 = vadd.f32 %v948, %v1432
      %v1483 = vadd.f32 %v953, %v1437
      %v1484 = vadd.f32 %v958, %v1442
      %v1485 = vadd.f32 %v963, %v1447
      %v1486 = vadd.f32 %v968, %v1452
      %s1487 = scalar_lea.vmem %s3, 8
      %v1488 = vld [vmem:[%s1487] sm:$0xff]
      %v1489 = vsel %vm328, %v1086, 0
      %v1491 = vsel %vm328, %v1088, 0
      %v1493 = vsel %vm328, %v1091, 0
      %v1495 = vsel %vm328, %v1093, 0
      %v1497 = vsel %vm328, %v1096, 0
      %v1499 = vsel %vm328, %v1098, 0
      %v1501 = vsel %vm328, %v1101, 0
      %v1503 = vsel %vm328, %v1103, 0
      %v1505 = vsel %vm328, %v1106, 0
      %v1507 = vsel %vm328, %v1108, 0
      %v1509 = vsel %vm328, %v1111, 0
      %v1511 = vsel %vm328, %v1113, 0
      %v1513 = vsel %vm328, %v1116, 0
      %v1515 = vsel %vm328, %v1118, 0
      %v1517 = vsel %vm328, %v1121, 0
      %v1519 = vsel %vm328, %v1123, 0
      %v1521 = vsel %vm328, %v1126, 0
      %v1523 = vsel %vm328, %v1128, 0
      %v1525 = vsel %vm328, %v1131, 0
      %v1527 = vsel %vm328, %v1133, 0
      %v1529 = vsel %vm328, %v1136, 0
      %v1531 = vsel %vm328, %v1138, 0
      %v1533 = vsel %vm328, %v1141, 0
      %v1535 = vsel %vm328, %v1143, 0
      %v1537 = vsel %vm328, %v1146, 0
      %v1539 = vsel %vm328, %v1148, 0
      %v1541 = vsel %vm328, %v1151, 0
      %v1543 = vsel %vm328, %v1153, 0
      %v1545 = vsel %vm328, %v1156, 0
      %v1547 = vsel %vm328, %v1158, 0
      %v1549 = vsel %vm328, %v1161, 0
      %v1551 = vsel %vm328, %v1163, 0
      %1553 = vmatprep.subr.mxu0 0.0
      %1554 = vmatpush1.msra.mxu0 %v1488
      %1555 = vmatprep.subr.mxu0 0.0
      %1556 = vmatpush1.msra.mxu0 0.0
      %1557 = vmatprep.subr.mxu0 0.0
      %1558 = vmatpush1.msra.mxu0 0.0
      %1559 = vmatprep.subr.mxu0 0.0
      %1560 = vmatpush1.msra.mxu0 0.0
      %1561 = vmatprep.subr.mxu0 0.0
      %1562 = vmatpush1.msra.mxu0 0.0
      %1563 = vmatprep.subr.mxu0 0.0
      %1564 = vmatpush1.msra.mxu0 0.0
      %1565 = vmatprep.subr.mxu0 0.0
      %1566 = vmatpush1.msra.mxu0 0.0
      %1567 = vmatprep.subr.mxu0 0.0
      %1568 = vmatpush1.msra.mxu0 0.0
      %1569 = vmatprep.subr.mxu0 0.0
      %1570 = vmatpush1.msra.mxu0 0.0
      %1571 = vmatprep.subr.mxu0 0.0
      %1572 = vmatpush1.msra.mxu0 0.0
      %1573 = vmatprep.subr.mxu0 0.0
      %1574 = vmatpush1.msra.mxu0 0.0
      %1575 = vmatprep.subr.mxu0 0.0
      %1576 = vmatpush1.msra.mxu0 0.0
      %1577 = vmatprep.subr.mxu0 0.0
      %1578 = vmatpush1.msra.mxu0 0.0
      %1579 = vmatprep.subr.mxu0 0.0
      %1580 = vmatpush1.msra.mxu0 0.0
      %1581 = vmatprep.subr.mxu0 0.0
      %1582 = vmatpush1.msra.mxu0 0.0
      %1583 = vmatprep.subr.mxu0 0.0
      %1584 = vmatpush1.msra.mxu0 0.0
      %1585 = vmatprep.subr.mxu0 0.0
      %1586 = vmatpush1.msra.mxu0 0.0
      %1587 = vmatprep.subr.mxu0 0.0
      %1588 = vmatpush1.msra.mxu0 0.0
      %1589 = vmatprep.subr.mxu0 0.0
      %1590 = vmatpush1.msra.mxu0 0.0
      %1591 = vmatprep.subr.mxu0 0.0
      %1592 = vmatpush1.msra.mxu0 0.0
      %1593 = vmatprep.subr.mxu0 0.0
      %1594 = vmatpush1.msra.mxu0 0.0
      %1595 = vmatprep.subr.mxu0 0.0
      %1596 = vmatpush1.msra.mxu0 0.0
      %1597 = vmatprep.subr.mxu0 0.0
      %1598 = vmatpush1.msra.mxu0 0.0
      %1599 = vmatprep.subr.mxu0 0.0
      %1600 = vmatpush1.msra.mxu0 0.0
      %1601 = vmatprep.subr.mxu0 0.0
      %1602 = vmatpush1.msra.mxu0 0.0
      %1603 = vmatprep.subr.mxu0 0.0
      %1604 = vmatpush1.msra.mxu0 0.0
      %1605 = vmatprep.subr.mxu0 0.0
      %1606 = vmatpush1.msra.mxu0 0.0
      %1607 = vmatprep.subr.mxu0 0.0
      %1608 = vmatpush1.msra.mxu0 0.0
      %1609 = vmatprep.subr.mxu0 0.0
      %1610 = vmatpush1.msra.mxu0 0.0
      %1611 = vmatprep.subr.mxu0 0.0
      %1612 = vmatpush1.msra.mxu0 0.0
      %1613 = vmatprep.subr.mxu0 0.0
      %1614 = vmatpush1.msra.mxu0 0.0
      %1615 = vmatprep.subr.mxu0 0.0
      %1616 = vmatpush1.msra.mxu0 0.0
      %1617 = vmatprep.mubr.f32.mxu0 0.0
      %1618 = vmatmul.mubr.f32.gmra.mrb[0].mxu0 %v1489
      %v1619 = vpop.f32.mrb[0].mxu0
      %v1620 = vadd.f32 0.0, %v1619
      %v1621 = vpop.f32.mrb[0].mxu0
      %1622 = vmatprep.mubr.f32.mxu0 0.0
      %1623 = vmatmul.mubr.f32.gmra.mrb[0].mxu0 %v1491
      %v1624 = vpop.f32.mrb[0].mxu0
      %v1625 = vadd.f32 0.0, %v1624
      %v1626 = vpop.f32.mrb[0].mxu0
      %1627 = vmatprep.mubr.f32.mxu0 0.0
      %1628 = vmatmul.mubr.f32.gmra.mrb[0].mxu0 %v1493
      %v1629 = vpop.f32.mrb[0].mxu0
      %v1630 = vadd.f32 0.0, %v1629
      %v1631 = vpop.f32.mrb[0].mxu0
      %1632 = vmatprep.mubr.f32.mxu0 0.0
      %1633 = vmatmul.mubr.f32.gmra.mrb[0].mxu0 %v1495
      %v1634 = vpop.f32.mrb[0].mxu0
      %v1635 = vadd.f32 0.0, %v1634
      %v1636 = vpop.f32.mrb[0].mxu0
      %1637 = vmatprep.mubr.f32.mxu0 0.0
      %1638 = vmatmul.mubr.f32.gmra.mrb[0].mxu0 %v1497
      %v1639 = vpop.f32.mrb[0].mxu0
      %v1640 = vadd.f32 0.0, %v1639
      %v1641 = vpop.f32.mrb[0].mxu0
      %1642 = vmatprep.mubr.f32.mxu0 0.0
      %1643 = vmatmul.mubr.f32.gmra.mrb[0].mxu0 %v1499
      %v1644 = vpop.f32.mrb[0].mxu0
      %v1645 = vadd.f32 0.0, %v1644
      %v1646 = vpop.f32.mrb[0].mxu0
      %1647 = vmatprep.mubr.f32.mxu0 0.0
      %1648 = vmatmul.mubr.f32.gmra.mrb[0].mxu0 %v1501
      %v1649 = vpop.f32.mrb[0].mxu0
      %v1650 = vadd.f32 0.0, %v1649
      %v1651 = vpop.f32.mrb[0].mxu0
      %1652 = vmatprep.mubr.f32.mxu0 0.0
      %1653 = vmatmul.mubr.f32.gmra.mrb[0].mxu0 %v1503
      %v1654 = vpop.f32.mrb[0].mxu0
      %v1655 = vadd.f32 0.0, %v1654
      %v1656 = vpop.f32.mrb[0].mxu0
      %1657 = vmatprep.mubr.f32.mxu0 0.0
      %1658 = vmatmul.mubr.f32.gmra.mrb[0].mxu0 %v1505
      %v1659 = vpop.f32.mrb[0].mxu0
      %v1660 = vadd.f32 0.0, %v1659
      %v1661 = vpop.f32.mrb[0].mxu0
      %1662 = vmatprep.mubr.f32.mxu0 0.0
      %1663 = vmatmul.mubr.f32.gmra.mrb[0].mxu0 %v1507
      %v1664 = vpop.f32.mrb[0].mxu0
      %v1665 = vadd.f32 0.0, %v1664
      %v1666 = vpop.f32.mrb[0].mxu0
      %1667 = vmatprep.mubr.f32.mxu0 0.0
      %1668 = vmatmul.mubr.f32.gmra.mrb[0].mxu0 %v1509
      %v1669 = vpop.f32.mrb[0].mxu0
      %v1670 = vadd.f32 0.0, %v1669
      %v1671 = vpop.f32.mrb[0].mxu0
      %1672 = vmatprep.mubr.f32.mxu0 0.0
      %1673 = vmatmul.mubr.f32.gmra.mrb[0].mxu0 %v1511
      %v1674 = vpop.f32.mrb[0].mxu0
      %v1675 = vadd.f32 0.0, %v1674
      %v1676 = vpop.f32.mrb[0].mxu0
      %1677 = vmatprep.mubr.f32.mxu0 0.0
      %1678 = vmatmul.mubr.f32.gmra.mrb[0].mxu0 %v1513
      %v1679 = vpop.f32.mrb[0].mxu0
      %v1680 = vadd.f32 0.0, %v1679
      %v1681 = vpop.f32.mrb[0].mxu0
      %1682 = vmatprep.mubr.f32.mxu0 0.0
      %1683 = vmatmul.mubr.f32.gmra.mrb[0].mxu0 %v1515
      %v1684 = vpop.f32.mrb[0].mxu0
      %v1685 = vadd.f32 0.0, %v1684
      %v1686 = vpop.f32.mrb[0].mxu0
      %1687 = vmatprep.mubr.f32.mxu0 0.0
      %1688 = vmatmul.mubr.f32.gmra.mrb[0].mxu0 %v1517
      %v1689 = vpop.f32.mrb[0].mxu0
      %v1690 = vadd.f32 0.0, %v1689
      %v1691 = vpop.f32.mrb[0].mxu0
      %1692 = vmatprep.mubr.f32.mxu0 0.0
      %1693 = vmatmul.mubr.f32.gmra.mrb[0].mxu0 %v1519
      %v1694 = vpop.f32.mrb[0].mxu0
      %v1695 = vadd.f32 0.0, %v1694
      %v1696 = vpop.f32.mrb[0].mxu0
      %1697 = vmatprep.mubr.f32.mxu0 0.0
      %1698 = vmatmul.mubr.f32.gmra.mrb[0].mxu0 %v1521
      %v1699 = vpop.f32.mrb[0].mxu0
      %v1700 = vadd.f32 0.0, %v1699
      %v1701 = vpop.f32.mrb[0].mxu0
      %1702 = vmatprep.mubr.f32.mxu0 0.0
      %1703 = vmatmul.mubr.f32.gmra.mrb[0].mxu0 %v1523
      %v1704 = vpop.f32.mrb[0].mxu0
      %v1705 = vadd.f32 0.0, %v1704
      %v1706 = vpop.f32.mrb[0].mxu0
      %1707 = vmatprep.mubr.f32.mxu0 0.0
      %1708 = vmatmul.mubr.f32.gmra.mrb[0].mxu0 %v1525
      %v1709 = vpop.f32.mrb[0].mxu0
      %v1710 = vadd.f32 0.0, %v1709
      %v1711 = vpop.f32.mrb[0].mxu0
      %1712 = vmatprep.mubr.f32.mxu0 0.0
      %1713 = vmatmul.mubr.f32.gmra.mrb[0].mxu0 %v1527
      %v1714 = vpop.f32.mrb[0].mxu0
      %v1715 = vadd.f32 0.0, %v1714
      %v1716 = vpop.f32.mrb[0].mxu0
      %1717 = vmatprep.mubr.f32.mxu0 0.0
      %1718 = vmatmul.mubr.f32.gmra.mrb[0].mxu0 %v1529
      %v1719 = vpop.f32.mrb[0].mxu0
      %v1720 = vadd.f32 0.0, %v1719
      %v1721 = vpop.f32.mrb[0].mxu0
      %1722 = vmatprep.mubr.f32.mxu0 0.0
      %1723 = vmatmul.mubr.f32.gmra.mrb[0].mxu0 %v1531
      %v1724 = vpop.f32.mrb[0].mxu0
      %v1725 = vadd.f32 0.0, %v1724
      %v1726 = vpop.f32.mrb[0].mxu0
      %1727 = vmatprep.mubr.f32.mxu0 0.0
      %1728 = vmatmul.mubr.f32.gmra.mrb[0].mxu0 %v1533
      %v1729 = vpop.f32.mrb[0].mxu0
      %v1730 = vadd.f32 0.0, %v1729
      %v1731 = vpop.f32.mrb[0].mxu0
      %1732 = vmatprep.mubr.f32.mxu0 0.0
      %1733 = vmatmul.mubr.f32.gmra.mrb[0].mxu0 %v1535
      %v1734 = vpop.f32.mrb[0].mxu0
      %v1735 = vadd.f32 0.0, %v1734
      %v1736 = vpop.f32.mrb[0].mxu0
      %1737 = vmatprep.mubr.f32.mxu0 0.0
      %1738 = vmatmul.mubr.f32.gmra.mrb[0].mxu0 %v1537
      %v1739 = vpop.f32.mrb[0].mxu0
      %v1740 = vadd.f32 0.0, %v1739
      %v1741 = vpop.f32.mrb[0].mxu0
      %1742 = vmatprep.mubr.f32.mxu0 0.0
      %1743 = vmatmul.mubr.f32.gmra.mrb[0].mxu0 %v1539
      %v1744 = vpop.f32.mrb[0].mxu0
      %v1745 = vadd.f32 0.0, %v1744
      %v1746 = vpop.f32.mrb[0].mxu0
      %1747 = vmatprep.mubr.f32.mxu0 0.0
      %1748 = vmatmul.mubr.f32.gmra.mrb[0].mxu0 %v1541
      %v1749 = vpop.f32.mrb[0].mxu0
      %v1750 = vadd.f32 0.0, %v1749
      %v1751 = vpop.f32.mrb[0].mxu0
      %1752 = vmatprep.mubr.f32.mxu0 0.0
      %1753 = vmatmul.mubr.f32.gmra.mrb[0].mxu0 %v1543
      %v1754 = vpop.f32.mrb[0].mxu0
      %v1755 = vadd.f32 0.0, %v1754
      %v1756 = vpop.f32.mrb[0].mxu0
      %1757 = vmatprep.mubr.f32.mxu0 0.0
      %1758 = vmatmul.mubr.f32.gmra.mrb[0].mxu0 %v1545
      %v1759 = vpop.f32.mrb[0].mxu0
      %v1760 = vadd.f32 0.0, %v1759
      %v1761 = vpop.f32.mrb[0].mxu0
      %1762 = vmatprep.mubr.f32.mxu0 0.0
      %1763 = vmatmul.mubr.f32.gmra.mrb[0].mxu0 %v1547
      %v1764 = vpop.f32.mrb[0].mxu0
      %v1765 = vadd.f32 0.0, %v1764
      %v1766 = vpop.f32.mrb[0].mxu0
      %1767 = vmatprep.mubr.f32.mxu0 0.0
      %1768 = vmatmul.mubr.f32.gmra.mrb[0].mxu0 %v1549
      %v1769 = vpop.f32.mrb[0].mxu0
      %v1770 = vadd.f32 0.0, %v1769
      %v1771 = vpop.f32.mrb[0].mxu0
      %1772 = vmatprep.mubr.f32.mxu0 0.0
      %1773 = vmatmul.mubr.f32.gmra.mrb[0].mxu0 %v1551
      %v1774 = vpop.f32.mrb[0].mxu0
      %v1775 = vadd.f32 0.0, %v1774
      %v1776 = vpop.f32.mrb[0].mxu0
      %1777 = vdwg.mxu0
      %v1778 = vadd.f32 %v1455, %v1620
      %v1779 = vadd.f32 %v1456, %v1625
      %v1780 = vadd.f32 %v1457, %v1630
      %v1781 = vadd.f32 %v1458, %v1635
      %v1782 = vadd.f32 %v1459, %v1640
      %v1783 = vadd.f32 %v1460, %v1645
      %v1784 = vadd.f32 %v1461, %v1650
      %v1785 = vadd.f32 %v1462, %v1655
      %v1786 = vadd.f32 %v1463, %v1660
      %v1787 = vadd.f32 %v1464, %v1665
      %v1788 = vadd.f32 %v1465, %v1670
      %v1789 = vadd.f32 %v1466, %v1675
      %v1790 = vadd.f32 %v1467, %v1680
      %v1791 = vadd.f32 %v1468, %v1685
      %v1792 = vadd.f32 %v1469, %v1690
      %v1793 = vadd.f32 %v1470, %v1695
      %v1794 = vadd.f32 %v1471, %v1700
      %v1795 = vadd.f32 %v1472, %v1705
      %v1796 = vadd.f32 %v1473, %v1710
      %v1797 = vadd.f32 %v1474, %v1715
      %v1798 = vadd.f32 %v1475, %v1720
      %v1799 = vadd.f32 %v1476, %v1725
      %v1800 = vadd.f32 %v1477, %v1730
      %v1801 = vadd.f32 %v1478, %v1735
      %v1802 = vadd.f32 %v1479, %v1740
      %v1803 = vadd.f32 %v1480, %v1745
      %v1804 = vadd.f32 %v1481, %v1750
      %v1805 = vadd.f32 %v1482, %v1755
      %v1806 = vadd.f32 %v1483, %v1760
      %v1807 = vadd.f32 %v1484, %v1765
      %v1808 = vadd.f32 %v1485, %v1770
      %v1809 = vadd.f32 %v1486, %v1775
      %vm1810 = vcmask 1045504
      %v1811 = vrot.slane %v218, 2
      %v1812 = vrot.slane %v219, 2
      %v1813 = vsel %vm1810, %v1811, %v1812
      %v1814 = vrot.slane %v220, 2
      %v1815 = vsel %vm1810, %v1812, %v1814
      %v1816 = vrot.slane %v221, 2
      %v1817 = vrot.slane %v222, 2
      %v1818 = vsel %vm1810, %v1816, %v1817
      %v1819 = vrot.slane %v223, 2
      %v1820 = vsel %vm1810, %v1817, %v1819
      %v1821 = vrot.slane %v224, 2
      %v1822 = vrot.slane %v225, 2
      %v1823 = vsel %vm1810, %v1821, %v1822
      %v1824 = vrot.slane %v226, 2
      %v1825 = vsel %vm1810, %v1822, %v1824
      %v1826 = vrot.slane %v227, 2
      %v1827 = vrot.slane %v228, 2
      %v1828 = vsel %vm1810, %v1826, %v1827
      %v1829 = vrot.slane %v229, 2
      %v1830 = vsel %vm1810, %v1827, %v1829
      %v1831 = vrot.slane %v230, 2
      %v1832 = vrot.slane %v231, 2
      %v1833 = vsel %vm1810, %v1831, %v1832
      %v1834 = vrot.slane %v232, 2
      %v1835 = vsel %vm1810, %v1832, %v1834
      %v1836 = vrot.slane %v233, 2
      %v1837 = vrot.slane %v234, 2
      %v1838 = vsel %vm1810, %v1836, %v1837
      %v1839 = vrot.slane %v235, 2
      %v1840 = vsel %vm1810, %v1837, %v1839
      %v1841 = vrot.slane %v236, 2
      %v1842 = vrot.slane %v237, 2
      %v1843 = vsel %vm1810, %v1841, %v1842
      %v1844 = vrot.slane %v238, 2
      %v1845 = vsel %vm1810, %v1842, %v1844
      %v1846 = vrot.slane %v239, 2
      %v1847 = vrot.slane %v240, 2
      %v1848 = vsel %vm1810, %v1846, %v1847
      %v1849 = vrot.slane %v241, 2
      %v1850 = vsel %vm1810, %v1847, %v1849
      %v1851 = vrot.slane %v242, 2
      %v1852 = vrot.slane %v243, 2
      %v1853 = vsel %vm1810, %v1851, %v1852
      %v1854 = vrot.slane %v244, 2
      %v1855 = vsel %vm1810, %v1852, %v1854
      %v1856 = vrot.slane %v245, 2
      %v1857 = vrot.slane %v246, 2
      %v1858 = vsel %vm1810, %v1856, %v1857
      %v1859 = vrot.slane %v247, 2
      %v1860 = vsel %vm1810, %v1857, %v1859
      %v1861 = vrot.slane %v248, 2
      %v1862 = vrot.slane %v249, 2
      %v1863 = vsel %vm1810, %v1861, %v1862
      %v1864 = vrot.slane %v250, 2
      %v1865 = vsel %vm1810, %v1862, %v1864
      %v1866 = vrot.slane %v251, 2
      %v1867 = vrot.slane %v252, 2
      %v1868 = vsel %vm1810, %v1866, %v1867
      %v1869 = vrot.slane %v253, 2
      %v1870 = vsel %vm1810, %v1867, %v1869
      %v1871 = vrot.slane %v254, 2
      %v1872 = vrot.slane %v255, 2
      %v1873 = vsel %vm1810, %v1871, %v1872
      %v1874 = vrot.slane %v256, 2
      %v1875 = vsel %vm1810, %v1872, %v1874
      %v1876 = vrot.slane %v257, 2
      %v1877 = vrot.slane %v258, 2
      %v1878 = vsel %vm1810, %v1876, %v1877
      %v1879 = vrot.slane %v259, 2
      %v1880 = vsel %vm1810, %v1877, %v1879
      %v1881 = vrot.slane %v260, 2
      %v1882 = vrot.slane %v261, 2
      %v1883 = vsel %vm1810, %v1881, %v1882
      %v1884 = vrot.slane %v262, 2
      %v1885 = vsel %vm1810, %v1882, %v1884
      %v1886 = vrot.slane %v263, 2
      %v1887 = vrot.slane %v264, 2
      %v1888 = vsel %vm1810, %v1886, %v1887
      %v1889 = vrot.slane %v265, 2
      %v1890 = vsel %vm1810, %v1887, %v1889
      %v1891 = vrot.slane %v272, 2
      %v1892 = vrot.slane %v273, 2
      %v1893 = vsel %vm1810, %v1891, %v1892
      %v1894 = vrot.slane %v274, 2
      %v1895 = vsel %vm1810, %v1892, %v1894
      %v1896 = vrot.slane %v275, 2
      %v1897 = vrot.slane %v276, 2
      %v1898 = vsel %vm1810, %v1896, %v1897
      %v1899 = vrot.slane %v277, 2
      %v1900 = vsel %vm1810, %v1897, %v1899
      %v1901 = vrot.slane %v278, 2
      %v1902 = vrot.slane %v279, 2
      %v1903 = vsel %vm1810, %v1901, %v1902
      %v1904 = vrot.slane %v280, 2
      %v1905 = vsel %vm1810, %v1902, %v1904
      %v1906 = vrot.slane %v281, 2
      %v1907 = vrot.slane %v282, 2
      %v1908 = vsel %vm1810, %v1906, %v1907
      %v1909 = vrot.slane %v283, 2
      %v1910 = vsel %vm1810, %v1907, %v1909
      %v1911 = vrot.slane %v284, 2
      %v1912 = vrot.slane %v285, 2
      %v1913 = vsel %vm1810, %v1911, %v1912
      %v1914 = vrot.slane %v286, 2
      %v1915 = vsel %vm1810, %v1912, %v1914
      %v1916 = vrot.slane %v287, 2
      %v1917 = vrot.slane %v288, 2
      %v1918 = vsel %vm1810, %v1916, %v1917
      %v1919 = vrot.slane %v289, 2
      %v1920 = vsel %vm1810, %v1917, %v1919
      %v1921 = vrot.slane %v290, 2
      %v1922 = vrot.slane %v291, 2
      %v1923 = vsel %vm1810, %v1921, %v1922
      %v1924 = vrot.slane %v292, 2
      %v1925 = vsel %vm1810, %v1922, %v1924
      %v1926 = vrot.slane %v293, 2
      %v1927 = vrot.slane %v294, 2
      %v1928 = vsel %vm1810, %v1926, %v1927
      %v1929 = vrot.slane %v295, 2
      %v1930 = vsel %vm1810, %v1927, %v1929
      %v1931 = vrot.slane %v296, 2
      %v1932 = vrot.slane %v297, 2
      %v1933 = vsel %vm1810, %v1931, %v1932
      %v1934 = vrot.slane %v298, 2
      %v1935 = vsel %vm1810, %v1932, %v1934
      %v1936 = vrot.slane %v299, 2
      %v1937 = vrot.slane %v300, 2
      %v1938 = vsel %vm1810, %v1936, %v1937
      %v1939 = vrot.slane %v301, 2
      %v1940 = vsel %vm1810, %v1937, %v1939
      %v1941 = vrot.slane %v302, 2
      %v1942 = vrot.slane %v303, 2
      %v1943 = vsel %vm1810, %v1941, %v1942
      %v1944 = vrot.slane %v304, 2
      %v1945 = vsel %vm1810, %v1942, %v1944
      %v1946 = vrot.slane %v305, 2
      %v1947 = vrot.slane %v306, 2
      %v1948 = vsel %vm1810, %v1946, %v1947
      %v1949 = vrot.slane %v307, 2
      %v1950 = vsel %vm1810, %v1947, %v1949
      %v1951 = vrot.slane %v308, 2
      %v1952 = vrot.slane %v309, 2
      %v1953 = vsel %vm1810, %v1951, %v1952
      %v1954 = vrot.slane %v310, 2
      %v1955 = vsel %vm1810, %v1952, %v1954
      %v1956 = vrot.slane %v311, 2
      %v1957 = vrot.slane %v312, 2
      %v1958 = vsel %vm1810, %v1956, %v1957
      %v1959 = vrot.slane %v313, 2
      %v1960 = vsel %vm1810, %v1957, %v1959
      %v1961 = vrot.slane %v314, 2
      %v1962 = vrot.slane %v315, 2
      %v1963 = vsel %vm1810, %v1961, %v1962
      %v1964 = vrot.slane %v316, 2
      %v1965 = vsel %vm1810, %v1962, %v1964
      %v1966 = vrot.slane %v317, 2
      %v1967 = vrot.slane %v318, 2
      %v1968 = vsel %vm1810, %v1966, %v1967
      %v1969 = vrot.slane %v319, 2
      %v1970 = vsel %vm1810, %v1967, %v1969
      %s1971 = scalar_lea.vmem %s2, 16
      %v1972 = vld [vmem:[%s1971] sm:$0xff]
      %v1973 = vsel %vm328, %v1813, 0
      %v1975 = vsel %vm328, %v1815, 0
      %v1977 = vsel %vm328, %v1818, 0
      %v1979 = vsel %vm328, %v1820, 0
      %v1981 = vsel %vm328, %v1823, 0
      %v1983 = vsel %vm328, %v1825, 0
      %v1985 = vsel %vm328, %v1828, 0
      %v1987 = vsel %vm328, %v1830, 0
      %v1989 = vsel %vm328, %v1833, 0
      %v1991 = vsel %vm328, %v1835, 0
      %v1993 = vsel %vm328, %v1838, 0
      %v1995 = vsel %vm328, %v1840, 0
      %v1997 = vsel %vm328, %v1843, 0
      %v1999 = vsel %vm328, %v1845, 0
      %v2001 = vsel %vm328, %v1848, 0
      %v2003 = vsel %vm328, %v1850, 0
      %v2005 = vsel %vm328, %v1853, 0
      %v2007 = vsel %vm328, %v1855, 0
      %v2009 = vsel %vm328, %v1858, 0
      %v2011 = vsel %vm328, %v1860, 0
      %v2013 = vsel %vm328, %v1863, 0
      %v2015 = vsel %vm328, %v1865, 0
      %v2017 = vsel %vm328, %v1868, 0
      %v2019 = vsel %vm328, %v1870, 0
      %v2021 = vsel %vm328, %v1873, 0
      %v2023 = vsel %vm328, %v1875, 0
      %v2025 = vsel %vm328, %v1878, 0
      %v2027 = vsel %vm328, %v1880, 0
      %v2029 = vsel %vm328, %v1883, 0
      %v2031 = vsel %vm328, %v1885, 0
      %v2033 = vsel %vm328, %v1888, 0
      %v2035 = vsel %vm328, %v1890, 0
      %2037 = vmatprep.subr.mxu0 0.0
      %2038 = vmatpush1.msra.mxu0 %v1972
      %2039 = vmatprep.subr.mxu0 0.0
      %2040 = vmatpush1.msra.mxu0 0.0
      %2041 = vmatprep.subr.mxu0 0.0
      %2042 = vmatpush1.msra.mxu0 0.0
      %2043 = vmatprep.subr.mxu0 0.0
      %2044 = vmatpush1.msra.mxu0 0.0
      %2045 = vmatprep.subr.mxu0 0.0
      %2046 = vmatpush1.msra.mxu0 0.0
      %2047 = vmatprep.subr.mxu0 0.0
      %2048 = vmatpush1.msra.mxu0 0.0
      %2049 = vmatprep.subr.mxu0 0.0
      %2050 = vmatpush1.msra.mxu0 0.0
      %2051 = vmatprep.subr.mxu0 0.0
      %2052 = vmatpush1.msra.mxu0 0.0
      %2053 = vmatprep.subr.mxu0 0.0
      %2054 = vmatpush1.msra.mxu0 0.0
      %2055 = vmatprep.subr.mxu0 0.0
      %2056 = vmatpush1.msra.mxu0 0.0
      %2057 = vmatprep.subr.mxu0 0.0
      %2058 = vmatpush1.msra.mxu0 0.0
      %2059 = vmatprep.subr.mxu0 0.0
      %2060 = vmatpush1.msra.mxu0 0.0
      %2061 = vmatprep.subr.mxu0 0.0
      %2062 = vmatpush1.msra.mxu0 0.0
      %2063 = vmatprep.subr.mxu0 0.0
      %2064 = vmatpush1.msra.mxu0 0.0
      %2065 = vmatprep.subr.mxu0 0.0
      %2066 = vmatpush1.msra.mxu0 0.0
      %2067 = vmatprep.subr.mxu0 0.0
      %2068 = vmatpush1.msra.mxu0 0.0
      %2069 = vmatprep.subr.mxu0 0.0
      %2070 = vmatpush1.msra.mxu0 0.0
      %2071 = vmatprep.subr.mxu0 0.0
      %2072 = vmatpush1.msra.mxu0 0.0
      %2073 = vmatprep.subr.mxu0 0.0
      %2074 = vmatpush1.msra.mxu0 0.0
      %2075 = vmatprep.subr.mxu0 0.0
      %2076 = vmatpush1.msra.mxu0 0.0
      %2077 = vmatprep.subr.mxu0 0.0
      %2078 = vmatpush1.msra.mxu0 0.0
      %2079 = vmatprep.subr.mxu0 0.0
      %2080 = vmatpush1.msra.mxu0 0.0
      %2081 = vmatprep.subr.mxu0 0.0
      %2082 = vmatpush1.msra.mxu0 0.0
      %2083 = vmatprep.subr.mxu0 0.0
      %2084 = vmatpush1.msra.mxu0 0.0
      %2085 = vmatprep.subr.mxu0 0.0
      %2086 = vmatpush1.msra.mxu0 0.0
      %2087 = vmatprep.subr.mxu0 0.0
      %2088 = vmatpush1.msra.mxu0 0.0
      %2089 = vmatprep.subr.mxu0 0.0
      %2090 = vmatpush1.msra.mxu0 0.0
      %2091 = vmatprep.subr.mxu0 0.0
      %2092 = vmatpush1.msra.mxu0 0.0
      %2093 = vmatprep.subr.mxu0 0.0
      %2094 = vmatpush1.msra.mxu0 0.0
      %2095 = vmatprep.subr.mxu0 0.0
      %2096 = vmatpush1.msra.mxu0 0.0
      %2097 = vmatprep.subr.mxu0 0.0
      %2098 = vmatpush1.msra.mxu0 0.0
      %2099 = vmatprep.subr.mxu0 0.0
      %2100 = vmatpush1.msra.mxu0 0.0
      %2101 = vmatprep.mubr.f32.mxu0 0.0
      %2102 = vmatmul.mubr.f32.gmra.mrb[0].mxu0 %v1973
      %v2103 = vpop.f32.mrb[0].mxu0
      %v2104 = vadd.f32 0.0, %v2103
      %v2105 = vpop.f32.mrb[0].mxu0
      %2106 = vmatprep.mubr.f32.mxu0 0.0
      %2107 = vmatmul.mubr.f32.gmra.mrb[0].mxu0 %v1975
      %v2108 = vpop.f32.mrb[0].mxu0
      %v2109 = vadd.f32 0.0, %v2108
      %v2110 = vpop.f32.mrb[0].mxu0
      %2111 = vmatprep.mubr.f32.mxu0 0.0
      %2112 = vmatmul.mubr.f32.gmra.mrb[0].mxu0 %v1977
      %v2113 = vpop.f32.mrb[0].mxu0
      %v2114 = vadd.f32 0.0, %v2113
      %v2115 = vpop.f32.mrb[0].mxu0
      %2116 = vmatprep.mubr.f32.mxu0 0.0
      %2117 = vmatmul.mubr.f32.gmra.mrb[0].mxu0 %v1979
      %v2118 = vpop.f32.mrb[0].mxu0
      %v2119 = vadd.f32 0.0, %v2118
      %v2120 = vpop.f32.mrb[0].mxu0
      %2121 = vmatprep.mubr.f32.mxu0 0.0
      %2122 = vmatmul.mubr.f32.gmra.mrb[0].mxu0 %v1981
      %v2123 = vpop.f32.mrb[0].mxu0
      %v2124 = vadd.f32 0.0, %v2123
      %v2125 = vpop.f32.mrb[0].mxu0
      %2126 = vmatprep.mubr.f32.mxu0 0.0
      %2127 = vmatmul.mubr.f32.gmra.mrb[0].mxu0 %v1983
      %v2128 = vpop.f32.mrb[0].mxu0
      %v2129 = vadd.f32 0.0, %v2128
      %v2130 = vpop.f32.mrb[0].mxu0
      %2131 = vmatprep.mubr.f32.mxu0 0.0
      %2132 = vmatmul.mubr.f32.gmra.mrb[0].mxu0 %v1985
      %v2133 = vpop.f32.mrb[0].mxu0
      %v2134 = vadd.f32 0.0, %v2133
      %v2135 = vpop.f32.mrb[0].mxu0
      %2136 = vmatprep.mubr.f32.mxu0 0.0
      %2137 = vmatmul.mubr.f32.gmra.mrb[0].mxu0 %v1987
      %v2138 = vpop.f32.mrb[0].mxu0
      %v2139 = vadd.f32 0.0, %v2138
      %v2140 = vpop.f32.mrb[0].mxu0
      %2141 = vmatprep.mubr.f32.mxu0 0.0
      %2142 = vmatmul.mubr.f32.gmra.mrb[0].mxu0 %v1989
      %v2143 = vpop.f32.mrb[0].mxu0
      %v2144 = vadd.f32 0.0, %v2143
      %v2145 = vpop.f32.mrb[0].mxu0
      %2146 = vmatprep.mubr.f32.mxu0 0.0
      %2147 = vmatmul.mubr.f32.gmra.mrb[0].mxu0 %v1991
      %v2148 = vpop.f32.mrb[0].mxu0
      %v2149 = vadd.f32 0.0, %v2148
      %v2150 = vpop.f32.mrb[0].mxu0
      %2151 = vmatprep.mubr.f32.mxu0 0.0
      %2152 = vmatmul.mubr.f32.gmra.mrb[0].mxu0 %v1993
      %v2153 = vpop.f32.mrb[0].mxu0
      %v2154 = vadd.f32 0.0, %v2153
      %v2155 = vpop.f32.mrb[0].mxu0
      %2156 = vmatprep.mubr.f32.mxu0 0.0
      %2157 = vmatmul.mubr.f32.gmra.mrb[0].mxu0 %v1995
      %v2158 = vpop.f32.mrb[0].mxu0
      %v2159 = vadd.f32 0.0, %v2158
      %v2160 = vpop.f32.mrb[0].mxu0
      %2161 = vmatprep.mubr.f32.mxu0 0.0
      %2162 = vmatmul.mubr.f32.gmra.mrb[0].mxu0 %v1997
      %v2163 = vpop.f32.mrb[0].mxu0
      %v2164 = vadd.f32 0.0, %v2163
      %v2165 = vpop.f32.mrb[0].mxu0
      %2166 = vmatprep.mubr.f32.mxu0 0.0
      %2167 = vmatmul.mubr.f32.gmra.mrb[0].mxu0 %v1999
      %v2168 = vpop.f32.mrb[0].mxu0
      %v2169 = vadd.f32 0.0, %v2168
      %v2170 = vpop.f32.mrb[0].mxu0
      %2171 = vmatprep.mubr.f32.mxu0 0.0
      %2172 = vmatmul.mubr.f32.gmra.mrb[0].mxu0 %v2001
      %v2173 = vpop.f32.mrb[0].mxu0
      %v2174 = vadd.f32 0.0, %v2173
      %v2175 = vpop.f32.mrb[0].mxu0
      %2176 = vmatprep.mubr.f32.mxu0 0.0
      %2177 = vmatmul.mubr.f32.gmra.mrb[0].mxu0 %v2003
      %v2178 = vpop.f32.mrb[0].mxu0
      %v2179 = vadd.f32 0.0, %v2178
      %v2180 = vpop.f32.mrb[0].mxu0
      %2181 = vmatprep.mubr.f32.mxu0 0.0
      %2182 = vmatmul.mubr.f32.gmra.mrb[0].mxu0 %v2005
      %v2183 = vpop.f32.mrb[0].mxu0
      %v2184 = vadd.f32 0.0, %v2183
      %v2185 = vpop.f32.mrb[0].mxu0
      %2186 = vmatprep.mubr.f32.mxu0 0.0
      %2187 = vmatmul.mubr.f32.gmra.mrb[0].mxu0 %v2007
      %v2188 = vpop.f32.mrb[0].mxu0
      %v2189 = vadd.f32 0.0, %v2188
      %v2190 = vpop.f32.mrb[0].mxu0
      %2191 = vmatprep.mubr.f32.mxu0 0.0
      %2192 = vmatmul.mubr.f32.gmra.mrb[0].mxu0 %v2009
      %v2193 = vpop.f32.mrb[0].mxu0
      %v2194 = vadd.f32 0.0, %v2193
      %v2195 = vpop.f32.mrb[0].mxu0
      %2196 = vmatprep.mubr.f32.mxu0 0.0
      %2197 = vmatmul.mubr.f32.gmra.mrb[0].mxu0 %v2011
      %v2198 = vpop.f32.mrb[0].mxu0
      %v2199 = vadd.f32 0.0, %v2198
      %v2200 = vpop.f32.mrb[0].mxu0
      %2201 = vmatprep.mubr.f32.mxu0 0.0
      %2202 = vmatmul.mubr.f32.gmra.mrb[0].mxu0 %v2013
      %v2203 = vpop.f32.mrb[0].mxu0
      %v2204 = vadd.f32 0.0, %v2203
      %v2205 = vpop.f32.mrb[0].mxu0
      %2206 = vmatprep.mubr.f32.mxu0 0.0
      %2207 = vmatmul.mubr.f32.gmra.mrb[0].mxu0 %v2015
      %v2208 = vpop.f32.mrb[0].mxu0
      %v2209 = vadd.f32 0.0, %v2208
      %v2210 = vpop.f32.mrb[0].mxu0
      %2211 = vmatprep.mubr.f32.mxu0 0.0
      %2212 = vmatmul.mubr.f32.gmra.mrb[0].mxu0 %v2017
      %v2213 = vpop.f32.mrb[0].mxu0
      %v2214 = vadd.f32 0.0, %v2213
      %v2215 = vpop.f32.mrb[0].mxu0
      %2216 = vmatprep.mubr.f32.mxu0 0.0
      %2217 = vmatmul.mubr.f32.gmra.mrb[0].mxu0 %v2019
      %v2218 = vpop.f32.mrb[0].mxu0
      %v2219 = vadd.f32 0.0, %v2218
      %v2220 = vpop.f32.mrb[0].mxu0
      %2221 = vmatprep.mubr.f32.mxu0 0.0
      %2222 = vmatmul.mubr.f32.gmra.mrb[0].mxu0 %v2021
      %v2223 = vpop.f32.mrb[0].mxu0
      %v2224 = vadd.f32 0.0, %v2223
      %v2225 = vpop.f32.mrb[0].mxu0
      %2226 = vmatprep.mubr.f32.mxu0 0.0
      %2227 = vmatmul.mubr.f32.gmra.mrb[0].mxu0 %v2023
      %v2228 = vpop.f32.mrb[0].mxu0
      %v2229 = vadd.f32 0.0, %v2228
      %v2230 = vpop.f32.mrb[0].mxu0
      %2231 = vmatprep.mubr.f32.mxu0 0.0
      %2232 = vmatmul.mubr.f32.gmra.mrb[0].mxu0 %v2025
      %v2233 = vpop.f32.mrb[0].mxu0
      %v2234 = vadd.f32 0.0, %v2233
      %v2235 = vpop.f32.mrb[0].mxu0
      %2236 = vmatprep.mubr.f32.mxu0 0.0
      %2237 = vmatmul.mubr.f32.gmra.mrb[0].mxu0 %v2027
      %v2238 = vpop.f32.mrb[0].mxu0
      %v2239 = vadd.f32 0.0, %v2238
      %v2240 = vpop.f32.mrb[0].mxu0
      %2241 = vmatprep.mubr.f32.mxu0 0.0
      %2242 = vmatmul.mubr.f32.gmra.mrb[0].mxu0 %v2029
      %v2243 = vpop.f32.mrb[0].mxu0
      %v2244 = vadd.f32 0.0, %v2243
      %v2245 = vpop.f32.mrb[0].mxu0
      %2246 = vmatprep.mubr.f32.mxu0 0.0
      %2247 = vmatmul.mubr.f32.gmra.mrb[0].mxu0 %v2031
      %v2248 = vpop.f32.mrb[0].mxu0
      %v2249 = vadd.f32 0.0, %v2248
      %v2250 = vpop.f32.mrb[0].mxu0
      %2251 = vmatprep.mubr.f32.mxu0 0.0
      %2252 = vmatmul.mubr.f32.gmra.mrb[0].mxu0 %v2033
      %v2253 = vpop.f32.mrb[0].mxu0
      %v2254 = vadd.f32 0.0, %v2253
      %v2255 = vpop.f32.mrb[0].mxu0
      %2256 = vmatprep.mubr.f32.mxu0 0.0
      %2257 = vmatmul.mubr.f32.gmra.mrb[0].mxu0 %v2035
      %v2258 = vpop.f32.mrb[0].mxu0
      %v2259 = vadd.f32 0.0, %v2258
      %v2260 = vpop.f32.mrb[0].mxu0
      %2261 = vdwg.mxu0
      %v2262 = vadd.f32 %v1778, %v2104
      %v2263 = vadd.f32 %v1779, %v2109
      %v2264 = vadd.f32 %v1780, %v2114
      %v2265 = vadd.f32 %v1781, %v2119
      %v2266 = vadd.f32 %v1782, %v2124
      %v2267 = vadd.f32 %v1783, %v2129
      %v2268 = vadd.f32 %v1784, %v2134
      %v2269 = vadd.f32 %v1785, %v2139
      %v2270 = vadd.f32 %v1786, %v2144
      %v2271 = vadd.f32 %v1787, %v2149
      %v2272 = vadd.f32 %v1788, %v2154
      %v2273 = vadd.f32 %v1789, %v2159
      %v2274 = vadd.f32 %v1790, %v2164
      %v2275 = vadd.f32 %v1791, %v2169
      %v2276 = vadd.f32 %v1792, %v2174
      %v2277 = vadd.f32 %v1793, %v2179
      %v2278 = vadd.f32 %v1794, %v2184
      %v2279 = vadd.f32 %v1795, %v2189
      %v2280 = vadd.f32 %v1796, %v2194
      %v2281 = vadd.f32 %v1797, %v2199
      %v2282 = vadd.f32 %v1798, %v2204
      %v2283 = vadd.f32 %v1799, %v2209
      %v2284 = vadd.f32 %v1800, %v2214
      %v2285 = vadd.f32 %v1801, %v2219
      %v2286 = vadd.f32 %v1802, %v2224
      %v2287 = vadd.f32 %v1803, %v2229
      %v2288 = vadd.f32 %v1804, %v2234
      %v2289 = vadd.f32 %v1805, %v2239
      %v2290 = vadd.f32 %v1806, %v2244
      %v2291 = vadd.f32 %v1807, %v2249
      %v2292 = vadd.f32 %v1808, %v2254
      %v2293 = vadd.f32 %v1809, %v2259
      %s2294 = scalar_lea.vmem %s3, 16
      %v2295 = vld [vmem:[%s2294] sm:$0xff]
      %v2296 = vsel %vm328, %v1893, 0
      %v2298 = vsel %vm328, %v1895, 0
      %v2300 = vsel %vm328, %v1898, 0
      %v2302 = vsel %vm328, %v1900, 0
      %v2304 = vsel %vm328, %v1903, 0
      %v2306 = vsel %vm328, %v1905, 0
      %v2308 = vsel %vm328, %v1908, 0
      %v2310 = vsel %vm328, %v1910, 0
      %v2312 = vsel %vm328, %v1913, 0
      %v2314 = vsel %vm328, %v1915, 0
      %v2316 = vsel %vm328, %v1918, 0
      %v2318 = vsel %vm328, %v1920, 0
      %v2320 = vsel %vm328, %v1923, 0
      %v2322 = vsel %vm328, %v1925, 0
      %v2324 = vsel %vm328, %v1928, 0
      %v2326 = vsel %vm328, %v1930, 0
      %v2328 = vsel %vm328, %v1933, 0
      %v2330 = vsel %vm328, %v1935, 0
      %v2332 = vsel %vm328, %v1938, 0
      %v2334 = vsel %vm328, %v1940, 0
      %v2336 = vsel %vm328, %v1943, 0
      %v2338 = vsel %vm328, %v1945, 0
      %v2340 = vsel %vm328, %v1948, 0
      %v2342 = vsel %vm328, %v1950, 0
      %v2344 = vsel %vm328, %v1953, 0
      %v2346 = vsel %vm328, %v1955, 0
      %v2348 = vsel %vm328, %v1958, 0
      %v2350 = vsel %vm328, %v1960, 0
      %v2352 = vsel %vm328, %v1963, 0
      %v2354 = vsel %vm328, %v1965, 0
      %v2356 = vsel %vm328, %v1968, 0
      %v2358 = vsel %vm328, %v1970, 0
      %2360 = vmatprep.subr.mxu0 0.0
      %2361 = vmatpush1.msra.mxu0 %v2295
      %2362 = vmatprep.subr.mxu0 0.0
      %2363 = vmatpush1.msra.mxu0 0.0
      %2364 = vmatprep.subr.mxu0 0.0
      %2365 = vmatpush1.msra.mxu0 0.0
      %2366 = vmatprep.subr.mxu0 0.0
      %2367 = vmatpush1.msra.mxu0 0.0
      %2368 = vmatprep.subr.mxu0 0.0
      %2369 = vmatpush1.msra.mxu0 0.0
      %2370 = vmatprep.subr.mxu0 0.0
      %2371 = vmatpush1.msra.mxu0 0.0
      %2372 = vmatprep.subr.mxu0 0.0
      %2373 = vmatpush1.msra.mxu0 0.0
      %2374 = vmatprep.subr.mxu0 0.0
      %2375 = vmatpush1.msra.mxu0 0.0
      %2376 = vmatprep.subr.mxu0 0.0
      %2377 = vmatpush1.msra.mxu0 0.0
      %2378 = vmatprep.subr.mxu0 0.0
      %2379 = vmatpush1.msra.mxu0 0.0
      %2380 = vmatprep.subr.mxu0 0.0
      %2381 = vmatpush1.msra.mxu0 0.0
      %2382 = vmatprep.subr.mxu0 0.0
      %2383 = vmatpush1.msra.mxu0 0.0
      %2384 = vmatprep.subr.mxu0 0.0
      %2385 = vmatpush1.msra.mxu0 0.0
      %2386 = vmatprep.subr.mxu0 0.0
      %2387 = vmatpush1.msra.mxu0 0.0
      %2388 = vmatprep.subr.mxu0 0.0
      %2389 = vmatpush1.msra.mxu0 0.0
      %2390 = vmatprep.subr.mxu0 0.0
      %2391 = vmatpush1.msra.mxu0 0.0
      %2392 = vmatprep.subr.mxu0 0.0
      %2393 = vmatpush1.msra.mxu0 0.0
      %2394 = vmatprep.subr.mxu0 0.0
      %2395 = vmatpush1.msra.mxu0 0.0
      %2396 = vmatprep.subr.mxu0 0.0
      %2397 = vmatpush1.msra.mxu0 0.0
      %2398 = vmatprep.subr.mxu0 0.0
      %2399 = vmatpush1.msra.mxu0 0.0
      %2400 = vmatprep.subr.mxu0 0.0
      %2401 = vmatpush1.msra.mxu0 0.0
      %2402 = vmatprep.subr.mxu0 0.0
      %2403 = vmatpush1.msra.mxu0 0.0
      %2404 = vmatprep.subr.mxu0 0.0
      %2405 = vmatpush1.msra.mxu0 0.0
      %2406 = vmatprep.subr.mxu0 0.0
      %2407 = vmatpush1.msra.mxu0 0.0
      %2408 = vmatprep.subr.mxu0 0.0
      %2409 = vmatpush1.msra.mxu0 0.0
      %2410 = vmatprep.subr.mxu0 0.0
      %2411 = vmatpush1.msra.mxu0 0.0
      %2412 = vmatprep.subr.mxu0 0.0
      %2413 = vmatpush1.msra.mxu0 0.0
      %2414 = vmatprep.subr.mxu0 0.0
      %2415 = vmatpush1.msra.mxu0 0.0
      %2416 = vmatprep.subr.mxu0 0.0
      %2417 = vmatpush1.msra.mxu0 0.0
      %2418 = vmatprep.subr.mxu0 0.0
      %2419 = vmatpush1.msra.mxu0 0.0
      %2420 = vmatprep.subr.mxu0 0.0
      %2421 = vmatpush1.msra.mxu0 0.0
      %2422 = vmatprep.subr.mxu0 0.0
      %2423 = vmatpush1.msra.mxu0 0.0
      %2424 = vmatprep.mubr.f32.mxu0 0.0
      %2425 = vmatmul.mubr.f32.gmra.mrb[0].mxu0 %v2296
      %v2426 = vpop.f32.mrb[0].mxu0
      %v2427 = vadd.f32 0.0, %v2426
      %v2428 = vpop.f32.mrb[0].mxu0
      %2429 = vmatprep.mubr.f32.mxu0 0.0
      %2430 = vmatmul.mubr.f32.gmra.mrb[0].mxu0 %v2298
      %v2431 = vpop.f32.mrb[0].mxu0
      %v2432 = vadd.f32 0.0, %v2431
      %v2433 = vpop.f32.mrb[0].mxu0
      %2434 = vmatprep.mubr.f32.mxu0 0.0
      %2435 = vmatmul.mubr.f32.gmra.mrb[0].mxu0 %v2300
      %v2436 = vpop.f32.mrb[0].mxu0
      %v2437 = vadd.f32 0.0, %v2436
      %v2438 = vpop.f32.mrb[0].mxu0
      %2439 = vmatprep.mubr.f32.mxu0 0.0
      %2440 = vmatmul.mubr.f32.gmra.mrb[0].mxu0 %v2302
      %v2441 = vpop.f32.mrb[0].mxu0
      %v2442 = vadd.f32 0.0, %v2441
      %v2443 = vpop.f32.mrb[0].mxu0
      %2444 = vmatprep.mubr.f32.mxu0 0.0
      %2445 = vmatmul.mubr.f32.gmra.mrb[0].mxu0 %v2304
      %v2446 = vpop.f32.mrb[0].mxu0
      %v2447 = vadd.f32 0.0, %v2446
      %v2448 = vpop.f32.mrb[0].mxu0
      %2449 = vmatprep.mubr.f32.mxu0 0.0
      %2450 = vmatmul.mubr.f32.gmra.mrb[0].mxu0 %v2306
      %v2451 = vpop.f32.mrb[0].mxu0
      %v2452 = vadd.f32 0.0, %v2451
      %v2453 = vpop.f32.mrb[0].mxu0
      %2454 = vmatprep.mubr.f32.mxu0 0.0
      %2455 = vmatmul.mubr.f32.gmra.mrb[0].mxu0 %v2308
      %v2456 = vpop.f32.mrb[0].mxu0
      %v2457 = vadd.f32 0.0, %v2456
      %v2458 = vpop.f32.mrb[0].mxu0
      %2459 = vmatprep.mubr.f32.mxu0 0.0
      %2460 = vmatmul.mubr.f32.gmra.mrb[0].mxu0 %v2310
      %v2461 = vpop.f32.mrb[0].mxu0
      %v2462 = vadd.f32 0.0, %v2461
      %v2463 = vpop.f32.mrb[0].mxu0
      %2464 = vmatprep.mubr.f32.mxu0 0.0
      %2465 = vmatmul.mubr.f32.gmra.mrb[0].mxu0 %v2312
      %v2466 = vpop.f32.mrb[0].mxu0
      %v2467 = vadd.f32 0.0, %v2466
      %v2468 = vpop.f32.mrb[0].mxu0
      %2469 = vmatprep.mubr.f32.mxu0 0.0
      %2470 = vmatmul.mubr.f32.gmra.mrb[0].mxu0 %v2314
      %v2471 = vpop.f32.mrb[0].mxu0
      %v2472 = vadd.f32 0.0, %v2471
      %v2473 = vpop.f32.mrb[0].mxu0
      %2474 = vmatprep.mubr.f32.mxu0 0.0
      %2475 = vmatmul.mubr.f32.gmra.mrb[0].mxu0 %v2316
      %v2476 = vpop.f32.mrb[0].mxu0
      %v2477 = vadd.f32 0.0, %v2476
      %v2478 = vpop.f32.mrb[0].mxu0
      %2479 = vmatprep.mubr.f32.mxu0 0.0
      %2480 = vmatmul.mubr.f32.gmra.mrb[0].mxu0 %v2318
      %v2481 = vpop.f32.mrb[0].mxu0
      %v2482 = vadd.f32 0.0, %v2481
      %v2483 = vpop.f32.mrb[0].mxu0
      %2484 = vmatprep.mubr.f32.mxu0 0.0
      %2485 = vmatmul.mubr.f32.gmra.mrb[0].mxu0 %v2320
      %v2486 = vpop.f32.mrb[0].mxu0
      %v2487 = vadd.f32 0.0, %v2486
      %v2488 = vpop.f32.mrb[0].mxu0
      %2489 = vmatprep.mubr.f32.mxu0 0.0
      %2490 = vmatmul.mubr.f32.gmra.mrb[0].mxu0 %v2322
      %v2491 = vpop.f32.mrb[0].mxu0
      %v2492 = vadd.f32 0.0, %v2491
      %v2493 = vpop.f32.mrb[0].mxu0
      %2494 = vmatprep.mubr.f32.mxu0 0.0
      %2495 = vmatmul.mubr.f32.gmra.mrb[0].mxu0 %v2324
      %v2496 = vpop.f32.mrb[0].mxu0
      %v2497 = vadd.f32 0.0, %v2496
      %v2498 = vpop.f32.mrb[0].mxu0
      %2499 = vmatprep.mubr.f32.mxu0 0.0
      %2500 = vmatmul.mubr.f32.gmra.mrb[0].mxu0 %v2326
      %v2501 = vpop.f32.mrb[0].mxu0
      %v2502 = vadd.f32 0.0, %v2501
      %v2503 = vpop.f32.mrb[0].mxu0
      %2504 = vmatprep.mubr.f32.mxu0 0.0
      %2505 = vmatmul.mubr.f32.gmra.mrb[0].mxu0 %v2328
      %v2506 = vpop.f32.mrb[0].mxu0
      %v2507 = vadd.f32 0.0, %v2506
      %v2508 = vpop.f32.mrb[0].mxu0
      %2509 = vmatprep.mubr.f32.mxu0 0.0
      %2510 = vmatmul.mubr.f32.gmra.mrb[0].mxu0 %v2330
      %v2511 = vpop.f32.mrb[0].mxu0
      %v2512 = vadd.f32 0.0, %v2511
      %v2513 = vpop.f32.mrb[0].mxu0
      %2514 = vmatprep.mubr.f32.mxu0 0.0
      %2515 = vmatmul.mubr.f32.gmra.mrb[0].mxu0 %v2332
      %v2516 = vpop.f32.mrb[0].mxu0
      %v2517 = vadd.f32 0.0, %v2516
      %v2518 = vpop.f32.mrb[0].mxu0
      %2519 = vmatprep.mubr.f32.mxu0 0.0
      %2520 = vmatmul.mubr.f32.gmra.mrb[0].mxu0 %v2334
      %v2521 = vpop.f32.mrb[0].mxu0
      %v2522 = vadd.f32 0.0, %v2521
      %v2523 = vpop.f32.mrb[0].mxu0
      %2524 = vmatprep.mubr.f32.mxu0 0.0
      %2525 = vmatmul.mubr.f32.gmra.mrb[0].mxu0 %v2336
      %v2526 = vpop.f32.mrb[0].mxu0
      %v2527 = vadd.f32 0.0, %v2526
      %v2528 = vpop.f32.mrb[0].mxu0
      %2529 = vmatprep.mubr.f32.mxu0 0.0
      %2530 = vmatmul.mubr.f32.gmra.mrb[0].mxu0 %v2338
      %v2531 = vpop.f32.mrb[0].mxu0
      %v2532 = vadd.f32 0.0, %v2531
      %v2533 = vpop.f32.mrb[0].mxu0
      %2534 = vmatprep.mubr.f32.mxu0 0.0
      %2535 = vmatmul.mubr.f32.gmra.mrb[0].mxu0 %v2340
      %v2536 = vpop.f32.mrb[0].mxu0
      %v2537 = vadd.f32 0.0, %v2536
      %v2538 = vpop.f32.mrb[0].mxu0
      %2539 = vmatprep.mubr.f32.mxu0 0.0
      %2540 = vmatmul.mubr.f32.gmra.mrb[0].mxu0 %v2342
      %v2541 = vpop.f32.mrb[0].mxu0
      %v2542 = vadd.f32 0.0, %v2541
      %v2543 = vpop.f32.mrb[0].mxu0
      %2544 = vmatprep.mubr.f32.mxu0 0.0
      %2545 = vmatmul.mubr.f32.gmra.mrb[0].mxu0 %v2344
      %v2546 = vpop.f32.mrb[0].mxu0
      %v2547 = vadd.f32 0.0, %v2546
      %v2548 = vpop.f32.mrb[0].mxu0
      %2549 = vmatprep.mubr.f32.mxu0 0.0
      %2550 = vmatmul.mubr.f32.gmra.mrb[0].mxu0 %v2346
      %v2551 = vpop.f32.mrb[0].mxu0
      %v2552 = vadd.f32 0.0, %v2551
      %v2553 = vpop.f32.mrb[0].mxu0
      %2554 = vmatprep.mubr.f32.mxu0 0.0
      %2555 = vmatmul.mubr.f32.gmra.mrb[0].mxu0 %v2348
      %v2556 = vpop.f32.mrb[0].mxu0
      %v2557 = vadd.f32 0.0, %v2556
      %v2558 = vpop.f32.mrb[0].mxu0
      %2559 = vmatprep.mubr.f32.mxu0 0.0
      %2560 = vmatmul.mubr.f32.gmra.mrb[0].mxu0 %v2350
      %v2561 = vpop.f32.mrb[0].mxu0
      %v2562 = vadd.f32 0.0, %v2561
      %v2563 = vpop.f32.mrb[0].mxu0
      %2564 = vmatprep.mubr.f32.mxu0 0.0
      %2565 = vmatmul.mubr.f32.gmra.mrb[0].mxu0 %v2352
      %v2566 = vpop.f32.mrb[0].mxu0
      %v2567 = vadd.f32 0.0, %v2566
      %v2568 = vpop.f32.mrb[0].mxu0
      %2569 = vmatprep.mubr.f32.mxu0 0.0
      %2570 = vmatmul.mubr.f32.gmra.mrb[0].mxu0 %v2354
      %v2571 = vpop.f32.mrb[0].mxu0
      %v2572 = vadd.f32 0.0, %v2571
      %v2573 = vpop.f32.mrb[0].mxu0
      %2574 = vmatprep.mubr.f32.mxu0 0.0
      %2575 = vmatmul.mubr.f32.gmra.mrb[0].mxu0 %v2356
      %v2576 = vpop.f32.mrb[0].mxu0
      %v2577 = vadd.f32 0.0, %v2576
      %v2578 = vpop.f32.mrb[0].mxu0
      %2579 = vmatprep.mubr.f32.mxu0 0.0
      %2580 = vmatmul.mubr.f32.gmra.mrb[0].mxu0 %v2358
      %v2581 = vpop.f32.mrb[0].mxu0
      %v2582 = vadd.f32 0.0, %v2581
      %v2583 = vpop.f32.mrb[0].mxu0
      %2584 = vdwg.mxu0
      %v2585 = vadd.f32 %v2262, %v2427
      %v2586 = vadd.f32 %v2263, %v2432
      %v2587 = vadd.f32 %v2264, %v2437
      %v2588 = vadd.f32 %v2265, %v2442
      %v2589 = vadd.f32 %v2266, %v2447
      %v2590 = vadd.f32 %v2267, %v2452
      %v2591 = vadd.f32 %v2268, %v2457
      %v2592 = vadd.f32 %v2269, %v2462
      %v2593 = vadd.f32 %v2270, %v2467
      %v2594 = vadd.f32 %v2271, %v2472
      %v2595 = vadd.f32 %v2272, %v2477
      %v2596 = vadd.f32 %v2273, %v2482
      %v2597 = vadd.f32 %v2274, %v2487
      %v2598 = vadd.f32 %v2275, %v2492
      %v2599 = vadd.f32 %v2276, %v2497
      %v2600 = vadd.f32 %v2277, %v2502
      %v2601 = vadd.f32 %v2278, %v2507
      %v2602 = vadd.f32 %v2279, %v2512
      %v2603 = vadd.f32 %v2280, %v2517
      %v2604 = vadd.f32 %v2281, %v2522
      %v2605 = vadd.f32 %v2282, %v2527
      %v2606 = vadd.f32 %v2283, %v2532
      %v2607 = vadd.f32 %v2284, %v2537
      %v2608 = vadd.f32 %v2285, %v2542
      %v2609 = vadd.f32 %v2286, %v2547
      %v2610 = vadd.f32 %v2287, %v2552
      %v2611 = vadd.f32 %v2288, %v2557
      %v2612 = vadd.f32 %v2289, %v2562
      %v2613 = vadd.f32 %v2290, %v2567
      %v2614 = vadd.f32 %v2291, %v2572
      %v2615 = vadd.f32 %v2292, %v2577
      %v2616 = vadd.f32 %v2293, %v2582
      %s2617 = scalar_lea.vmem %s2, 24
      %v2618 = vld [vmem:[%s2617] sm:$0xff]
      %v2620 = vsel %vm328, %v266, 0
      %v2623 = vsel %vm328, %v267, 0
      %2625 = vmatprep.subr.mxu0 0.0
      %2626 = vmatpush1.msra.mxu0 %v2618
      %2627 = vmatprep.subr.mxu0 0.0
      %2628 = vmatpush1.msra.mxu0 0.0
      %2629 = vmatprep.subr.mxu0 0.0
      %2630 = vmatpush1.msra.mxu0 0.0
      %2631 = vmatprep.subr.mxu0 0.0
      %2632 = vmatpush1.msra.mxu0 0.0
      %2633 = vmatprep.subr.mxu0 0.0
      %2634 = vmatpush1.msra.mxu0 0.0
      %2635 = vmatprep.subr.mxu0 0.0
      %2636 = vmatpush1.msra.mxu0 0.0
      %2637 = vmatprep.subr.mxu0 0.0
      %2638 = vmatpush1.msra.mxu0 0.0
      %2639 = vmatprep.subr.mxu0 0.0
      %2640 = vmatpush1.msra.mxu0 0.0
      %2641 = vmatprep.subr.mxu0 0.0
      %2642 = vmatpush1.msra.mxu0 0.0
      %2643 = vmatprep.subr.mxu0 0.0
      %2644 = vmatpush1.msra.mxu0 0.0
      %2645 = vmatprep.subr.mxu0 0.0
      %2646 = vmatpush1.msra.mxu0 0.0
      %2647 = vmatprep.subr.mxu0 0.0
      %2648 = vmatpush1.msra.mxu0 0.0
      %2649 = vmatprep.subr.mxu0 0.0
      %2650 = vmatpush1.msra.mxu0 0.0
      %2651 = vmatprep.subr.mxu0 0.0
      %2652 = vmatpush1.msra.mxu0 0.0
      %2653 = vmatprep.subr.mxu0 0.0
      %2654 = vmatpush1.msra.mxu0 0.0
      %2655 = vmatprep.subr.mxu0 0.0
      %2656 = vmatpush1.msra.mxu0 0.0
      %2657 = vmatprep.subr.mxu0 0.0
      %2658 = vmatpush1.msra.mxu0 0.0
      %2659 = vmatprep.subr.mxu0 0.0
      %2660 = vmatpush1.msra.mxu0 0.0
      %2661 = vmatprep.subr.mxu0 0.0
      %2662 = vmatpush1.msra.mxu0 0.0
      %2663 = vmatprep.subr.mxu0 0.0
      %2664 = vmatpush1.msra.mxu0 0.0
      %2665 = vmatprep.subr.mxu0 0.0
      %2666 = vmatpush1.msra.mxu0 0.0
      %2667 = vmatprep.subr.mxu0 0.0
      %2668 = vmatpush1.msra.mxu0 0.0
      %2669 = vmatprep.subr.mxu0 0.0
      %2670 = vmatpush1.msra.mxu0 0.0
      %2671 = vmatprep.subr.mxu0 0.0
      %2672 = vmatpush1.msra.mxu0 0.0
      %2673 = vmatprep.subr.mxu0 0.0
      %2674 = vmatpush1.msra.mxu0 0.0
      %2675 = vmatprep.subr.mxu0 0.0
      %2676 = vmatpush1.msra.mxu0 0.0
      %2677 = vmatprep.subr.mxu0 0.0
      %2678 = vmatpush1.msra.mxu0 0.0
      %2679 = vmatprep.subr.mxu0 0.0
      %2680 = vmatpush1.msra.mxu0 0.0
      %2681 = vmatprep.subr.mxu0 0.0
      %2682 = vmatpush1.msra.mxu0 0.0
      %2683 = vmatprep.subr.mxu0 0.0
      %2684 = vmatpush1.msra.mxu0 0.0
      %2685 = vmatprep.subr.mxu0 0.0
      %2686 = vmatpush1.msra.mxu0 0.0
      %2687 = vmatprep.subr.mxu0 0.0
      %2688 = vmatpush1.msra.mxu0 0.0
      %2689 = vmatprep.mubr.f32.mxu0 0.0
      %2690 = vmatmul.mubr.f32.gmra.mrb[0].mxu0 %v657
      %v2691 = vpop.f32.mrb[0].mxu0
      %v2692 = vadd.f32 0.0, %v2691
      %v2693 = vpop.f32.mrb[0].mxu0
      %2694 = vmatprep.mubr.f32.mxu0 0.0
      %2695 = vmatmul.mubr.f32.gmra.mrb[0].mxu0 %v660
      %v2696 = vpop.f32.mrb[0].mxu0
      %v2697 = vadd.f32 0.0, %v2696
      %v2698 = vpop.f32.mrb[0].mxu0
      %2699 = vmatprep.mubr.f32.mxu0 0.0
      %2700 = vmatmul.mubr.f32.gmra.mrb[0].mxu0 %v663
      %v2701 = vpop.f32.mrb[0].mxu0
      %v2702 = vadd.f32 0.0, %v2701
      %v2703 = vpop.f32.mrb[0].mxu0
      %2704 = vmatprep.mubr.f32.mxu0 0.0
      %2705 = vmatmul.mubr.f32.gmra.mrb[0].mxu0 %v666
      %v2706 = vpop.f32.mrb[0].mxu0
      %v2707 = vadd.f32 0.0, %v2706
      %v2708 = vpop.f32.mrb[0].mxu0
      %2709 = vmatprep.mubr.f32.mxu0 0.0
      %2710 = vmatmul.mubr.f32.gmra.mrb[0].mxu0 %v669
      %v2711 = vpop.f32.mrb[0].mxu0
      %v2712 = vadd.f32 0.0, %v2711
      %v2713 = vpop.f32.mrb[0].mxu0
      %2714 = vmatprep.mubr.f32.mxu0 0.0
      %2715 = vmatmul.mubr.f32.gmra.mrb[0].mxu0 %v672
      %v2716 = vpop.f32.mrb[0].mxu0
      %v2717 = vadd.f32 0.0, %v2716
      %v2718 = vpop.f32.mrb[0].mxu0
      %2719 = vmatprep.mubr.f32.mxu0 0.0
      %2720 = vmatmul.mubr.f32.gmra.mrb[0].mxu0 %v675
      %v2721 = vpop.f32.mrb[0].mxu0
      %v2722 = vadd.f32 0.0, %v2721
      %v2723 = vpop.f32.mrb[0].mxu0
      %2724 = vmatprep.mubr.f32.mxu0 0.0
      %2725 = vmatmul.mubr.f32.gmra.mrb[0].mxu0 %v678
      %v2726 = vpop.f32.mrb[0].mxu0
      %v2727 = vadd.f32 0.0, %v2726
      %v2728 = vpop.f32.mrb[0].mxu0
      %2729 = vmatprep.mubr.f32.mxu0 0.0
      %2730 = vmatmul.mubr.f32.gmra.mrb[0].mxu0 %v681
      %v2731 = vpop.f32.mrb[0].mxu0
      %v2732 = vadd.f32 0.0, %v2731
      %v2733 = vpop.f32.mrb[0].mxu0
      %2734 = vmatprep.mubr.f32.mxu0 0.0
      %2735 = vmatmul.mubr.f32.gmra.mrb[0].mxu0 %v684
      %v2736 = vpop.f32.mrb[0].mxu0
      %v2737 = vadd.f32 0.0, %v2736
      %v2738 = vpop.f32.mrb[0].mxu0
      %2739 = vmatprep.mubr.f32.mxu0 0.0
      %2740 = vmatmul.mubr.f32.gmra.mrb[0].mxu0 %v687
      %v2741 = vpop.f32.mrb[0].mxu0
      %v2742 = vadd.f32 0.0, %v2741
      %v2743 = vpop.f32.mrb[0].mxu0
      %2744 = vmatprep.mubr.f32.mxu0 0.0
      %2745 = vmatmul.mubr.f32.gmra.mrb[0].mxu0 %v690
      %v2746 = vpop.f32.mrb[0].mxu0
      %v2747 = vadd.f32 0.0, %v2746
      %v2748 = vpop.f32.mrb[0].mxu0
      %2749 = vmatprep.mubr.f32.mxu0 0.0
      %2750 = vmatmul.mubr.f32.gmra.mrb[0].mxu0 %v693
      %v2751 = vpop.f32.mrb[0].mxu0
      %v2752 = vadd.f32 0.0, %v2751
      %v2753 = vpop.f32.mrb[0].mxu0
      %2754 = vmatprep.mubr.f32.mxu0 0.0
      %2755 = vmatmul.mubr.f32.gmra.mrb[0].mxu0 %v696
      %v2756 = vpop.f32.mrb[0].mxu0
      %v2757 = vadd.f32 0.0, %v2756
      %v2758 = vpop.f32.mrb[0].mxu0
      %2759 = vmatprep.mubr.f32.mxu0 0.0
      %2760 = vmatmul.mubr.f32.gmra.mrb[0].mxu0 %v699
      %v2761 = vpop.f32.mrb[0].mxu0
      %v2762 = vadd.f32 0.0, %v2761
      %v2763 = vpop.f32.mrb[0].mxu0
      %2764 = vmatprep.mubr.f32.mxu0 0.0
      %2765 = vmatmul.mubr.f32.gmra.mrb[0].mxu0 %v702
      %v2766 = vpop.f32.mrb[0].mxu0
      %v2767 = vadd.f32 0.0, %v2766
      %v2768 = vpop.f32.mrb[0].mxu0
      %2769 = vmatprep.mubr.f32.mxu0 0.0
      %2770 = vmatmul.mubr.f32.gmra.mrb[0].mxu0 %v705
      %v2771 = vpop.f32.mrb[0].mxu0
      %v2772 = vadd.f32 0.0, %v2771
      %v2773 = vpop.f32.mrb[0].mxu0
      %2774 = vmatprep.mubr.f32.mxu0 0.0
      %2775 = vmatmul.mubr.f32.gmra.mrb[0].mxu0 %v708
      %v2776 = vpop.f32.mrb[0].mxu0
      %v2777 = vadd.f32 0.0, %v2776
      %v2778 = vpop.f32.mrb[0].mxu0
      %2779 = vmatprep.mubr.f32.mxu0 0.0
      %2780 = vmatmul.mubr.f32.gmra.mrb[0].mxu0 %v711
      %v2781 = vpop.f32.mrb[0].mxu0
      %v2782 = vadd.f32 0.0, %v2781
      %v2783 = vpop.f32.mrb[0].mxu0
      %2784 = vmatprep.mubr.f32.mxu0 0.0
      %2785 = vmatmul.mubr.f32.gmra.mrb[0].mxu0 %v714
      %v2786 = vpop.f32.mrb[0].mxu0
      %v2787 = vadd.f32 0.0, %v2786
      %v2788 = vpop.f32.mrb[0].mxu0
      %2789 = vmatprep.mubr.f32.mxu0 0.0
      %2790 = vmatmul.mubr.f32.gmra.mrb[0].mxu0 %v717
      %v2791 = vpop.f32.mrb[0].mxu0
      %v2792 = vadd.f32 0.0, %v2791
      %v2793 = vpop.f32.mrb[0].mxu0
      %2794 = vmatprep.mubr.f32.mxu0 0.0
      %2795 = vmatmul.mubr.f32.gmra.mrb[0].mxu0 %v720
      %v2796 = vpop.f32.mrb[0].mxu0
      %v2797 = vadd.f32 0.0, %v2796
      %v2798 = vpop.f32.mrb[0].mxu0
      %2799 = vmatprep.mubr.f32.mxu0 0.0
      %2800 = vmatmul.mubr.f32.gmra.mrb[0].mxu0 %v723
      %v2801 = vpop.f32.mrb[0].mxu0
      %v2802 = vadd.f32 0.0, %v2801
      %v2803 = vpop.f32.mrb[0].mxu0
      %2804 = vmatprep.mubr.f32.mxu0 0.0
      %2805 = vmatmul.mubr.f32.gmra.mrb[0].mxu0 %v726
      %v2806 = vpop.f32.mrb[0].mxu0
      %v2807 = vadd.f32 0.0, %v2806
      %v2808 = vpop.f32.mrb[0].mxu0
      %2809 = vmatprep.mubr.f32.mxu0 0.0
      %2810 = vmatmul.mubr.f32.gmra.mrb[0].mxu0 %v729
      %v2811 = vpop.f32.mrb[0].mxu0
      %v2812 = vadd.f32 0.0, %v2811
      %v2813 = vpop.f32.mrb[0].mxu0
      %2814 = vmatprep.mubr.f32.mxu0 0.0
      %2815 = vmatmul.mubr.f32.gmra.mrb[0].mxu0 %v732
      %v2816 = vpop.f32.mrb[0].mxu0
      %v2817 = vadd.f32 0.0, %v2816
      %v2818 = vpop.f32.mrb[0].mxu0
      %2819 = vmatprep.mubr.f32.mxu0 0.0
      %2820 = vmatmul.mubr.f32.gmra.mrb[0].mxu0 %v735
      %v2821 = vpop.f32.mrb[0].mxu0
      %v2822 = vadd.f32 0.0, %v2821
      %v2823 = vpop.f32.mrb[0].mxu0
      %2824 = vmatprep.mubr.f32.mxu0 0.0
      %2825 = vmatmul.mubr.f32.gmra.mrb[0].mxu0 %v738
      %v2826 = vpop.f32.mrb[0].mxu0
      %v2827 = vadd.f32 0.0, %v2826
      %v2828 = vpop.f32.mrb[0].mxu0
      %2829 = vmatprep.mubr.f32.mxu0 0.0
      %2830 = vmatmul.mubr.f32.gmra.mrb[0].mxu0 %v741
      %v2831 = vpop.f32.mrb[0].mxu0
      %v2832 = vadd.f32 0.0, %v2831
      %v2833 = vpop.f32.mrb[0].mxu0
      %2834 = vmatprep.mubr.f32.mxu0 0.0
      %2835 = vmatmul.mubr.f32.gmra.mrb[0].mxu0 %v744
      %v2836 = vpop.f32.mrb[0].mxu0
      %v2837 = vadd.f32 0.0, %v2836
      %v2838 = vpop.f32.mrb[0].mxu0
      %2839 = vmatprep.mubr.f32.mxu0 0.0
      %2840 = vmatmul.mubr.f32.gmra.mrb[0].mxu0 %v2620
      %v2841 = vpop.f32.mrb[0].mxu0
      %v2842 = vadd.f32 0.0, %v2841
      %v2843 = vpop.f32.mrb[0].mxu0
      %2844 = vmatprep.mubr.f32.mxu0 0.0
      %2845 = vmatmul.mubr.f32.gmra.mrb[0].mxu0 %v2623
      %v2846 = vpop.f32.mrb[0].mxu0
      %v2847 = vadd.f32 0.0, %v2846
      %v2848 = vpop.f32.mrb[0].mxu0
      %2849 = vdwg.mxu0
      %v2850 = vadd.f32 %v2585, %v2692
      %v2851 = vadd.f32 %v2586, %v2697
      %v2852 = vadd.f32 %v2587, %v2702
      %v2853 = vadd.f32 %v2588, %v2707
      %v2854 = vadd.f32 %v2589, %v2712
      %v2855 = vadd.f32 %v2590, %v2717
      %v2856 = vadd.f32 %v2591, %v2722
      %v2857 = vadd.f32 %v2592, %v2727
      %v2858 = vadd.f32 %v2593, %v2732
      %v2859 = vadd.f32 %v2594, %v2737
      %v2860 = vadd.f32 %v2595, %v2742
      %v2861 = vadd.f32 %v2596, %v2747
      %v2862 = vadd.f32 %v2597, %v2752
      %v2863 = vadd.f32 %v2598, %v2757
      %v2864 = vadd.f32 %v2599, %v2762
      %v2865 = vadd.f32 %v2600, %v2767
      %v2866 = vadd.f32 %v2601, %v2772
      %v2867 = vadd.f32 %v2602, %v2777
      %v2868 = vadd.f32 %v2603, %v2782
      %v2869 = vadd.f32 %v2604, %v2787
      %v2870 = vadd.f32 %v2605, %v2792
      %v2871 = vadd.f32 %v2606, %v2797
      %v2872 = vadd.f32 %v2607, %v2802
      %v2873 = vadd.f32 %v2608, %v2807
      %v2874 = vadd.f32 %v2609, %v2812
      %v2875 = vadd.f32 %v2610, %v2817
      %v2876 = vadd.f32 %v2611, %v2822
      %v2877 = vadd.f32 %v2612, %v2827
      %v2878 = vadd.f32 %v2613, %v2832
      %v2879 = vadd.f32 %v2614, %v2837
      %v2880 = vadd.f32 %v2615, %v2842
      %v2881 = vadd.f32 %v2616, %v2847
      %s2882 = scalar_lea.vmem %s3, 24
      %v2883 = vld [vmem:[%s2882] sm:$0xff]
      %v2885 = vsel %vm328, %v320, 0
      %v2888 = vsel %vm328, %v321, 0
      %2890 = vmatprep.subr.mxu0 0.0
      %2891 = vmatpush1.msra.mxu0 %v2883
      %2892 = vmatprep.subr.mxu0 0.0
      %2893 = vmatpush1.msra.mxu0 0.0
      %2894 = vmatprep.subr.mxu0 0.0
      %2895 = vmatpush1.msra.mxu0 0.0
      %2896 = vmatprep.subr.mxu0 0.0
      %2897 = vmatpush1.msra.mxu0 0.0
      %2898 = vmatprep.subr.mxu0 0.0
      %2899 = vmatpush1.msra.mxu0 0.0
      %2900 = vmatprep.subr.mxu0 0.0
      %2901 = vmatpush1.msra.mxu0 0.0
      %2902 = vmatprep.subr.mxu0 0.0
      %2903 = vmatpush1.msra.mxu0 0.0
      %2904 = vmatprep.subr.mxu0 0.0
      %2905 = vmatpush1.msra.mxu0 0.0
      %2906 = vmatprep.subr.mxu0 0.0
      %2907 = vmatpush1.msra.mxu0 0.0
      %2908 = vmatprep.subr.mxu0 0.0
      %2909 = vmatpush1.msra.mxu0 0.0
      %2910 = vmatprep.subr.mxu0 0.0
      %2911 = vmatpush1.msra.mxu0 0.0
      %2912 = vmatprep.subr.mxu0 0.0
      %2913 = vmatpush1.msra.mxu0 0.0
      %2914 = vmatprep.subr.mxu0 0.0
      %2915 = vmatpush1.msra.mxu0 0.0
      %2916 = vmatprep.subr.mxu0 0.0
      %2917 = vmatpush1.msra.mxu0 0.0
      %2918 = vmatprep.subr.mxu0 0.0
      %2919 = vmatpush1.msra.mxu0 0.0
      %2920 = vmatprep.subr.mxu0 0.0
      %2921 = vmatpush1.msra.mxu0 0.0
      %2922 = vmatprep.subr.mxu0 0.0
      %2923 = vmatpush1.msra.mxu0 0.0
      %2924 = vmatprep.subr.mxu0 0.0
      %2925 = vmatpush1.msra.mxu0 0.0
      %2926 = vmatprep.subr.mxu0 0.0
      %2927 = vmatpush1.msra.mxu0 0.0
      %2928 = vmatprep.subr.mxu0 0.0
      %2929 = vmatpush1.msra.mxu0 0.0
      %2930 = vmatprep.subr.mxu0 0.0
      %2931 = vmatpush1.msra.mxu0 0.0
      %2932 = vmatprep.subr.mxu0 0.0
      %2933 = vmatpush1.msra.mxu0 0.0
      %2934 = vmatprep.subr.mxu0 0.0
      %2935 = vmatpush1.msra.mxu0 0.0
      %2936 = vmatprep.subr.mxu0 0.0
      %2937 = vmatpush1.msra.mxu0 0.0
      %2938 = vmatprep.subr.mxu0 0.0
      %2939 = vmatpush1.msra.mxu0 0.0
      %2940 = vmatprep.subr.mxu0 0.0
      %2941 = vmatpush1.msra.mxu0 0.0
      %2942 = vmatprep.subr.mxu0 0.0
      %2943 = vmatpush1.msra.mxu0 0.0
      %2944 = vmatprep.subr.mxu0 0.0
      %2945 = vmatpush1.msra.mxu0 0.0
      %2946 = vmatprep.subr.mxu0 0.0
      %2947 = vmatpush1.msra.mxu0 0.0
      %2948 = vmatprep.subr.mxu0 0.0
      %2949 = vmatpush1.msra.mxu0 0.0
      %2950 = vmatprep.subr.mxu0 0.0
      %2951 = vmatpush1.msra.mxu0 0.0
      %2952 = vmatprep.subr.mxu0 0.0
      %2953 = vmatpush1.msra.mxu0 0.0
      %2954 = vmatprep.mubr.f32.mxu0 0.0
      %2955 = vmatmul.mubr.f32.gmra.mrb[0].mxu0 %v336
      %v2956 = vpop.f32.mrb[0].mxu0
      %v2957 = vadd.f32 0.0, %v2956
      %v2958 = vpop.f32.mrb[0].mxu0
      %2959 = vmatprep.mubr.f32.mxu0 0.0
      %2960 = vmatmul.mubr.f32.gmra.mrb[0].mxu0 %v339
      %v2961 = vpop.f32.mrb[0].mxu0
      %v2962 = vadd.f32 0.0, %v2961
      %v2963 = vpop.f32.mrb[0].mxu0
      %2964 = vmatprep.mubr.f32.mxu0 0.0
      %2965 = vmatmul.mubr.f32.gmra.mrb[0].mxu0 %v342
      %v2966 = vpop.f32.mrb[0].mxu0
      %v2967 = vadd.f32 0.0, %v2966
      %v2968 = vpop.f32.mrb[0].mxu0
      %2969 = vmatprep.mubr.f32.mxu0 0.0
      %2970 = vmatmul.mubr.f32.gmra.mrb[0].mxu0 %v345
      %v2971 = vpop.f32.mrb[0].mxu0
      %v2972 = vadd.f32 0.0, %v2971
      %v2973 = vpop.f32.mrb[0].mxu0
      %2974 = vmatprep.mubr.f32.mxu0 0.0
      %2975 = vmatmul.mubr.f32.gmra.mrb[0].mxu0 %v348
      %v2976 = vpop.f32.mrb[0].mxu0
      %v2977 = vadd.f32 0.0, %v2976
      %v2978 = vpop.f32.mrb[0].mxu0
      %2979 = vmatprep.mubr.f32.mxu0 0.0
      %2980 = vmatmul.mubr.f32.gmra.mrb[0].mxu0 %v351
      %v2981 = vpop.f32.mrb[0].mxu0
      %v2982 = vadd.f32 0.0, %v2981
      %v2983 = vpop.f32.mrb[0].mxu0
      %2984 = vmatprep.mubr.f32.mxu0 0.0
      %2985 = vmatmul.mubr.f32.gmra.mrb[0].mxu0 %v354
      %v2986 = vpop.f32.mrb[0].mxu0
      %v2987 = vadd.f32 0.0, %v2986
      %v2988 = vpop.f32.mrb[0].mxu0
      %2989 = vmatprep.mubr.f32.mxu0 0.0
      %2990 = vmatmul.mubr.f32.gmra.mrb[0].mxu0 %v357
      %v2991 = vpop.f32.mrb[0].mxu0
      %v2992 = vadd.f32 0.0, %v2991
      %v2993 = vpop.f32.mrb[0].mxu0
      %2994 = vmatprep.mubr.f32.mxu0 0.0
      %2995 = vmatmul.mubr.f32.gmra.mrb[0].mxu0 %v360
      %v2996 = vpop.f32.mrb[0].mxu0
      %v2997 = vadd.f32 0.0, %v2996
      %v2998 = vpop.f32.mrb[0].mxu0
      %2999 = vmatprep.mubr.f32.mxu0 0.0
      %3000 = vmatmul.mubr.f32.gmra.mrb[0].mxu0 %v363
      %v3001 = vpop.f32.mrb[0].mxu0
      %v3002 = vadd.f32 0.0, %v3001
      %v3003 = vpop.f32.mrb[0].mxu0
      %3004 = vmatprep.mubr.f32.mxu0 0.0
      %3005 = vmatmul.mubr.f32.gmra.mrb[0].mxu0 %v366
      %v3006 = vpop.f32.mrb[0].mxu0
      %v3007 = vadd.f32 0.0, %v3006
      %v3008 = vpop.f32.mrb[0].mxu0
      %3009 = vmatprep.mubr.f32.mxu0 0.0
      %3010 = vmatmul.mubr.f32.gmra.mrb[0].mxu0 %v369
      %v3011 = vpop.f32.mrb[0].mxu0
      %v3012 = vadd.f32 0.0, %v3011
      %v3013 = vpop.f32.mrb[0].mxu0
      %3014 = vmatprep.mubr.f32.mxu0 0.0
      %3015 = vmatmul.mubr.f32.gmra.mrb[0].mxu0 %v372
      %v3016 = vpop.f32.mrb[0].mxu0
      %v3017 = vadd.f32 0.0, %v3016
      %v3018 = vpop.f32.mrb[0].mxu0
      %3019 = vmatprep.mubr.f32.mxu0 0.0
      %3020 = vmatmul.mubr.f32.gmra.mrb[0].mxu0 %v375
      %v3021 = vpop.f32.mrb[0].mxu0
      %v3022 = vadd.f32 0.0, %v3021
      %v3023 = vpop.f32.mrb[0].mxu0
      %3024 = vmatprep.mubr.f32.mxu0 0.0
      %3025 = vmatmul.mubr.f32.gmra.mrb[0].mxu0 %v378
      %v3026 = vpop.f32.mrb[0].mxu0
      %v3027 = vadd.f32 0.0, %v3026
      %v3028 = vpop.f32.mrb[0].mxu0
      %3029 = vmatprep.mubr.f32.mxu0 0.0
      %3030 = vmatmul.mubr.f32.gmra.mrb[0].mxu0 %v381
      %v3031 = vpop.f32.mrb[0].mxu0
      %v3032 = vadd.f32 0.0, %v3031
      %v3033 = vpop.f32.mrb[0].mxu0
      %3034 = vmatprep.mubr.f32.mxu0 0.0
      %3035 = vmatmul.mubr.f32.gmra.mrb[0].mxu0 %v384
      %v3036 = vpop.f32.mrb[0].mxu0
      %v3037 = vadd.f32 0.0, %v3036
      %v3038 = vpop.f32.mrb[0].mxu0
      %3039 = vmatprep.mubr.f32.mxu0 0.0
      %3040 = vmatmul.mubr.f32.gmra.mrb[0].mxu0 %v387
      %v3041 = vpop.f32.mrb[0].mxu0
      %v3042 = vadd.f32 0.0, %v3041
      %v3043 = vpop.f32.mrb[0].mxu0
      %3044 = vmatprep.mubr.f32.mxu0 0.0
      %3045 = vmatmul.mubr.f32.gmra.mrb[0].mxu0 %v390
      %v3046 = vpop.f32.mrb[0].mxu0
      %v3047 = vadd.f32 0.0, %v3046
      %v3048 = vpop.f32.mrb[0].mxu0
      %3049 = vmatprep.mubr.f32.mxu0 0.0
      %3050 = vmatmul.mubr.f32.gmra.mrb[0].mxu0 %v393
      %v3051 = vpop.f32.mrb[0].mxu0
      %v3052 = vadd.f32 0.0, %v3051
      %v3053 = vpop.f32.mrb[0].mxu0
      %3054 = vmatprep.mubr.f32.mxu0 0.0
      %3055 = vmatmul.mubr.f32.gmra.mrb[0].mxu0 %v396
      %v3056 = vpop.f32.mrb[0].mxu0
      %v3057 = vadd.f32 0.0, %v3056
      %v3058 = vpop.f32.mrb[0].mxu0
      %3059 = vmatprep.mubr.f32.mxu0 0.0
      %3060 = vmatmul.mubr.f32.gmra.mrb[0].mxu0 %v399
      %v3061 = vpop.f32.mrb[0].mxu0
      %v3062 = vadd.f32 0.0, %v3061
      %v3063 = vpop.f32.mrb[0].mxu0
      %3064 = vmatprep.mubr.f32.mxu0 0.0
      %3065 = vmatmul.mubr.f32.gmra.mrb[0].mxu0 %v402
      %v3066 = vpop.f32.mrb[0].mxu0
      %v3067 = vadd.f32 0.0, %v3066
      %v3068 = vpop.f32.mrb[0].mxu0
      %3069 = vmatprep.mubr.f32.mxu0 0.0
      %3070 = vmatmul.mubr.f32.gmra.mrb[0].mxu0 %v405
      %v3071 = vpop.f32.mrb[0].mxu0
      %v3072 = vadd.f32 0.0, %v3071
      %v3073 = vpop.f32.mrb[0].mxu0
      %3074 = vmatprep.mubr.f32.mxu0 0.0
      %3075 = vmatmul.mubr.f32.gmra.mrb[0].mxu0 %v408
      %v3076 = vpop.f32.mrb[0].mxu0
      %v3077 = vadd.f32 0.0, %v3076
      %v3078 = vpop.f32.mrb[0].mxu0
      %3079 = vmatprep.mubr.f32.mxu0 0.0
      %3080 = vmatmul.mubr.f32.gmra.mrb[0].mxu0 %v411
      %v3081 = vpop.f32.mrb[0].mxu0
      %v3082 = vadd.f32 0.0, %v3081
      %v3083 = vpop.f32.mrb[0].mxu0
      %3084 = vmatprep.mubr.f32.mxu0 0.0
      %3085 = vmatmul.mubr.f32.gmra.mrb[0].mxu0 %v414
      %v3086 = vpop.f32.mrb[0].mxu0
      %v3087 = vadd.f32 0.0, %v3086
      %v3088 = vpop.f32.mrb[0].mxu0
      %3089 = vmatprep.mubr.f32.mxu0 0.0
      %3090 = vmatmul.mubr.f32.gmra.mrb[0].mxu0 %v417
      %v3091 = vpop.f32.mrb[0].mxu0
      %v3092 = vadd.f32 0.0, %v3091
      %v3093 = vpop.f32.mrb[0].mxu0
      %3094 = vmatprep.mubr.f32.mxu0 0.0
      %3095 = vmatmul.mubr.f32.gmra.mrb[0].mxu0 %v420
      %v3096 = vpop.f32.mrb[0].mxu0
      %v3097 = vadd.f32 0.0, %v3096
      %v3098 = vpop.f32.mrb[0].mxu0
      %3099 = vmatprep.mubr.f32.mxu0 0.0
      %3100 = vmatmul.mubr.f32.gmra.mrb[0].mxu0 %v423
      %v3101 = vpop.f32.mrb[0].mxu0
      %v3102 = vadd.f32 0.0, %v3101
      %v3103 = vpop.f32.mrb[0].mxu0
      %3104 = vmatprep.mubr.f32.mxu0 0.0
      %3105 = vmatmul.mubr.f32.gmra.mrb[0].mxu0 %v2885
      %v3106 = vpop.f32.mrb[0].mxu0
      %v3107 = vadd.f32 0.0, %v3106
      %v3108 = vpop.f32.mrb[0].mxu0
      %3109 = vmatprep.mubr.f32.mxu0 0.0
      %3110 = vmatmul.mubr.f32.gmra.mrb[0].mxu0 %v2888
      %v3111 = vpop.f32.mrb[0].mxu0
      %v3112 = vadd.f32 0.0, %v3111
      %v3113 = vpop.f32.mrb[0].mxu0
      %3114 = vdwg.mxu0
      %v3115 = vadd.f32 %v2850, %v2957
      %v3116 = vadd.f32 %v2851, %v2962
      %v3117 = vadd.f32 %v2852, %v2967
      %v3118 = vadd.f32 %v2853, %v2972
      %v3119 = vadd.f32 %v2854, %v2977
      %v3120 = vadd.f32 %v2855, %v2982
      %v3121 = vadd.f32 %v2856, %v2987
      %v3122 = vadd.f32 %v2857, %v2992
      %v3123 = vadd.f32 %v2858, %v2997
      %v3124 = vadd.f32 %v2859, %v3002
      %v3125 = vadd.f32 %v2860, %v3007
      %v3126 = vadd.f32 %v2861, %v3012
      %v3127 = vadd.f32 %v2862, %v3017
      %v3128 = vadd.f32 %v2863, %v3022
      %v3129 = vadd.f32 %v2864, %v3027
      %v3130 = vadd.f32 %v2865, %v3032
      %v3131 = vadd.f32 %v2866, %v3037
      %v3132 = vadd.f32 %v2867, %v3042
      %v3133 = vadd.f32 %v2868, %v3047
      %v3134 = vadd.f32 %v2869, %v3052
      %v3135 = vadd.f32 %v2870, %v3057
      %v3136 = vadd.f32 %v2871, %v3062
      %v3137 = vadd.f32 %v2872, %v3067
      %v3138 = vadd.f32 %v2873, %v3072
      %v3139 = vadd.f32 %v2874, %v3077
      %v3140 = vadd.f32 %v2875, %v3082
      %v3141 = vadd.f32 %v2876, %v3087
      %v3142 = vadd.f32 %v2877, %v3092
      %v3143 = vadd.f32 %v2878, %v3097
      %v3144 = vadd.f32 %v2879, %v3102
      %v3145 = vadd.f32 %v2880, %v3107
      %v3146 = vadd.f32 %v2881, %v3112
      %v3148 = vrot.slane %v266, 1
      %v3149 = vrot.slane %v267, 1
      %v3150 = vsel %vm987, %v3148, %v3149
      %v3151 = vrot.slane %v268, 1
      %v3152 = vsel %vm987, %v3149, %v3151
      %v3154 = vrot.slane %v320, 1
      %v3155 = vrot.slane %v321, 1
      %v3156 = vsel %vm987, %v3154, %v3155
      %v3157 = vrot.slane %v322, 1
      %v3158 = vsel %vm987, %v3155, %v3157
      %s3159 = scalar_lea.vmem %s2, 32
      %v3160 = vld [vmem:[%s3159] sm:$0xff]
      %v3161 = vsel %vm328, %v3150, 0
      %v3163 = vsel %vm328, %v3152, 0
      %3165 = vmatprep.subr.mxu0 0.0
      %3166 = vmatpush1.msra.mxu0 %v3160
      %3167 = vmatprep.subr.mxu0 0.0
      %3168 = vmatpush1.msra.mxu0 0.0
      %3169 = vmatprep.subr.mxu0 0.0
      %3170 = vmatpush1.msra.mxu0 0.0
      %3171 = vmatprep.subr.mxu0 0.0
      %3172 = vmatpush1.msra.mxu0 0.0
      %3173 = vmatprep.subr.mxu0 0.0
      %3174 = vmatpush1.msra.mxu0 0.0
      %3175 = vmatprep.subr.mxu0 0.0
      %3176 = vmatpush1.msra.mxu0 0.0
      %3177 = vmatprep.subr.mxu0 0.0
      %3178 = vmatpush1.msra.mxu0 0.0
      %3179 = vmatprep.subr.mxu0 0.0
      %3180 = vmatpush1.msra.mxu0 0.0
      %3181 = vmatprep.subr.mxu0 0.0
      %3182 = vmatpush1.msra.mxu0 0.0
      %3183 = vmatprep.subr.mxu0 0.0
      %3184 = vmatpush1.msra.mxu0 0.0
      %3185 = vmatprep.subr.mxu0 0.0
      %3186 = vmatpush1.msra.mxu0 0.0
      %3187 = vmatprep.subr.mxu0 0.0
      %3188 = vmatpush1.msra.mxu0 0.0
      %3189 = vmatprep.subr.mxu0 0.0
      %3190 = vmatpush1.msra.mxu0 0.0
      %3191 = vmatprep.subr.mxu0 0.0
      %3192 = vmatpush1.msra.mxu0 0.0
      %3193 = vmatprep.subr.mxu0 0.0
      %3194 = vmatpush1.msra.mxu0 0.0
      %3195 = vmatprep.subr.mxu0 0.0
      %3196 = vmatpush1.msra.mxu0 0.0
      %3197 = vmatprep.subr.mxu0 0.0
      %3198 = vmatpush1.msra.mxu0 0.0
      %3199 = vmatprep.subr.mxu0 0.0
      %3200 = vmatpush1.msra.mxu0 0.0
      %3201 = vmatprep.subr.mxu0 0.0
      %3202 = vmatpush1.msra.mxu0 0.0
      %3203 = vmatprep.subr.mxu0 0.0
      %3204 = vmatpush1.msra.mxu0 0.0
      %3205 = vmatprep.subr.mxu0 0.0
      %3206 = vmatpush1.msra.mxu0 0.0
      %3207 = vmatprep.subr.mxu0 0.0
      %3208 = vmatpush1.msra.mxu0 0.0
      %3209 = vmatprep.subr.mxu0 0.0
      %3210 = vmatpush1.msra.mxu0 0.0
      %3211 = vmatprep.subr.mxu0 0.0
      %3212 = vmatpush1.msra.mxu0 0.0
      %3213 = vmatprep.subr.mxu0 0.0
      %3214 = vmatpush1.msra.mxu0 0.0
      %3215 = vmatprep.subr.mxu0 0.0
      %3216 = vmatpush1.msra.mxu0 0.0
      %3217 = vmatprep.subr.mxu0 0.0
      %3218 = vmatpush1.msra.mxu0 0.0
      %3219 = vmatprep.subr.mxu0 0.0
      %3220 = vmatpush1.msra.mxu0 0.0
      %3221 = vmatprep.subr.mxu0 0.0
      %3222 = vmatpush1.msra.mxu0 0.0
      %3223 = vmatprep.subr.mxu0 0.0
      %3224 = vmatpush1.msra.mxu0 0.0
      %3225 = vmatprep.subr.mxu0 0.0
      %3226 = vmatpush1.msra.mxu0 0.0
      %3227 = vmatprep.subr.mxu0 0.0
      %3228 = vmatpush1.msra.mxu0 0.0
      %3229 = vmatprep.mubr.f32.mxu0 0.0
      %3230 = vmatmul.mubr.f32.gmra.mrb[0].mxu0 %v1170
      %v3231 = vpop.f32.mrb[0].mxu0
      %v3232 = vadd.f32 0.0, %v3231
      %v3233 = vpop.f32.mrb[0].mxu0
      %3234 = vmatprep.mubr.f32.mxu0 0.0
      %3235 = vmatmul.mubr.f32.gmra.mrb[0].mxu0 %v1172
      %v3236 = vpop.f32.mrb[0].mxu0
      %v3237 = vadd.f32 0.0, %v3236
      %v3238 = vpop.f32.mrb[0].mxu0
      %3239 = vmatprep.mubr.f32.mxu0 0.0
      %3240 = vmatmul.mubr.f32.gmra.mrb[0].mxu0 %v1174
      %v3241 = vpop.f32.mrb[0].mxu0
      %v3242 = vadd.f32 0.0, %v3241
      %v3243 = vpop.f32.mrb[0].mxu0
      %3244 = vmatprep.mubr.f32.mxu0 0.0
      %3245 = vmatmul.mubr.f32.gmra.mrb[0].mxu0 %v1176
      %v3246 = vpop.f32.mrb[0].mxu0
      %v3247 = vadd.f32 0.0, %v3246
      %v3248 = vpop.f32.mrb[0].mxu0
      %3249 = vmatprep.mubr.f32.mxu0 0.0
      %3250 = vmatmul.mubr.f32.gmra.mrb[0].mxu0 %v1178
      %v3251 = vpop.f32.mrb[0].mxu0
      %v3252 = vadd.f32 0.0, %v3251
      %v3253 = vpop.f32.mrb[0].mxu0
      %3254 = vmatprep.mubr.f32.mxu0 0.0
      %3255 = vmatmul.mubr.f32.gmra.mrb[0].mxu0 %v1180
      %v3256 = vpop.f32.mrb[0].mxu0
      %v3257 = vadd.f32 0.0, %v3256
      %v3258 = vpop.f32.mrb[0].mxu0
      %3259 = vmatprep.mubr.f32.mxu0 0.0
      %3260 = vmatmul.mubr.f32.gmra.mrb[0].mxu0 %v1182
      %v3261 = vpop.f32.mrb[0].mxu0
      %v3262 = vadd.f32 0.0, %v3261
      %v3263 = vpop.f32.mrb[0].mxu0
      %3264 = vmatprep.mubr.f32.mxu0 0.0
      %3265 = vmatmul.mubr.f32.gmra.mrb[0].mxu0 %v1184
      %v3266 = vpop.f32.mrb[0].mxu0
      %v3267 = vadd.f32 0.0, %v3266
      %v3268 = vpop.f32.mrb[0].mxu0
      %3269 = vmatprep.mubr.f32.mxu0 0.0
      %3270 = vmatmul.mubr.f32.gmra.mrb[0].mxu0 %v1186
      %v3271 = vpop.f32.mrb[0].mxu0
      %v3272 = vadd.f32 0.0, %v3271
      %v3273 = vpop.f32.mrb[0].mxu0
      %3274 = vmatprep.mubr.f32.mxu0 0.0
      %3275 = vmatmul.mubr.f32.gmra.mrb[0].mxu0 %v1188
      %v3276 = vpop.f32.mrb[0].mxu0
      %v3277 = vadd.f32 0.0, %v3276
      %v3278 = vpop.f32.mrb[0].mxu0
      %3279 = vmatprep.mubr.f32.mxu0 0.0
      %3280 = vmatmul.mubr.f32.gmra.mrb[0].mxu0 %v1190
      %v3281 = vpop.f32.mrb[0].mxu0
      %v3282 = vadd.f32 0.0, %v3281
      %v3283 = vpop.f32.mrb[0].mxu0
      %3284 = vmatprep.mubr.f32.mxu0 0.0
      %3285 = vmatmul.mubr.f32.gmra.mrb[0].mxu0 %v1192
      %v3286 = vpop.f32.mrb[0].mxu0
      %v3287 = vadd.f32 0.0, %v3286
      %v3288 = vpop.f32.mrb[0].mxu0
      %3289 = vmatprep.mubr.f32.mxu0 0.0
      %3290 = vmatmul.mubr.f32.gmra.mrb[0].mxu0 %v1194
      %v3291 = vpop.f32.mrb[0].mxu0
      %v3292 = vadd.f32 0.0, %v3291
      %v3293 = vpop.f32.mrb[0].mxu0
      %3294 = vmatprep.mubr.f32.mxu0 0.0
      %3295 = vmatmul.mubr.f32.gmra.mrb[0].mxu0 %v1196
      %v3296 = vpop.f32.mrb[0].mxu0
      %v3297 = vadd.f32 0.0, %v3296
      %v3298 = vpop.f32.mrb[0].mxu0
      %3299 = vmatprep.mubr.f32.mxu0 0.0
      %3300 = vmatmul.mubr.f32.gmra.mrb[0].mxu0 %v1198
      %v3301 = vpop.f32.mrb[0].mxu0
      %v3302 = vadd.f32 0.0, %v3301
      %v3303 = vpop.f32.mrb[0].mxu0
      %3304 = vmatprep.mubr.f32.mxu0 0.0
      %3305 = vmatmul.mubr.f32.gmra.mrb[0].mxu0 %v1200
      %v3306 = vpop.f32.mrb[0].mxu0
      %v3307 = vadd.f32 0.0, %v3306
      %v3308 = vpop.f32.mrb[0].mxu0
      %3309 = vmatprep.mubr.f32.mxu0 0.0
      %3310 = vmatmul.mubr.f32.gmra.mrb[0].mxu0 %v1202
      %v3311 = vpop.f32.mrb[0].mxu0
      %v3312 = vadd.f32 0.0, %v3311
      %v3313 = vpop.f32.mrb[0].mxu0
      %3314 = vmatprep.mubr.f32.mxu0 0.0
      %3315 = vmatmul.mubr.f32.gmra.mrb[0].mxu0 %v1204
      %v3316 = vpop.f32.mrb[0].mxu0
      %v3317 = vadd.f32 0.0, %v3316
      %v3318 = vpop.f32.mrb[0].mxu0
      %3319 = vmatprep.mubr.f32.mxu0 0.0
      %3320 = vmatmul.mubr.f32.gmra.mrb[0].mxu0 %v1206
      %v3321 = vpop.f32.mrb[0].mxu0
      %v3322 = vadd.f32 0.0, %v3321
      %v3323 = vpop.f32.mrb[0].mxu0
      %3324 = vmatprep.mubr.f32.mxu0 0.0
      %3325 = vmatmul.mubr.f32.gmra.mrb[0].mxu0 %v1208
      %v3326 = vpop.f32.mrb[0].mxu0
      %v3327 = vadd.f32 0.0, %v3326
      %v3328 = vpop.f32.mrb[0].mxu0
      %3329 = vmatprep.mubr.f32.mxu0 0.0
      %3330 = vmatmul.mubr.f32.gmra.mrb[0].mxu0 %v1210
      %v3331 = vpop.f32.mrb[0].mxu0
      %v3332 = vadd.f32 0.0, %v3331
      %v3333 = vpop.f32.mrb[0].mxu0
      %3334 = vmatprep.mubr.f32.mxu0 0.0
      %3335 = vmatmul.mubr.f32.gmra.mrb[0].mxu0 %v1212
      %v3336 = vpop.f32.mrb[0].mxu0
      %v3337 = vadd.f32 0.0, %v3336
      %v3338 = vpop.f32.mrb[0].mxu0
      %3339 = vmatprep.mubr.f32.mxu0 0.0
      %3340 = vmatmul.mubr.f32.gmra.mrb[0].mxu0 %v1214
      %v3341 = vpop.f32.mrb[0].mxu0
      %v3342 = vadd.f32 0.0, %v3341
      %v3343 = vpop.f32.mrb[0].mxu0
      %3344 = vmatprep.mubr.f32.mxu0 0.0
      %3345 = vmatmul.mubr.f32.gmra.mrb[0].mxu0 %v1216
      %v3346 = vpop.f32.mrb[0].mxu0
      %v3347 = vadd.f32 0.0, %v3346
      %v3348 = vpop.f32.mrb[0].mxu0
      %3349 = vmatprep.mubr.f32.mxu0 0.0
      %3350 = vmatmul.mubr.f32.gmra.mrb[0].mxu0 %v1218
      %v3351 = vpop.f32.mrb[0].mxu0
      %v3352 = vadd.f32 0.0, %v3351
      %v3353 = vpop.f32.mrb[0].mxu0
      %3354 = vmatprep.mubr.f32.mxu0 0.0
      %3355 = vmatmul.mubr.f32.gmra.mrb[0].mxu0 %v1220
      %v3356 = vpop.f32.mrb[0].mxu0
      %v3357 = vadd.f32 0.0, %v3356
      %v3358 = vpop.f32.mrb[0].mxu0
      %3359 = vmatprep.mubr.f32.mxu0 0.0
      %3360 = vmatmul.mubr.f32.gmra.mrb[0].mxu0 %v1222
      %v3361 = vpop.f32.mrb[0].mxu0
      %v3362 = vadd.f32 0.0, %v3361
      %v3363 = vpop.f32.mrb[0].mxu0
      %3364 = vmatprep.mubr.f32.mxu0 0.0
      %3365 = vmatmul.mubr.f32.gmra.mrb[0].mxu0 %v1224
      %v3366 = vpop.f32.mrb[0].mxu0
      %v3367 = vadd.f32 0.0, %v3366
      %v3368 = vpop.f32.mrb[0].mxu0
      %3369 = vmatprep.mubr.f32.mxu0 0.0
      %3370 = vmatmul.mubr.f32.gmra.mrb[0].mxu0 %v1226
      %v3371 = vpop.f32.mrb[0].mxu0
      %v3372 = vadd.f32 0.0, %v3371
      %v3373 = vpop.f32.mrb[0].mxu0
      %3374 = vmatprep.mubr.f32.mxu0 0.0
      %3375 = vmatmul.mubr.f32.gmra.mrb[0].mxu0 %v1228
      %v3376 = vpop.f32.mrb[0].mxu0
      %v3377 = vadd.f32 0.0, %v3376
      %v3378 = vpop.f32.mrb[0].mxu0
      %3379 = vmatprep.mubr.f32.mxu0 0.0
      %3380 = vmatmul.mubr.f32.gmra.mrb[0].mxu0 %v3161
      %v3381 = vpop.f32.mrb[0].mxu0
      %v3382 = vadd.f32 0.0, %v3381
      %v3383 = vpop.f32.mrb[0].mxu0
      %3384 = vmatprep.mubr.f32.mxu0 0.0
      %3385 = vmatmul.mubr.f32.gmra.mrb[0].mxu0 %v3163
      %v3386 = vpop.f32.mrb[0].mxu0
      %v3387 = vadd.f32 0.0, %v3386
      %v3388 = vpop.f32.mrb[0].mxu0
      %3389 = vdwg.mxu0
      %v3390 = vadd.f32 %v3115, %v3232
      %v3391 = vadd.f32 %v3116, %v3237
      %v3392 = vadd.f32 %v3117, %v3242
      %v3393 = vadd.f32 %v3118, %v3247
      %v3394 = vadd.f32 %v3119, %v3252
      %v3395 = vadd.f32 %v3120, %v3257
      %v3396 = vadd.f32 %v3121, %v3262
      %v3397 = vadd.f32 %v3122, %v3267
      %v3398 = vadd.f32 %v3123, %v3272
      %v3399 = vadd.f32 %v3124, %v3277
      %v3400 = vadd.f32 %v3125, %v3282
      %v3401 = vadd.f32 %v3126, %v3287
      %v3402 = vadd.f32 %v3127, %v3292
      %v3403 = vadd.f32 %v3128, %v3297
      %v3404 = vadd.f32 %v3129, %v3302
      %v3405 = vadd.f32 %v3130, %v3307
      %v3406 = vadd.f32 %v3131, %v3312
      %v3407 = vadd.f32 %v3132, %v3317
      %v3408 = vadd.f32 %v3133, %v3322
      %v3409 = vadd.f32 %v3134, %v3327
      %v3410 = vadd.f32 %v3135, %v3332
      %v3411 = vadd.f32 %v3136, %v3337
      %v3412 = vadd.f32 %v3137, %v3342
      %v3413 = vadd.f32 %v3138, %v3347
      %v3414 = vadd.f32 %v3139, %v3352
      %v3415 = vadd.f32 %v3140, %v3357
      %v3416 = vadd.f32 %v3141, %v3362
      %v3417 = vadd.f32 %v3142, %v3367
      %v3418 = vadd.f32 %v3143, %v3372
      %v3419 = vadd.f32 %v3144, %v3377
      %v3420 = vadd.f32 %v3145, %v3382
      %v3421 = vadd.f32 %v3146, %v3387
      %s3422 = scalar_lea.vmem %s3, 32
      %v3423 = vld [vmem:[%s3422] sm:$0xff]
      %v3424 = vsel %vm328, %v3156, 0
      %v3426 = vsel %vm328, %v3158, 0
      %3428 = vmatprep.subr.mxu0 0.0
      %3429 = vmatpush1.msra.mxu0 %v3423
      %3430 = vmatprep.subr.mxu0 0.0
      %3431 = vmatpush1.msra.mxu0 0.0
      %3432 = vmatprep.subr.mxu0 0.0
      %3433 = vmatpush1.msra.mxu0 0.0
      %3434 = vmatprep.subr.mxu0 0.0
      %3435 = vmatpush1.msra.mxu0 0.0
      %3436 = vmatprep.subr.mxu0 0.0
      %3437 = vmatpush1.msra.mxu0 0.0
      %3438 = vmatprep.subr.mxu0 0.0
      %3439 = vmatpush1.msra.mxu0 0.0
      %3440 = vmatprep.subr.mxu0 0.0
      %3441 = vmatpush1.msra.mxu0 0.0
      %3442 = vmatprep.subr.mxu0 0.0
      %3443 = vmatpush1.msra.mxu0 0.0
      %3444 = vmatprep.subr.mxu0 0.0
      %3445 = vmatpush1.msra.mxu0 0.0
      %3446 = vmatprep.subr.mxu0 0.0
      %3447 = vmatpush1.msra.mxu0 0.0
      %3448 = vmatprep.subr.mxu0 0.0
      %3449 = vmatpush1.msra.mxu0 0.0
      %3450 = vmatprep.subr.mxu0 0.0
      %3451 = vmatpush1.msra.mxu0 0.0
      %3452 = vmatprep.subr.mxu0 0.0
      %3453 = vmatpush1.msra.mxu0 0.0
      %3454 = vmatprep.subr.mxu0 0.0
      %3455 = vmatpush1.msra.mxu0 0.0
      %3456 = vmatprep.subr.mxu0 0.0
      %3457 = vmatpush1.msra.mxu0 0.0
      %3458 = vmatprep.subr.mxu0 0.0
      %3459 = vmatpush1.msra.mxu0 0.0
      %3460 = vmatprep.subr.mxu0 0.0
      %3461 = vmatpush1.msra.mxu0 0.0
      %3462 = vmatprep.subr.mxu0 0.0
      %3463 = vmatpush1.msra.mxu0 0.0
      %3464 = vmatprep.subr.mxu0 0.0
      %3465 = vmatpush1.msra.mxu0 0.0
      %3466 = vmatprep.subr.mxu0 0.0
      %3467 = vmatpush1.msra.mxu0 0.0
      %3468 = vmatprep.subr.mxu0 0.0
      %3469 = vmatpush1.msra.mxu0 0.0
      %3470 = vmatprep.subr.mxu0 0.0
      %3471 = vmatpush1.msra.mxu0 0.0
      %3472 = vmatprep.subr.mxu0 0.0
      %3473 = vmatpush1.msra.mxu0 0.0
      %3474 = vmatprep.subr.mxu0 0.0
      %3475 = vmatpush1.msra.mxu0 0.0
      %3476 = vmatprep.subr.mxu0 0.0
      %3477 = vmatpush1.msra.mxu0 0.0
      %3478 = vmatprep.subr.mxu0 0.0
      %3479 = vmatpush1.msra.mxu0 0.0
      %3480 = vmatprep.subr.mxu0 0.0
      %3481 = vmatpush1.msra.mxu0 0.0
      %3482 = vmatprep.subr.mxu0 0.0
      %3483 = vmatpush1.msra.mxu0 0.0
      %3484 = vmatprep.subr.mxu0 0.0
      %3485 = vmatpush1.msra.mxu0 0.0
      %3486 = vmatprep.subr.mxu0 0.0
      %3487 = vmatpush1.msra.mxu0 0.0
      %3488 = vmatprep.subr.mxu0 0.0
      %3489 = vmatpush1.msra.mxu0 0.0
      %3490 = vmatprep.subr.mxu0 0.0
      %3491 = vmatpush1.msra.mxu0 0.0
      %3492 = vmatprep.mubr.f32.mxu0 0.0
      %3493 = vmatmul.mubr.f32.gmra.mrb[0].mxu0 %v1493
      %v3494 = vpop.f32.mrb[0].mxu0
      %v3495 = vadd.f32 0.0, %v3494
      %v3496 = vpop.f32.mrb[0].mxu0
      %3497 = vmatprep.mubr.f32.mxu0 0.0
      %3498 = vmatmul.mubr.f32.gmra.mrb[0].mxu0 %v1495
      %v3499 = vpop.f32.mrb[0].mxu0
      %v3500 = vadd.f32 0.0, %v3499
      %v3501 = vpop.f32.mrb[0].mxu0
      %3502 = vmatprep.mubr.f32.mxu0 0.0
      %3503 = vmatmul.mubr.f32.gmra.mrb[0].mxu0 %v1497
      %v3504 = vpop.f32.mrb[0].mxu0
      %v3505 = vadd.f32 0.0, %v3504
      %v3506 = vpop.f32.mrb[0].mxu0
      %3507 = vmatprep.mubr.f32.mxu0 0.0
      %3508 = vmatmul.mubr.f32.gmra.mrb[0].mxu0 %v1499
      %v3509 = vpop.f32.mrb[0].mxu0
      %v3510 = vadd.f32 0.0, %v3509
      %v3511 = vpop.f32.mrb[0].mxu0
      %3512 = vmatprep.mubr.f32.mxu0 0.0
      %3513 = vmatmul.mubr.f32.gmra.mrb[0].mxu0 %v1501
      %v3514 = vpop.f32.mrb[0].mxu0
      %v3515 = vadd.f32 0.0, %v3514
      %v3516 = vpop.f32.mrb[0].mxu0
      %3517 = vmatprep.mubr.f32.mxu0 0.0
      %3518 = vmatmul.mubr.f32.gmra.mrb[0].mxu0 %v1503
      %v3519 = vpop.f32.mrb[0].mxu0
      %v3520 = vadd.f32 0.0, %v3519
      %v3521 = vpop.f32.mrb[0].mxu0
      %3522 = vmatprep.mubr.f32.mxu0 0.0
      %3523 = vmatmul.mubr.f32.gmra.mrb[0].mxu0 %v1505
      %v3524 = vpop.f32.mrb[0].mxu0
      %v3525 = vadd.f32 0.0, %v3524
      %v3526 = vpop.f32.mrb[0].mxu0
      %3527 = vmatprep.mubr.f32.mxu0 0.0
      %3528 = vmatmul.mubr.f32.gmra.mrb[0].mxu0 %v1507
      %v3529 = vpop.f32.mrb[0].mxu0
      %v3530 = vadd.f32 0.0, %v3529
      %v3531 = vpop.f32.mrb[0].mxu0
      %3532 = vmatprep.mubr.f32.mxu0 0.0
      %3533 = vmatmul.mubr.f32.gmra.mrb[0].mxu0 %v1509
      %v3534 = vpop.f32.mrb[0].mxu0
      %v3535 = vadd.f32 0.0, %v3534
      %v3536 = vpop.f32.mrb[0].mxu0
      %3537 = vmatprep.mubr.f32.mxu0 0.0
      %3538 = vmatmul.mubr.f32.gmra.mrb[0].mxu0 %v1511
      %v3539 = vpop.f32.mrb[0].mxu0
      %v3540 = vadd.f32 0.0, %v3539
      %v3541 = vpop.f32.mrb[0].mxu0
      %3542 = vmatprep.mubr.f32.mxu0 0.0
      %3543 = vmatmul.mubr.f32.gmra.mrb[0].mxu0 %v1513
      %v3544 = vpop.f32.mrb[0].mxu0
      %v3545 = vadd.f32 0.0, %v3544
      %v3546 = vpop.f32.mrb[0].mxu0
      %3547 = vmatprep.mubr.f32.mxu0 0.0
      %3548 = vmatmul.mubr.f32.gmra.mrb[0].mxu0 %v1515
      %v3549 = vpop.f32.mrb[0].mxu0
      %v3550 = vadd.f32 0.0, %v3549
      %v3551 = vpop.f32.mrb[0].mxu0
      %3552 = vmatprep.mubr.f32.mxu0 0.0
      %3553 = vmatmul.mubr.f32.gmra.mrb[0].mxu0 %v1517
      %v3554 = vpop.f32.mrb[0].mxu0
      %v3555 = vadd.f32 0.0, %v3554
      %v3556 = vpop.f32.mrb[0].mxu0
      %3557 = vmatprep.mubr.f32.mxu0 0.0
      %3558 = vmatmul.mubr.f32.gmra.mrb[0].mxu0 %v1519
      %v3559 = vpop.f32.mrb[0].mxu0
      %v3560 = vadd.f32 0.0, %v3559
      %v3561 = vpop.f32.mrb[0].mxu0
      %3562 = vmatprep.mubr.f32.mxu0 0.0
      %3563 = vmatmul.mubr.f32.gmra.mrb[0].mxu0 %v1521
      %v3564 = vpop.f32.mrb[0].mxu0
      %v3565 = vadd.f32 0.0, %v3564
      %v3566 = vpop.f32.mrb[0].mxu0
      %3567 = vmatprep.mubr.f32.mxu0 0.0
      %3568 = vmatmul.mubr.f32.gmra.mrb[0].mxu0 %v1523
      %v3569 = vpop.f32.mrb[0].mxu0
      %v3570 = vadd.f32 0.0, %v3569
      %v3571 = vpop.f32.mrb[0].mxu0
      %3572 = vmatprep.mubr.f32.mxu0 0.0
      %3573 = vmatmul.mubr.f32.gmra.mrb[0].mxu0 %v1525
      %v3574 = vpop.f32.mrb[0].mxu0
      %v3575 = vadd.f32 0.0, %v3574
      %v3576 = vpop.f32.mrb[0].mxu0
      %3577 = vmatprep.mubr.f32.mxu0 0.0
      %3578 = vmatmul.mubr.f32.gmra.mrb[0].mxu0 %v1527
      %v3579 = vpop.f32.mrb[0].mxu0
      %v3580 = vadd.f32 0.0, %v3579
      %v3581 = vpop.f32.mrb[0].mxu0
      %3582 = vmatprep.mubr.f32.mxu0 0.0
      %3583 = vmatmul.mubr.f32.gmra.mrb[0].mxu0 %v1529
      %v3584 = vpop.f32.mrb[0].mxu0
      %v3585 = vadd.f32 0.0, %v3584
      %v3586 = vpop.f32.mrb[0].mxu0
      %3587 = vmatprep.mubr.f32.mxu0 0.0
      %3588 = vmatmul.mubr.f32.gmra.mrb[0].mxu0 %v1531
      %v3589 = vpop.f32.mrb[0].mxu0
      %v3590 = vadd.f32 0.0, %v3589
      %v3591 = vpop.f32.mrb[0].mxu0
      %3592 = vmatprep.mubr.f32.mxu0 0.0
      %3593 = vmatmul.mubr.f32.gmra.mrb[0].mxu0 %v1533
      %v3594 = vpop.f32.mrb[0].mxu0
      %v3595 = vadd.f32 0.0, %v3594
      %v3596 = vpop.f32.mrb[0].mxu0
      %3597 = vmatprep.mubr.f32.mxu0 0.0
      %3598 = vmatmul.mubr.f32.gmra.mrb[0].mxu0 %v1535
      %v3599 = vpop.f32.mrb[0].mxu0
      %v3600 = vadd.f32 0.0, %v3599
      %v3601 = vpop.f32.mrb[0].mxu0
      %3602 = vmatprep.mubr.f32.mxu0 0.0
      %3603 = vmatmul.mubr.f32.gmra.mrb[0].mxu0 %v1537
      %v3604 = vpop.f32.mrb[0].mxu0
      %v3605 = vadd.f32 0.0, %v3604
      %v3606 = vpop.f32.mrb[0].mxu0
      %3607 = vmatprep.mubr.f32.mxu0 0.0
      %3608 = vmatmul.mubr.f32.gmra.mrb[0].mxu0 %v1539
      %v3609 = vpop.f32.mrb[0].mxu0
      %v3610 = vadd.f32 0.0, %v3609
      %v3611 = vpop.f32.mrb[0].mxu0
      %3612 = vmatprep.mubr.f32.mxu0 0.0
      %3613 = vmatmul.mubr.f32.gmra.mrb[0].mxu0 %v1541
      %v3614 = vpop.f32.mrb[0].mxu0
      %v3615 = vadd.f32 0.0, %v3614
      %v3616 = vpop.f32.mrb[0].mxu0
      %3617 = vmatprep.mubr.f32.mxu0 0.0
      %3618 = vmatmul.mubr.f32.gmra.mrb[0].mxu0 %v1543
      %v3619 = vpop.f32.mrb[0].mxu0
      %v3620 = vadd.f32 0.0, %v3619
      %v3621 = vpop.f32.mrb[0].mxu0
      %3622 = vmatprep.mubr.f32.mxu0 0.0
      %3623 = vmatmul.mubr.f32.gmra.mrb[0].mxu0 %v1545
      %v3624 = vpop.f32.mrb[0].mxu0
      %v3625 = vadd.f32 0.0, %v3624
      %v3626 = vpop.f32.mrb[0].mxu0
      %3627 = vmatprep.mubr.f32.mxu0 0.0
      %3628 = vmatmul.mubr.f32.gmra.mrb[0].mxu0 %v1547
      %v3629 = vpop.f32.mrb[0].mxu0
      %v3630 = vadd.f32 0.0, %v3629
      %v3631 = vpop.f32.mrb[0].mxu0
      %3632 = vmatprep.mubr.f32.mxu0 0.0
      %3633 = vmatmul.mubr.f32.gmra.mrb[0].mxu0 %v1549
      %v3634 = vpop.f32.mrb[0].mxu0
      %v3635 = vadd.f32 0.0, %v3634
      %v3636 = vpop.f32.mrb[0].mxu0
      %3637 = vmatprep.mubr.f32.mxu0 0.0
      %3638 = vmatmul.mubr.f32.gmra.mrb[0].mxu0 %v1551
      %v3639 = vpop.f32.mrb[0].mxu0
      %v3640 = vadd.f32 0.0, %v3639
      %v3641 = vpop.f32.mrb[0].mxu0
      %3642 = vmatprep.mubr.f32.mxu0 0.0
      %3643 = vmatmul.mubr.f32.gmra.mrb[0].mxu0 %v3424
      %v3644 = vpop.f32.mrb[0].mxu0
      %v3645 = vadd.f32 0.0, %v3644
      %v3646 = vpop.f32.mrb[0].mxu0
      %3647 = vmatprep.mubr.f32.mxu0 0.0
      %3648 = vmatmul.mubr.f32.gmra.mrb[0].mxu0 %v3426
      %v3649 = vpop.f32.mrb[0].mxu0
      %v3650 = vadd.f32 0.0, %v3649
      %v3651 = vpop.f32.mrb[0].mxu0
      %3652 = vdwg.mxu0
      %v3653 = vadd.f32 %v3390, %v3495
      %v3654 = vadd.f32 %v3391, %v3500
      %v3655 = vadd.f32 %v3392, %v3505
      %v3656 = vadd.f32 %v3393, %v3510
      %v3657 = vadd.f32 %v3394, %v3515
      %v3658 = vadd.f32 %v3395, %v3520
      %v3659 = vadd.f32 %v3396, %v3525
      %v3660 = vadd.f32 %v3397, %v3530
      %v3661 = vadd.f32 %v3398, %v3535
      %v3662 = vadd.f32 %v3399, %v3540
      %v3663 = vadd.f32 %v3400, %v3545
      %v3664 = vadd.f32 %v3401, %v3550
      %v3665 = vadd.f32 %v3402, %v3555
      %v3666 = vadd.f32 %v3403, %v3560
      %v3667 = vadd.f32 %v3404, %v3565
      %v3668 = vadd.f32 %v3405, %v3570
      %v3669 = vadd.f32 %v3406, %v3575
      %v3670 = vadd.f32 %v3407, %v3580
      %v3671 = vadd.f32 %v3408, %v3585
      %v3672 = vadd.f32 %v3409, %v3590
      %v3673 = vadd.f32 %v3410, %v3595
      %v3674 = vadd.f32 %v3411, %v3600
      %v3675 = vadd.f32 %v3412, %v3605
      %v3676 = vadd.f32 %v3413, %v3610
      %v3677 = vadd.f32 %v3414, %v3615
      %v3678 = vadd.f32 %v3415, %v3620
      %v3679 = vadd.f32 %v3416, %v3625
      %v3680 = vadd.f32 %v3417, %v3630
      %v3681 = vadd.f32 %v3418, %v3635
      %v3682 = vadd.f32 %v3419, %v3640
      %v3683 = vadd.f32 %v3420, %v3645
      %v3684 = vadd.f32 %v3421, %v3650
      %v3685 = vrot.slane %v266, 2
      %v3686 = vrot.slane %v267, 2
      %v3687 = vsel %vm1810, %v3685, %v3686
      %v3688 = vrot.slane %v268, 2
      %v3689 = vsel %vm1810, %v3686, %v3688
      %v3690 = vrot.slane %v320, 2
      %v3691 = vrot.slane %v321, 2
      %v3692 = vsel %vm1810, %v3690, %v3691
      %v3693 = vrot.slane %v322, 2
      %v3694 = vsel %vm1810, %v3691, %v3693
      %s3695 = scalar_lea.vmem %s2, 40
      %v3696 = vld [vmem:[%s3695] sm:$0xff]
      %v3697 = vsel %vm328, %v3687, 0
      %v3699 = vsel %vm328, %v3689, 0
      %3701 = vmatprep.subr.mxu0 0.0
      %3702 = vmatpush1.msra.mxu0 %v3696
      %3703 = vmatprep.subr.mxu0 0.0
      %3704 = vmatpush1.msra.mxu0 0.0
      %3705 = vmatprep.subr.mxu0 0.0
      %3706 = vmatpush1.msra.mxu0 0.0
      %3707 = vmatprep.subr.mxu0 0.0
      %3708 = vmatpush1.msra.mxu0 0.0
      %3709 = vmatprep.subr.mxu0 0.0
      %3710 = vmatpush1.msra.mxu0 0.0
      %3711 = vmatprep.subr.mxu0 0.0
      %3712 = vmatpush1.msra.mxu0 0.0
      %3713 = vmatprep.subr.mxu0 0.0
      %3714 = vmatpush1.msra.mxu0 0.0
      %3715 = vmatprep.subr.mxu0 0.0
      %3716 = vmatpush1.msra.mxu0 0.0
      %3717 = vmatprep.subr.mxu0 0.0
      %3718 = vmatpush1.msra.mxu0 0.0
      %3719 = vmatprep.subr.mxu0 0.0
      %3720 = vmatpush1.msra.mxu0 0.0
      %3721 = vmatprep.subr.mxu0 0.0
      %3722 = vmatpush1.msra.mxu0 0.0
      %3723 = vmatprep.subr.mxu0 0.0
      %3724 = vmatpush1.msra.mxu0 0.0
      %3725 = vmatprep.subr.mxu0 0.0
      %3726 = vmatpush1.msra.mxu0 0.0
      %3727 = vmatprep.subr.mxu0 0.0
      %3728 = vmatpush1.msra.mxu0 0.0
      %3729 = vmatprep.subr.mxu0 0.0
      %3730 = vmatpush1.msra.mxu0 0.0
      %3731 = vmatprep.subr.mxu0 0.0
      %3732 = vmatpush1.msra.mxu0 0.0
      %3733 = vmatprep.subr.mxu0 0.0
      %3734 = vmatpush1.msra.mxu0 0.0
      %3735 = vmatprep.subr.mxu0 0.0
      %3736 = vmatpush1.msra.mxu0 0.0
      %3737 = vmatprep.subr.mxu0 0.0
      %3738 = vmatpush1.msra.mxu0 0.0
      %3739 = vmatprep.subr.mxu0 0.0
      %3740 = vmatpush1.msra.mxu0 0.0
      %3741 = vmatprep.subr.mxu0 0.0
      %3742 = vmatpush1.msra.mxu0 0.0
      %3743 = vmatprep.subr.mxu0 0.0
      %3744 = vmatpush1.msra.mxu0 0.0
      %3745 = vmatprep.subr.mxu0 0.0
      %3746 = vmatpush1.msra.mxu0 0.0
      %3747 = vmatprep.subr.mxu0 0.0
      %3748 = vmatpush1.msra.mxu0 0.0
      %3749 = vmatprep.subr.mxu0 0.0
      %3750 = vmatpush1.msra.mxu0 0.0
      %3751 = vmatprep.subr.mxu0 0.0
      %3752 = vmatpush1.msra.mxu0 0.0
      %3753 = vmatprep.subr.mxu0 0.0
      %3754 = vmatpush1.msra.mxu0 0.0
      %3755 = vmatprep.subr.mxu0 0.0
      %3756 = vmatpush1.msra.mxu0 0.0
      %3757 = vmatprep.subr.mxu0 0.0
      %3758 = vmatpush1.msra.mxu0 0.0
      %3759 = vmatprep.subr.mxu0 0.0
      %3760 = vmatpush1.msra.mxu0 0.0
      %3761 = vmatprep.subr.mxu0 0.0
      %3762 = vmatpush1.msra.mxu0 0.0
      %3763 = vmatprep.subr.mxu0 0.0
      %3764 = vmatpush1.msra.mxu0 0.0
      %3765 = vmatprep.mubr.f32.mxu0 0.0
      %3766 = vmatmul.mubr.f32.gmra.mrb[0].mxu0 %v1977
      %v3767 = vpop.f32.mrb[0].mxu0
      %v3768 = vadd.f32 0.0, %v3767
      %v3769 = vpop.f32.mrb[0].mxu0
      %3770 = vmatprep.mubr.f32.mxu0 0.0
      %3771 = vmatmul.mubr.f32.gmra.mrb[0].mxu0 %v1979
      %v3772 = vpop.f32.mrb[0].mxu0
      %v3773 = vadd.f32 0.0, %v3772
      %v3774 = vpop.f32.mrb[0].mxu0
      %3775 = vmatprep.mubr.f32.mxu0 0.0
      %3776 = vmatmul.mubr.f32.gmra.mrb[0].mxu0 %v1981
      %v3777 = vpop.f32.mrb[0].mxu0
      %v3778 = vadd.f32 0.0, %v3777
      %v3779 = vpop.f32.mrb[0].mxu0
      %3780 = vmatprep.mubr.f32.mxu0 0.0
      %3781 = vmatmul.mubr.f32.gmra.mrb[0].mxu0 %v1983
      %v3782 = vpop.f32.mrb[0].mxu0
      %v3783 = vadd.f32 0.0, %v3782
      %v3784 = vpop.f32.mrb[0].mxu0
      %3785 = vmatprep.mubr.f32.mxu0 0.0
      %3786 = vmatmul.mubr.f32.gmra.mrb[0].mxu0 %v1985
      %v3787 = vpop.f32.mrb[0].mxu0
      %v3788 = vadd.f32 0.0, %v3787
      %v3789 = vpop.f32.mrb[0].mxu0
      %3790 = vmatprep.mubr.f32.mxu0 0.0
      %3791 = vmatmul.mubr.f32.gmra.mrb[0].mxu0 %v1987
      %v3792 = vpop.f32.mrb[0].mxu0
      %v3793 = vadd.f32 0.0, %v3792
      %v3794 = vpop.f32.mrb[0].mxu0
      %3795 = vmatprep.mubr.f32.mxu0 0.0
      %3796 = vmatmul.mubr.f32.gmra.mrb[0].mxu0 %v1989
      %v3797 = vpop.f32.mrb[0].mxu0
      %v3798 = vadd.f32 0.0, %v3797
      %v3799 = vpop.f32.mrb[0].mxu0
      %3800 = vmatprep.mubr.f32.mxu0 0.0
      %3801 = vmatmul.mubr.f32.gmra.mrb[0].mxu0 %v1991
      %v3802 = vpop.f32.mrb[0].mxu0
      %v3803 = vadd.f32 0.0, %v3802
      %v3804 = vpop.f32.mrb[0].mxu0
      %3805 = vmatprep.mubr.f32.mxu0 0.0
      %3806 = vmatmul.mubr.f32.gmra.mrb[0].mxu0 %v1993
      %v3807 = vpop.f32.mrb[0].mxu0
      %v3808 = vadd.f32 0.0, %v3807
      %v3809 = vpop.f32.mrb[0].mxu0
      %3810 = vmatprep.mubr.f32.mxu0 0.0
      %3811 = vmatmul.mubr.f32.gmra.mrb[0].mxu0 %v1995
      %v3812 = vpop.f32.mrb[0].mxu0
      %v3813 = vadd.f32 0.0, %v3812
      %v3814 = vpop.f32.mrb[0].mxu0
      %3815 = vmatprep.mubr.f32.mxu0 0.0
      %3816 = vmatmul.mubr.f32.gmra.mrb[0].mxu0 %v1997
      %v3817 = vpop.f32.mrb[0].mxu0
      %v3818 = vadd.f32 0.0, %v3817
      %v3819 = vpop.f32.mrb[0].mxu0
      %3820 = vmatprep.mubr.f32.mxu0 0.0
      %3821 = vmatmul.mubr.f32.gmra.mrb[0].mxu0 %v1999
      %v3822 = vpop.f32.mrb[0].mxu0
      %v3823 = vadd.f32 0.0, %v3822
      %v3824 = vpop.f32.mrb[0].mxu0
      %3825 = vmatprep.mubr.f32.mxu0 0.0
      %3826 = vmatmul.mubr.f32.gmra.mrb[0].mxu0 %v2001
      %v3827 = vpop.f32.mrb[0].mxu0
      %v3828 = vadd.f32 0.0, %v3827
      %v3829 = vpop.f32.mrb[0].mxu0
      %3830 = vmatprep.mubr.f32.mxu0 0.0
      %3831 = vmatmul.mubr.f32.gmra.mrb[0].mxu0 %v2003
      %v3832 = vpop.f32.mrb[0].mxu0
      %v3833 = vadd.f32 0.0, %v3832
      %v3834 = vpop.f32.mrb[0].mxu0
      %3835 = vmatprep.mubr.f32.mxu0 0.0
      %3836 = vmatmul.mubr.f32.gmra.mrb[0].mxu0 %v2005
      %v3837 = vpop.f32.mrb[0].mxu0
      %v3838 = vadd.f32 0.0, %v3837
      %v3839 = vpop.f32.mrb[0].mxu0
      %3840 = vmatprep.mubr.f32.mxu0 0.0
      %3841 = vmatmul.mubr.f32.gmra.mrb[0].mxu0 %v2007
      %v3842 = vpop.f32.mrb[0].mxu0
      %v3843 = vadd.f32 0.0, %v3842
      %v3844 = vpop.f32.mrb[0].mxu0
      %3845 = vmatprep.mubr.f32.mxu0 0.0
      %3846 = vmatmul.mubr.f32.gmra.mrb[0].mxu0 %v2009
      %v3847 = vpop.f32.mrb[0].mxu0
      %v3848 = vadd.f32 0.0, %v3847
      %v3849 = vpop.f32.mrb[0].mxu0
      %3850 = vmatprep.mubr.f32.mxu0 0.0
      %3851 = vmatmul.mubr.f32.gmra.mrb[0].mxu0 %v2011
      %v3852 = vpop.f32.mrb[0].mxu0
      %v3853 = vadd.f32 0.0, %v3852
      %v3854 = vpop.f32.mrb[0].mxu0
      %3855 = vmatprep.mubr.f32.mxu0 0.0
      %3856 = vmatmul.mubr.f32.gmra.mrb[0].mxu0 %v2013
      %v3857 = vpop.f32.mrb[0].mxu0
      %v3858 = vadd.f32 0.0, %v3857
      %v3859 = vpop.f32.mrb[0].mxu0
      %3860 = vmatprep.mubr.f32.mxu0 0.0
      %3861 = vmatmul.mubr.f32.gmra.mrb[0].mxu0 %v2015
      %v3862 = vpop.f32.mrb[0].mxu0
      %v3863 = vadd.f32 0.0, %v3862
      %v3864 = vpop.f32.mrb[0].mxu0
      %3865 = vmatprep.mubr.f32.mxu0 0.0
      %3866 = vmatmul.mubr.f32.gmra.mrb[0].mxu0 %v2017
      %v3867 = vpop.f32.mrb[0].mxu0
      %v3868 = vadd.f32 0.0, %v3867
      %v3869 = vpop.f32.mrb[0].mxu0
      %3870 = vmatprep.mubr.f32.mxu0 0.0
      %3871 = vmatmul.mubr.f32.gmra.mrb[0].mxu0 %v2019
      %v3872 = vpop.f32.mrb[0].mxu0
      %v3873 = vadd.f32 0.0, %v3872
      %v3874 = vpop.f32.mrb[0].mxu0
      %3875 = vmatprep.mubr.f32.mxu0 0.0
      %3876 = vmatmul.mubr.f32.gmra.mrb[0].mxu0 %v2021
      %v3877 = vpop.f32.mrb[0].mxu0
      %v3878 = vadd.f32 0.0, %v3877
      %v3879 = vpop.f32.mrb[0].mxu0
      %3880 = vmatprep.mubr.f32.mxu0 0.0
      %3881 = vmatmul.mubr.f32.gmra.mrb[0].mxu0 %v2023
      %v3882 = vpop.f32.mrb[0].mxu0
      %v3883 = vadd.f32 0.0, %v3882
      %v3884 = vpop.f32.mrb[0].mxu0
      %3885 = vmatprep.mubr.f32.mxu0 0.0
      %3886 = vmatmul.mubr.f32.gmra.mrb[0].mxu0 %v2025
      %v3887 = vpop.f32.mrb[0].mxu0
      %v3888 = vadd.f32 0.0, %v3887
      %v3889 = vpop.f32.mrb[0].mxu0
      %3890 = vmatprep.mubr.f32.mxu0 0.0
      %3891 = vmatmul.mubr.f32.gmra.mrb[0].mxu0 %v2027
      %v3892 = vpop.f32.mrb[0].mxu0
      %v3893 = vadd.f32 0.0, %v3892
      %v3894 = vpop.f32.mrb[0].mxu0
      %3895 = vmatprep.mubr.f32.mxu0 0.0
      %3896 = vmatmul.mubr.f32.gmra.mrb[0].mxu0 %v2029
      %v3897 = vpop.f32.mrb[0].mxu0
      %v3898 = vadd.f32 0.0, %v3897
      %v3899 = vpop.f32.mrb[0].mxu0
      %3900 = vmatprep.mubr.f32.mxu0 0.0
      %3901 = vmatmul.mubr.f32.gmra.mrb[0].mxu0 %v2031
      %v3902 = vpop.f32.mrb[0].mxu0
      %v3903 = vadd.f32 0.0, %v3902
      %v3904 = vpop.f32.mrb[0].mxu0
      %3905 = vmatprep.mubr.f32.mxu0 0.0
      %3906 = vmatmul.mubr.f32.gmra.mrb[0].mxu0 %v2033
      %v3907 = vpop.f32.mrb[0].mxu0
      %v3908 = vadd.f32 0.0, %v3907
      %v3909 = vpop.f32.mrb[0].mxu0
      %3910 = vmatprep.mubr.f32.mxu0 0.0
      %3911 = vmatmul.mubr.f32.gmra.mrb[0].mxu0 %v2035
      %v3912 = vpop.f32.mrb[0].mxu0
      %v3913 = vadd.f32 0.0, %v3912
      %v3914 = vpop.f32.mrb[0].mxu0
      %3915 = vmatprep.mubr.f32.mxu0 0.0
      %3916 = vmatmul.mubr.f32.gmra.mrb[0].mxu0 %v3697
      %v3917 = vpop.f32.mrb[0].mxu0
      %v3918 = vadd.f32 0.0, %v3917
      %v3919 = vpop.f32.mrb[0].mxu0
      %3920 = vmatprep.mubr.f32.mxu0 0.0
      %3921 = vmatmul.mubr.f32.gmra.mrb[0].mxu0 %v3699
      %v3922 = vpop.f32.mrb[0].mxu0
      %v3923 = vadd.f32 0.0, %v3922
      %v3924 = vpop.f32.mrb[0].mxu0
      %3925 = vdwg.mxu0
      %v3926 = vadd.f32 %v3653, %v3768
      %v3927 = vadd.f32 %v3654, %v3773
      %v3928 = vadd.f32 %v3655, %v3778
      %v3929 = vadd.f32 %v3656, %v3783
      %v3930 = vadd.f32 %v3657, %v3788
      %v3931 = vadd.f32 %v3658, %v3793
      %v3932 = vadd.f32 %v3659, %v3798
      %v3933 = vadd.f32 %v3660, %v3803
      %v3934 = vadd.f32 %v3661, %v3808
      %v3935 = vadd.f32 %v3662, %v3813
      %v3936 = vadd.f32 %v3663, %v3818
      %v3937 = vadd.f32 %v3664, %v3823
      %v3938 = vadd.f32 %v3665, %v3828
      %v3939 = vadd.f32 %v3666, %v3833
      %v3940 = vadd.f32 %v3667, %v3838
      %v3941 = vadd.f32 %v3668, %v3843
      %v3942 = vadd.f32 %v3669, %v3848
      %v3943 = vadd.f32 %v3670, %v3853
      %v3944 = vadd.f32 %v3671, %v3858
      %v3945 = vadd.f32 %v3672, %v3863
      %v3946 = vadd.f32 %v3673, %v3868
      %v3947 = vadd.f32 %v3674, %v3873
      %v3948 = vadd.f32 %v3675, %v3878
      %v3949 = vadd.f32 %v3676, %v3883
      %v3950 = vadd.f32 %v3677, %v3888
      %v3951 = vadd.f32 %v3678, %v3893
      %v3952 = vadd.f32 %v3679, %v3898
      %v3953 = vadd.f32 %v3680, %v3903
      %v3954 = vadd.f32 %v3681, %v3908
      %v3955 = vadd.f32 %v3682, %v3913
      %v3956 = vadd.f32 %v3683, %v3918
      %v3957 = vadd.f32 %v3684, %v3923
      %s3958 = scalar_lea.vmem %s3, 40
      %v3959 = vld [vmem:[%s3958] sm:$0xff]
      %v3960 = vsel %vm328, %v3692, 0
      %v3962 = vsel %vm328, %v3694, 0
      %3964 = vmatprep.subr.mxu0 0.0
      %3965 = vmatpush1.msra.mxu0 %v3959
      %3966 = vmatprep.subr.mxu0 0.0
      %3967 = vmatpush1.msra.mxu0 0.0
      %3968 = vmatprep.subr.mxu0 0.0
      %3969 = vmatpush1.msra.mxu0 0.0
      %3970 = vmatprep.subr.mxu0 0.0
      %3971 = vmatpush1.msra.mxu0 0.0
      %3972 = vmatprep.subr.mxu0 0.0
      %3973 = vmatpush1.msra.mxu0 0.0
      %3974 = vmatprep.subr.mxu0 0.0
      %3975 = vmatpush1.msra.mxu0 0.0
      %3976 = vmatprep.subr.mxu0 0.0
      %3977 = vmatpush1.msra.mxu0 0.0
      %3978 = vmatprep.subr.mxu0 0.0
      %3979 = vmatpush1.msra.mxu0 0.0
      %3980 = vmatprep.subr.mxu0 0.0
      %3981 = vmatpush1.msra.mxu0 0.0
      %3982 = vmatprep.subr.mxu0 0.0
      %3983 = vmatpush1.msra.mxu0 0.0
      %3984 = vmatprep.subr.mxu0 0.0
      %3985 = vmatpush1.msra.mxu0 0.0
      %3986 = vmatprep.subr.mxu0 0.0
      %3987 = vmatpush1.msra.mxu0 0.0
      %3988 = vmatprep.subr.mxu0 0.0
      %3989 = vmatpush1.msra.mxu0 0.0
      %3990 = vmatprep.subr.mxu0 0.0
      %3991 = vmatpush1.msra.mxu0 0.0
      %3992 = vmatprep.subr.mxu0 0.0
      %3993 = vmatpush1.msra.mxu0 0.0
      %3994 = vmatprep.subr.mxu0 0.0
      %3995 = vmatpush1.msra.mxu0 0.0
      %3996 = vmatprep.subr.mxu0 0.0
      %3997 = vmatpush1.msra.mxu0 0.0
      %3998 = vmatprep.subr.mxu0 0.0
      %3999 = vmatpush1.msra.mxu0 0.0
      %4000 = vmatprep.subr.mxu0 0.0
      %4001 = vmatpush1.msra.mxu0 0.0
      %4002 = vmatprep.subr.mxu0 0.0
      %4003 = vmatpush1.msra.mxu0 0.0
      %4004 = vmatprep.subr.mxu0 0.0
      %4005 = vmatpush1.msra.mxu0 0.0
      %4006 = vmatprep.subr.mxu0 0.0
      %4007 = vmatpush1.msra.mxu0 0.0
      %4008 = vmatprep.subr.mxu0 0.0
      %4009 = vmatpush1.msra.mxu0 0.0
      %4010 = vmatprep.subr.mxu0 0.0
      %4011 = vmatpush1.msra.mxu0 0.0
      %4012 = vmatprep.subr.mxu0 0.0
      %4013 = vmatpush1.msra.mxu0 0.0
      %4014 = vmatprep.subr.mxu0 0.0
      %4015 = vmatpush1.msra.mxu0 0.0
      %4016 = vmatprep.subr.mxu0 0.0
      %4017 = vmatpush1.msra.mxu0 0.0
      %4018 = vmatprep.subr.mxu0 0.0
      %4019 = vmatpush1.msra.mxu0 0.0
      %4020 = vmatprep.subr.mxu0 0.0
      %4021 = vmatpush1.msra.mxu0 0.0
      %4022 = vmatprep.subr.mxu0 0.0
      %4023 = vmatpush1.msra.mxu0 0.0
      %4024 = vmatprep.subr.mxu0 0.0
      %4025 = vmatpush1.msra.mxu0 0.0
      %4026 = vmatprep.subr.mxu0 0.0
      %4027 = vmatpush1.msra.mxu0 0.0
      %4028 = vmatprep.mubr.f32.mxu0 0.0
      %4029 = vmatmul.mubr.f32.gmra.mrb[0].mxu0 %v2300
      %v4030 = vpop.f32.mrb[0].mxu0
      %v4031 = vadd.f32 0.0, %v4030
      %v4032 = vpop.f32.mrb[0].mxu0
      %4033 = vmatprep.mubr.f32.mxu0 0.0
      %4034 = vmatmul.mubr.f32.gmra.mrb[0].mxu0 %v2302
      %v4035 = vpop.f32.mrb[0].mxu0
      %v4036 = vadd.f32 0.0, %v4035
      %v4037 = vpop.f32.mrb[0].mxu0
      %4038 = vmatprep.mubr.f32.mxu0 0.0
      %4039 = vmatmul.mubr.f32.gmra.mrb[0].mxu0 %v2304
      %v4040 = vpop.f32.mrb[0].mxu0
      %v4041 = vadd.f32 0.0, %v4040
      %v4042 = vpop.f32.mrb[0].mxu0
      %4043 = vmatprep.mubr.f32.mxu0 0.0
      %4044 = vmatmul.mubr.f32.gmra.mrb[0].mxu0 %v2306
      %v4045 = vpop.f32.mrb[0].mxu0
      %v4046 = vadd.f32 0.0, %v4045
      %v4047 = vpop.f32.mrb[0].mxu0
      %4048 = vmatprep.mubr.f32.mxu0 0.0
      %4049 = vmatmul.mubr.f32.gmra.mrb[0].mxu0 %v2308
      %v4050 = vpop.f32.mrb[0].mxu0
      %v4051 = vadd.f32 0.0, %v4050
      %v4052 = vpop.f32.mrb[0].mxu0
      %4053 = vmatprep.mubr.f32.mxu0 0.0
      %4054 = vmatmul.mubr.f32.gmra.mrb[0].mxu0 %v2310
      %v4055 = vpop.f32.mrb[0].mxu0
      %v4056 = vadd.f32 0.0, %v4055
      %v4057 = vpop.f32.mrb[0].mxu0
      %4058 = vmatprep.mubr.f32.mxu0 0.0
      %4059 = vmatmul.mubr.f32.gmra.mrb[0].mxu0 %v2312
      %v4060 = vpop.f32.mrb[0].mxu0
      %v4061 = vadd.f32 0.0, %v4060
      %v4062 = vpop.f32.mrb[0].mxu0
      %4063 = vmatprep.mubr.f32.mxu0 0.0
      %4064 = vmatmul.mubr.f32.gmra.mrb[0].mxu0 %v2314
      %v4065 = vpop.f32.mrb[0].mxu0
      %v4066 = vadd.f32 0.0, %v4065
      %v4067 = vpop.f32.mrb[0].mxu0
      %4068 = vmatprep.mubr.f32.mxu0 0.0
      %4069 = vmatmul.mubr.f32.gmra.mrb[0].mxu0 %v2316
      %v4070 = vpop.f32.mrb[0].mxu0
      %v4071 = vadd.f32 0.0, %v4070
      %v4072 = vpop.f32.mrb[0].mxu0
      %4073 = vmatprep.mubr.f32.mxu0 0.0
      %4074 = vmatmul.mubr.f32.gmra.mrb[0].mxu0 %v2318
      %v4075 = vpop.f32.mrb[0].mxu0
      %v4076 = vadd.f32 0.0, %v4075
      %v4077 = vpop.f32.mrb[0].mxu0
      %4078 = vmatprep.mubr.f32.mxu0 0.0
      %4079 = vmatmul.mubr.f32.gmra.mrb[0].mxu0 %v2320
      %v4080 = vpop.f32.mrb[0].mxu0
      %v4081 = vadd.f32 0.0, %v4080
      %v4082 = vpop.f32.mrb[0].mxu0
      %4083 = vmatprep.mubr.f32.mxu0 0.0
      %4084 = vmatmul.mubr.f32.gmra.mrb[0].mxu0 %v2322
      %v4085 = vpop.f32.mrb[0].mxu0
      %v4086 = vadd.f32 0.0, %v4085
      %v4087 = vpop.f32.mrb[0].mxu0
      %4088 = vmatprep.mubr.f32.mxu0 0.0
      %4089 = vmatmul.mubr.f32.gmra.mrb[0].mxu0 %v2324
      %v4090 = vpop.f32.mrb[0].mxu0
      %v4091 = vadd.f32 0.0, %v4090
      %v4092 = vpop.f32.mrb[0].mxu0
      %4093 = vmatprep.mubr.f32.mxu0 0.0
      %4094 = vmatmul.mubr.f32.gmra.mrb[0].mxu0 %v2326
      %v4095 = vpop.f32.mrb[0].mxu0
      %v4096 = vadd.f32 0.0, %v4095
      %v4097 = vpop.f32.mrb[0].mxu0
      %4098 = vmatprep.mubr.f32.mxu0 0.0
      %4099 = vmatmul.mubr.f32.gmra.mrb[0].mxu0 %v2328
      %v4100 = vpop.f32.mrb[0].mxu0
      %v4101 = vadd.f32 0.0, %v4100
      %v4102 = vpop.f32.mrb[0].mxu0
      %4103 = vmatprep.mubr.f32.mxu0 0.0
      %4104 = vmatmul.mubr.f32.gmra.mrb[0].mxu0 %v2330
      %v4105 = vpop.f32.mrb[0].mxu0
      %v4106 = vadd.f32 0.0, %v4105
      %v4107 = vpop.f32.mrb[0].mxu0
      %4108 = vmatprep.mubr.f32.mxu0 0.0
      %4109 = vmatmul.mubr.f32.gmra.mrb[0].mxu0 %v2332
      %v4110 = vpop.f32.mrb[0].mxu0
      %v4111 = vadd.f32 0.0, %v4110
      %v4112 = vpop.f32.mrb[0].mxu0
      %4113 = vmatprep.mubr.f32.mxu0 0.0
      %4114 = vmatmul.mubr.f32.gmra.mrb[0].mxu0 %v2334
      %v4115 = vpop.f32.mrb[0].mxu0
      %v4116 = vadd.f32 0.0, %v4115
      %v4117 = vpop.f32.mrb[0].mxu0
      %4118 = vmatprep.mubr.f32.mxu0 0.0
      %4119 = vmatmul.mubr.f32.gmra.mrb[0].mxu0 %v2336
      %v4120 = vpop.f32.mrb[0].mxu0
      %v4121 = vadd.f32 0.0, %v4120
      %v4122 = vpop.f32.mrb[0].mxu0
      %4123 = vmatprep.mubr.f32.mxu0 0.0
      %4124 = vmatmul.mubr.f32.gmra.mrb[0].mxu0 %v2338
      %v4125 = vpop.f32.mrb[0].mxu0
      %v4126 = vadd.f32 0.0, %v4125
      %v4127 = vpop.f32.mrb[0].mxu0
      %4128 = vmatprep.mubr.f32.mxu0 0.0
      %4129 = vmatmul.mubr.f32.gmra.mrb[0].mxu0 %v2340
      %v4130 = vpop.f32.mrb[0].mxu0
      %v4131 = vadd.f32 0.0, %v4130
      %v4132 = vpop.f32.mrb[0].mxu0
      %4133 = vmatprep.mubr.f32.mxu0 0.0
      %4134 = vmatmul.mubr.f32.gmra.mrb[0].mxu0 %v2342
      %v4135 = vpop.f32.mrb[0].mxu0
      %v4136 = vadd.f32 0.0, %v4135
      %v4137 = vpop.f32.mrb[0].mxu0
      %4138 = vmatprep.mubr.f32.mxu0 0.0
      %4139 = vmatmul.mubr.f32.gmra.mrb[0].mxu0 %v2344
      %v4140 = vpop.f32.mrb[0].mxu0
      %v4141 = vadd.f32 0.0, %v4140
      %v4142 = vpop.f32.mrb[0].mxu0
      %4143 = vmatprep.mubr.f32.mxu0 0.0
      %4144 = vmatmul.mubr.f32.gmra.mrb[0].mxu0 %v2346
      %v4145 = vpop.f32.mrb[0].mxu0
      %v4146 = vadd.f32 0.0, %v4145
      %v4147 = vpop.f32.mrb[0].mxu0
      %4148 = vmatprep.mubr.f32.mxu0 0.0
      %4149 = vmatmul.mubr.f32.gmra.mrb[0].mxu0 %v2348
      %v4150 = vpop.f32.mrb[0].mxu0
      %v4151 = vadd.f32 0.0, %v4150
      %v4152 = vpop.f32.mrb[0].mxu0
      %4153 = vmatprep.mubr.f32.mxu0 0.0
      %4154 = vmatmul.mubr.f32.gmra.mrb[0].mxu0 %v2350
      %v4155 = vpop.f32.mrb[0].mxu0
      %v4156 = vadd.f32 0.0, %v4155
      %v4157 = vpop.f32.mrb[0].mxu0
      %4158 = vmatprep.mubr.f32.mxu0 0.0
      %4159 = vmatmul.mubr.f32.gmra.mrb[0].mxu0 %v2352
      %v4160 = vpop.f32.mrb[0].mxu0
      %v4161 = vadd.f32 0.0, %v4160
      %v4162 = vpop.f32.mrb[0].mxu0
      %4163 = vmatprep.mubr.f32.mxu0 0.0
      %4164 = vmatmul.mubr.f32.gmra.mrb[0].mxu0 %v2354
      %v4165 = vpop.f32.mrb[0].mxu0
      %v4166 = vadd.f32 0.0, %v4165
      %v4167 = vpop.f32.mrb[0].mxu0
      %4168 = vmatprep.mubr.f32.mxu0 0.0
      %4169 = vmatmul.mubr.f32.gmra.mrb[0].mxu0 %v2356
      %v4170 = vpop.f32.mrb[0].mxu0
      %v4171 = vadd.f32 0.0, %v4170
      %v4172 = vpop.f32.mrb[0].mxu0
      %4173 = vmatprep.mubr.f32.mxu0 0.0
      %4174 = vmatmul.mubr.f32.gmra.mrb[0].mxu0 %v2358
      %v4175 = vpop.f32.mrb[0].mxu0
      %v4176 = vadd.f32 0.0, %v4175
      %v4177 = vpop.f32.mrb[0].mxu0
      %4178 = vmatprep.mubr.f32.mxu0 0.0
      %4179 = vmatmul.mubr.f32.gmra.mrb[0].mxu0 %v3960
      %v4180 = vpop.f32.mrb[0].mxu0
      %v4181 = vadd.f32 0.0, %v4180
      %v4182 = vpop.f32.mrb[0].mxu0
      %4183 = vmatprep.mubr.f32.mxu0 0.0
      %4184 = vmatmul.mubr.f32.gmra.mrb[0].mxu0 %v3962
      %v4185 = vpop.f32.mrb[0].mxu0
      %v4186 = vadd.f32 0.0, %v4185
      %v4187 = vpop.f32.mrb[0].mxu0
      %4188 = vdwg.mxu0
      %v4189 = vadd.f32 %v3926, %v4031
      %v4190 = vadd.f32 %v3927, %v4036
      %v4191 = vadd.f32 %v3928, %v4041
      %v4192 = vadd.f32 %v3929, %v4046
      %v4193 = vadd.f32 %v3930, %v4051
      %v4194 = vadd.f32 %v3931, %v4056
      %v4195 = vadd.f32 %v3932, %v4061
      %v4196 = vadd.f32 %v3933, %v4066
      %v4197 = vadd.f32 %v3934, %v4071
      %v4198 = vadd.f32 %v3935, %v4076
      %v4199 = vadd.f32 %v3936, %v4081
      %v4200 = vadd.f32 %v3937, %v4086
      %v4201 = vadd.f32 %v3938, %v4091
      %v4202 = vadd.f32 %v3939, %v4096
      %v4203 = vadd.f32 %v3940, %v4101
      %v4204 = vadd.f32 %v3941, %v4106
      %v4205 = vadd.f32 %v3942, %v4111
      %v4206 = vadd.f32 %v3943, %v4116
      %v4207 = vadd.f32 %v3944, %v4121
      %v4208 = vadd.f32 %v3945, %v4126
      %v4209 = vadd.f32 %v3946, %v4131
      %v4210 = vadd.f32 %v3947, %v4136
      %v4211 = vadd.f32 %v3948, %v4141
      %v4212 = vadd.f32 %v3949, %v4146
      %v4213 = vadd.f32 %v3950, %v4151
      %v4214 = vadd.f32 %v3951, %v4156
      %v4215 = vadd.f32 %v3952, %v4161
      %v4216 = vadd.f32 %v3953, %v4166
      %v4217 = vadd.f32 %v3954, %v4171
      %v4218 = vadd.f32 %v3955, %v4176
      %v4219 = vadd.f32 %v3956, %v4181
      %v4220 = vadd.f32 %v3957, %v4186
      %s4221 = scalar_lea.vmem %s2, 48
      %v4222 = vld [vmem:[%s4221] sm:$0xff]
      %v4224 = vsel %vm328, %v269, 0
      %v4227 = vsel %vm328, %v270, 0
      %4229 = vmatprep.subr.mxu0 0.0
      %4230 = vmatpush1.msra.mxu0 %v4222
      %4231 = vmatprep.subr.mxu0 0.0
      %4232 = vmatpush1.msra.mxu0 0.0
      %4233 = vmatprep.subr.mxu0 0.0
      %4234 = vmatpush1.msra.mxu0 0.0
      %4235 = vmatprep.subr.mxu0 0.0
      %4236 = vmatpush1.msra.mxu0 0.0
      %4237 = vmatprep.subr.mxu0 0.0
      %4238 = vmatpush1.msra.mxu0 0.0
      %4239 = vmatprep.subr.mxu0 0.0
      %4240 = vmatpush1.msra.mxu0 0.0
      %4241 = vmatprep.subr.mxu0 0.0
      %4242 = vmatpush1.msra.mxu0 0.0
      %4243 = vmatprep.subr.mxu0 0.0
      %4244 = vmatpush1.msra.mxu0 0.0
      %4245 = vmatprep.subr.mxu0 0.0
      %4246 = vmatpush1.msra.mxu0 0.0
      %4247 = vmatprep.subr.mxu0 0.0
      %4248 = vmatpush1.msra.mxu0 0.0
      %4249 = vmatprep.subr.mxu0 0.0
      %4250 = vmatpush1.msra.mxu0 0.0
      %4251 = vmatprep.subr.mxu0 0.0
      %4252 = vmatpush1.msra.mxu0 0.0
      %4253 = vmatprep.subr.mxu0 0.0
      %4254 = vmatpush1.msra.mxu0 0.0
      %4255 = vmatprep.subr.mxu0 0.0
      %4256 = vmatpush1.msra.mxu0 0.0
      %4257 = vmatprep.subr.mxu0 0.0
      %4258 = vmatpush1.msra.mxu0 0.0
      %4259 = vmatprep.subr.mxu0 0.0
      %4260 = vmatpush1.msra.mxu0 0.0
      %4261 = vmatprep.subr.mxu0 0.0
      %4262 = vmatpush1.msra.mxu0 0.0
      %4263 = vmatprep.subr.mxu0 0.0
      %4264 = vmatpush1.msra.mxu0 0.0
      %4265 = vmatprep.subr.mxu0 0.0
      %4266 = vmatpush1.msra.mxu0 0.0
      %4267 = vmatprep.subr.mxu0 0.0
      %4268 = vmatpush1.msra.mxu0 0.0
      %4269 = vmatprep.subr.mxu0 0.0
      %4270 = vmatpush1.msra.mxu0 0.0
      %4271 = vmatprep.subr.mxu0 0.0
      %4272 = vmatpush1.msra.mxu0 0.0
      %4273 = vmatprep.subr.mxu0 0.0
      %4274 = vmatpush1.msra.mxu0 0.0
      %4275 = vmatprep.subr.mxu0 0.0
      %4276 = vmatpush1.msra.mxu0 0.0
      %4277 = vmatprep.subr.mxu0 0.0
      %4278 = vmatpush1.msra.mxu0 0.0
      %4279 = vmatprep.subr.mxu0 0.0
      %4280 = vmatpush1.msra.mxu0 0.0
      %4281 = vmatprep.subr.mxu0 0.0
      %4282 = vmatpush1.msra.mxu0 0.0
      %4283 = vmatprep.subr.mxu0 0.0
      %4284 = vmatpush1.msra.mxu0 0.0
      %4285 = vmatprep.subr.mxu0 0.0
      %4286 = vmatpush1.msra.mxu0 0.0
      %4287 = vmatprep.subr.mxu0 0.0
      %4288 = vmatpush1.msra.mxu0 0.0
      %4289 = vmatprep.subr.mxu0 0.0
      %4290 = vmatpush1.msra.mxu0 0.0
      %4291 = vmatprep.subr.mxu0 0.0
      %4292 = vmatpush1.msra.mxu0 0.0
      %4293 = vmatprep.mubr.f32.mxu0 0.0
      %4294 = vmatmul.mubr.f32.gmra.mrb[0].mxu0 %v663
      %v4295 = vpop.f32.mrb[0].mxu0
      %v4296 = vadd.f32 0.0, %v4295
      %v4297 = vpop.f32.mrb[0].mxu0
      %4298 = vmatprep.mubr.f32.mxu0 0.0
      %4299 = vmatmul.mubr.f32.gmra.mrb[0].mxu0 %v666
      %v4300 = vpop.f32.mrb[0].mxu0
      %v4301 = vadd.f32 0.0, %v4300
      %v4302 = vpop.f32.mrb[0].mxu0
      %4303 = vmatprep.mubr.f32.mxu0 0.0
      %4304 = vmatmul.mubr.f32.gmra.mrb[0].mxu0 %v669
      %v4305 = vpop.f32.mrb[0].mxu0
      %v4306 = vadd.f32 0.0, %v4305
      %v4307 = vpop.f32.mrb[0].mxu0
      %4308 = vmatprep.mubr.f32.mxu0 0.0
      %4309 = vmatmul.mubr.f32.gmra.mrb[0].mxu0 %v672
      %v4310 = vpop.f32.mrb[0].mxu0
      %v4311 = vadd.f32 0.0, %v4310
      %v4312 = vpop.f32.mrb[0].mxu0
      %4313 = vmatprep.mubr.f32.mxu0 0.0
      %4314 = vmatmul.mubr.f32.gmra.mrb[0].mxu0 %v675
      %v4315 = vpop.f32.mrb[0].mxu0
      %v4316 = vadd.f32 0.0, %v4315
      %v4317 = vpop.f32.mrb[0].mxu0
      %4318 = vmatprep.mubr.f32.mxu0 0.0
      %4319 = vmatmul.mubr.f32.gmra.mrb[0].mxu0 %v678
      %v4320 = vpop.f32.mrb[0].mxu0
      %v4321 = vadd.f32 0.0, %v4320
      %v4322 = vpop.f32.mrb[0].mxu0
      %4323 = vmatprep.mubr.f32.mxu0 0.0
      %4324 = vmatmul.mubr.f32.gmra.mrb[0].mxu0 %v681
      %v4325 = vpop.f32.mrb[0].mxu0
      %v4326 = vadd.f32 0.0, %v4325
      %v4327 = vpop.f32.mrb[0].mxu0
      %4328 = vmatprep.mubr.f32.mxu0 0.0
      %4329 = vmatmul.mubr.f32.gmra.mrb[0].mxu0 %v684
      %v4330 = vpop.f32.mrb[0].mxu0
      %v4331 = vadd.f32 0.0, %v4330
      %v4332 = vpop.f32.mrb[0].mxu0
      %4333 = vmatprep.mubr.f32.mxu0 0.0
      %4334 = vmatmul.mubr.f32.gmra.mrb[0].mxu0 %v687
      %v4335 = vpop.f32.mrb[0].mxu0
      %v4336 = vadd.f32 0.0, %v4335
      %v4337 = vpop.f32.mrb[0].mxu0
      %4338 = vmatprep.mubr.f32.mxu0 0.0
      %4339 = vmatmul.mubr.f32.gmra.mrb[0].mxu0 %v690
      %v4340 = vpop.f32.mrb[0].mxu0
      %v4341 = vadd.f32 0.0, %v4340
      %v4342 = vpop.f32.mrb[0].mxu0
      %4343 = vmatprep.mubr.f32.mxu0 0.0
      %4344 = vmatmul.mubr.f32.gmra.mrb[0].mxu0 %v693
      %v4345 = vpop.f32.mrb[0].mxu0
      %v4346 = vadd.f32 0.0, %v4345
      %v4347 = vpop.f32.mrb[0].mxu0
      %4348 = vmatprep.mubr.f32.mxu0 0.0
      %4349 = vmatmul.mubr.f32.gmra.mrb[0].mxu0 %v696
      %v4350 = vpop.f32.mrb[0].mxu0
      %v4351 = vadd.f32 0.0, %v4350
      %v4352 = vpop.f32.mrb[0].mxu0
      %4353 = vmatprep.mubr.f32.mxu0 0.0
      %4354 = vmatmul.mubr.f32.gmra.mrb[0].mxu0 %v699
      %v4355 = vpop.f32.mrb[0].mxu0
      %v4356 = vadd.f32 0.0, %v4355
      %v4357 = vpop.f32.mrb[0].mxu0
      %4358 = vmatprep.mubr.f32.mxu0 0.0
      %4359 = vmatmul.mubr.f32.gmra.mrb[0].mxu0 %v702
      %v4360 = vpop.f32.mrb[0].mxu0
      %v4361 = vadd.f32 0.0, %v4360
      %v4362 = vpop.f32.mrb[0].mxu0
      %4363 = vmatprep.mubr.f32.mxu0 0.0
      %4364 = vmatmul.mubr.f32.gmra.mrb[0].mxu0 %v705
      %v4365 = vpop.f32.mrb[0].mxu0
      %v4366 = vadd.f32 0.0, %v4365
      %v4367 = vpop.f32.mrb[0].mxu0
      %4368 = vmatprep.mubr.f32.mxu0 0.0
      %4369 = vmatmul.mubr.f32.gmra.mrb[0].mxu0 %v708
      %v4370 = vpop.f32.mrb[0].mxu0
      %v4371 = vadd.f32 0.0, %v4370
      %v4372 = vpop.f32.mrb[0].mxu0
      %4373 = vmatprep.mubr.f32.mxu0 0.0
      %4374 = vmatmul.mubr.f32.gmra.mrb[0].mxu0 %v711
      %v4375 = vpop.f32.mrb[0].mxu0
      %v4376 = vadd.f32 0.0, %v4375
      %v4377 = vpop.f32.mrb[0].mxu0
      %4378 = vmatprep.mubr.f32.mxu0 0.0
      %4379 = vmatmul.mubr.f32.gmra.mrb[0].mxu0 %v714
      %v4380 = vpop.f32.mrb[0].mxu0
      %v4381 = vadd.f32 0.0, %v4380
      %v4382 = vpop.f32.mrb[0].mxu0
      %4383 = vmatprep.mubr.f32.mxu0 0.0
      %4384 = vmatmul.mubr.f32.gmra.mrb[0].mxu0 %v717
      %v4385 = vpop.f32.mrb[0].mxu0
      %v4386 = vadd.f32 0.0, %v4385
      %v4387 = vpop.f32.mrb[0].mxu0
      %4388 = vmatprep.mubr.f32.mxu0 0.0
      %4389 = vmatmul.mubr.f32.gmra.mrb[0].mxu0 %v720
      %v4390 = vpop.f32.mrb[0].mxu0
      %v4391 = vadd.f32 0.0, %v4390
      %v4392 = vpop.f32.mrb[0].mxu0
      %4393 = vmatprep.mubr.f32.mxu0 0.0
      %4394 = vmatmul.mubr.f32.gmra.mrb[0].mxu0 %v723
      %v4395 = vpop.f32.mrb[0].mxu0
      %v4396 = vadd.f32 0.0, %v4395
      %v4397 = vpop.f32.mrb[0].mxu0
      %4398 = vmatprep.mubr.f32.mxu0 0.0
      %4399 = vmatmul.mubr.f32.gmra.mrb[0].mxu0 %v726
      %v4400 = vpop.f32.mrb[0].mxu0
      %v4401 = vadd.f32 0.0, %v4400
      %v4402 = vpop.f32.mrb[0].mxu0
      %4403 = vmatprep.mubr.f32.mxu0 0.0
      %4404 = vmatmul.mubr.f32.gmra.mrb[0].mxu0 %v729
      %v4405 = vpop.f32.mrb[0].mxu0
      %v4406 = vadd.f32 0.0, %v4405
      %v4407 = vpop.f32.mrb[0].mxu0
      %4408 = vmatprep.mubr.f32.mxu0 0.0
      %4409 = vmatmul.mubr.f32.gmra.mrb[0].mxu0 %v732
      %v4410 = vpop.f32.mrb[0].mxu0
      %v4411 = vadd.f32 0.0, %v4410
      %v4412 = vpop.f32.mrb[0].mxu0
      %4413 = vmatprep.mubr.f32.mxu0 0.0
      %4414 = vmatmul.mubr.f32.gmra.mrb[0].mxu0 %v735
      %v4415 = vpop.f32.mrb[0].mxu0
      %v4416 = vadd.f32 0.0, %v4415
      %v4417 = vpop.f32.mrb[0].mxu0
      %4418 = vmatprep.mubr.f32.mxu0 0.0
      %4419 = vmatmul.mubr.f32.gmra.mrb[0].mxu0 %v738
      %v4420 = vpop.f32.mrb[0].mxu0
      %v4421 = vadd.f32 0.0, %v4420
      %v4422 = vpop.f32.mrb[0].mxu0
      %4423 = vmatprep.mubr.f32.mxu0 0.0
      %4424 = vmatmul.mubr.f32.gmra.mrb[0].mxu0 %v741
      %v4425 = vpop.f32.mrb[0].mxu0
      %v4426 = vadd.f32 0.0, %v4425
      %v4427 = vpop.f32.mrb[0].mxu0
      %4428 = vmatprep.mubr.f32.mxu0 0.0
      %4429 = vmatmul.mubr.f32.gmra.mrb[0].mxu0 %v744
      %v4430 = vpop.f32.mrb[0].mxu0
      %v4431 = vadd.f32 0.0, %v4430
      %v4432 = vpop.f32.mrb[0].mxu0
      %4433 = vmatprep.mubr.f32.mxu0 0.0
      %4434 = vmatmul.mubr.f32.gmra.mrb[0].mxu0 %v2620
      %v4435 = vpop.f32.mrb[0].mxu0
      %v4436 = vadd.f32 0.0, %v4435
      %v4437 = vpop.f32.mrb[0].mxu0
      %4438 = vmatprep.mubr.f32.mxu0 0.0
      %4439 = vmatmul.mubr.f32.gmra.mrb[0].mxu0 %v2623
      %v4440 = vpop.f32.mrb[0].mxu0
      %v4441 = vadd.f32 0.0, %v4440
      %v4442 = vpop.f32.mrb[0].mxu0
      %4443 = vmatprep.mubr.f32.mxu0 0.0
      %4444 = vmatmul.mubr.f32.gmra.mrb[0].mxu0 %v4224
      %v4445 = vpop.f32.mrb[0].mxu0
      %v4446 = vadd.f32 0.0, %v4445
      %v4447 = vpop.f32.mrb[0].mxu0
      %4448 = vmatprep.mubr.f32.mxu0 0.0
      %4449 = vmatmul.mubr.f32.gmra.mrb[0].mxu0 %v4227
      %v4450 = vpop.f32.mrb[0].mxu0
      %v4451 = vadd.f32 0.0, %v4450
      %v4452 = vpop.f32.mrb[0].mxu0
      %4453 = vdwg.mxu0
      %v4454 = vadd.f32 %v4189, %v4296
      %v4455 = vadd.f32 %v4190, %v4301
      %v4456 = vadd.f32 %v4191, %v4306
      %v4457 = vadd.f32 %v4192, %v4311
      %v4458 = vadd.f32 %v4193, %v4316
      %v4459 = vadd.f32 %v4194, %v4321
      %v4460 = vadd.f32 %v4195, %v4326
      %v4461 = vadd.f32 %v4196, %v4331
      %v4462 = vadd.f32 %v4197, %v4336
      %v4463 = vadd.f32 %v4198, %v4341
      %v4464 = vadd.f32 %v4199, %v4346
      %v4465 = vadd.f32 %v4200, %v4351
      %v4466 = vadd.f32 %v4201, %v4356
      %v4467 = vadd.f32 %v4202, %v4361
      %v4468 = vadd.f32 %v4203, %v4366
      %v4469 = vadd.f32 %v4204, %v4371
      %v4470 = vadd.f32 %v4205, %v4376
      %v4471 = vadd.f32 %v4206, %v4381
      %v4472 = vadd.f32 %v4207, %v4386
      %v4473 = vadd.f32 %v4208, %v4391
      %v4474 = vadd.f32 %v4209, %v4396
      %v4475 = vadd.f32 %v4210, %v4401
      %v4476 = vadd.f32 %v4211, %v4406
      %v4477 = vadd.f32 %v4212, %v4411
      %v4478 = vadd.f32 %v4213, %v4416
      %v4479 = vadd.f32 %v4214, %v4421
      %v4480 = vadd.f32 %v4215, %v4426
      %v4481 = vadd.f32 %v4216, %v4431
      %v4482 = vadd.f32 %v4217, %v4436
      %v4483 = vadd.f32 %v4218, %v4441
      %v4484 = vadd.f32 %v4219, %v4446
      %v4485 = vadd.f32 %v4220, %v4451
      %s4486 = scalar_lea.vmem %s3, 48
      %v4487 = vld [vmem:[%s4486] sm:$0xff]
      %v4489 = vsel %vm328, %v323, 0
      %v4492 = vsel %vm328, %v324, 0
      %4494 = vmatprep.subr.mxu0 0.0
      %4495 = vmatpush1.msra.mxu0 %v4487
      %4496 = vmatprep.subr.mxu0 0.0
      %4497 = vmatpush1.msra.mxu0 0.0
      %4498 = vmatprep.subr.mxu0 0.0
      %4499 = vmatpush1.msra.mxu0 0.0
      %4500 = vmatprep.subr.mxu0 0.0
      %4501 = vmatpush1.msra.mxu0 0.0
      %4502 = vmatprep.subr.mxu0 0.0
      %4503 = vmatpush1.msra.mxu0 0.0
      %4504 = vmatprep.subr.mxu0 0.0
      %4505 = vmatpush1.msra.mxu0 0.0
      %4506 = vmatprep.subr.mxu0 0.0
      %4507 = vmatpush1.msra.mxu0 0.0
      %4508 = vmatprep.subr.mxu0 0.0
      %4509 = vmatpush1.msra.mxu0 0.0
      %4510 = vmatprep.subr.mxu0 0.0
      %4511 = vmatpush1.msra.mxu0 0.0
      %4512 = vmatprep.subr.mxu0 0.0
      %4513 = vmatpush1.msra.mxu0 0.0
      %4514 = vmatprep.subr.mxu0 0.0
      %4515 = vmatpush1.msra.mxu0 0.0
      %4516 = vmatprep.subr.mxu0 0.0
      %4517 = vmatpush1.msra.mxu0 0.0
      %4518 = vmatprep.subr.mxu0 0.0
      %4519 = vmatpush1.msra.mxu0 0.0
      %4520 = vmatprep.subr.mxu0 0.0
      %4521 = vmatpush1.msra.mxu0 0.0
      %4522 = vmatprep.subr.mxu0 0.0
      %4523 = vmatpush1.msra.mxu0 0.0
      %4524 = vmatprep.subr.mxu0 0.0
      %4525 = vmatpush1.msra.mxu0 0.0
      %4526 = vmatprep.subr.mxu0 0.0
      %4527 = vmatpush1.msra.mxu0 0.0
      %4528 = vmatprep.subr.mxu0 0.0
      %4529 = vmatpush1.msra.mxu0 0.0
      %4530 = vmatprep.subr.mxu0 0.0
      %4531 = vmatpush1.msra.mxu0 0.0
      %4532 = vmatprep.subr.mxu0 0.0
      %4533 = vmatpush1.msra.mxu0 0.0
      %4534 = vmatprep.subr.mxu0 0.0
      %4535 = vmatpush1.msra.mxu0 0.0
      %4536 = vmatprep.subr.mxu0 0.0
      %4537 = vmatpush1.msra.mxu0 0.0
      %4538 = vmatprep.subr.mxu0 0.0
      %4539 = vmatpush1.msra.mxu0 0.0
      %4540 = vmatprep.subr.mxu0 0.0
      %4541 = vmatpush1.msra.mxu0 0.0
      %4542 = vmatprep.subr.mxu0 0.0
      %4543 = vmatpush1.msra.mxu0 0.0
      %4544 = vmatprep.subr.mxu0 0.0
      %4545 = vmatpush1.msra.mxu0 0.0
      %4546 = vmatprep.subr.mxu0 0.0
      %4547 = vmatpush1.msra.mxu0 0.0
      %4548 = vmatprep.subr.mxu0 0.0
      %4549 = vmatpush1.msra.mxu0 0.0
      %4550 = vmatprep.subr.mxu0 0.0
      %4551 = vmatpush1.msra.mxu0 0.0
      %4552 = vmatprep.subr.mxu0 0.0
      %4553 = vmatpush1.msra.mxu0 0.0
      %4554 = vmatprep.subr.mxu0 0.0
      %4555 = vmatpush1.msra.mxu0 0.0
      %4556 = vmatprep.subr.mxu0 0.0
      %4557 = vmatpush1.msra.mxu0 0.0
      %4558 = vmatprep.mubr.f32.mxu0 0.0
      %4559 = vmatmul.mubr.f32.gmra.mrb[0].mxu0 %v342
      %v4560 = vpop.f32.mrb[0].mxu0
      %v4561 = vadd.f32 0.0, %v4560
      %v4562 = vpop.f32.mrb[0].mxu0
      %4563 = vmatprep.mubr.f32.mxu0 0.0
      %4564 = vmatmul.mubr.f32.gmra.mrb[0].mxu0 %v345
      %v4565 = vpop.f32.mrb[0].mxu0
      %v4566 = vadd.f32 0.0, %v4565
      %v4567 = vpop.f32.mrb[0].mxu0
      %4568 = vmatprep.mubr.f32.mxu0 0.0
      %4569 = vmatmul.mubr.f32.gmra.mrb[0].mxu0 %v348
      %v4570 = vpop.f32.mrb[0].mxu0
      %v4571 = vadd.f32 0.0, %v4570
      %v4572 = vpop.f32.mrb[0].mxu0
      %4573 = vmatprep.mubr.f32.mxu0 0.0
      %4574 = vmatmul.mubr.f32.gmra.mrb[0].mxu0 %v351
      %v4575 = vpop.f32.mrb[0].mxu0
      %v4576 = vadd.f32 0.0, %v4575
      %v4577 = vpop.f32.mrb[0].mxu0
      %4578 = vmatprep.mubr.f32.mxu0 0.0
      %4579 = vmatmul.mubr.f32.gmra.mrb[0].mxu0 %v354
      %v4580 = vpop.f32.mrb[0].mxu0
      %v4581 = vadd.f32 0.0, %v4580
      %v4582 = vpop.f32.mrb[0].mxu0
      %4583 = vmatprep.mubr.f32.mxu0 0.0
      %4584 = vmatmul.mubr.f32.gmra.mrb[0].mxu0 %v357
      %v4585 = vpop.f32.mrb[0].mxu0
      %v4586 = vadd.f32 0.0, %v4585
      %v4587 = vpop.f32.mrb[0].mxu0
      %4588 = vmatprep.mubr.f32.mxu0 0.0
      %4589 = vmatmul.mubr.f32.gmra.mrb[0].mxu0 %v360
      %v4590 = vpop.f32.mrb[0].mxu0
      %v4591 = vadd.f32 0.0, %v4590
      %v4592 = vpop.f32.mrb[0].mxu0
      %4593 = vmatprep.mubr.f32.mxu0 0.0
      %4594 = vmatmul.mubr.f32.gmra.mrb[0].mxu0 %v363
      %v4595 = vpop.f32.mrb[0].mxu0
      %v4596 = vadd.f32 0.0, %v4595
      %v4597 = vpop.f32.mrb[0].mxu0
      %4598 = vmatprep.mubr.f32.mxu0 0.0
      %4599 = vmatmul.mubr.f32.gmra.mrb[0].mxu0 %v366
      %v4600 = vpop.f32.mrb[0].mxu0
      %v4601 = vadd.f32 0.0, %v4600
      %v4602 = vpop.f32.mrb[0].mxu0
      %4603 = vmatprep.mubr.f32.mxu0 0.0
      %4604 = vmatmul.mubr.f32.gmra.mrb[0].mxu0 %v369
      %v4605 = vpop.f32.mrb[0].mxu0
      %v4606 = vadd.f32 0.0, %v4605
      %v4607 = vpop.f32.mrb[0].mxu0
      %4608 = vmatprep.mubr.f32.mxu0 0.0
      %4609 = vmatmul.mubr.f32.gmra.mrb[0].mxu0 %v372
      %v4610 = vpop.f32.mrb[0].mxu0
      %v4611 = vadd.f32 0.0, %v4610
      %v4612 = vpop.f32.mrb[0].mxu0
      %4613 = vmatprep.mubr.f32.mxu0 0.0
      %4614 = vmatmul.mubr.f32.gmra.mrb[0].mxu0 %v375
      %v4615 = vpop.f32.mrb[0].mxu0
      %v4616 = vadd.f32 0.0, %v4615
      %v4617 = vpop.f32.mrb[0].mxu0
      %4618 = vmatprep.mubr.f32.mxu0 0.0
      %4619 = vmatmul.mubr.f32.gmra.mrb[0].mxu0 %v378
      %v4620 = vpop.f32.mrb[0].mxu0
      %v4621 = vadd.f32 0.0, %v4620
      %v4622 = vpop.f32.mrb[0].mxu0
      %4623 = vmatprep.mubr.f32.mxu0 0.0
      %4624 = vmatmul.mubr.f32.gmra.mrb[0].mxu0 %v381
      %v4625 = vpop.f32.mrb[0].mxu0
      %v4626 = vadd.f32 0.0, %v4625
      %v4627 = vpop.f32.mrb[0].mxu0
      %4628 = vmatprep.mubr.f32.mxu0 0.0
      %4629 = vmatmul.mubr.f32.gmra.mrb[0].mxu0 %v384
      %v4630 = vpop.f32.mrb[0].mxu0
      %v4631 = vadd.f32 0.0, %v4630
      %v4632 = vpop.f32.mrb[0].mxu0
      %4633 = vmatprep.mubr.f32.mxu0 0.0
      %4634 = vmatmul.mubr.f32.gmra.mrb[0].mxu0 %v387
      %v4635 = vpop.f32.mrb[0].mxu0
      %v4636 = vadd.f32 0.0, %v4635
      %v4637 = vpop.f32.mrb[0].mxu0
      %4638 = vmatprep.mubr.f32.mxu0 0.0
      %4639 = vmatmul.mubr.f32.gmra.mrb[0].mxu0 %v390
      %v4640 = vpop.f32.mrb[0].mxu0
      %v4641 = vadd.f32 0.0, %v4640
      %v4642 = vpop.f32.mrb[0].mxu0
      %4643 = vmatprep.mubr.f32.mxu0 0.0
      %4644 = vmatmul.mubr.f32.gmra.mrb[0].mxu0 %v393
      %v4645 = vpop.f32.mrb[0].mxu0
      %v4646 = vadd.f32 0.0, %v4645
      %v4647 = vpop.f32.mrb[0].mxu0
      %4648 = vmatprep.mubr.f32.mxu0 0.0
      %4649 = vmatmul.mubr.f32.gmra.mrb[0].mxu0 %v396
      %v4650 = vpop.f32.mrb[0].mxu0
      %v4651 = vadd.f32 0.0, %v4650
      %v4652 = vpop.f32.mrb[0].mxu0
      %4653 = vmatprep.mubr.f32.mxu0 0.0
      %4654 = vmatmul.mubr.f32.gmra.mrb[0].mxu0 %v399
      %v4655 = vpop.f32.mrb[0].mxu0
      %v4656 = vadd.f32 0.0, %v4655
      %v4657 = vpop.f32.mrb[0].mxu0
      %4658 = vmatprep.mubr.f32.mxu0 0.0
      %4659 = vmatmul.mubr.f32.gmra.mrb[0].mxu0 %v402
      %v4660 = vpop.f32.mrb[0].mxu0
      %v4661 = vadd.f32 0.0, %v4660
      %v4662 = vpop.f32.mrb[0].mxu0
      %4663 = vmatprep.mubr.f32.mxu0 0.0
      %4664 = vmatmul.mubr.f32.gmra.mrb[0].mxu0 %v405
      %v4665 = vpop.f32.mrb[0].mxu0
      %v4666 = vadd.f32 0.0, %v4665
      %v4667 = vpop.f32.mrb[0].mxu0
      %4668 = vmatprep.mubr.f32.mxu0 0.0
      %4669 = vmatmul.mubr.f32.gmra.mrb[0].mxu0 %v408
      %v4670 = vpop.f32.mrb[0].mxu0
      %v4671 = vadd.f32 0.0, %v4670
      %v4672 = vpop.f32.mrb[0].mxu0
      %4673 = vmatprep.mubr.f32.mxu0 0.0
      %4674 = vmatmul.mubr.f32.gmra.mrb[0].mxu0 %v411
      %v4675 = vpop.f32.mrb[0].mxu0
      %v4676 = vadd.f32 0.0, %v4675
      %v4677 = vpop.f32.mrb[0].mxu0
      %4678 = vmatprep.mubr.f32.mxu0 0.0
      %4679 = vmatmul.mubr.f32.gmra.mrb[0].mxu0 %v414
      %v4680 = vpop.f32.mrb[0].mxu0
      %v4681 = vadd.f32 0.0, %v4680
      %v4682 = vpop.f32.mrb[0].mxu0
      %4683 = vmatprep.mubr.f32.mxu0 0.0
      %4684 = vmatmul.mubr.f32.gmra.mrb[0].mxu0 %v417
      %v4685 = vpop.f32.mrb[0].mxu0
      %v4686 = vadd.f32 0.0, %v4685
      %v4687 = vpop.f32.mrb[0].mxu0
      %4688 = vmatprep.mubr.f32.mxu0 0.0
      %4689 = vmatmul.mubr.f32.gmra.mrb[0].mxu0 %v420
      %v4690 = vpop.f32.mrb[0].mxu0
      %v4691 = vadd.f32 0.0, %v4690
      %v4692 = vpop.f32.mrb[0].mxu0
      %4693 = vmatprep.mubr.f32.mxu0 0.0
      %4694 = vmatmul.mubr.f32.gmra.mrb[0].mxu0 %v423
      %v4695 = vpop.f32.mrb[0].mxu0
      %v4696 = vadd.f32 0.0, %v4695
      %v4697 = vpop.f32.mrb[0].mxu0
      %4698 = vmatprep.mubr.f32.mxu0 0.0
      %4699 = vmatmul.mubr.f32.gmra.mrb[0].mxu0 %v2885
      %v4700 = vpop.f32.mrb[0].mxu0
      %v4701 = vadd.f32 0.0, %v4700
      %v4702 = vpop.f32.mrb[0].mxu0
      %4703 = vmatprep.mubr.f32.mxu0 0.0
      %4704 = vmatmul.mubr.f32.gmra.mrb[0].mxu0 %v2888
      %v4705 = vpop.f32.mrb[0].mxu0
      %v4706 = vadd.f32 0.0, %v4705
      %v4707 = vpop.f32.mrb[0].mxu0
      %4708 = vmatprep.mubr.f32.mxu0 0.0
      %4709 = vmatmul.mubr.f32.gmra.mrb[0].mxu0 %v4489
      %v4710 = vpop.f32.mrb[0].mxu0
      %v4711 = vadd.f32 0.0, %v4710
      %v4712 = vpop.f32.mrb[0].mxu0
      %4713 = vmatprep.mubr.f32.mxu0 0.0
      %4714 = vmatmul.mubr.f32.gmra.mrb[0].mxu0 %v4492
      %v4715 = vpop.f32.mrb[0].mxu0
      %v4716 = vadd.f32 0.0, %v4715
      %v4717 = vpop.f32.mrb[0].mxu0
      %4718 = vdwg.mxu0
      %v4719 = vadd.f32 %v4454, %v4561
      %v4720 = vadd.f32 %v4455, %v4566
      %v4721 = vadd.f32 %v4456, %v4571
      %v4722 = vadd.f32 %v4457, %v4576
      %v4723 = vadd.f32 %v4458, %v4581
      %v4724 = vadd.f32 %v4459, %v4586
      %v4725 = vadd.f32 %v4460, %v4591
      %v4726 = vadd.f32 %v4461, %v4596
      %v4727 = vadd.f32 %v4462, %v4601
      %v4728 = vadd.f32 %v4463, %v4606
      %v4729 = vadd.f32 %v4464, %v4611
      %v4730 = vadd.f32 %v4465, %v4616
      %v4731 = vadd.f32 %v4466, %v4621
      %v4732 = vadd.f32 %v4467, %v4626
      %v4733 = vadd.f32 %v4468, %v4631
      %v4734 = vadd.f32 %v4469, %v4636
      %v4735 = vadd.f32 %v4470, %v4641
      %v4736 = vadd.f32 %v4471, %v4646
      %v4737 = vadd.f32 %v4472, %v4651
      %v4738 = vadd.f32 %v4473, %v4656
      %v4739 = vadd.f32 %v4474, %v4661
      %v4740 = vadd.f32 %v4475, %v4666
      %v4741 = vadd.f32 %v4476, %v4671
      %v4742 = vadd.f32 %v4477, %v4676
      %v4743 = vadd.f32 %v4478, %v4681
      %v4744 = vadd.f32 %v4479, %v4686
      %v4745 = vadd.f32 %v4480, %v4691
      %v4746 = vadd.f32 %v4481, %v4696
      %v4747 = vadd.f32 %v4482, %v4701
      %v4748 = vadd.f32 %v4483, %v4706
      %v4749 = vadd.f32 %v4484, %v4711
      %v4750 = vadd.f32 %v4485, %v4716
      %v4752 = vrot.slane %v269, 1
      %v4753 = vrot.slane %v270, 1
      %v4754 = vsel %vm987, %v4752, %v4753
      %v4755 = vrot.slane %v271, 1
      %v4756 = vsel %vm987, %v4753, %v4755
      %v4758 = vrot.slane %v323, 1
      %v4759 = vrot.slane %v324, 1
      %v4760 = vsel %vm987, %v4758, %v4759
      %v4761 = vrot.slane %v325, 1
      %v4762 = vsel %vm987, %v4759, %v4761
      %s4763 = scalar_lea.vmem %s2, 56
      %v4764 = vld [vmem:[%s4763] sm:$0xff]
      %v4765 = vsel %vm328, %v4754, 0
      %v4767 = vsel %vm328, %v4756, 0
      %4769 = vmatprep.subr.mxu0 0.0
      %4770 = vmatpush1.msra.mxu0 %v4764
      %4771 = vmatprep.subr.mxu0 0.0
      %4772 = vmatpush1.msra.mxu0 0.0
      %4773 = vmatprep.subr.mxu0 0.0
      %4774 = vmatpush1.msra.mxu0 0.0
      %4775 = vmatprep.subr.mxu0 0.0
      %4776 = vmatpush1.msra.mxu0 0.0
      %4777 = vmatprep.subr.mxu0 0.0
      %4778 = vmatpush1.msra.mxu0 0.0
      %4779 = vmatprep.subr.mxu0 0.0
      %4780 = vmatpush1.msra.mxu0 0.0
      %4781 = vmatprep.subr.mxu0 0.0
      %4782 = vmatpush1.msra.mxu0 0.0
      %4783 = vmatprep.subr.mxu0 0.0
      %4784 = vmatpush1.msra.mxu0 0.0
      %4785 = vmatprep.subr.mxu0 0.0
      %4786 = vmatpush1.msra.mxu0 0.0
      %4787 = vmatprep.subr.mxu0 0.0
      %4788 = vmatpush1.msra.mxu0 0.0
      %4789 = vmatprep.subr.mxu0 0.0
      %4790 = vmatpush1.msra.mxu0 0.0
      %4791 = vmatprep.subr.mxu0 0.0
      %4792 = vmatpush1.msra.mxu0 0.0
      %4793 = vmatprep.subr.mxu0 0.0
      %4794 = vmatpush1.msra.mxu0 0.0
      %4795 = vmatprep.subr.mxu0 0.0
      %4796 = vmatpush1.msra.mxu0 0.0
      %4797 = vmatprep.subr.mxu0 0.0
      %4798 = vmatpush1.msra.mxu0 0.0
      %4799 = vmatprep.subr.mxu0 0.0
      %4800 = vmatpush1.msra.mxu0 0.0
      %4801 = vmatprep.subr.mxu0 0.0
      %4802 = vmatpush1.msra.mxu0 0.0
      %4803 = vmatprep.subr.mxu0 0.0
      %4804 = vmatpush1.msra.mxu0 0.0
      %4805 = vmatprep.subr.mxu0 0.0
      %4806 = vmatpush1.msra.mxu0 0.0
      %4807 = vmatprep.subr.mxu0 0.0
      %4808 = vmatpush1.msra.mxu0 0.0
      %4809 = vmatprep.subr.mxu0 0.0
      %4810 = vmatpush1.msra.mxu0 0.0
      %4811 = vmatprep.subr.mxu0 0.0
      %4812 = vmatpush1.msra.mxu0 0.0
      %4813 = vmatprep.subr.mxu0 0.0
      %4814 = vmatpush1.msra.mxu0 0.0
      %4815 = vmatprep.subr.mxu0 0.0
      %4816 = vmatpush1.msra.mxu0 0.0
      %4817 = vmatprep.subr.mxu0 0.0
      %4818 = vmatpush1.msra.mxu0 0.0
      %4819 = vmatprep.subr.mxu0 0.0
      %4820 = vmatpush1.msra.mxu0 0.0
      %4821 = vmatprep.subr.mxu0 0.0
      %4822 = vmatpush1.msra.mxu0 0.0
      %4823 = vmatprep.subr.mxu0 0.0
      %4824 = vmatpush1.msra.mxu0 0.0
      %4825 = vmatprep.subr.mxu0 0.0
      %4826 = vmatpush1.msra.mxu0 0.0
      %4827 = vmatprep.subr.mxu0 0.0
      %4828 = vmatpush1.msra.mxu0 0.0
      %4829 = vmatprep.subr.mxu0 0.0
      %4830 = vmatpush1.msra.mxu0 0.0
      %4831 = vmatprep.subr.mxu0 0.0
      %4832 = vmatpush1.msra.mxu0 0.0
      %4833 = vmatprep.mubr.f32.mxu0 0.0
      %4834 = vmatmul.mubr.f32.gmra.mrb[0].mxu0 %v1174
      %v4835 = vpop.f32.mrb[0].mxu0
      %v4836 = vadd.f32 0.0, %v4835
      %v4837 = vpop.f32.mrb[0].mxu0
      %4838 = vmatprep.mubr.f32.mxu0 0.0
      %4839 = vmatmul.mubr.f32.gmra.mrb[0].mxu0 %v1176
      %v4840 = vpop.f32.mrb[0].mxu0
      %v4841 = vadd.f32 0.0, %v4840
      %v4842 = vpop.f32.mrb[0].mxu0
      %4843 = vmatprep.mubr.f32.mxu0 0.0
      %4844 = vmatmul.mubr.f32.gmra.mrb[0].mxu0 %v1178
      %v4845 = vpop.f32.mrb[0].mxu0
      %v4846 = vadd.f32 0.0, %v4845
      %v4847 = vpop.f32.mrb[0].mxu0
      %4848 = vmatprep.mubr.f32.mxu0 0.0
      %4849 = vmatmul.mubr.f32.gmra.mrb[0].mxu0 %v1180
      %v4850 = vpop.f32.mrb[0].mxu0
      %v4851 = vadd.f32 0.0, %v4850
      %v4852 = vpop.f32.mrb[0].mxu0
      %4853 = vmatprep.mubr.f32.mxu0 0.0
      %4854 = vmatmul.mubr.f32.gmra.mrb[0].mxu0 %v1182
      %v4855 = vpop.f32.mrb[0].mxu0
      %v4856 = vadd.f32 0.0, %v4855
      %v4857 = vpop.f32.mrb[0].mxu0
      %4858 = vmatprep.mubr.f32.mxu0 0.0
      %4859 = vmatmul.mubr.f32.gmra.mrb[0].mxu0 %v1184
      %v4860 = vpop.f32.mrb[0].mxu0
      %v4861 = vadd.f32 0.0, %v4860
      %v4862 = vpop.f32.mrb[0].mxu0
      %4863 = vmatprep.mubr.f32.mxu0 0.0
      %4864 = vmatmul.mubr.f32.gmra.mrb[0].mxu0 %v1186
      %v4865 = vpop.f32.mrb[0].mxu0
      %v4866 = vadd.f32 0.0, %v4865
      %v4867 = vpop.f32.mrb[0].mxu0
      %4868 = vmatprep.mubr.f32.mxu0 0.0
      %4869 = vmatmul.mubr.f32.gmra.mrb[0].mxu0 %v1188
      %v4870 = vpop.f32.mrb[0].mxu0
      %v4871 = vadd.f32 0.0, %v4870
      %v4872 = vpop.f32.mrb[0].mxu0
      %4873 = vmatprep.mubr.f32.mxu0 0.0
      %4874 = vmatmul.mubr.f32.gmra.mrb[0].mxu0 %v1190
      %v4875 = vpop.f32.mrb[0].mxu0
      %v4876 = vadd.f32 0.0, %v4875
      %v4877 = vpop.f32.mrb[0].mxu0
      %4878 = vmatprep.mubr.f32.mxu0 0.0
      %4879 = vmatmul.mubr.f32.gmra.mrb[0].mxu0 %v1192
      %v4880 = vpop.f32.mrb[0].mxu0
      %v4881 = vadd.f32 0.0, %v4880
      %v4882 = vpop.f32.mrb[0].mxu0
      %4883 = vmatprep.mubr.f32.mxu0 0.0
      %4884 = vmatmul.mubr.f32.gmra.mrb[0].mxu0 %v1194
      %v4885 = vpop.f32.mrb[0].mxu0
      %v4886 = vadd.f32 0.0, %v4885
      %v4887 = vpop.f32.mrb[0].mxu0
      %4888 = vmatprep.mubr.f32.mxu0 0.0
      %4889 = vmatmul.mubr.f32.gmra.mrb[0].mxu0 %v1196
      %v4890 = vpop.f32.mrb[0].mxu0
      %v4891 = vadd.f32 0.0, %v4890
      %v4892 = vpop.f32.mrb[0].mxu0
      %4893 = vmatprep.mubr.f32.mxu0 0.0
      %4894 = vmatmul.mubr.f32.gmra.mrb[0].mxu0 %v1198
      %v4895 = vpop.f32.mrb[0].mxu0
      %v4896 = vadd.f32 0.0, %v4895
      %v4897 = vpop.f32.mrb[0].mxu0
      %4898 = vmatprep.mubr.f32.mxu0 0.0
      %4899 = vmatmul.mubr.f32.gmra.mrb[0].mxu0 %v1200
      %v4900 = vpop.f32.mrb[0].mxu0
      %v4901 = vadd.f32 0.0, %v4900
      %v4902 = vpop.f32.mrb[0].mxu0
      %4903 = vmatprep.mubr.f32.mxu0 0.0
      %4904 = vmatmul.mubr.f32.gmra.mrb[0].mxu0 %v1202
      %v4905 = vpop.f32.mrb[0].mxu0
      %v4906 = vadd.f32 0.0, %v4905
      %v4907 = vpop.f32.mrb[0].mxu0
      %4908 = vmatprep.mubr.f32.mxu0 0.0
      %4909 = vmatmul.mubr.f32.gmra.mrb[0].mxu0 %v1204
      %v4910 = vpop.f32.mrb[0].mxu0
      %v4911 = vadd.f32 0.0, %v4910
      %v4912 = vpop.f32.mrb[0].mxu0
      %4913 = vmatprep.mubr.f32.mxu0 0.0
      %4914 = vmatmul.mubr.f32.gmra.mrb[0].mxu0 %v1206
      %v4915 = vpop.f32.mrb[0].mxu0
      %v4916 = vadd.f32 0.0, %v4915
      %v4917 = vpop.f32.mrb[0].mxu0
      %4918 = vmatprep.mubr.f32.mxu0 0.0
      %4919 = vmatmul.mubr.f32.gmra.mrb[0].mxu0 %v1208
      %v4920 = vpop.f32.mrb[0].mxu0
      %v4921 = vadd.f32 0.0, %v4920
      %v4922 = vpop.f32.mrb[0].mxu0
      %4923 = vmatprep.mubr.f32.mxu0 0.0
      %4924 = vmatmul.mubr.f32.gmra.mrb[0].mxu0 %v1210
      %v4925 = vpop.f32.mrb[0].mxu0
      %v4926 = vadd.f32 0.0, %v4925
      %v4927 = vpop.f32.mrb[0].mxu0
      %4928 = vmatprep.mubr.f32.mxu0 0.0
      %4929 = vmatmul.mubr.f32.gmra.mrb[0].mxu0 %v1212
      %v4930 = vpop.f32.mrb[0].mxu0
      %v4931 = vadd.f32 0.0, %v4930
      %v4932 = vpop.f32.mrb[0].mxu0
      %4933 = vmatprep.mubr.f32.mxu0 0.0
      %4934 = vmatmul.mubr.f32.gmra.mrb[0].mxu0 %v1214
      %v4935 = vpop.f32.mrb[0].mxu0
      %v4936 = vadd.f32 0.0, %v4935
      %v4937 = vpop.f32.mrb[0].mxu0
      %4938 = vmatprep.mubr.f32.mxu0 0.0
      %4939 = vmatmul.mubr.f32.gmra.mrb[0].mxu0 %v1216
      %v4940 = vpop.f32.mrb[0].mxu0
      %v4941 = vadd.f32 0.0, %v4940
      %v4942 = vpop.f32.mrb[0].mxu0
      %4943 = vmatprep.mubr.f32.mxu0 0.0
      %4944 = vmatmul.mubr.f32.gmra.mrb[0].mxu0 %v1218
      %v4945 = vpop.f32.mrb[0].mxu0
      %v4946 = vadd.f32 0.0, %v4945
      %v4947 = vpop.f32.mrb[0].mxu0
      %4948 = vmatprep.mubr.f32.mxu0 0.0
      %4949 = vmatmul.mubr.f32.gmra.mrb[0].mxu0 %v1220
      %v4950 = vpop.f32.mrb[0].mxu0
      %v4951 = vadd.f32 0.0, %v4950
      %v4952 = vpop.f32.mrb[0].mxu0
      %4953 = vmatprep.mubr.f32.mxu0 0.0
      %4954 = vmatmul.mubr.f32.gmra.mrb[0].mxu0 %v1222
      %v4955 = vpop.f32.mrb[0].mxu0
      %v4956 = vadd.f32 0.0, %v4955
      %v4957 = vpop.f32.mrb[0].mxu0
      %4958 = vmatprep.mubr.f32.mxu0 0.0
      %4959 = vmatmul.mubr.f32.gmra.mrb[0].mxu0 %v1224
      %v4960 = vpop.f32.mrb[0].mxu0
      %v4961 = vadd.f32 0.0, %v4960
      %v4962 = vpop.f32.mrb[0].mxu0
      %4963 = vmatprep.mubr.f32.mxu0 0.0
      %4964 = vmatmul.mubr.f32.gmra.mrb[0].mxu0 %v1226
      %v4965 = vpop.f32.mrb[0].mxu0
      %v4966 = vadd.f32 0.0, %v4965
      %v4967 = vpop.f32.mrb[0].mxu0
      %4968 = vmatprep.mubr.f32.mxu0 0.0
      %4969 = vmatmul.mubr.f32.gmra.mrb[0].mxu0 %v1228
      %v4970 = vpop.f32.mrb[0].mxu0
      %v4971 = vadd.f32 0.0, %v4970
      %v4972 = vpop.f32.mrb[0].mxu0
      %4973 = vmatprep.mubr.f32.mxu0 0.0
      %4974 = vmatmul.mubr.f32.gmra.mrb[0].mxu0 %v3161
      %v4975 = vpop.f32.mrb[0].mxu0
      %v4976 = vadd.f32 0.0, %v4975
      %v4977 = vpop.f32.mrb[0].mxu0
      %4978 = vmatprep.mubr.f32.mxu0 0.0
      %4979 = vmatmul.mubr.f32.gmra.mrb[0].mxu0 %v3163
      %v4980 = vpop.f32.mrb[0].mxu0
      %v4981 = vadd.f32 0.0, %v4980
      %v4982 = vpop.f32.mrb[0].mxu0
      %4983 = vmatprep.mubr.f32.mxu0 0.0
      %4984 = vmatmul.mubr.f32.gmra.mrb[0].mxu0 %v4765
      %v4985 = vpop.f32.mrb[0].mxu0
      %v4986 = vadd.f32 0.0, %v4985
      %v4987 = vpop.f32.mrb[0].mxu0
      %4988 = vmatprep.mubr.f32.mxu0 0.0
      %4989 = vmatmul.mubr.f32.gmra.mrb[0].mxu0 %v4767
      %v4990 = vpop.f32.mrb[0].mxu0
      %v4991 = vadd.f32 0.0, %v4990
      %v4992 = vpop.f32.mrb[0].mxu0
      %4993 = vdwg.mxu0
      %v4994 = vadd.f32 %v4719, %v4836
      %v4995 = vadd.f32 %v4720, %v4841
      %v4996 = vadd.f32 %v4721, %v4846
      %v4997 = vadd.f32 %v4722, %v4851
      %v4998 = vadd.f32 %v4723, %v4856
      %v4999 = vadd.f32 %v4724, %v4861
      %v5000 = vadd.f32 %v4725, %v4866
      %v5001 = vadd.f32 %v4726, %v4871
      %v5002 = vadd.f32 %v4727, %v4876
      %v5003 = vadd.f32 %v4728, %v4881
      %v5004 = vadd.f32 %v4729, %v4886
      %v5005 = vadd.f32 %v4730, %v4891
      %v5006 = vadd.f32 %v4731, %v4896
      %v5007 = vadd.f32 %v4732, %v4901
      %v5008 = vadd.f32 %v4733, %v4906
      %v5009 = vadd.f32 %v4734, %v4911
      %v5010 = vadd.f32 %v4735, %v4916
      %v5011 = vadd.f32 %v4736, %v4921
      %v5012 = vadd.f32 %v4737, %v4926
      %v5013 = vadd.f32 %v4738, %v4931
      %v5014 = vadd.f32 %v4739, %v4936
      %v5015 = vadd.f32 %v4740, %v4941
      %v5016 = vadd.f32 %v4741, %v4946
      %v5017 = vadd.f32 %v4742, %v4951
      %v5018 = vadd.f32 %v4743, %v4956
      %v5019 = vadd.f32 %v4744, %v4961
      %v5020 = vadd.f32 %v4745, %v4966
      %v5021 = vadd.f32 %v4746, %v4971
      %v5022 = vadd.f32 %v4747, %v4976
      %v5023 = vadd.f32 %v4748, %v4981
      %v5024 = vadd.f32 %v4749, %v4986
      %v5025 = vadd.f32 %v4750, %v4991
      %s5026 = scalar_lea.vmem %s3, 56
      %v5027 = vld [vmem:[%s5026] sm:$0xff]
      %v5028 = vsel %vm328, %v4760, 0
      %v5030 = vsel %vm328, %v4762, 0
      %5032 = vmatprep.subr.mxu0 0.0
      %5033 = vmatpush1.msra.mxu0 %v5027
      %5034 = vmatprep.subr.mxu0 0.0
      %5035 = vmatpush1.msra.mxu0 0.0
      %5036 = vmatprep.subr.mxu0 0.0
      %5037 = vmatpush1.msra.mxu0 0.0
      %5038 = vmatprep.subr.mxu0 0.0
      %5039 = vmatpush1.msra.mxu0 0.0
      %5040 = vmatprep.subr.mxu0 0.0
      %5041 = vmatpush1.msra.mxu0 0.0
      %5042 = vmatprep.subr.mxu0 0.0
      %5043 = vmatpush1.msra.mxu0 0.0
      %5044 = vmatprep.subr.mxu0 0.0
      %5045 = vmatpush1.msra.mxu0 0.0
      %5046 = vmatprep.subr.mxu0 0.0
      %5047 = vmatpush1.msra.mxu0 0.0
      %5048 = vmatprep.subr.mxu0 0.0
      %5049 = vmatpush1.msra.mxu0 0.0
      %5050 = vmatprep.subr.mxu0 0.0
      %5051 = vmatpush1.msra.mxu0 0.0
      %5052 = vmatprep.subr.mxu0 0.0
      %5053 = vmatpush1.msra.mxu0 0.0
      %5054 = vmatprep.subr.mxu0 0.0
      %5055 = vmatpush1.msra.mxu0 0.0
      %5056 = vmatprep.subr.mxu0 0.0
      %5057 = vmatpush1.msra.mxu0 0.0
      %5058 = vmatprep.subr.mxu0 0.0
      %5059 = vmatpush1.msra.mxu0 0.0
      %5060 = vmatprep.subr.mxu0 0.0
      %5061 = vmatpush1.msra.mxu0 0.0
      %5062 = vmatprep.subr.mxu0 0.0
      %5063 = vmatpush1.msra.mxu0 0.0
      %5064 = vmatprep.subr.mxu0 0.0
      %5065 = vmatpush1.msra.mxu0 0.0
      %5066 = vmatprep.subr.mxu0 0.0
      %5067 = vmatpush1.msra.mxu0 0.0
      %5068 = vmatprep.subr.mxu0 0.0
      %5069 = vmatpush1.msra.mxu0 0.0
      %5070 = vmatprep.subr.mxu0 0.0
      %5071 = vmatpush1.msra.mxu0 0.0
      %5072 = vmatprep.subr.mxu0 0.0
      %5073 = vmatpush1.msra.mxu0 0.0
      %5074 = vmatprep.subr.mxu0 0.0
      %5075 = vmatpush1.msra.mxu0 0.0
      %5076 = vmatprep.subr.mxu0 0.0
      %5077 = vmatpush1.msra.mxu0 0.0
      %5078 = vmatprep.subr.mxu0 0.0
      %5079 = vmatpush1.msra.mxu0 0.0
      %5080 = vmatprep.subr.mxu0 0.0
      %5081 = vmatpush1.msra.mxu0 0.0
      %5082 = vmatprep.subr.mxu0 0.0
      %5083 = vmatpush1.msra.mxu0 0.0
      %5084 = vmatprep.subr.mxu0 0.0
      %5085 = vmatpush1.msra.mxu0 0.0
      %5086 = vmatprep.subr.mxu0 0.0
      %5087 = vmatpush1.msra.mxu0 0.0
      %5088 = vmatprep.subr.mxu0 0.0
      %5089 = vmatpush1.msra.mxu0 0.0
      %5090 = vmatprep.subr.mxu0 0.0
      %5091 = vmatpush1.msra.mxu0 0.0
      %5092 = vmatprep.subr.mxu0 0.0
      %5093 = vmatpush1.msra.mxu0 0.0
      %5094 = vmatprep.subr.mxu0 0.0
      %5095 = vmatpush1.msra.mxu0 0.0
      %5096 = vmatprep.mubr.f32.mxu0 0.0
      %5097 = vmatmul.mubr.f32.gmra.mrb[0].mxu0 %v1497
      %v5098 = vpop.f32.mrb[0].mxu0
      %v5099 = vadd.f32 0.0, %v5098
      %v5100 = vpop.f32.mrb[0].mxu0
      %5101 = vmatprep.mubr.f32.mxu0 0.0
      %5102 = vmatmul.mubr.f32.gmra.mrb[0].mxu0 %v1499
      %v5103 = vpop.f32.mrb[0].mxu0
      %v5104 = vadd.f32 0.0, %v5103
      %v5105 = vpop.f32.mrb[0].mxu0
      %5106 = vmatprep.mubr.f32.mxu0 0.0
      %5107 = vmatmul.mubr.f32.gmra.mrb[0].mxu0 %v1501
      %v5108 = vpop.f32.mrb[0].mxu0
      %v5109 = vadd.f32 0.0, %v5108
      %v5110 = vpop.f32.mrb[0].mxu0
      %5111 = vmatprep.mubr.f32.mxu0 0.0
      %5112 = vmatmul.mubr.f32.gmra.mrb[0].mxu0 %v1503
      %v5113 = vpop.f32.mrb[0].mxu0
      %v5114 = vadd.f32 0.0, %v5113
      %v5115 = vpop.f32.mrb[0].mxu0
      %5116 = vmatprep.mubr.f32.mxu0 0.0
      %5117 = vmatmul.mubr.f32.gmra.mrb[0].mxu0 %v1505
      %v5118 = vpop.f32.mrb[0].mxu0
      %v5119 = vadd.f32 0.0, %v5118
      %v5120 = vpop.f32.mrb[0].mxu0
      %5121 = vmatprep.mubr.f32.mxu0 0.0
      %5122 = vmatmul.mubr.f32.gmra.mrb[0].mxu0 %v1507
      %v5123 = vpop.f32.mrb[0].mxu0
      %v5124 = vadd.f32 0.0, %v5123
      %v5125 = vpop.f32.mrb[0].mxu0
      %5126 = vmatprep.mubr.f32.mxu0 0.0
      %5127 = vmatmul.mubr.f32.gmra.mrb[0].mxu0 %v1509
      %v5128 = vpop.f32.mrb[0].mxu0
      %v5129 = vadd.f32 0.0, %v5128
      %v5130 = vpop.f32.mrb[0].mxu0
      %5131 = vmatprep.mubr.f32.mxu0 0.0
      %5132 = vmatmul.mubr.f32.gmra.mrb[0].mxu0 %v1511
      %v5133 = vpop.f32.mrb[0].mxu0
      %v5134 = vadd.f32 0.0, %v5133
      %v5135 = vpop.f32.mrb[0].mxu0
      %5136 = vmatprep.mubr.f32.mxu0 0.0
      %5137 = vmatmul.mubr.f32.gmra.mrb[0].mxu0 %v1513
      %v5138 = vpop.f32.mrb[0].mxu0
      %v5139 = vadd.f32 0.0, %v5138
      %v5140 = vpop.f32.mrb[0].mxu0
      %5141 = vmatprep.mubr.f32.mxu0 0.0
      %5142 = vmatmul.mubr.f32.gmra.mrb[0].mxu0 %v1515
      %v5143 = vpop.f32.mrb[0].mxu0
      %v5144 = vadd.f32 0.0, %v5143
      %v5145 = vpop.f32.mrb[0].mxu0
      %5146 = vmatprep.mubr.f32.mxu0 0.0
      %5147 = vmatmul.mubr.f32.gmra.mrb[0].mxu0 %v1517
      %v5148 = vpop.f32.mrb[0].mxu0
      %v5149 = vadd.f32 0.0, %v5148
      %v5150 = vpop.f32.mrb[0].mxu0
      %5151 = vmatprep.mubr.f32.mxu0 0.0
      %5152 = vmatmul.mubr.f32.gmra.mrb[0].mxu0 %v1519
      %v5153 = vpop.f32.mrb[0].mxu0
      %v5154 = vadd.f32 0.0, %v5153
      %v5155 = vpop.f32.mrb[0].mxu0
      %5156 = vmatprep.mubr.f32.mxu0 0.0
      %5157 = vmatmul.mubr.f32.gmra.mrb[0].mxu0 %v1521
      %v5158 = vpop.f32.mrb[0].mxu0
      %v5159 = vadd.f32 0.0, %v5158
      %v5160 = vpop.f32.mrb[0].mxu0
      %5161 = vmatprep.mubr.f32.mxu0 0.0
      %5162 = vmatmul.mubr.f32.gmra.mrb[0].mxu0 %v1523
      %v5163 = vpop.f32.mrb[0].mxu0
      %v5164 = vadd.f32 0.0, %v5163
      %v5165 = vpop.f32.mrb[0].mxu0
      %5166 = vmatprep.mubr.f32.mxu0 0.0
      %5167 = vmatmul.mubr.f32.gmra.mrb[0].mxu0 %v1525
      %v5168 = vpop.f32.mrb[0].mxu0
      %v5169 = vadd.f32 0.0, %v5168
      %v5170 = vpop.f32.mrb[0].mxu0
      %5171 = vmatprep.mubr.f32.mxu0 0.0
      %5172 = vmatmul.mubr.f32.gmra.mrb[0].mxu0 %v1527
      %v5173 = vpop.f32.mrb[0].mxu0
      %v5174 = vadd.f32 0.0, %v5173
      %v5175 = vpop.f32.mrb[0].mxu0
      %5176 = vmatprep.mubr.f32.mxu0 0.0
      %5177 = vmatmul.mubr.f32.gmra.mrb[0].mxu0 %v1529
      %v5178 = vpop.f32.mrb[0].mxu0
      %v5179 = vadd.f32 0.0, %v5178
      %v5180 = vpop.f32.mrb[0].mxu0
      %5181 = vmatprep.mubr.f32.mxu0 0.0
      %5182 = vmatmul.mubr.f32.gmra.mrb[0].mxu0 %v1531
      %v5183 = vpop.f32.mrb[0].mxu0
      %v5184 = vadd.f32 0.0, %v5183
      %v5185 = vpop.f32.mrb[0].mxu0
      %5186 = vmatprep.mubr.f32.mxu0 0.0
      %5187 = vmatmul.mubr.f32.gmra.mrb[0].mxu0 %v1533
      %v5188 = vpop.f32.mrb[0].mxu0
      %v5189 = vadd.f32 0.0, %v5188
      %v5190 = vpop.f32.mrb[0].mxu0
      %5191 = vmatprep.mubr.f32.mxu0 0.0
      %5192 = vmatmul.mubr.f32.gmra.mrb[0].mxu0 %v1535
      %v5193 = vpop.f32.mrb[0].mxu0
      %v5194 = vadd.f32 0.0, %v5193
      %v5195 = vpop.f32.mrb[0].mxu0
      %5196 = vmatprep.mubr.f32.mxu0 0.0
      %5197 = vmatmul.mubr.f32.gmra.mrb[0].mxu0 %v1537
      %v5198 = vpop.f32.mrb[0].mxu0
      %v5199 = vadd.f32 0.0, %v5198
      %v5200 = vpop.f32.mrb[0].mxu0
      %5201 = vmatprep.mubr.f32.mxu0 0.0
      %5202 = vmatmul.mubr.f32.gmra.mrb[0].mxu0 %v1539
      %v5203 = vpop.f32.mrb[0].mxu0
      %v5204 = vadd.f32 0.0, %v5203
      %v5205 = vpop.f32.mrb[0].mxu0
      %5206 = vmatprep.mubr.f32.mxu0 0.0
      %5207 = vmatmul.mubr.f32.gmra.mrb[0].mxu0 %v1541
      %v5208 = vpop.f32.mrb[0].mxu0
      %v5209 = vadd.f32 0.0, %v5208
      %v5210 = vpop.f32.mrb[0].mxu0
      %5211 = vmatprep.mubr.f32.mxu0 0.0
      %5212 = vmatmul.mubr.f32.gmra.mrb[0].mxu0 %v1543
      %v5213 = vpop.f32.mrb[0].mxu0
      %v5214 = vadd.f32 0.0, %v5213
      %v5215 = vpop.f32.mrb[0].mxu0
      %5216 = vmatprep.mubr.f32.mxu0 0.0
      %5217 = vmatmul.mubr.f32.gmra.mrb[0].mxu0 %v1545
      %v5218 = vpop.f32.mrb[0].mxu0
      %v5219 = vadd.f32 0.0, %v5218
      %v5220 = vpop.f32.mrb[0].mxu0
      %5221 = vmatprep.mubr.f32.mxu0 0.0
      %5222 = vmatmul.mubr.f32.gmra.mrb[0].mxu0 %v1547
      %v5223 = vpop.f32.mrb[0].mxu0
      %v5224 = vadd.f32 0.0, %v5223
      %v5225 = vpop.f32.mrb[0].mxu0
      %5226 = vmatprep.mubr.f32.mxu0 0.0
      %5227 = vmatmul.mubr.f32.gmra.mrb[0].mxu0 %v1549
      %v5228 = vpop.f32.mrb[0].mxu0
      %v5229 = vadd.f32 0.0, %v5228
      %v5230 = vpop.f32.mrb[0].mxu0
      %5231 = vmatprep.mubr.f32.mxu0 0.0
      %5232 = vmatmul.mubr.f32.gmra.mrb[0].mxu0 %v1551
      %v5233 = vpop.f32.mrb[0].mxu0
      %v5234 = vadd.f32 0.0, %v5233
      %v5235 = vpop.f32.mrb[0].mxu0
      %5236 = vmatprep.mubr.f32.mxu0 0.0
      %5237 = vmatmul.mubr.f32.gmra.mrb[0].mxu0 %v3424
      %v5238 = vpop.f32.mrb[0].mxu0
      %v5239 = vadd.f32 0.0, %v5238
      %v5240 = vpop.f32.mrb[0].mxu0
      %5241 = vmatprep.mubr.f32.mxu0 0.0
      %5242 = vmatmul.mubr.f32.gmra.mrb[0].mxu0 %v3426
      %v5243 = vpop.f32.mrb[0].mxu0
      %v5244 = vadd.f32 0.0, %v5243
      %v5245 = vpop.f32.mrb[0].mxu0
      %5246 = vmatprep.mubr.f32.mxu0 0.0
      %5247 = vmatmul.mubr.f32.gmra.mrb[0].mxu0 %v5028
      %v5248 = vpop.f32.mrb[0].mxu0
      %v5249 = vadd.f32 0.0, %v5248
      %v5250 = vpop.f32.mrb[0].mxu0
      %5251 = vmatprep.mubr.f32.mxu0 0.0
      %5252 = vmatmul.mubr.f32.gmra.mrb[0].mxu0 %v5030
      %v5253 = vpop.f32.mrb[0].mxu0
      %v5254 = vadd.f32 0.0, %v5253
      %v5255 = vpop.f32.mrb[0].mxu0
      %5256 = vdwg.mxu0
      %v5257 = vadd.f32 %v4994, %v5099
      %v5258 = vadd.f32 %v4995, %v5104
      %v5259 = vadd.f32 %v4996, %v5109
      %v5260 = vadd.f32 %v4997, %v5114
      %v5261 = vadd.f32 %v4998, %v5119
      %v5262 = vadd.f32 %v4999, %v5124
      %v5263 = vadd.f32 %v5000, %v5129
      %v5264 = vadd.f32 %v5001, %v5134
      %v5265 = vadd.f32 %v5002, %v5139
      %v5266 = vadd.f32 %v5003, %v5144
      %v5267 = vadd.f32 %v5004, %v5149
      %v5268 = vadd.f32 %v5005, %v5154
      %v5269 = vadd.f32 %v5006, %v5159
      %v5270 = vadd.f32 %v5007, %v5164
      %v5271 = vadd.f32 %v5008, %v5169
      %v5272 = vadd.f32 %v5009, %v5174
      %v5273 = vadd.f32 %v5010, %v5179
      %v5274 = vadd.f32 %v5011, %v5184
      %v5275 = vadd.f32 %v5012, %v5189
      %v5276 = vadd.f32 %v5013, %v5194
      %v5277 = vadd.f32 %v5014, %v5199
      %v5278 = vadd.f32 %v5015, %v5204
      %v5279 = vadd.f32 %v5016, %v5209
      %v5280 = vadd.f32 %v5017, %v5214
      %v5281 = vadd.f32 %v5018, %v5219
      %v5282 = vadd.f32 %v5019, %v5224
      %v5283 = vadd.f32 %v5020, %v5229
      %v5284 = vadd.f32 %v5021, %v5234
      %v5285 = vadd.f32 %v5022, %v5239
      %v5286 = vadd.f32 %v5023, %v5244
      %v5287 = vadd.f32 %v5024, %v5249
      %v5288 = vadd.f32 %v5025, %v5254
      %v5289 = vrot.slane %v269, 2
      %v5290 = vrot.slane %v270, 2
      %v5291 = vsel %vm1810, %v5289, %v5290
      %v5292 = vrot.slane %v271, 2
      %v5293 = vsel %vm1810, %v5290, %v5292
      %v5294 = vrot.slane %v323, 2
      %v5295 = vrot.slane %v324, 2
      %v5296 = vsel %vm1810, %v5294, %v5295
      %v5297 = vrot.slane %v325, 2
      %v5298 = vsel %vm1810, %v5295, %v5297
      %s5299 = scalar_lea.vmem %s2, 64
      %v5300 = vld [vmem:[%s5299] sm:$0xff]
      %v5301 = vsel %vm328, %v5291, 0
      %v5303 = vsel %vm328, %v5293, 0
      %5305 = vmatprep.subr.mxu0 0.0
      %5306 = vmatpush1.msra.mxu0 %v5300
      %5307 = vmatprep.subr.mxu0 0.0
      %5308 = vmatpush1.msra.mxu0 0.0
      %5309 = vmatprep.subr.mxu0 0.0
      %5310 = vmatpush1.msra.mxu0 0.0
      %5311 = vmatprep.subr.mxu0 0.0
      %5312 = vmatpush1.msra.mxu0 0.0
      %5313 = vmatprep.subr.mxu0 0.0
      %5314 = vmatpush1.msra.mxu0 0.0
      %5315 = vmatprep.subr.mxu0 0.0
      %5316 = vmatpush1.msra.mxu0 0.0
      %5317 = vmatprep.subr.mxu0 0.0
      %5318 = vmatpush1.msra.mxu0 0.0
      %5319 = vmatprep.subr.mxu0 0.0
      %5320 = vmatpush1.msra.mxu0 0.0
      %5321 = vmatprep.subr.mxu0 0.0
      %5322 = vmatpush1.msra.mxu0 0.0
      %5323 = vmatprep.subr.mxu0 0.0
      %5324 = vmatpush1.msra.mxu0 0.0
      %5325 = vmatprep.subr.mxu0 0.0
      %5326 = vmatpush1.msra.mxu0 0.0
      %5327 = vmatprep.subr.mxu0 0.0
      %5328 = vmatpush1.msra.mxu0 0.0
      %5329 = vmatprep.subr.mxu0 0.0
      %5330 = vmatpush1.msra.mxu0 0.0
      %5331 = vmatprep.subr.mxu0 0.0
      %5332 = vmatpush1.msra.mxu0 0.0
      %5333 = vmatprep.subr.mxu0 0.0
      %5334 = vmatpush1.msra.mxu0 0.0
      %5335 = vmatprep.subr.mxu0 0.0
      %5336 = vmatpush1.msra.mxu0 0.0
      %5337 = vmatprep.subr.mxu0 0.0
      %5338 = vmatpush1.msra.mxu0 0.0
      %5339 = vmatprep.subr.mxu0 0.0
      %5340 = vmatpush1.msra.mxu0 0.0
      %5341 = vmatprep.subr.mxu0 0.0
      %5342 = vmatpush1.msra.mxu0 0.0
      %5343 = vmatprep.subr.mxu0 0.0
      %5344 = vmatpush1.msra.mxu0 0.0
      %5345 = vmatprep.subr.mxu0 0.0
      %5346 = vmatpush1.msra.mxu0 0.0
      %5347 = vmatprep.subr.mxu0 0.0
      %5348 = vmatpush1.msra.mxu0 0.0
      %5349 = vmatprep.subr.mxu0 0.0
      %5350 = vmatpush1.msra.mxu0 0.0
      %5351 = vmatprep.subr.mxu0 0.0
      %5352 = vmatpush1.msra.mxu0 0.0
      %5353 = vmatprep.subr.mxu0 0.0
      %5354 = vmatpush1.msra.mxu0 0.0
      %5355 = vmatprep.subr.mxu0 0.0
      %5356 = vmatpush1.msra.mxu0 0.0
      %5357 = vmatprep.subr.mxu0 0.0
      %5358 = vmatpush1.msra.mxu0 0.0
      %5359 = vmatprep.subr.mxu0 0.0
      %5360 = vmatpush1.msra.mxu0 0.0
      %5361 = vmatprep.subr.mxu0 0.0
      %5362 = vmatpush1.msra.mxu0 0.0
      %5363 = vmatprep.subr.mxu0 0.0
      %5364 = vmatpush1.msra.mxu0 0.0
      %5365 = vmatprep.subr.mxu0 0.0
      %5366 = vmatpush1.msra.mxu0 0.0
      %5367 = vmatprep.subr.mxu0 0.0
      %5368 = vmatpush1.msra.mxu0 0.0
      %5369 = vmatprep.mubr.f32.mxu0 0.0
      %5370 = vmatmul.mubr.f32.gmra.mrb[0].mxu0 %v1981
      %v5371 = vpop.f32.mrb[0].mxu0
      %v5372 = vadd.f32 0.0, %v5371
      %v5373 = vpop.f32.mrb[0].mxu0
      %5374 = vmatprep.mubr.f32.mxu0 0.0
      %5375 = vmatmul.mubr.f32.gmra.mrb[0].mxu0 %v1983
      %v5376 = vpop.f32.mrb[0].mxu0
      %v5377 = vadd.f32 0.0, %v5376
      %v5378 = vpop.f32.mrb[0].mxu0
      %5379 = vmatprep.mubr.f32.mxu0 0.0
      %5380 = vmatmul.mubr.f32.gmra.mrb[0].mxu0 %v1985
      %v5381 = vpop.f32.mrb[0].mxu0
      %v5382 = vadd.f32 0.0, %v5381
      %v5383 = vpop.f32.mrb[0].mxu0
      %5384 = vmatprep.mubr.f32.mxu0 0.0
      %5385 = vmatmul.mubr.f32.gmra.mrb[0].mxu0 %v1987
      %v5386 = vpop.f32.mrb[0].mxu0
      %v5387 = vadd.f32 0.0, %v5386
      %v5388 = vpop.f32.mrb[0].mxu0
      %5389 = vmatprep.mubr.f32.mxu0 0.0
      %5390 = vmatmul.mubr.f32.gmra.mrb[0].mxu0 %v1989
      %v5391 = vpop.f32.mrb[0].mxu0
      %v5392 = vadd.f32 0.0, %v5391
      %v5393 = vpop.f32.mrb[0].mxu0
      %5394 = vmatprep.mubr.f32.mxu0 0.0
      %5395 = vmatmul.mubr.f32.gmra.mrb[0].mxu0 %v1991
      %v5396 = vpop.f32.mrb[0].mxu0
      %v5397 = vadd.f32 0.0, %v5396
      %v5398 = vpop.f32.mrb[0].mxu0
      %5399 = vmatprep.mubr.f32.mxu0 0.0
      %5400 = vmatmul.mubr.f32.gmra.mrb[0].mxu0 %v1993
      %v5401 = vpop.f32.mrb[0].mxu0
      %v5402 = vadd.f32 0.0, %v5401
      %v5403 = vpop.f32.mrb[0].mxu0
      %5404 = vmatprep.mubr.f32.mxu0 0.0
      %5405 = vmatmul.mubr.f32.gmra.mrb[0].mxu0 %v1995
      %v5406 = vpop.f32.mrb[0].mxu0
      %v5407 = vadd.f32 0.0, %v5406
      %v5408 = vpop.f32.mrb[0].mxu0
      %5409 = vmatprep.mubr.f32.mxu0 0.0
      %5410 = vmatmul.mubr.f32.gmra.mrb[0].mxu0 %v1997
      %v5411 = vpop.f32.mrb[0].mxu0
      %v5412 = vadd.f32 0.0, %v5411
      %v5413 = vpop.f32.mrb[0].mxu0
      %5414 = vmatprep.mubr.f32.mxu0 0.0
      %5415 = vmatmul.mubr.f32.gmra.mrb[0].mxu0 %v1999
      %v5416 = vpop.f32.mrb[0].mxu0
      %v5417 = vadd.f32 0.0, %v5416
      %v5418 = vpop.f32.mrb[0].mxu0
      %5419 = vmatprep.mubr.f32.mxu0 0.0
      %5420 = vmatmul.mubr.f32.gmra.mrb[0].mxu0 %v2001
      %v5421 = vpop.f32.mrb[0].mxu0
      %v5422 = vadd.f32 0.0, %v5421
      %v5423 = vpop.f32.mrb[0].mxu0
      %5424 = vmatprep.mubr.f32.mxu0 0.0
      %5425 = vmatmul.mubr.f32.gmra.mrb[0].mxu0 %v2003
      %v5426 = vpop.f32.mrb[0].mxu0
      %v5427 = vadd.f32 0.0, %v5426
      %v5428 = vpop.f32.mrb[0].mxu0
      %5429 = vmatprep.mubr.f32.mxu0 0.0
      %5430 = vmatmul.mubr.f32.gmra.mrb[0].mxu0 %v2005
      %v5431 = vpop.f32.mrb[0].mxu0
      %v5432 = vadd.f32 0.0, %v5431
      %v5433 = vpop.f32.mrb[0].mxu0
      %5434 = vmatprep.mubr.f32.mxu0 0.0
      %5435 = vmatmul.mubr.f32.gmra.mrb[0].mxu0 %v2007
      %v5436 = vpop.f32.mrb[0].mxu0
      %v5437 = vadd.f32 0.0, %v5436
      %v5438 = vpop.f32.mrb[0].mxu0
      %5439 = vmatprep.mubr.f32.mxu0 0.0
      %5440 = vmatmul.mubr.f32.gmra.mrb[0].mxu0 %v2009
      %v5441 = vpop.f32.mrb[0].mxu0
      %v5442 = vadd.f32 0.0, %v5441
      %v5443 = vpop.f32.mrb[0].mxu0
      %5444 = vmatprep.mubr.f32.mxu0 0.0
      %5445 = vmatmul.mubr.f32.gmra.mrb[0].mxu0 %v2011
      %v5446 = vpop.f32.mrb[0].mxu0
      %v5447 = vadd.f32 0.0, %v5446
      %v5448 = vpop.f32.mrb[0].mxu0
      %5449 = vmatprep.mubr.f32.mxu0 0.0
      %5450 = vmatmul.mubr.f32.gmra.mrb[0].mxu0 %v2013
      %v5451 = vpop.f32.mrb[0].mxu0
      %v5452 = vadd.f32 0.0, %v5451
      %v5453 = vpop.f32.mrb[0].mxu0
      %5454 = vmatprep.mubr.f32.mxu0 0.0
      %5455 = vmatmul.mubr.f32.gmra.mrb[0].mxu0 %v2015
      %v5456 = vpop.f32.mrb[0].mxu0
      %v5457 = vadd.f32 0.0, %v5456
      %v5458 = vpop.f32.mrb[0].mxu0
      %5459 = vmatprep.mubr.f32.mxu0 0.0
      %5460 = vmatmul.mubr.f32.gmra.mrb[0].mxu0 %v2017
      %v5461 = vpop.f32.mrb[0].mxu0
      %v5462 = vadd.f32 0.0, %v5461
      %v5463 = vpop.f32.mrb[0].mxu0
      %5464 = vmatprep.mubr.f32.mxu0 0.0
      %5465 = vmatmul.mubr.f32.gmra.mrb[0].mxu0 %v2019
      %v5466 = vpop.f32.mrb[0].mxu0
      %v5467 = vadd.f32 0.0, %v5466
      %v5468 = vpop.f32.mrb[0].mxu0
      %5469 = vmatprep.mubr.f32.mxu0 0.0
      %5470 = vmatmul.mubr.f32.gmra.mrb[0].mxu0 %v2021
      %v5471 = vpop.f32.mrb[0].mxu0
      %v5472 = vadd.f32 0.0, %v5471
      %v5473 = vpop.f32.mrb[0].mxu0
      %5474 = vmatprep.mubr.f32.mxu0 0.0
      %5475 = vmatmul.mubr.f32.gmra.mrb[0].mxu0 %v2023
      %v5476 = vpop.f32.mrb[0].mxu0
      %v5477 = vadd.f32 0.0, %v5476
      %v5478 = vpop.f32.mrb[0].mxu0
      %5479 = vmatprep.mubr.f32.mxu0 0.0
      %5480 = vmatmul.mubr.f32.gmra.mrb[0].mxu0 %v2025
      %v5481 = vpop.f32.mrb[0].mxu0
      %v5482 = vadd.f32 0.0, %v5481
      %v5483 = vpop.f32.mrb[0].mxu0
      %5484 = vmatprep.mubr.f32.mxu0 0.0
      %5485 = vmatmul.mubr.f32.gmra.mrb[0].mxu0 %v2027
      %v5486 = vpop.f32.mrb[0].mxu0
      %v5487 = vadd.f32 0.0, %v5486
      %v5488 = vpop.f32.mrb[0].mxu0
      %5489 = vmatprep.mubr.f32.mxu0 0.0
      %5490 = vmatmul.mubr.f32.gmra.mrb[0].mxu0 %v2029
      %v5491 = vpop.f32.mrb[0].mxu0
      %v5492 = vadd.f32 0.0, %v5491
      %v5493 = vpop.f32.mrb[0].mxu0
      %5494 = vmatprep.mubr.f32.mxu0 0.0
      %5495 = vmatmul.mubr.f32.gmra.mrb[0].mxu0 %v2031
      %v5496 = vpop.f32.mrb[0].mxu0
      %v5497 = vadd.f32 0.0, %v5496
      %v5498 = vpop.f32.mrb[0].mxu0
      %5499 = vmatprep.mubr.f32.mxu0 0.0
      %5500 = vmatmul.mubr.f32.gmra.mrb[0].mxu0 %v2033
      %v5501 = vpop.f32.mrb[0].mxu0
      %v5502 = vadd.f32 0.0, %v5501
      %v5503 = vpop.f32.mrb[0].mxu0
      %5504 = vmatprep.mubr.f32.mxu0 0.0
      %5505 = vmatmul.mubr.f32.gmra.mrb[0].mxu0 %v2035
      %v5506 = vpop.f32.mrb[0].mxu0
      %v5507 = vadd.f32 0.0, %v5506
      %v5508 = vpop.f32.mrb[0].mxu0
      %5509 = vmatprep.mubr.f32.mxu0 0.0
      %5510 = vmatmul.mubr.f32.gmra.mrb[0].mxu0 %v3697
      %v5511 = vpop.f32.mrb[0].mxu0
      %v5512 = vadd.f32 0.0, %v5511
      %v5513 = vpop.f32.mrb[0].mxu0
      %5514 = vmatprep.mubr.f32.mxu0 0.0
      %5515 = vmatmul.mubr.f32.gmra.mrb[0].mxu0 %v3699
      %v5516 = vpop.f32.mrb[0].mxu0
      %v5517 = vadd.f32 0.0, %v5516
      %v5518 = vpop.f32.mrb[0].mxu0
      %5519 = vmatprep.mubr.f32.mxu0 0.0
      %5520 = vmatmul.mubr.f32.gmra.mrb[0].mxu0 %v5301
      %v5521 = vpop.f32.mrb[0].mxu0
      %v5522 = vadd.f32 0.0, %v5521
      %v5523 = vpop.f32.mrb[0].mxu0
      %5524 = vmatprep.mubr.f32.mxu0 0.0
      %5525 = vmatmul.mubr.f32.gmra.mrb[0].mxu0 %v5303
      %v5526 = vpop.f32.mrb[0].mxu0
      %v5527 = vadd.f32 0.0, %v5526
      %v5528 = vpop.f32.mrb[0].mxu0
      %5529 = vdwg.mxu0
      %v5530 = vadd.f32 %v5257, %v5372
      %v5531 = vadd.f32 %v5258, %v5377
      %v5532 = vadd.f32 %v5259, %v5382
      %v5533 = vadd.f32 %v5260, %v5387
      %v5534 = vadd.f32 %v5261, %v5392
      %v5535 = vadd.f32 %v5262, %v5397
      %v5536 = vadd.f32 %v5263, %v5402
      %v5537 = vadd.f32 %v5264, %v5407
      %v5538 = vadd.f32 %v5265, %v5412
      %v5539 = vadd.f32 %v5266, %v5417
      %v5540 = vadd.f32 %v5267, %v5422
      %v5541 = vadd.f32 %v5268, %v5427
      %v5542 = vadd.f32 %v5269, %v5432
      %v5543 = vadd.f32 %v5270, %v5437
      %v5544 = vadd.f32 %v5271, %v5442
      %v5545 = vadd.f32 %v5272, %v5447
      %v5546 = vadd.f32 %v5273, %v5452
      %v5547 = vadd.f32 %v5274, %v5457
      %v5548 = vadd.f32 %v5275, %v5462
      %v5549 = vadd.f32 %v5276, %v5467
      %v5550 = vadd.f32 %v5277, %v5472
      %v5551 = vadd.f32 %v5278, %v5477
      %v5552 = vadd.f32 %v5279, %v5482
      %v5553 = vadd.f32 %v5280, %v5487
      %v5554 = vadd.f32 %v5281, %v5492
      %v5555 = vadd.f32 %v5282, %v5497
      %v5556 = vadd.f32 %v5283, %v5502
      %v5557 = vadd.f32 %v5284, %v5507
      %v5558 = vadd.f32 %v5285, %v5512
      %v5559 = vadd.f32 %v5286, %v5517
      %v5560 = vadd.f32 %v5287, %v5522
      %v5561 = vadd.f32 %v5288, %v5527
      %s5562 = scalar_lea.vmem %s3, 64
      %v5563 = vld [vmem:[%s5562] sm:$0xff]
      %v5564 = vsel %vm328, %v5296, 0
      %v5566 = vsel %vm328, %v5298, 0
      %5568 = vmatprep.subr.mxu0 0.0
      %5569 = vmatpush1.msra.mxu0 %v5563
      %5570 = vmatprep.subr.mxu0 0.0
      %5571 = vmatpush1.msra.mxu0 0.0
      %5572 = vmatprep.subr.mxu0 0.0
      %5573 = vmatpush1.msra.mxu0 0.0
      %5574 = vmatprep.subr.mxu0 0.0
      %5575 = vmatpush1.msra.mxu0 0.0
      %5576 = vmatprep.subr.mxu0 0.0
      %5577 = vmatpush1.msra.mxu0 0.0
      %5578 = vmatprep.subr.mxu0 0.0
      %5579 = vmatpush1.msra.mxu0 0.0
      %5580 = vmatprep.subr.mxu0 0.0
      %5581 = vmatpush1.msra.mxu0 0.0
      %5582 = vmatprep.subr.mxu0 0.0
      %5583 = vmatpush1.msra.mxu0 0.0
      %5584 = vmatprep.subr.mxu0 0.0
      %5585 = vmatpush1.msra.mxu0 0.0
      %5586 = vmatprep.subr.mxu0 0.0
      %5587 = vmatpush1.msra.mxu0 0.0
      %5588 = vmatprep.subr.mxu0 0.0
      %5589 = vmatpush1.msra.mxu0 0.0
      %5590 = vmatprep.subr.mxu0 0.0
      %5591 = vmatpush1.msra.mxu0 0.0
      %5592 = vmatprep.subr.mxu0 0.0
      %5593 = vmatpush1.msra.mxu0 0.0
      %5594 = vmatprep.subr.mxu0 0.0
      %5595 = vmatpush1.msra.mxu0 0.0
      %5596 = vmatprep.subr.mxu0 0.0
      %5597 = vmatpush1.msra.mxu0 0.0
      %5598 = vmatprep.subr.mxu0 0.0
      %5599 = vmatpush1.msra.mxu0 0.0
      %5600 = vmatprep.subr.mxu0 0.0
      %5601 = vmatpush1.msra.mxu0 0.0
      %5602 = vmatprep.subr.mxu0 0.0
      %5603 = vmatpush1.msra.mxu0 0.0
      %5604 = vmatprep.subr.mxu0 0.0
      %5605 = vmatpush1.msra.mxu0 0.0
      %5606 = vmatprep.subr.mxu0 0.0
      %5607 = vmatpush1.msra.mxu0 0.0
      %5608 = vmatprep.subr.mxu0 0.0
      %5609 = vmatpush1.msra.mxu0 0.0
      %5610 = vmatprep.subr.mxu0 0.0
      %5611 = vmatpush1.msra.mxu0 0.0
      %5612 = vmatprep.subr.mxu0 0.0
      %5613 = vmatpush1.msra.mxu0 0.0
      %5614 = vmatprep.subr.mxu0 0.0
      %5615 = vmatpush1.msra.mxu0 0.0
      %5616 = vmatprep.subr.mxu0 0.0
      %5617 = vmatpush1.msra.mxu0 0.0
      %5618 = vmatprep.subr.mxu0 0.0
      %5619 = vmatpush1.msra.mxu0 0.0
      %5620 = vmatprep.subr.mxu0 0.0
      %5621 = vmatpush1.msra.mxu0 0.0
      %5622 = vmatprep.subr.mxu0 0.0
      %5623 = vmatpush1.msra.mxu0 0.0
      %5624 = vmatprep.subr.mxu0 0.0
      %5625 = vmatpush1.msra.mxu0 0.0
      %5626 = vmatprep.subr.mxu0 0.0
      %5627 = vmatpush1.msra.mxu0 0.0
      %5628 = vmatprep.subr.mxu0 0.0
      %5629 = vmatpush1.msra.mxu0 0.0
      %5630 = vmatprep.subr.mxu0 0.0
      %5631 = vmatpush1.msra.mxu0 0.0
      %5632 = vmatprep.mubr.f32.mxu0 0.0
      %5633 = vmatmul.mubr.f32.gmra.mrb[0].mxu0 %v2304
      %v5634 = vpop.f32.mrb[0].mxu0
      %v5635 = vadd.f32 0.0, %v5634
      %v5636 = vpop.f32.mrb[0].mxu0
      %5637 = vmatprep.mubr.f32.mxu0 0.0
      %5638 = vmatmul.mubr.f32.gmra.mrb[0].mxu0 %v2306
      %v5639 = vpop.f32.mrb[0].mxu0
      %v5640 = vadd.f32 0.0, %v5639
      %v5641 = vpop.f32.mrb[0].mxu0
      %5642 = vmatprep.mubr.f32.mxu0 0.0
      %5643 = vmatmul.mubr.f32.gmra.mrb[0].mxu0 %v2308
      %v5644 = vpop.f32.mrb[0].mxu0
      %v5645 = vadd.f32 0.0, %v5644
      %v5646 = vpop.f32.mrb[0].mxu0
      %5647 = vmatprep.mubr.f32.mxu0 0.0
      %5648 = vmatmul.mubr.f32.gmra.mrb[0].mxu0 %v2310
      %v5649 = vpop.f32.mrb[0].mxu0
      %v5650 = vadd.f32 0.0, %v5649
      %v5651 = vpop.f32.mrb[0].mxu0
      %5652 = vmatprep.mubr.f32.mxu0 0.0
      %5653 = vmatmul.mubr.f32.gmra.mrb[0].mxu0 %v2312
      %v5654 = vpop.f32.mrb[0].mxu0
      %v5655 = vadd.f32 0.0, %v5654
      %v5656 = vpop.f32.mrb[0].mxu0
      %5657 = vmatprep.mubr.f32.mxu0 0.0
      %5658 = vmatmul.mubr.f32.gmra.mrb[0].mxu0 %v2314
      %v5659 = vpop.f32.mrb[0].mxu0
      %v5660 = vadd.f32 0.0, %v5659
      %v5661 = vpop.f32.mrb[0].mxu0
      %5662 = vmatprep.mubr.f32.mxu0 0.0
      %5663 = vmatmul.mubr.f32.gmra.mrb[0].mxu0 %v2316
      %v5664 = vpop.f32.mrb[0].mxu0
      %v5665 = vadd.f32 0.0, %v5664
      %v5666 = vpop.f32.mrb[0].mxu0
      %5667 = vmatprep.mubr.f32.mxu0 0.0
      %5668 = vmatmul.mubr.f32.gmra.mrb[0].mxu0 %v2318
      %v5669 = vpop.f32.mrb[0].mxu0
      %v5670 = vadd.f32 0.0, %v5669
      %v5671 = vpop.f32.mrb[0].mxu0
      %5672 = vmatprep.mubr.f32.mxu0 0.0
      %5673 = vmatmul.mubr.f32.gmra.mrb[0].mxu0 %v2320
      %v5674 = vpop.f32.mrb[0].mxu0
      %v5675 = vadd.f32 0.0, %v5674
      %v5676 = vpop.f32.mrb[0].mxu0
      %5677 = vmatprep.mubr.f32.mxu0 0.0
      %5678 = vmatmul.mubr.f32.gmra.mrb[0].mxu0 %v2322
      %v5679 = vpop.f32.mrb[0].mxu0
      %v5680 = vadd.f32 0.0, %v5679
      %v5681 = vpop.f32.mrb[0].mxu0
      %5682 = vmatprep.mubr.f32.mxu0 0.0
      %5683 = vmatmul.mubr.f32.gmra.mrb[0].mxu0 %v2324
      %v5684 = vpop.f32.mrb[0].mxu0
      %v5685 = vadd.f32 0.0, %v5684
      %v5686 = vpop.f32.mrb[0].mxu0
      %5687 = vmatprep.mubr.f32.mxu0 0.0
      %5688 = vmatmul.mubr.f32.gmra.mrb[0].mxu0 %v2326
      %v5689 = vpop.f32.mrb[0].mxu0
      %v5690 = vadd.f32 0.0, %v5689
      %v5691 = vpop.f32.mrb[0].mxu0
      %5692 = vmatprep.mubr.f32.mxu0 0.0
      %5693 = vmatmul.mubr.f32.gmra.mrb[0].mxu0 %v2328
      %v5694 = vpop.f32.mrb[0].mxu0
      %v5695 = vadd.f32 0.0, %v5694
      %v5696 = vpop.f32.mrb[0].mxu0
      %5697 = vmatprep.mubr.f32.mxu0 0.0
      %5698 = vmatmul.mubr.f32.gmra.mrb[0].mxu0 %v2330
      %v5699 = vpop.f32.mrb[0].mxu0
      %v5700 = vadd.f32 0.0, %v5699
      %v5701 = vpop.f32.mrb[0].mxu0
      %5702 = vmatprep.mubr.f32.mxu0 0.0
      %5703 = vmatmul.mubr.f32.gmra.mrb[0].mxu0 %v2332
      %v5704 = vpop.f32.mrb[0].mxu0
      %v5705 = vadd.f32 0.0, %v5704
      %v5706 = vpop.f32.mrb[0].mxu0
      %5707 = vmatprep.mubr.f32.mxu0 0.0
      %5708 = vmatmul.mubr.f32.gmra.mrb[0].mxu0 %v2334
      %v5709 = vpop.f32.mrb[0].mxu0
      %v5710 = vadd.f32 0.0, %v5709
      %v5711 = vpop.f32.mrb[0].mxu0
      %5712 = vmatprep.mubr.f32.mxu0 0.0
      %5713 = vmatmul.mubr.f32.gmra.mrb[0].mxu0 %v2336
      %v5714 = vpop.f32.mrb[0].mxu0
      %v5715 = vadd.f32 0.0, %v5714
      %v5716 = vpop.f32.mrb[0].mxu0
      %5717 = vmatprep.mubr.f32.mxu0 0.0
      %5718 = vmatmul.mubr.f32.gmra.mrb[0].mxu0 %v2338
      %v5719 = vpop.f32.mrb[0].mxu0
      %v5720 = vadd.f32 0.0, %v5719
      %v5721 = vpop.f32.mrb[0].mxu0
      %5722 = vmatprep.mubr.f32.mxu0 0.0
      %5723 = vmatmul.mubr.f32.gmra.mrb[0].mxu0 %v2340
      %v5724 = vpop.f32.mrb[0].mxu0
      %v5725 = vadd.f32 0.0, %v5724
      %v5726 = vpop.f32.mrb[0].mxu0
      %5727 = vmatprep.mubr.f32.mxu0 0.0
      %5728 = vmatmul.mubr.f32.gmra.mrb[0].mxu0 %v2342
      %v5729 = vpop.f32.mrb[0].mxu0
      %v5730 = vadd.f32 0.0, %v5729
      %v5731 = vpop.f32.mrb[0].mxu0
      %5732 = vmatprep.mubr.f32.mxu0 0.0
      %5733 = vmatmul.mubr.f32.gmra.mrb[0].mxu0 %v2344
      %v5734 = vpop.f32.mrb[0].mxu0
      %v5735 = vadd.f32 0.0, %v5734
      %v5736 = vpop.f32.mrb[0].mxu0
      %5737 = vmatprep.mubr.f32.mxu0 0.0
      %5738 = vmatmul.mubr.f32.gmra.mrb[0].mxu0 %v2346
      %v5739 = vpop.f32.mrb[0].mxu0
      %v5740 = vadd.f32 0.0, %v5739
      %v5741 = vpop.f32.mrb[0].mxu0
      %5742 = vmatprep.mubr.f32.mxu0 0.0
      %5743 = vmatmul.mubr.f32.gmra.mrb[0].mxu0 %v2348
      %v5744 = vpop.f32.mrb[0].mxu0
      %v5745 = vadd.f32 0.0, %v5744
      %v5746 = vpop.f32.mrb[0].mxu0
      %5747 = vmatprep.mubr.f32.mxu0 0.0
      %5748 = vmatmul.mubr.f32.gmra.mrb[0].mxu0 %v2350
      %v5749 = vpop.f32.mrb[0].mxu0
      %v5750 = vadd.f32 0.0, %v5749
      %v5751 = vpop.f32.mrb[0].mxu0
      %5752 = vmatprep.mubr.f32.mxu0 0.0
      %5753 = vmatmul.mubr.f32.gmra.mrb[0].mxu0 %v2352
      %v5754 = vpop.f32.mrb[0].mxu0
      %v5755 = vadd.f32 0.0, %v5754
      %v5756 = vpop.f32.mrb[0].mxu0
      %5757 = vmatprep.mubr.f32.mxu0 0.0
      %5758 = vmatmul.mubr.f32.gmra.mrb[0].mxu0 %v2354
      %v5759 = vpop.f32.mrb[0].mxu0
      %v5760 = vadd.f32 0.0, %v5759
      %v5761 = vpop.f32.mrb[0].mxu0
      %5762 = vmatprep.mubr.f32.mxu0 0.0
      %5763 = vmatmul.mubr.f32.gmra.mrb[0].mxu0 %v2356
      %v5764 = vpop.f32.mrb[0].mxu0
      %v5765 = vadd.f32 0.0, %v5764
      %v5766 = vpop.f32.mrb[0].mxu0
      %5767 = vmatprep.mubr.f32.mxu0 0.0
      %5768 = vmatmul.mubr.f32.gmra.mrb[0].mxu0 %v2358
      %v5769 = vpop.f32.mrb[0].mxu0
      %v5770 = vadd.f32 0.0, %v5769
      %v5771 = vpop.f32.mrb[0].mxu0
      %5772 = vmatprep.mubr.f32.mxu0 0.0
      %5773 = vmatmul.mubr.f32.gmra.mrb[0].mxu0 %v3960
      %v5774 = vpop.f32.mrb[0].mxu0
      %v5775 = vadd.f32 0.0, %v5774
      %v5776 = vpop.f32.mrb[0].mxu0
      %5777 = vmatprep.mubr.f32.mxu0 0.0
      %5778 = vmatmul.mubr.f32.gmra.mrb[0].mxu0 %v3962
      %v5779 = vpop.f32.mrb[0].mxu0
      %v5780 = vadd.f32 0.0, %v5779
      %v5781 = vpop.f32.mrb[0].mxu0
      %5782 = vmatprep.mubr.f32.mxu0 0.0
      %5783 = vmatmul.mubr.f32.gmra.mrb[0].mxu0 %v5564
      %v5784 = vpop.f32.mrb[0].mxu0
      %v5785 = vadd.f32 0.0, %v5784
      %v5786 = vpop.f32.mrb[0].mxu0
      %5787 = vmatprep.mubr.f32.mxu0 0.0
      %5788 = vmatmul.mubr.f32.gmra.mrb[0].mxu0 %v5566
      %v5789 = vpop.f32.mrb[0].mxu0
      %v5790 = vadd.f32 0.0, %v5789
      %v5791 = vpop.f32.mrb[0].mxu0
      %5792 = vdwg.mxu0
      %v5793 = vadd.f32 %v5530, %v5635
      %v5794 = vadd.f32 %v5531, %v5640
      %v5795 = vadd.f32 %v5532, %v5645
      %v5796 = vadd.f32 %v5533, %v5650
      %v5797 = vadd.f32 %v5534, %v5655
      %v5798 = vadd.f32 %v5535, %v5660
      %v5799 = vadd.f32 %v5536, %v5665
      %v5800 = vadd.f32 %v5537, %v5670
      %v5801 = vadd.f32 %v5538, %v5675
      %v5802 = vadd.f32 %v5539, %v5680
      %v5803 = vadd.f32 %v5540, %v5685
      %v5804 = vadd.f32 %v5541, %v5690
      %v5805 = vadd.f32 %v5542, %v5695
      %v5806 = vadd.f32 %v5543, %v5700
      %v5807 = vadd.f32 %v5544, %v5705
      %v5808 = vadd.f32 %v5545, %v5710
      %v5809 = vadd.f32 %v5546, %v5715
      %v5810 = vadd.f32 %v5547, %v5720
      %v5811 = vadd.f32 %v5548, %v5725
      %v5812 = vadd.f32 %v5549, %v5730
      %v5813 = vadd.f32 %v5550, %v5735
      %v5814 = vadd.f32 %v5551, %v5740
      %v5815 = vadd.f32 %v5552, %v5745
      %v5816 = vadd.f32 %v5553, %v5750
      %v5817 = vadd.f32 %v5554, %v5755
      %v5818 = vadd.f32 %v5555, %v5760
      %v5819 = vadd.f32 %v5556, %v5765
      %v5820 = vadd.f32 %v5557, %v5770
      %v5821 = vadd.f32 %v5558, %v5775
      %v5822 = vadd.f32 %v5559, %v5780
      %v5823 = vadd.f32 %v5560, %v5785
      %v5824 = vadd.f32 %v5561, %v5790
      %vm5825 = vcmask 130048
      %5826 = vst.msk [vmem:[%s217] sm:$0xff] %vm5825, %v5793
      %5827 = vst.msk [vmem:[%s217 + $0x8] sm:$0xff] %vm5825, %v5794
      %5828 = vst.msk [vmem:[%s217 + $0x10] sm:$0xff] %vm5825, %v5795
      %5829 = vst.msk [vmem:[%s217 + $0x18] sm:$0xff] %vm5825, %v5796
      %5830 = vst.msk [vmem:[%s217 + $0x20] sm:$0xff] %vm5825, %v5797
      %5831 = vst.msk [vmem:[%s217 + $0x28] sm:$0xff] %vm5825, %v5798
      %5832 = vst.msk [vmem:[%s217 + $0x30] sm:$0xff] %vm5825, %v5799
      %5833 = vst.msk [vmem:[%s217 + $0x38] sm:$0xff] %vm5825, %v5800
      %5834 = vst.msk [vmem:[%s217 + $0x40] sm:$0xff] %vm5825, %v5801
      %5835 = vst.msk [vmem:[%s217 + $0x48] sm:$0xff] %vm5825, %v5802
      %5836 = vst.msk [vmem:[%s217 + $0x50] sm:$0xff] %vm5825, %v5803
      %5837 = vst.msk [vmem:[%s217 + $0x58] sm:$0xff] %vm5825, %v5804
      %5838 = vst.msk [vmem:[%s217 + $0x60] sm:$0xff] %vm5825, %v5805
      %5839 = vst.msk [vmem:[%s217 + $0x68] sm:$0xff] %vm5825, %v5806
      %5840 = vst.msk [vmem:[%s217 + $0x70] sm:$0xff] %vm5825, %v5807
      %5841 = vst.msk [vmem:[%s217 + $0x78] sm:$0xff] %vm5825, %v5808
      %5842 = vst.msk [vmem:[%s217 + $0x80] sm:$0xff] %vm5825, %v5809
      %5843 = vst.msk [vmem:[%s217 + $0x88] sm:$0xff] %vm5825, %v5810
      %5844 = vst.msk [vmem:[%s217 + $0x90] sm:$0xff] %vm5825, %v5811
      %5845 = vst.msk [vmem:[%s217 + $0x98] sm:$0xff] %vm5825, %v5812
      %5846 = vst.msk [vmem:[%s217 + $0xa0] sm:$0xff] %vm5825, %v5813
      %5847 = vst.msk [vmem:[%s217 + $0xa8] sm:$0xff] %vm5825, %v5814
      %5848 = vst.msk [vmem:[%s217 + $0xb0] sm:$0xff] %vm5825, %v5815
      %5849 = vst.msk [vmem:[%s217 + $0xb8] sm:$0xff] %vm5825, %v5816
      %5850 = vst.msk [vmem:[%s217 + $0xc0] sm:$0xff] %vm5825, %v5817
      %5851 = vst.msk [vmem:[%s217 + $0xc8] sm:$0xff] %vm5825, %v5818
      %5852 = vst.msk [vmem:[%s217 + $0xd0] sm:$0xff] %vm5825, %v5819
      %5853 = vst.msk [vmem:[%s217 + $0xd8] sm:$0xff] %vm5825, %v5820
      %5854 = vst.msk [vmem:[%s217 + $0xe0] sm:$0xff] %vm5825, %v5821
      %5855 = vst.msk [vmem:[%s217 + $0xe8] sm:$0xff] %vm5825, %v5822
      %5856 = vst.msk [vmem:[%s217 + $0xf0] sm:$0xff] %vm5825, %v5823
      %5857 = vst.msk [vmem:[%s217 + $0xf8] sm:$0xff] %vm5825, %v5824
      %p5858 = scmp.lt.s32.totalorder %s15, 1
      %s5859 = scalar_select %p5858, %s15, 1
      %s5860 = smul.addr %s5859, 32
      %s5861 = smul.addr %s5860, 8
      %s5862 = scalar_lea.vmem %s4, %s5861
      // Predicated region
      $region37: #{ffc_forward.8} parent=35 // pred_check
        %p5863 = pneg %p127
      $region38: #{ffc_forward.8} parent=35 // pred_check_branch
        %5865 = sbr.rel (%p5863) target = $region40
      $region39: #{ffc_forward.8} parent=35 // pred_region
        _
      $region40: #{ffc_forward.8} parent=35 // pred_fallthru
        _
    $region36: #{ffc_forward.8} parent=5 // pred_fallthru
      _
    %p5866 = scmp.le.s32.totalorder 2, %s10
    // Predicated region
    $region41: #{ffc_forward.8} parent=5 // pred_check
      %p5867 = pneg %p5866
    $region42: #{ffc_forward.8} parent=5 // pred_check_branch
      %5869 = sbr.rel (%p5867) target = $region44
    $region43: #{ffc_forward.8} parent=5 // pred_region
      %s5870 = ssub.s32 %s10, 2
      // Predicated region
      $region45: #{ffc_forward.8} parent=43 // pred_check
        %p5871 = pneg %p133
      $region46: #{ffc_forward.8} parent=43 // pred_check_branch
        %5873 = sbr.rel (%p5871) target = $region48
      $region47: #{ffc_forward.8} parent=43 // pred_region
        %p5874 = scmp.lt.s32.totalorder %s16, 1
        %s5875 = scalar_select %p5874, %s16, 1
        %s5876 = smul.addr %s5875, 32
        %s5877 = smul.addr %s5876, 8
        %s5878 = scalar_lea.vmem %s4, %s5877
      $region48: #{ffc_forward.8} parent=43 // pred_fallthru
        _
    $region44: #{ffc_forward.8} parent=5 // pred_fallthru
      _
  $region6: #{ffc_forward.8} parent=0 // loop_footer
    %s14 = sadd.s32 1, %s10
  $region7: #{ffc_forward.8} parent=0 // loop_footer_branch
    %9 = sbr.rel target = $region3
  $region8: #{ffc_forward.8} parent=0 // loop_exit
    _

// kernel: ffc_forward.12
$region0: #{ffc_forward.12}
  #allocation0 [shape = 'u32[]', space=smem, size = 0x4, offset = 0x4, fixed_abs, tag = 'smem constant byte address 0x4 - core index']
  #allocation1 [shape = 'u32[144,128]{1,0:T(1,128)}', space=vmem, size = 0x12000, scoped, tag = 'internal scratch']
  %s0 = inlined_call_operand.vmem [shape: f32[384,8], index: 0, kind: input, shape index: {}]
  %s1 = inlined_call_operand.vmem [shape: f32[8,8], index: 1, kind: input, shape index: {}]
  %s2 = inlined_call_operand.vmem [shape: f32[1,8], index: 2, kind: input, shape index: {}]
  %s3 = inlined_call_operand.vmem [shape: f32[1,8], index: 3, kind: input, shape index: {}]
  %s4 = inlined_call_operand.vmem [shape: f32[384,8], index: 4, kind: output, shape index: {}]
  %s5 = sld [smem:[#allocation0]]
  $region49: #{ffc_forward.12} parent=0
    _
  %s7 = ssub.s32 1, %s5
  %s8 = scalar_select 0, %s7, %s5
  loop: start=0, step=1, limit=5
  $region2: #{ffc_forward.12} parent=0 // loop_pre_header
    _
  $region3: #{ffc_forward.12} parent=0 // loop_header
    %s10 = sphi 0, %s14
    %p11 = scmp.ge.s32.totalorder %s10, 5
    %s20 = sphi 0, %s22
    %s23 = sphi 0, %s20
    %s24 = sphi 0, %s23
    %s40 = sphi 0, %s24
    %s44 = sphi 0, %s44
    %s46 = sphi 0, %s44
    %s47 = sphi 0, %s46
    %s61 = sphi 0, %s47
    %s65 = sphi 0, %s65
    %s67 = sphi 0, %s65
    %s68 = sphi 0, %s67
    %s82 = sphi 0, %s68
    %s86 = sphi 0, %s86
    %s88 = sphi 0, %s86
    %s89 = sphi 0, %s88
    %s103 = sphi 0, %s89
    %s109 = sphi 0, %s111
    %s112 = sphi 0, %s109
    %s113 = sphi 0, %s112
    %s129 = sphi 0, %s113
  $region4: #{ffc_forward.12} parent=0 // loop_header_branch
    %13 = sbr.rel (%p11) target = $region8
  $region5: #{ffc_forward.12} parent=0 // loop_body
    %s15 = ssub.s32 %s10, 1
    %s16 = ssub.s32 %s10, 2
    %s17 = sadd.s32 %s10, 1
    %s18 = ssub.s32 %s10, %s17
    %p19 = scmp.eq.s32.totalorder %s18, 0
    %s21 = sadd.s32 %s20, 1
    %s22 = scalar_select %p19, %s20, %s21
    %p25 = pneg %p19
    %p26 = scmp.eq.s32.totalorder %s10, 2
    %p27 = por %p25, %p26
    %p28 = scmp.ne.s32.totalorder %s20, %s23
    %p29 = scmp.eq.s32.totalorder %s10, 0
    %p30 = por %p28, %p29
    %p31 = scmp.ne.s32.totalorder %s20, %s23
    %p32 = scmp.eq.s32.totalorder %s15, 2
    %p33 = por %p31, %p32
    %p34 = scmp.ne.s32.totalorder %s23, %s24
    %p35 = scmp.eq.s32.totalorder %s15, 0
    %p36 = por %p34, %p35
    %p37 = scmp.ne.s32.totalorder %s23, %s24
    %p38 = scmp.eq.s32.totalorder %s16, 2
    %p39 = por %p37, %p38
    %p41 = scmp.ne.s32.totalorder %s24, %s40
    %p42 = scmp.eq.s32.totalorder %s16, 0
    %p43 = por %p41, %p42
    %s45 = sadd.s32 %s44, 1
    %p48 = scmp.eq.s32.totalorder %s10, 2
    %p49 = scmp.ne.s32.totalorder %s44, %s46
    %p50 = scmp.eq.s32.totalorder %s10, 0
    %p51 = por %p49, %p50
    %p52 = scmp.ne.s32.totalorder %s44, %s46
    %p53 = scmp.eq.s32.totalorder %s15, 2
    %p54 = por %p52, %p53
    %p55 = scmp.ne.s32.totalorder %s46, %s47
    %p56 = scmp.eq.s32.totalorder %s15, 0
    %p57 = por %p55, %p56
    %p58 = scmp.ne.s32.totalorder %s46, %s47
    %p59 = scmp.eq.s32.totalorder %s16, 2
    %p60 = por %p58, %p59
    %p62 = scmp.ne.s32.totalorder %s47, %s61
    %p63 = scmp.eq.s32.totalorder %s16, 0
    %p64 = por %p62, %p63
    %s66 = sadd.s32 %s65, 1
    %p69 = scmp.eq.s32.totalorder %s10, 2
    %p70 = scmp.ne.s32.totalorder %s65, %s67
    %p71 = scmp.eq.s32.totalorder %s10, 0
    %p72 = por %p70, %p71
    %p73 = scmp.ne.s32.totalorder %s65, %s67
    %p74 = scmp.eq.s32.totalorder %s15, 2
    %p75 = por %p73, %p74
    %p76 = scmp.ne.s32.totalorder %s67, %s68
    %p77 = scmp.eq.s32.totalorder %s15, 0
    %p78 = por %p76, %p77
    %p79 = scmp.ne.s32.totalorder %s67, %s68
    %p80 = scmp.eq.s32.totalorder %s16, 2
    %p81 = por %p79, %p80
    %p83 = scmp.ne.s32.totalorder %s68, %s82
    %p84 = scmp.eq.s32.totalorder %s16, 0
    %p85 = por %p83, %p84
    %s87 = sadd.s32 %s86, 1
    %p90 = scmp.eq.s32.totalorder %s10, 2
    %p91 = scmp.ne.s32.totalorder %s86, %s88
    %p92 = scmp.eq.s32.totalorder %s10, 0
    %p93 = por %p91, %p92
    %p94 = scmp.ne.s32.totalorder %s86, %s88
    %p95 = scmp.eq.s32.totalorder %s15, 2
    %p96 = por %p94, %p95
    %p97 = scmp.ne.s32.totalorder %s88, %s89
    %p98 = scmp.eq.s32.totalorder %s15, 0
    %p99 = por %p97, %p98
    %p100 = scmp.ne.s32.totalorder %s88, %s89
    %p101 = scmp.eq.s32.totalorder %s16, 2
    %p102 = por %p100, %p101
    %p104 = scmp.ne.s32.totalorder %s89, %s103
    %p105 = scmp.eq.s32.totalorder %s16, 0
    %p106 = por %p104, %p105
    %s107 = ssub.s32 %s10, %s17
    %p108 = scmp.eq.s32.totalorder %s107, 0
    %s110 = sadd.s32 %s109, 1
    %s111 = scalar_select %p108, %s109, %s110
    %p114 = pneg %p108
    %p115 = scmp.eq.s32.totalorder %s10, 2
    %p116 = por %p114, %p115
    %p117 = scmp.ne.s32.totalorder %s109, %s112
    %p118 = scmp.eq.s32.totalorder %s10, 0
    %p119 = por %p117, %p118
    %p120 = scmp.ne.s32.totalorder %s109, %s112
    %p121 = scmp.eq.s32.totalorder %s15, 2
    %p122 = por %p120, %p121
    %p123 = scmp.ne.s32.totalorder %s112, %s113
    %p124 = scmp.eq.s32.totalorder %s15, 0
    %p125 = por %p123, %p124
    %p126 = scmp.ne.s32.totalorder %s112, %s113
    %p127 = scmp.eq.s32.totalorder %s16, 2
    %p128 = por %p126, %p127
    %p130 = scmp.ne.s32.totalorder %s113, %s129
    %p131 = scmp.eq.s32.totalorder %s16, 0
    %p132 = por %p130, %p131
    %p133 = scmp.le.s32.totalorder 1, %s10
    %p134 = scmp.lt.s32.totalorder %s10, 4
    %p135 = pnand %p133, %p134
    %p136 = pneg %p135
    // Predicated region
    $region9: #{ffc_forward.12} parent=5 // pred_check
      _
    $region10: #{ffc_forward.12} parent=5 // pred_check_branch
      %138 = sbr.rel (%p135) target = $region12
    $region11: #{ffc_forward.12} parent=5 // pred_region
      %s139 = ssub.s32 %s10, 1
      // Predicated region
      $region13: #{ffc_forward.12} parent=11 // pred_check
        %p140 = pneg %p57
      $region14: #{ffc_forward.12} parent=11 // pred_check_branch
        %142 = sbr.rel (%p140) target = $region16
      $region15: #{ffc_forward.12} parent=11 // pred_region
        _
      $region16: #{ffc_forward.12} parent=11 // pred_fallthru
        _
      // Predicated region
      $region17: #{ffc_forward.12} parent=11 // pred_check
        %p143 = pneg %p78
      $region18: #{ffc_forward.12} parent=11 // pred_check_branch
        %145 = sbr.rel (%p143) target = $region20
      $region19: #{ffc_forward.12} parent=11 // pred_region
        _
      $region20: #{ffc_forward.12} parent=11 // pred_fallthru
        _
      // Predicated region
      $region21: #{ffc_forward.12} parent=11 // pred_check
        %p146 = pneg %p99
      $region22: #{ffc_forward.12} parent=11 // pred_check_branch
        %148 = sbr.rel (%p146) target = $region24
      $region23: #{ffc_forward.12} parent=11 // pred_region
        _
      $region24: #{ffc_forward.12} parent=11 // pred_fallthru
        _
    $region12: #{ffc_forward.12} parent=5 // pred_fallthru
      _
    %p149 = scmp.lt.s32.totalorder %s10, 3
    // Predicated region
    $region25: #{ffc_forward.12} parent=5 // pred_check
      %p150 = pneg %p149
    $region26: #{ffc_forward.12} parent=5 // pred_check_branch
      %152 = sbr.rel (%p150) target = $region28
    $region27: #{ffc_forward.12} parent=5 // pred_region
      // Predicated region
      $region29: #{ffc_forward.12} parent=27 // pred_check
        %p153 = pneg %p30
      $region30: #{ffc_forward.12} parent=27 // pred_check_branch
        %155 = sbr.rel (%p153) target = $region32
      $region31: #{ffc_forward.12} parent=27 // pred_region
        %s156 = smul.u32 16, %s10
        %p157 = scmp.lt.s32.totalorder %s156, 47
        %s158 = scalar_select %p157, %s156, 47
        %s159 = smul.addr %s158, 8
        %s160 = scalar_lea.vmem %s0, %s159
        %s161 = smul.u32 16, %s10
      $region32: #{ffc_forward.12} parent=27 // pred_fallthru
        _
    $region28: #{ffc_forward.12} parent=5 // pred_fallthru
      _
    %p162 = scmp.le.s32.totalorder 1, %s10
    %p163 = scmp.lt.s32.totalorder %s10, 4
    %p164 = pnand %p162, %p163
    %p165 = pneg %p164
    // Predicated region
    $region33: #{ffc_forward.12} parent=5 // pred_check
      _
    $region34: #{ffc_forward.12} parent=5 // pred_check_branch
      %167 = sbr.rel (%p164) target = $region36
    $region35: #{ffc_forward.12} parent=5 // pred_region
      %s168 = ssub.s32 %s10, 1
      %s169 = smul.u32 16, %s15
      %p170 = scmp.lt.s32.totalorder %s169, 47
      %s171 = scalar_select %p170, %s169, 47
      %s172 = smul.addr %s171, 8
      %s173 = scalar_lea.vmem %s0, %s172
      %p174 = pneg %p36
      %p175 = pneg %p33
      %p176 = pneg %p57
      %p177 = pneg %p54
      %p178 = pneg %p78
      %p179 = pneg %p75
      %p180 = pneg %p99
      %p181 = pneg %p96
      %p182 = pneg %p125
      %p183 = pneg %p122
      %s184 = smul.u32 16, %s15
      %p185 = scmp.lt.s32.totalorder %s184, 47
      %s186 = scalar_select %p185, %s184, 47
      %s187 = smul.addr %s186, 8
      %s188 = scalar_lea.vmem %s4, %s187
      %s189 = smul.u32 16, %s15
      %p190 = scmp.lt.s32.totalorder %s189, 47
      %s191 = scalar_select %p190, %s189, 47
      %s192 = smul.addr %s191, 8
      %s193 = scalar_lea.vmem %s0, %s192
      %s194 = smul.u32 16, %s15
      %s195 = smul.u32 16, %s15
      %p196 = scmp.lt.s32.totalorder %s195, 47
      %s197 = scalar_select %p196, %s195, 47
      %s198 = smul.addr %s197, 8
      %s199 = scalar_lea.vmem %s4, %s198
      %s200 = smul.u32 16, %s15
      %v201 = vld [vmem:[%s193] sm:$0xff]
      %v202 = vld [vmem:[%s193 + $0x8] sm:$0xff]
      %v203 = vld [vmem:[%s193 + $0x10] sm:$0xff]
      %v204 = vld [vmem:[%s193 + $0x18] sm:$0xff]
      %v205 = vld [vmem:[%s193 + $0x20] sm:$0xff]
      %v206 = vld [vmem:[%s193 + $0x28] sm:$0xff]
      %v207 = vld [vmem:[%s193 + $0x30] sm:$0xff]
      %v208 = vld [vmem:[%s193 + $0x38] sm:$0xff]
      %v209 = vld [vmem:[%s193 + $0x40] sm:$0xff]
      %v210 = vld [vmem:[%s193 + $0x48] sm:$0xff]
      %v211 = vld [vmem:[%s193 + $0x50] sm:$0xff]
      %v212 = vld [vmem:[%s193 + $0x58] sm:$0xff]
      %v213 = vld [vmem:[%s193 + $0x60] sm:$0xff]
      %v214 = vld [vmem:[%s193 + $0x68] sm:$0xff]
      %v215 = vld [vmem:[%s193 + $0x70] sm:$0xff]
      %v216 = vld [vmem:[%s193 + $0x78] sm:$0xff]
      %v217 = vld [vmem:[%s1] sm:$0xff]
      %vm218 = vcmask 64512
      %v220 = vsel %vm218, %v201, 0
      %v223 = vsel %vm218, %v202, 0
      %v226 = vsel %vm218, %v203, 0
      %v229 = vsel %vm218, %v204, 0
      %v232 = vsel %vm218, %v205, 0
      %v235 = vsel %vm218, %v206, 0
      %v238 = vsel %vm218, %v207, 0
      %v241 = vsel %vm218, %v208, 0
      %v244 = vsel %vm218, %v209, 0
      %v247 = vsel %vm218, %v210, 0
      %v250 = vsel %vm218, %v211, 0
      %v253 = vsel %vm218, %v212, 0
      %v256 = vsel %vm218, %v213, 0
      %v259 = vsel %vm218, %v214, 0
      %v262 = vsel %vm218, %v215, 0
      %v265 = vsel %vm218, %v216, 0
      %267 = vmatprep.subr.mxu0 0.0
      %268 = vmatpush1.msra.mxu0 %v217
      %269 = vmatprep.subr.mxu0 0.0
      %270 = vmatpush1.msra.mxu0 0.0
      %271 = vmatprep.subr.mxu0 0.0
      %272 = vmatpush1.msra.mxu0 0.0
      %273 = vmatprep.subr.mxu0 0.0
      %274 = vmatpush1.msra.mxu0 0.0
      %275 = vmatprep.subr.mxu0 0.0
      %276 = vmatpush1.msra.mxu0 0.0
      %277 = vmatprep.subr.mxu0 0.0
      %278 = vmatpush1.msra.mxu0 0.0
      %279 = vmatprep.subr.mxu0 0.0
      %280 = vmatpush1.msra.mxu0 0.0
      %281 = vmatprep.subr.mxu0 0.0
      %282 = vmatpush1.msra.mxu0 0.0
      %283 = vmatprep.subr.mxu0 0.0
      %284 = vmatpush1.msra.mxu0 0.0
      %285 = vmatprep.subr.mxu0 0.0
      %286 = vmatpush1.msra.mxu0 0.0
      %287 = vmatprep.subr.mxu0 0.0
      %288 = vmatpush1.msra.mxu0 0.0
      %289 = vmatprep.subr.mxu0 0.0
      %290 = vmatpush1.msra.mxu0 0.0
      %291 = vmatprep.subr.mxu0 0.0
      %292 = vmatpush1.msra.mxu0 0.0
      %293 = vmatprep.subr.mxu0 0.0
      %294 = vmatpush1.msra.mxu0 0.0
      %295 = vmatprep.subr.mxu0 0.0
      %296 = vmatpush1.msra.mxu0 0.0
      %297 = vmatprep.subr.mxu0 0.0
      %298 = vmatpush1.msra.mxu0 0.0
      %299 = vmatprep.subr.mxu0 0.0
      %300 = vmatpush1.msra.mxu0 0.0
      %301 = vmatprep.subr.mxu0 0.0
      %302 = vmatpush1.msra.mxu0 0.0
      %303 = vmatprep.subr.mxu0 0.0
      %304 = vmatpush1.msra.mxu0 0.0
      %305 = vmatprep.subr.mxu0 0.0
      %306 = vmatpush1.msra.mxu0 0.0
      %307 = vmatprep.subr.mxu0 0.0
      %308 = vmatpush1.msra.mxu0 0.0
      %309 = vmatprep.subr.mxu0 0.0
      %310 = vmatpush1.msra.mxu0 0.0
      %311 = vmatprep.subr.mxu0 0.0
      %312 = vmatpush1.msra.mxu0 0.0
      %313 = vmatprep.subr.mxu0 0.0
      %314 = vmatpush1.msra.mxu0 0.0
      %315 = vmatprep.subr.mxu0 0.0
      %316 = vmatpush1.msra.mxu0 0.0
      %317 = vmatprep.subr.mxu0 0.0
      %318 = vmatpush1.msra.mxu0 0.0
      %319 = vmatprep.subr.mxu0 0.0
      %320 = vmatpush1.msra.mxu0 0.0
      %321 = vmatprep.subr.mxu0 0.0
      %322 = vmatpush1.msra.mxu0 0.0
      %323 = vmatprep.subr.mxu0 0.0
      %324 = vmatpush1.msra.mxu0 0.0
      %325 = vmatprep.subr.mxu0 0.0
      %326 = vmatpush1.msra.mxu0 0.0
      %327 = vmatprep.subr.mxu0 0.0
      %328 = vmatpush1.msra.mxu0 0.0
      %329 = vmatprep.subr.mxu0 0.0
      %330 = vmatpush1.msra.mxu0 0.0
      %331 = vmatprep.mubr.f32.mxu0 0.0
      %332 = vmatmul.mubr.f32.gmra.mrb[0].mxu0 %v220
      %v333 = vpop.f32.mrb[0].mxu0
      %v334 = vadd.f32 0.0, %v333
      %v335 = vpop.f32.mrb[0].mxu0
      %336 = vmatprep.mubr.f32.mxu0 0.0
      %337 = vmatmul.mubr.f32.gmra.mrb[0].mxu0 %v223
      %v338 = vpop.f32.mrb[0].mxu0
      %v339 = vadd.f32 0.0, %v338
      %v340 = vpop.f32.mrb[0].mxu0
      %341 = vmatprep.mubr.f32.mxu0 0.0
      %342 = vmatmul.mubr.f32.gmra.mrb[0].mxu0 %v226
      %v343 = vpop.f32.mrb[0].mxu0
      %v344 = vadd.f32 0.0, %v343
      %v345 = vpop.f32.mrb[0].mxu0
      %346 = vmatprep.mubr.f32.mxu0 0.0
      %347 = vmatmul.mubr.f32.gmra.mrb[0].mxu0 %v229
      %v348 = vpop.f32.mrb[0].mxu0
      %v349 = vadd.f32 0.0, %v348
      %v350 = vpop.f32.mrb[0].mxu0
      %351 = vmatprep.mubr.f32.mxu0 0.0
      %352 = vmatmul.mubr.f32.gmra.mrb[0].mxu0 %v232
      %v353 = vpop.f32.mrb[0].mxu0
      %v354 = vadd.f32 0.0, %v353
      %v355 = vpop.f32.mrb[0].mxu0
      %356 = vmatprep.mubr.f32.mxu0 0.0
      %357 = vmatmul.mubr.f32.gmra.mrb[0].mxu0 %v235
      %v358 = vpop.f32.mrb[0].mxu0
      %v359 = vadd.f32 0.0, %v358
      %v360 = vpop.f32.mrb[0].mxu0
      %361 = vmatprep.mubr.f32.mxu0 0.0
      %362 = vmatmul.mubr.f32.gmra.mrb[0].mxu0 %v238
      %v363 = vpop.f32.mrb[0].mxu0
      %v364 = vadd.f32 0.0, %v363
      %v365 = vpop.f32.mrb[0].mxu0
      %366 = vmatprep.mubr.f32.mxu0 0.0
      %367 = vmatmul.mubr.f32.gmra.mrb[0].mxu0 %v241
      %v368 = vpop.f32.mrb[0].mxu0
      %v369 = vadd.f32 0.0, %v368
      %v370 = vpop.f32.mrb[0].mxu0
      %371 = vmatprep.mubr.f32.mxu0 0.0
      %372 = vmatmul.mubr.f32.gmra.mrb[0].mxu0 %v244
      %v373 = vpop.f32.mrb[0].mxu0
      %v374 = vadd.f32 0.0, %v373
      %v375 = vpop.f32.mrb[0].mxu0
      %376 = vmatprep.mubr.f32.mxu0 0.0
      %377 = vmatmul.mubr.f32.gmra.mrb[0].mxu0 %v247
      %v378 = vpop.f32.mrb[0].mxu0
      %v379 = vadd.f32 0.0, %v378
      %v380 = vpop.f32.mrb[0].mxu0
      %381 = vmatprep.mubr.f32.mxu0 0.0
      %382 = vmatmul.mubr.f32.gmra.mrb[0].mxu0 %v250
      %v383 = vpop.f32.mrb[0].mxu0
      %v384 = vadd.f32 0.0, %v383
      %v385 = vpop.f32.mrb[0].mxu0
      %386 = vmatprep.mubr.f32.mxu0 0.0
      %387 = vmatmul.mubr.f32.gmra.mrb[0].mxu0 %v253
      %v388 = vpop.f32.mrb[0].mxu0
      %v389 = vadd.f32 0.0, %v388
      %v390 = vpop.f32.mrb[0].mxu0
      %391 = vmatprep.mubr.f32.mxu0 0.0
      %392 = vmatmul.mubr.f32.gmra.mrb[0].mxu0 %v256
      %v393 = vpop.f32.mrb[0].mxu0
      %v394 = vadd.f32 0.0, %v393
      %v395 = vpop.f32.mrb[0].mxu0
      %396 = vmatprep.mubr.f32.mxu0 0.0
      %397 = vmatmul.mubr.f32.gmra.mrb[0].mxu0 %v259
      %v398 = vpop.f32.mrb[0].mxu0
      %v399 = vadd.f32 0.0, %v398
      %v400 = vpop.f32.mrb[0].mxu0
      %401 = vmatprep.mubr.f32.mxu0 0.0
      %402 = vmatmul.mubr.f32.gmra.mrb[0].mxu0 %v262
      %v403 = vpop.f32.mrb[0].mxu0
      %v404 = vadd.f32 0.0, %v403
      %v405 = vpop.f32.mrb[0].mxu0
      %406 = vmatprep.mubr.f32.mxu0 0.0
      %407 = vmatmul.mubr.f32.gmra.mrb[0].mxu0 %v265
      %v408 = vpop.f32.mrb[0].mxu0
      %v409 = vadd.f32 0.0, %v408
      %v410 = vpop.f32.mrb[0].mxu0
      %411 = vdwg.mxu0
      %v412 = vld [vmem:[%s2] sm:$0x1]
      %v414 = vlaneseq
      %v415 = vshrl.u32 %v414, 7
      %v416 = vsub.s32 0, %v415
      %v417 = vrot.slane %v412, %v416
      %v419 = vmul.f32 %v334, %v417
      %v420 = vmul.f32 %v339, %v417
      %v421 = vmul.f32 %v344, %v417
      %v422 = vmul.f32 %v349, %v417
      %v423 = vmul.f32 %v354, %v417
      %v424 = vmul.f32 %v359, %v417
      %v425 = vmul.f32 %v364, %v417
      %v426 = vmul.f32 %v369, %v417
      %v427 = vmul.f32 %v374, %v417
      %v428 = vmul.f32 %v379, %v417
      %v429 = vmul.f32 %v384, %v417
      %v430 = vmul.f32 %v389, %v417
      %v431 = vmul.f32 %v394, %v417
      %v432 = vmul.f32 %v399, %v417
      %v433 = vmul.f32 %v404, %v417
      %v434 = vmul.f32 %v409, %v417
      %v435 = vld [vmem:[%s3] sm:$0x1]
      %v437 = vlaneseq
      %v438 = vshrl.u32 %v437, 7
      %v439 = vsub.s32 0, %v438
      %v440 = vrot.slane %v435, %v439
      %v442 = vadd.f32 %v419, %v440
      %v443 = vadd.f32 %v420, %v440
      %v444 = vadd.f32 %v421, %v440
      %v445 = vadd.f32 %v422, %v440
      %v446 = vadd.f32 %v423, %v440
      %v447 = vadd.f32 %v424, %v440
      %v448 = vadd.f32 %v425, %v440
      %v449 = vadd.f32 %v426, %v440
      %v450 = vadd.f32 %v427, %v440
      %v451 = vadd.f32 %v428, %v440
      %v452 = vadd.f32 %v429, %v440
      %v453 = vadd.f32 %v430, %v440
      %v454 = vadd.f32 %v431, %v440
      %v455 = vadd.f32 %v432, %v440
      %v456 = vadd.f32 %v433, %v440
      %v457 = vadd.f32 %v434, %v440
      %v458 = vmax.f32 %v442, 0.0
      %v459 = vmax.f32 %v443, 0.0
      %v460 = vmax.f32 %v444, 0.0
      %v461 = vmax.f32 %v445, 0.0
      %v462 = vmax.f32 %v446, 0.0
      %v463 = vmax.f32 %v447, 0.0
      %v464 = vmax.f32 %v448, 0.0
      %v465 = vmax.f32 %v449, 0.0
      %v466 = vmax.f32 %v450, 0.0
      %v467 = vmax.f32 %v451, 0.0
      %v468 = vmax.f32 %v452, 0.0
      %v469 = vmax.f32 %v453, 0.0
      %v470 = vmax.f32 %v454, 0.0
      %v471 = vmax.f32 %v455, 0.0
      %v472 = vmax.f32 %v456, 0.0
      %v473 = vmax.f32 %v457, 0.0
      %474 = vst.msk [vmem:[%s199] sm:$0xff] %vm218, %v458
      %475 = vst.msk [vmem:[%s199 + $0x8] sm:$0xff] %vm218, %v459
      %476 = vst.msk [vmem:[%s199 + $0x10] sm:$0xff] %vm218, %v460
      %477 = vst.msk [vmem:[%s199 + $0x18] sm:$0xff] %vm218, %v461
      %478 = vst.msk [vmem:[%s199 + $0x20] sm:$0xff] %vm218, %v462
      %479 = vst.msk [vmem:[%s199 + $0x28] sm:$0xff] %vm218, %v463
      %480 = vst.msk [vmem:[%s199 + $0x30] sm:$0xff] %vm218, %v464
      %481 = vst.msk [vmem:[%s199 + $0x38] sm:$0xff] %vm218, %v465
      %482 = vst.msk [vmem:[%s199 + $0x40] sm:$0xff] %vm218, %v466
      %483 = vst.msk [vmem:[%s199 + $0x48] sm:$0xff] %vm218, %v467
      %484 = vst.msk [vmem:[%s199 + $0x50] sm:$0xff] %vm218, %v468
      %485 = vst.msk [vmem:[%s199 + $0x58] sm:$0xff] %vm218, %v469
      %486 = vst.msk [vmem:[%s199 + $0x60] sm:$0xff] %vm218, %v470
      %487 = vst.msk [vmem:[%s199 + $0x68] sm:$0xff] %vm218, %v471
      %488 = vst.msk [vmem:[%s199 + $0x70] sm:$0xff] %vm218, %v472
      %489 = vst.msk [vmem:[%s199 + $0x78] sm:$0xff] %vm218, %v473
      %s490 = smul.u32 16, %s15
      %p491 = scmp.lt.s32.totalorder %s490, 47
      %s492 = scalar_select %p491, %s490, 47
      %s493 = smul.addr %s492, 8
      %s494 = scalar_lea.vmem %s4, %s493
      // Predicated region
      $region37: #{ffc_forward.12} parent=35 // pred_check
        %p495 = pneg %p122
      $region38: #{ffc_forward.12} parent=35 // pred_check_branch
        %497 = sbr.rel (%p495) target = $region40
      $region39: #{ffc_forward.12} parent=35 // pred_region
        %s498 = smul.u32 16, %s15
      $region40: #{ffc_forward.12} parent=35 // pred_fallthru
        _
    $region36: #{ffc_forward.12} parent=5 // pred_fallthru
      _
    %p499 = scmp.le.s32.totalorder 2, %s10
    // Predicated region
    $region41: #{ffc_forward.12} parent=5 // pred_check
      %p500 = pneg %p499
    $region42: #{ffc_forward.12} parent=5 // pred_check_branch
      %502 = sbr.rel (%p500) target = $region44
    $region43: #{ffc_forward.12} parent=5 // pred_region
      %s503 = ssub.s32 %s10, 2
      // Predicated region
      $region45: #{ffc_forward.12} parent=43 // pred_check
        %p504 = pneg %p128
      $region46: #{ffc_forward.12} parent=43 // pred_check_branch
        %506 = sbr.rel (%p504) target = $region48
      $region47: #{ffc_forward.12} parent=43 // pred_region
        %s507 = smul.u32 16, %s16
        %p508 = scmp.lt.s32.totalorder %s507, 47
        %s509 = scalar_select %p508, %s507, 47
        %s510 = smul.addr %s509, 8
        %s511 = scalar_lea.vmem %s4, %s510
      $region48: #{ffc_forward.12} parent=43 // pred_fallthru
        _
    $region44: #{ffc_forward.12} parent=5 // pred_fallthru
      _
  $region6: #{ffc_forward.12} parent=0 // loop_footer
    %s14 = sadd.s32 1, %s10
  $region7: #{ffc_forward.12} parent=0 // loop_footer_branch
    %9 = sbr.rel target = $region3
  $region8: #{ffc_forward.12} parent=0 // loop_exit
    _

// kernel: reverse.0
$region0: #{reverse.0}
  %s0 = inlined_call_operand.vmem [shape: f32[2,4,16,7], index: 0, kind: input, shape index: {}]
  %s1 = inlined_call_operand.vmem [shape: f32[2,4,16,7], index: 1, kind: output, shape index: {}]
  $region1: #{reverse.0} parent=0
    #allocation0 [shape = 'u8[65536]{0}', space=vmem, size = 0x10000, scoped, tag = 'operand span for operand 0']
    #allocation1 [shape = 'u8[32768]{0}', space=vmem, size = 0x8000, scoped, tag = 'operand span for operand 1']
    %s2 = scalar_lea.vmem [#allocation0], 8
    // Predicated region
    $region2: #{reverse.0} parent=1 // pred_check
      _
    $region3: #{reverse.0} parent=1 // pred_check_branch
      %4 = sbr.rel (0) target = $region5
    $region4: #{reverse.0} parent=1 // pred_region
      // Predicated region
      $region6: #{reverse.0} parent=4 // pred_check
        _
      $region7: #{reverse.0} parent=4 // pred_check_branch
        %6 = sbr.rel (0) target = $region9
      $region8: #{reverse.0} parent=4 // pred_region
        // Predicated region
        $region21: #{reverse.0} parent=8 // pred_check
          _
        $region22: #{reverse.0} parent=8 // pred_check_branch
          %35 = sbr.rel (0) target = $region24
        $region23: #{reverse.0} parent=8 // pred_region
          loop: start=0, step=1, limit=1
          $region25: #{reverse.0} parent=23 // loop_pre_header
            _
          $region26: #{reverse.0} parent=23 // loop_header
            %s37 = sphi 0, %s41
            %p38 = scmp.ge.s32.totalorder %s37, 1
            %s42 = sphi %s0, %s0
            %s43 = sphi %s2, %s2
          $region27: #{reverse.0} parent=23 // loop_header_branch
            %40 = sbr.rel (%p38) target = $region31
          $region28: #{reverse.0} parent=23 // loop_body
            %v44 = vld [vmem:[%s42] sm:$0xff]
            %45 = vst [vmem:[%s43] sm:$0xff] %v44
            %v46 = vld [vmem:[%s42 + $0x8] sm:$0xff]
            %47 = vst [vmem:[%s43 + $0x10] sm:$0xff] %v46
            %v48 = vld [vmem:[%s42 + $0x10] sm:$0xff]
            %49 = vst [vmem:[%s43 + $0x20] sm:$0xff] %v48
            %v50 = vld [vmem:[%s42 + $0x18] sm:$0xff]
            %51 = vst [vmem:[%s43 + $0x30] sm:$0xff] %v50
            %v52 = vld [vmem:[%s42 + $0x20] sm:$0xff]
            %53 = vst [vmem:[%s43 + $0x40] sm:$0xff] %v52
            %v54 = vld [vmem:[%s42 + $0x28] sm:$0xff]
            %55 = vst [vmem:[%s43 + $0x50] sm:$0xff] %v54
            %v56 = vld [vmem:[%s42 + $0x30] sm:$0xff]
            %57 = vst [vmem:[%s43 + $0x60] sm:$0xff] %v56
            %v58 = vld [vmem:[%s42 + $0x38] sm:$0xff]
            %59 = vst [vmem:[%s43 + $0x70] sm:$0xff] %v58
          $region29: #{reverse.0} parent=23 // loop_footer
            %s41 = sadd.s32 1, %s37
          $region30: #{reverse.0} parent=23 // loop_footer_branch
            %36 = sbr.rel target = $region26
          $region31: #{reverse.0} parent=23 // loop_exit
            _
        $region24: #{reverse.0} parent=8 // pred_fallthru
          _
        // Predicated region
        $region32: #{reverse.0} parent=8 // pred_check
          _
        $region33: #{reverse.0} parent=8 // pred_check_branch
          %61 = sbr.rel target = $region35
        $region34: #{reverse.0} parent=8 // pred_region
          _
        $region35: #{reverse.0} parent=8 // pred_fallthru
          _
      $region9: #{reverse.0} parent=4 // pred_fallthru
        _
      // Predicated region
      $region10: #{reverse.0} parent=4 // pred_check
        _
      $region11: #{reverse.0} parent=4 // pred_check_branch
        %8 = sbr.rel target = $region13
      $region12: #{reverse.0} parent=4 // pred_region
        loop: start=0, step=1, limit=1
        $region14: #{reverse.0} parent=12 // loop_pre_header
          _
        $region15: #{reverse.0} parent=12 // loop_header
          %s11 = sphi 0, %s15
          %p12 = scmp.ge.s32.totalorder %s11, 1
          %s16 = sphi %s0, %s0
          %s17 = sphi %s2, %s2
        $region16: #{reverse.0} parent=12 // loop_header_branch
          %14 = sbr.rel (%p12) target = $region20
        $region17: #{reverse.0} parent=12 // loop_body
          %v18 = vld [vmem:[%s16] sm:$0xff]
          %19 = vst [vmem:[%s17] sm:$0xff] %v18
          %v20 = vld [vmem:[%s16 + $0x8] sm:$0xff]
          %21 = vst [vmem:[%s17 + $0x10] sm:$0xff] %v20
          %v22 = vld [vmem:[%s16 + $0x10] sm:$0xff]
          %23 = vst [vmem:[%s17 + $0x20] sm:$0xff] %v22
          %v24 = vld [vmem:[%s16 + $0x18] sm:$0xff]
          %25 = vst [vmem:[%s17 + $0x30] sm:$0xff] %v24
          %v26 = vld [vmem:[%s16 + $0x20] sm:$0xff]
          %27 = vst [vmem:[%s17 + $0x40] sm:$0xff] %v26
          %v28 = vld [vmem:[%s16 + $0x28] sm:$0xff]
          %29 = vst [vmem:[%s17 + $0x50] sm:$0xff] %v28
          %v30 = vld [vmem:[%s16 + $0x30] sm:$0xff]
          %31 = vst [vmem:[%s17 + $0x60] sm:$0xff] %v30
          %v32 = vld [vmem:[%s16 + $0x38] sm:$0xff]
          %33 = vst [vmem:[%s17 + $0x70] sm:$0xff] %v32
        $region18: #{reverse.0} parent=12 // loop_footer
          %s15 = sadd.s32 1, %s11
        $region19: #{reverse.0} parent=12 // loop_footer_branch
          %10 = sbr.rel target = $region15
        $region20: #{reverse.0} parent=12 // loop_exit
          _
      $region13: #{reverse.0} parent=4 // pred_fallthru
        _
    $region5: #{reverse.0} parent=1 // pred_fallthru
      _
    %62 = vnop
    %s63 = scalar_lea.vmem [#allocation0], 7
    %v64 = vld [vmem:[%s63] ss:$-1 sm:$0xff]
    %v65 = vrot.slane %v64, 1
    %66 = vst [vmem:[#allocation1] sm:$0xff] %v65
    %s67 = scalar_lea.vmem [#allocation0], 8
    %s68 = scalar_lea.vmem %s67, 7 [#allocation0]
    %v69 = vld [vmem:[%s68] ss:$-1 sm:$0xff]
    %v70 = vrot.slane %v69, 1
    %v71 = vlaneseq
    %v72 = vshrl.u32 %v71, 7
    %vm73 = vcmp.lt.s32.totalorder %v72, 7
    %74 = vst.msk [vmem:[#allocation1] sm:$0xff] %vm73, %v70
    %s75 = scalar_lea.vmem [#allocation1], 8
    %s76 = scalar_lea.vmem [#allocation0], 16
    %s77 = scalar_lea.vmem %s76, 7 [#allocation0]
    %v78 = vld [vmem:[%s77] ss:$-1 sm:$0xff]
    %v79 = vrot.slane %v78, 1
    %80 = vst [vmem:[%s75] sm:$0xff] %v79
    %s81 = scalar_lea.vmem %s76, 8 [#allocation0]
    %s82 = scalar_lea.vmem %s81, 7 [#allocation0]
    %v83 = vld [vmem:[%s82] ss:$-1 sm:$0xff]
    %v84 = vrot.slane %v83, 1
    %v85 = vlaneseq
    %v86 = vshrl.u32 %v85, 7
    %vm87 = vcmp.lt.s32.totalorder %v86, 7
    %88 = vst.msk [vmem:[%s75] sm:$0xff] %vm87, %v84
    %s89 = scalar_lea.vmem [#allocation1], 16
    %s90 = scalar_lea.vmem [#allocation0], 32
    %s91 = scalar_lea.vmem %s90, 7 [#allocation0]
    %v92 = vld [vmem:[%s91] ss:$-1 sm:$0xff]
    %v93 = vrot.slane %v92, 1
    %94 = vst [vmem:[%s89] sm:$0xff] %v93
    %s95 = scalar_lea.vmem %s90, 8 [#allocation0]
    %s96 = scalar_lea.vmem %s95, 7 [#allocation0]
    %v97 = vld [vmem:[%s96] ss:$-1 sm:$0xff]
    %v98 = vrot.slane %v97, 1
    %v99 = vlaneseq
    %v100 = vshrl.u32 %v99, 7
    %vm101 = vcmp.lt.s32.totalorder %v100, 7
    %102 = vst.msk [vmem:[%s89] sm:$0xff] %vm101, %v98
    %s103 = scalar_lea.vmem [#allocation1], 24
    %s104 = scalar_lea.vmem [#allocation0], 48
    %s105 = scalar_lea.vmem %s104, 7 [#allocation0]
    %v106 = vld [vmem:[%s105] ss:$-1 sm:$0xff]
    %v107 = vrot.slane %v106, 1
    %108 = vst [vmem:[%s103] sm:$0xff] %v107
    %s109 = scalar_lea.vmem %s104, 8 [#allocation0]
    %s110 = scalar_lea.vmem %s109, 7 [#allocation0]
    %v111 = vld [vmem:[%s110] ss:$-1 sm:$0xff]
    %v112 = vrot.slane %v111, 1
    %v113 = vlaneseq
    %v114 = vshrl.u32 %v113, 7
    %vm115 = vcmp.lt.s32.totalorder %v114, 7
    %116 = vst.msk [vmem:[%s103] sm:$0xff] %vm115, %v112
    %s117 = scalar_lea.vmem [#allocation1], 32
    %s118 = scalar_lea.vmem [#allocation0], 64
    %s119 = scalar_lea.vmem %s118, 7 [#allocation0]
    %v120 = vld [vmem:[%s119] ss:$-1 sm:$0xff]
    %v121 = vrot.slane %v120, 1
    %122 = vst [vmem:[%s117] sm:$0xff] %v121
    %s123 = scalar_lea.vmem %s118, 8 [#allocation0]
    %s124 = scalar_lea.vmem %s123, 7 [#allocation0]
    %v125 = vld [vmem:[%s124] ss:$-1 sm:$0xff]
    %v126 = vrot.slane %v125, 1
    %v127 = vlaneseq
    %v128 = vshrl.u32 %v127, 7
    %vm129 = vcmp.lt.s32.totalorder %v128, 7
    %130 = vst.msk [vmem:[%s117] sm:$0xff] %vm129, %v126
    %s131 = scalar_lea.vmem [#allocation1], 40
    %s132 = scalar_lea.vmem [#allocation0], 80
    %s133 = scalar_lea.vmem %s132, 7 [#allocation0]
    %v134 = vld [vmem:[%s133] ss:$-1 sm:$0xff]
    %v135 = vrot.slane %v134, 1
    %136 = vst [vmem:[%s131] sm:$0xff] %v135
    %s137 = scalar_lea.vmem %s132, 8 [#allocation0]
    %s138 = scalar_lea.vmem %s137, 7 [#allocation0]
    %v139 = vld [vmem:[%s138] ss:$-1 sm:$0xff]
    %v140 = vrot.slane %v139, 1
    %v141 = vlaneseq
    %v142 = vshrl.u32 %v141, 7
    %vm143 = vcmp.lt.s32.totalorder %v142, 7
    %144 = vst.msk [vmem:[%s131] sm:$0xff] %vm143, %v140
    %s145 = scalar_lea.vmem [#allocation1], 48
    %s146 = scalar_lea.vmem [#allocation0], 96
    %s147 = scalar_lea.vmem %s146, 7 [#allocation0]
    %v148 = vld [vmem:[%s147] ss:$-1 sm:$0xff]
    %v149 = vrot.slane %v148, 1
    %150 = vst [vmem:[%s145] sm:$0xff] %v149
    %s151 = scalar_lea.vmem %s146, 8 [#allocation0]
    %s152 = scalar_lea.vmem %s151, 7 [#allocation0]
    %v153 = vld [vmem:[%s152] ss:$-1 sm:$0xff]
    %v154 = vrot.slane %v153, 1
    %v155 = vlaneseq
    %v156 = vshrl.u32 %v155, 7
    %vm157 = vcmp.lt.s32.totalorder %v156, 7
    %158 = vst.msk [vmem:[%s145] sm:$0xff] %vm157, %v154
    %s159 = scalar_lea.vmem [#allocation1], 56
    %s160 = scalar_lea.vmem [#allocation0], 112
    %s161 = scalar_lea.vmem %s160, 7 [#allocation0]
    %v162 = vld [vmem:[%s161] ss:$-1 sm:$0xff]
    %v163 = vrot.slane %v162, 1
    %164 = vst [vmem:[%s159] sm:$0xff] %v163
    %s165 = scalar_lea.vmem %s160, 8 [#allocation0]
    %s166 = scalar_lea.vmem %s165, 7 [#allocation0]
    %v167 = vld [vmem:[%s166] ss:$-1 sm:$0xff]
    %v168 = vrot.slane %v167, 1
    %v169 = vlaneseq
    %v170 = vshrl.u32 %v169, 7
    %vm171 = vcmp.lt.s32.totalorder %v170, 7
    %172 = vst.msk [vmem:[%s159] sm:$0xff] %vm171, %v168
    // Predicated region
    $region36: #{reverse.0} parent=1 // pred_check
      _
    $region37: #{reverse.0} parent=1 // pred_check_branch
      %174 = sbr.rel (0) target = $region39
    $region38: #{reverse.0} parent=1 // pred_region
      // Predicated region
      $region40: #{reverse.0} parent=38 // pred_check
        _
      $region41: #{reverse.0} parent=38 // pred_check_branch
        %176 = sbr.rel (0) target = $region43
      $region42: #{reverse.0} parent=38 // pred_region
        // Predicated region
        $region55: #{reverse.0} parent=42 // pred_check
          _
        $region56: #{reverse.0} parent=42 // pred_check_branch
          %205 = sbr.rel (0) target = $region58
        $region57: #{reverse.0} parent=42 // pred_region
          loop: start=0, step=1, limit=1
          $region59: #{reverse.0} parent=57 // loop_pre_header
            _
          $region60: #{reverse.0} parent=57 // loop_header
            %s207 = sphi 0, %s211
            %p208 = scmp.ge.s32.totalorder %s207, 1
            %s212 = sphi [#allocation1], [#allocation1]
            %s213 = sphi %s1, %s1
          $region61: #{reverse.0} parent=57 // loop_header_branch
            %210 = sbr.rel (%p208) target = $region65
          $region62: #{reverse.0} parent=57 // loop_body
            %v214 = vld [vmem:[%s212] sm:$0xff]
            %215 = vst [vmem:[%s213] sm:$0xff] %v214
            %v216 = vld [vmem:[%s212 + $0x8] sm:$0xff]
            %217 = vst [vmem:[%s213 + $0x8] sm:$0xff] %v216
            %v218 = vld [vmem:[%s212 + $0x10] sm:$0xff]
            %219 = vst [vmem:[%s213 + $0x10] sm:$0xff] %v218
            %v220 = vld [vmem:[%s212 + $0x18] sm:$0xff]
            %221 = vst [vmem:[%s213 + $0x18] sm:$0xff] %v220
            %v222 = vld [vmem:[%s212 + $0x20] sm:$0xff]
            %223 = vst [vmem:[%s213 + $0x20] sm:$0xff] %v222
            %v224 = vld [vmem:[%s212 + $0x28] sm:$0xff]
            %225 = vst [vmem:[%s213 + $0x28] sm:$0xff] %v224
            %v226 = vld [vmem:[%s212 + $0x30] sm:$0xff]
            %227 = vst [vmem:[%s213 + $0x30] sm:$0xff] %v226
            %v228 = vld [vmem:[%s212 + $0x38] sm:$0xff]
            %229 = vst [vmem:[%s213 + $0x38] sm:$0xff] %v228
          $region63: #{reverse.0} parent=57 // loop_footer
            %s211 = sadd.s32 1, %s207
          $region64: #{reverse.0} parent=57 // loop_footer_branch
            %206 = sbr.rel target = $region60
          $region65: #{reverse.0} parent=57 // loop_exit
            _
        $region58: #{reverse.0} parent=42 // pred_fallthru
          _
        // Predicated region
        $region66: #{reverse.0} parent=42 // pred_check
          _
        $region67: #{reverse.0} parent=42 // pred_check_branch
          %231 = sbr.rel target = $region69
        $region68: #{reverse.0} parent=42 // pred_region
          _
        $region69: #{reverse.0} parent=42 // pred_fallthru
          _
      $region43: #{reverse.0} parent=38 // pred_fallthru
        _
      // Predicated region
      $region44: #{reverse.0} parent=38 // pred_check
        _
      $region45: #{reverse.0} parent=38 // pred_check_branch
        %178 = sbr.rel target = $region47
      $region46: #{reverse.0} parent=38 // pred_region
        loop: start=0, step=1, limit=1
        $region48: #{reverse.0} parent=46 // loop_pre_header
          _
        $region49: #{reverse.0} parent=46 // loop_header
          %s181 = sphi 0, %s185
          %p182 = scmp.ge.s32.totalorder %s181, 1
          %s186 = sphi [#allocation1], [#allocation1]
          %s187 = sphi %s1, %s1
        $region50: #{reverse.0} parent=46 // loop_header_branch
          %184 = sbr.rel (%p182) target = $region54
        $region51: #{reverse.0} parent=46 // loop_body
          %v188 = vld [vmem:[%s186] sm:$0xff]
          %189 = vst [vmem:[%s187] sm:$0xff] %v188
          %v190 = vld [vmem:[%s186 + $0x8] sm:$0xff]
          %191 = vst [vmem:[%s187 + $0x8] sm:$0xff] %v190
          %v192 = vld [vmem:[%s186 + $0x10] sm:$0xff]
          %193 = vst [vmem:[%s187 + $0x10] sm:$0xff] %v192
          %v194 = vld [vmem:[%s186 + $0x18] sm:$0xff]
          %195 = vst [vmem:[%s187 + $0x18] sm:$0xff] %v194
          %v196 = vld [vmem:[%s186 + $0x20] sm:$0xff]
          %197 = vst [vmem:[%s187 + $0x20] sm:$0xff] %v196
          %v198 = vld [vmem:[%s186 + $0x28] sm:$0xff]
          %199 = vst [vmem:[%s187 + $0x28] sm:$0xff] %v198
          %v200 = vld [vmem:[%s186 + $0x30] sm:$0xff]
          %201 = vst [vmem:[%s187 + $0x30] sm:$0xff] %v200
          %v202 = vld [vmem:[%s186 + $0x38] sm:$0xff]
          %203 = vst [vmem:[%s187 + $0x38] sm:$0xff] %v202
        $region52: #{reverse.0} parent=46 // loop_footer
          %s185 = sadd.s32 1, %s181
        $region53: #{reverse.0} parent=46 // loop_footer_branch
          %180 = sbr.rel target = $region49
        $region54: #{reverse.0} parent=46 // loop_exit
          _
      $region47: #{reverse.0} parent=38 // pred_fallthru
        _
    $region39: #{reverse.0} parent=1 // pred_fallthru
      _
    %232 = vnop

// kernel: ffc_forward.14
$region0: #{ffc_forward.14}
  #allocation0 [shape = 'u32[]', space=smem, size = 0x4, offset = 0x4, fixed_abs, tag = 'smem constant byte address 0x4 - core index']
  #allocation1 [shape = 'u32[144,128]{1,0:T(1,128)}', space=vmem, size = 0x12000, scoped, tag = 'internal scratch']
  %s0 = inlined_call_operand.vmem [shape: f32[80,8], index: 0, kind: input, shape index: {}]
  %s1 = inlined_call_operand.vmem [shape: f32[8,8], index: 1, kind: input, shape index: {}]
  %s2 = inlined_call_operand.vmem [shape: f32[1,8], index: 2, kind: input, shape index: {}]
  %s3 = inlined_call_operand.vmem [shape: f32[1,8], index: 3, kind: input, shape index: {}]
  %s4 = inlined_call_operand.vmem [shape: f32[80,8], index: 4, kind: output, shape index: {}]
  %s5 = sld [smem:[#allocation0]]
  $region26: #{ffc_forward.14} parent=0
    _
  %s7 = ssub.s32 1, %s5
  %s8 = scalar_select 0, %s7, %s5
  // Predicated region
  $region2: #{ffc_forward.14} parent=0 // pred_check
    _
  $region3: #{ffc_forward.14} parent=0 // pred_check_branch
    %10 = sbr.rel (0) target = $region5
  $region4: #{ffc_forward.14} parent=0 // pred_region
    _
  $region5: #{ffc_forward.14} parent=0 // pred_fallthru
    _
  // Predicated region
  $region6: #{ffc_forward.14} parent=0 // pred_check
    _
  $region7: #{ffc_forward.14} parent=0 // pred_check_branch
    %12 = sbr.rel (0) target = $region9
  $region8: #{ffc_forward.14} parent=0 // pred_region
    _
  $region9: #{ffc_forward.14} parent=0 // pred_fallthru
    _
  // Predicated region
  $region10: #{ffc_forward.14} parent=0 // pred_check
    _
  $region11: #{ffc_forward.14} parent=0 // pred_check_branch
    %14 = sbr.rel (0) target = $region13
  $region12: #{ffc_forward.14} parent=0 // pred_region
    _
  $region13: #{ffc_forward.14} parent=0 // pred_fallthru
    _
  // Predicated region
  $region14: #{ffc_forward.14} parent=0 // pred_check
    _
  $region15: #{ffc_forward.14} parent=0 // pred_check_branch
    %16 = sbr.rel (0) target = $region17
  $region16: #{ffc_forward.14} parent=0 // pred_region
    _
  $region17: #{ffc_forward.14} parent=0 // pred_fallthru
    _
  %v17 = vld [vmem:[%s0] sm:$0xff]
  %v18 = vld [vmem:[%s0 + $0x8] sm:$0xff]
  %v19 = vld [vmem:[%s0 + $0x10] sm:$0xff]
  %v20 = vld [vmem:[%s0 + $0x18] sm:$0xff]
  %v21 = vld [vmem:[%s0 + $0x20] sm:$0xff]
  %v22 = vld [vmem:[%s0 + $0x28] sm:$0xff]
  %v23 = vld [vmem:[%s0 + $0x30] sm:$0xff]
  %v24 = vld [vmem:[%s0 + $0x38] sm:$0xff]
  %v25 = vld [vmem:[%s0 + $0x40] sm:$0xff]
  %v26 = vld [vmem:[%s0 + $0x48] sm:$0xff]
  %v27 = vld [vmem:[%s1] sm:$0xff]
  %vm28 = vcmask 64512
  %v30 = vsel %vm28, %v17, 0
  %v33 = vsel %vm28, %v18, 0
  %v36 = vsel %vm28, %v19, 0
  %v39 = vsel %vm28, %v20, 0
  %v42 = vsel %vm28, %v21, 0
  %v45 = vsel %vm28, %v22, 0
  %v48 = vsel %vm28, %v23, 0
  %v51 = vsel %vm28, %v24, 0
  %v54 = vsel %vm28, %v25, 0
  %v57 = vsel %vm28, %v26, 0
  %59 = vmatprep.subr.mxu0 0.0
  %60 = vmatpush1.msra.mxu0 %v27
  %61 = vmatprep.subr.mxu0 0.0
  %62 = vmatpush1.msra.mxu0 0.0
  %63 = vmatprep.subr.mxu0 0.0
  %64 = vmatpush1.msra.mxu0 0.0
  %65 = vmatprep.subr.mxu0 0.0
  %66 = vmatpush1.msra.mxu0 0.0
  %67 = vmatprep.subr.mxu0 0.0
  %68 = vmatpush1.msra.mxu0 0.0
  %69 = vmatprep.subr.mxu0 0.0
  %70 = vmatpush1.msra.mxu0 0.0
  %71 = vmatprep.subr.mxu0 0.0
  %72 = vmatpush1.msra.mxu0 0.0
  %73 = vmatprep.subr.mxu0 0.0
  %74 = vmatpush1.msra.mxu0 0.0
  %75 = vmatprep.subr.mxu0 0.0
  %76 = vmatpush1.msra.mxu0 0.0
  %77 = vmatprep.subr.mxu0 0.0
  %78 = vmatpush1.msra.mxu0 0.0
  %79 = vmatprep.subr.mxu0 0.0
  %80 = vmatpush1.msra.mxu0 0.0
  %81 = vmatprep.subr.mxu0 0.0
  %82 = vmatpush1.msra.mxu0 0.0
  %83 = vmatprep.subr.mxu0 0.0
  %84 = vmatpush1.msra.mxu0 0.0
  %85 = vmatprep.subr.mxu0 0.0
  %86 = vmatpush1.msra.mxu0 0.0
  %87 = vmatprep.subr.mxu0 0.0
  %88 = vmatpush1.msra.mxu0 0.0
  %89 = vmatprep.subr.mxu0 0.0
  %90 = vmatpush1.msra.mxu0 0.0
  %91 = vmatprep.subr.mxu0 0.0
  %92 = vmatpush1.msra.mxu0 0.0
  %93 = vmatprep.subr.mxu0 0.0
  %94 = vmatpush1.msra.mxu0 0.0
  %95 = vmatprep.subr.mxu0 0.0
  %96 = vmatpush1.msra.mxu0 0.0
  %97 = vmatprep.subr.mxu0 0.0
  %98 = vmatpush1.msra.mxu0 0.0
  %99 = vmatprep.subr.mxu0 0.0
  %100 = vmatpush1.msra.mxu0 0.0
  %101 = vmatprep.subr.mxu0 0.0
  %102 = vmatpush1.msra.mxu0 0.0
  %103 = vmatprep.subr.mxu0 0.0
  %104 = vmatpush1.msra.mxu0 0.0
  %105 = vmatprep.subr.mxu0 0.0
  %106 = vmatpush1.msra.mxu0 0.0
  %107 = vmatprep.subr.mxu0 0.0
  %108 = vmatpush1.msra.mxu0 0.0
  %109 = vmatprep.subr.mxu0 0.0
  %110 = vmatpush1.msra.mxu0 0.0
  %111 = vmatprep.subr.mxu0 0.0
  %112 = vmatpush1.msra.mxu0 0.0
  %113 = vmatprep.subr.mxu0 0.0
  %114 = vmatpush1.msra.mxu0 0.0
  %115 = vmatprep.subr.mxu0 0.0
  %116 = vmatpush1.msra.mxu0 0.0
  %117 = vmatprep.subr.mxu0 0.0
  %118 = vmatpush1.msra.mxu0 0.0
  %119 = vmatprep.subr.mxu0 0.0
  %120 = vmatpush1.msra.mxu0 0.0
  %121 = vmatprep.subr.mxu0 0.0
  %122 = vmatpush1.msra.mxu0 0.0
  %123 = vmatprep.mubr.f32.mxu0 0.0
  %124 = vmatmul.mubr.f32.gmra.mrb[0].mxu0 %v30
  %v125 = vpop.f32.mrb[0].mxu0
  %v126 = vadd.f32 0.0, %v125
  %v127 = vpop.f32.mrb[0].mxu0
  %128 = vmatprep.mubr.f32.mxu0 0.0
  %129 = vmatmul.mubr.f32.gmra.mrb[0].mxu0 %v33
  %v130 = vpop.f32.mrb[0].mxu0
  %v131 = vadd.f32 0.0, %v130
  %v132 = vpop.f32.mrb[0].mxu0
  %133 = vmatprep.mubr.f32.mxu0 0.0
  %134 = vmatmul.mubr.f32.gmra.mrb[0].mxu0 %v36
  %v135 = vpop.f32.mrb[0].mxu0
  %v136 = vadd.f32 0.0, %v135
  %v137 = vpop.f32.mrb[0].mxu0
  %138 = vmatprep.mubr.f32.mxu0 0.0
  %139 = vmatmul.mubr.f32.gmra.mrb[0].mxu0 %v39
  %v140 = vpop.f32.mrb[0].mxu0
  %v141 = vadd.f32 0.0, %v140
  %v142 = vpop.f32.mrb[0].mxu0
  %143 = vmatprep.mubr.f32.mxu0 0.0
  %144 = vmatmul.mubr.f32.gmra.mrb[0].mxu0 %v42
  %v145 = vpop.f32.mrb[0].mxu0
  %v146 = vadd.f32 0.0, %v145
  %v147 = vpop.f32.mrb[0].mxu0
  %148 = vmatprep.mubr.f32.mxu0 0.0
  %149 = vmatmul.mubr.f32.gmra.mrb[0].mxu0 %v45
  %v150 = vpop.f32.mrb[0].mxu0
  %v151 = vadd.f32 0.0, %v150
  %v152 = vpop.f32.mrb[0].mxu0
  %153 = vmatprep.mubr.f32.mxu0 0.0
  %154 = vmatmul.mubr.f32.gmra.mrb[0].mxu0 %v48
  %v155 = vpop.f32.mrb[0].mxu0
  %v156 = vadd.f32 0.0, %v155
  %v157 = vpop.f32.mrb[0].mxu0
  %158 = vmatprep.mubr.f32.mxu0 0.0
  %159 = vmatmul.mubr.f32.gmra.mrb[0].mxu0 %v51
  %v160 = vpop.f32.mrb[0].mxu0
  %v161 = vadd.f32 0.0, %v160
  %v162 = vpop.f32.mrb[0].mxu0
  %163 = vmatprep.mubr.f32.mxu0 0.0
  %164 = vmatmul.mubr.f32.gmra.mrb[0].mxu0 %v54
  %v165 = vpop.f32.mrb[0].mxu0
  %v166 = vadd.f32 0.0, %v165
  %v167 = vpop.f32.mrb[0].mxu0
  %168 = vmatprep.mubr.f32.mxu0 0.0
  %169 = vmatmul.mubr.f32.gmra.mrb[0].mxu0 %v57
  %v170 = vpop.f32.mrb[0].mxu0
  %v171 = vadd.f32 0.0, %v170
  %v172 = vpop.f32.mrb[0].mxu0
  %173 = vdwg.mxu0
  %v174 = vld [vmem:[%s2] sm:$0x1]
  %v176 = vlaneseq
  %v177 = vshrl.u32 %v176, 7
  %v178 = vsub.s32 0, %v177
  %v179 = vrot.slane %v174, %v178
  %v181 = vmul.f32 %v126, %v179
  %v182 = vmul.f32 %v131, %v179
  %v183 = vmul.f32 %v136, %v179
  %v184 = vmul.f32 %v141, %v179
  %v185 = vmul.f32 %v146, %v179
  %v186 = vmul.f32 %v151, %v179
  %v187 = vmul.f32 %v156, %v179
  %v188 = vmul.f32 %v161, %v179
  %v189 = vmul.f32 %v166, %v179
  %v190 = vmul.f32 %v171, %v179
  %v191 = vld [vmem:[%s3] sm:$0x1]
  %v193 = vlaneseq
  %v194 = vshrl.u32 %v193, 7
  %v195 = vsub.s32 0, %v194
  %v196 = vrot.slane %v191, %v195
  %v198 = vadd.f32 %v181, %v196
  %v199 = vadd.f32 %v182, %v196
  %v200 = vadd.f32 %v183, %v196
  %v201 = vadd.f32 %v184, %v196
  %v202 = vadd.f32 %v185, %v196
  %v203 = vadd.f32 %v186, %v196
  %v204 = vadd.f32 %v187, %v196
  %v205 = vadd.f32 %v188, %v196
  %v206 = vadd.f32 %v189, %v196
  %v207 = vadd.f32 %v190, %v196
  %v208 = vmax.f32 %v198, 0.0
  %v209 = vmax.f32 %v199, 0.0
  %v210 = vmax.f32 %v200, 0.0
  %v211 = vmax.f32 %v201, 0.0
  %v212 = vmax.f32 %v202, 0.0
  %v213 = vmax.f32 %v203, 0.0
  %v214 = vmax.f32 %v204, 0.0
  %v215 = vmax.f32 %v205, 0.0
  %v216 = vmax.f32 %v206, 0.0
  %v217 = vmax.f32 %v207, 0.0
  %218 = vst.msk [vmem:[%s4] sm:$0xff] %vm28, %v208
  %219 = vst.msk [vmem:[%s4 + $0x8] sm:$0xff] %vm28, %v209
  %220 = vst.msk [vmem:[%s4 + $0x10] sm:$0xff] %vm28, %v210
  %221 = vst.msk [vmem:[%s4 + $0x18] sm:$0xff] %vm28, %v211
  %222 = vst.msk [vmem:[%s4 + $0x20] sm:$0xff] %vm28, %v212
  %223 = vst.msk [vmem:[%s4 + $0x28] sm:$0xff] %vm28, %v213
  %224 = vst.msk [vmem:[%s4 + $0x30] sm:$0xff] %vm28, %v214
  %225 = vst.msk [vmem:[%s4 + $0x38] sm:$0xff] %vm28, %v215
  %226 = vst.msk [vmem:[%s4 + $0x40] sm:$0xff] %vm28, %v216
  %227 = vst.msk [vmem:[%s4 + $0x48] sm:$0xff] %vm28, %v217
  // Predicated region
  $region18: #{ffc_forward.14} parent=0 // pred_check
    _
  $region19: #{ffc_forward.14} parent=0 // pred_check_branch
    %229 = sbr.rel (0) target = $region21
  $region20: #{ffc_forward.14} parent=0 // pred_region
    _
  $region21: #{ffc_forward.14} parent=0 // pred_fallthru
    _
  // Predicated region
  $region22: #{ffc_forward.14} parent=0 // pred_check
    _
  $region23: #{ffc_forward.14} parent=0 // pred_check_branch
    %231 = sbr.rel (0) target = $region25
  $region24: #{ffc_forward.14} parent=0 // pred_region
    _
  $region25: #{ffc_forward.14} parent=0 // pred_fallthru
    _

// kernel: ffc_forward.13
$region0: #{ffc_forward.13}
  #allocation0 [shape = 'u32[]', space=smem, size = 0x4, offset = 0x4, fixed_abs, tag = 'smem constant byte address 0x4 - core index']
  #allocation1 [shape = 'u32[144,128]{1,0:T(1,128)}', space=vmem, size = 0x12000, scoped, tag = 'internal scratch']
  %s0 = inlined_call_operand.vmem [shape: f32[80,8], index: 0, kind: input, shape index: {}]
  %s1 = inlined_call_operand.vmem [shape: f32[8,8], index: 1, kind: input, shape index: {}]
  %s2 = inlined_call_operand.vmem [shape: f32[1,8], index: 2, kind: output, shape index: {0}]
  %s3 = inlined_call_operand.vmem [shape: f32[1,8], index: 3, kind: output, shape index: {1}]
  %4 = xla_tuple %s2, %s3
  %s5 = sld [smem:[#allocation0]]
  $region30: #{ffc_forward.13} parent=0
    _
  %s7 = ssub.s32 1, %s5
  %s8 = scalar_select 0, %s7, %s5
  // Predicated region
  $region2: #{ffc_forward.13} parent=0 // pred_check
    _
  $region3: #{ffc_forward.13} parent=0 // pred_check_branch
    %10 = sbr.rel (0) target = $region5
  $region4: #{ffc_forward.13} parent=0 // pred_region
    _
  $region5: #{ffc_forward.13} parent=0 // pred_fallthru
    _
  // Predicated region
  $region6: #{ffc_forward.13} parent=0 // pred_check
    _
  $region7: #{ffc_forward.13} parent=0 // pred_check_branch
    %12 = sbr.rel (0) target = $region9
  $region8: #{ffc_forward.13} parent=0 // pred_region
    _
  $region9: #{ffc_forward.13} parent=0 // pred_fallthru
    _
  %p13 = scmp.eq.s32.totalorder 0, 0
  // Predicated region
  $region10: #{ffc_forward.13} parent=0 // pred_check
    %p14 = pneg %p13
  $region11: #{ffc_forward.13} parent=0 // pred_check_branch
    %16 = sbr.rel (%p14) target = $region13
  $region12: #{ffc_forward.13} parent=0 // pred_region
    %vm17 = vcmask 57344
    %18 = vst.msk [vmem:[%s2] sm:$0x1] %vm17, 0.0
    %19 = vst.msk [vmem:[%s3] sm:$0x1] %vm17, 0.0
  $region13: #{ffc_forward.13} parent=0 // pred_fallthru
    _
  %v20 = vld [vmem:[%s0] sm:$0xff]
  %v21 = vld [vmem:[%s0 + $0x8] sm:$0xff]
  %v22 = vld [vmem:[%s0 + $0x10] sm:$0xff]
  %v23 = vld [vmem:[%s0 + $0x18] sm:$0xff]
  %v24 = vld [vmem:[%s0 + $0x20] sm:$0xff]
  %v25 = vld [vmem:[%s0 + $0x28] sm:$0xff]
  %v26 = vld [vmem:[%s0 + $0x30] sm:$0xff]
  %v27 = vld [vmem:[%s0 + $0x38] sm:$0xff]
  %v28 = vld [vmem:[%s0 + $0x40] sm:$0xff]
  %v29 = vld [vmem:[%s0 + $0x48] sm:$0xff]
  %v30 = vld [vmem:[%s1] sm:$0xff]
  %vm31 = vcmask 64512
  %v33 = vsel %vm31, %v20, 0
  %v36 = vsel %vm31, %v21, 0
  %v39 = vsel %vm31, %v22, 0
  %v42 = vsel %vm31, %v23, 0
  %v45 = vsel %vm31, %v24, 0
  %v48 = vsel %vm31, %v25, 0
  %v51 = vsel %vm31, %v26, 0
  %v54 = vsel %vm31, %v27, 0
  %v57 = vsel %vm31, %v28, 0
  %v60 = vsel %vm31, %v29, 0
  %62 = vmatprep.subr.mxu0 0.0
  %63 = vmatpush1.msra.mxu0 %v30
  %64 = vmatprep.subr.mxu0 0.0
  %65 = vmatpush1.msra.mxu0 0.0
  %66 = vmatprep.subr.mxu0 0.0
  %67 = vmatpush1.msra.mxu0 0.0
  %68 = vmatprep.subr.mxu0 0.0
  %69 = vmatpush1.msra.mxu0 0.0
  %70 = vmatprep.subr.mxu0 0.0
  %71 = vmatpush1.msra.mxu0 0.0
  %72 = vmatprep.subr.mxu0 0.0
  %73 = vmatpush1.msra.mxu0 0.0
  %74 = vmatprep.subr.mxu0 0.0
  %75 = vmatpush1.msra.mxu0 0.0
  %76 = vmatprep.subr.mxu0 0.0
  %77 = vmatpush1.msra.mxu0 0.0
  %78 = vmatprep.subr.mxu0 0.0
  %79 = vmatpush1.msra.mxu0 0.0
  %80 = vmatprep.subr.mxu0 0.0
  %81 = vmatpush1.msra.mxu0 0.0
  %82 = vmatprep.subr.mxu0 0.0
  %83 = vmatpush1.msra.mxu0 0.0
  %84 = vmatprep.subr.mxu0 0.0
  %85 = vmatpush1.msra.mxu0 0.0
  %86 = vmatprep.subr.mxu0 0.0
  %87 = vmatpush1.msra.mxu0 0.0
  %88 = vmatprep.subr.mxu0 0.0
  %89 = vmatpush1.msra.mxu0 0.0
  %90 = vmatprep.subr.mxu0 0.0
  %91 = vmatpush1.msra.mxu0 0.0
  %92 = vmatprep.subr.mxu0 0.0
  %93 = vmatpush1.msra.mxu0 0.0
  %94 = vmatprep.subr.mxu0 0.0
  %95 = vmatpush1.msra.mxu0 0.0
  %96 = vmatprep.subr.mxu0 0.0
  %97 = vmatpush1.msra.mxu0 0.0
  %98 = vmatprep.subr.mxu0 0.0
  %99 = vmatpush1.msra.mxu0 0.0
  %100 = vmatprep.subr.mxu0 0.0
  %101 = vmatpush1.msra.mxu0 0.0
  %102 = vmatprep.subr.mxu0 0.0
  %103 = vmatpush1.msra.mxu0 0.0
  %104 = vmatprep.subr.mxu0 0.0
  %105 = vmatpush1.msra.mxu0 0.0
  %106 = vmatprep.subr.mxu0 0.0
  %107 = vmatpush1.msra.mxu0 0.0
  %108 = vmatprep.subr.mxu0 0.0
  %109 = vmatpush1.msra.mxu0 0.0
  %110 = vmatprep.subr.mxu0 0.0
  %111 = vmatpush1.msra.mxu0 0.0
  %112 = vmatprep.subr.mxu0 0.0
  %113 = vmatpush1.msra.mxu0 0.0
  %114 = vmatprep.subr.mxu0 0.0
  %115 = vmatpush1.msra.mxu0 0.0
  %116 = vmatprep.subr.mxu0 0.0
  %117 = vmatpush1.msra.mxu0 0.0
  %118 = vmatprep.subr.mxu0 0.0
  %119 = vmatpush1.msra.mxu0 0.0
  %120 = vmatprep.subr.mxu0 0.0
  %121 = vmatpush1.msra.mxu0 0.0
  %122 = vmatprep.subr.mxu0 0.0
  %123 = vmatpush1.msra.mxu0 0.0
  %124 = vmatprep.subr.mxu0 0.0
  %125 = vmatpush1.msra.mxu0 0.0
  %126 = vmatprep.mubr.f32.mxu0 0.0
  %127 = vmatmul.mubr.f32.gmra.mrb[0].mxu0 %v33
  %v128 = vpop.f32.mrb[0].mxu0
  %v129 = vadd.f32 0.0, %v128
  %v130 = vpop.f32.mrb[0].mxu0
  %131 = vmatprep.mubr.f32.mxu0 0.0
  %132 = vmatmul.mubr.f32.gmra.mrb[0].mxu0 %v36
  %v133 = vpop.f32.mrb[0].mxu0
  %v134 = vadd.f32 0.0, %v133
  %v135 = vpop.f32.mrb[0].mxu0
  %136 = vmatprep.mubr.f32.mxu0 0.0
  %137 = vmatmul.mubr.f32.gmra.mrb[0].mxu0 %v39
  %v138 = vpop.f32.mrb[0].mxu0
  %v139 = vadd.f32 0.0, %v138
  %v140 = vpop.f32.mrb[0].mxu0
  %141 = vmatprep.mubr.f32.mxu0 0.0
  %142 = vmatmul.mubr.f32.gmra.mrb[0].mxu0 %v42
  %v143 = vpop.f32.mrb[0].mxu0
  %v144 = vadd.f32 0.0, %v143
  %v145 = vpop.f32.mrb[0].mxu0
  %146 = vmatprep.mubr.f32.mxu0 0.0
  %147 = vmatmul.mubr.f32.gmra.mrb[0].mxu0 %v45
  %v148 = vpop.f32.mrb[0].mxu0
  %v149 = vadd.f32 0.0, %v148
  %v150 = vpop.f32.mrb[0].mxu0
  %151 = vmatprep.mubr.f32.mxu0 0.0
  %152 = vmatmul.mubr.f32.gmra.mrb[0].mxu0 %v48
  %v153 = vpop.f32.mrb[0].mxu0
  %v154 = vadd.f32 0.0, %v153
  %v155 = vpop.f32.mrb[0].mxu0
  %156 = vmatprep.mubr.f32.mxu0 0.0
  %157 = vmatmul.mubr.f32.gmra.mrb[0].mxu0 %v51
  %v158 = vpop.f32.mrb[0].mxu0
  %v159 = vadd.f32 0.0, %v158
  %v160 = vpop.f32.mrb[0].mxu0
  %161 = vmatprep.mubr.f32.mxu0 0.0
  %162 = vmatmul.mubr.f32.gmra.mrb[0].mxu0 %v54
  %v163 = vpop.f32.mrb[0].mxu0
  %v164 = vadd.f32 0.0, %v163
  %v165 = vpop.f32.mrb[0].mxu0
  %166 = vmatprep.mubr.f32.mxu0 0.0
  %167 = vmatmul.mubr.f32.gmra.mrb[0].mxu0 %v57
  %v168 = vpop.f32.mrb[0].mxu0
  %v169 = vadd.f32 0.0, %v168
  %v170 = vpop.f32.mrb[0].mxu0
  %171 = vmatprep.mubr.f32.mxu0 0.0
  %172 = vmatmul.mubr.f32.gmra.mrb[0].mxu0 %v60
  %v173 = vpop.f32.mrb[0].mxu0
  %v174 = vadd.f32 0.0, %v173
  %v175 = vpop.f32.mrb[0].mxu0
  %176 = vdwg.mxu0
  %v177 = vld [vmem:[%s2] sm:$0x1]
  %v178 = vsel %vm31, %v129, 0.0
  %v179 = vsel %vm31, %v134, 0.0
  %v180 = vadd.f32 %v178, %v179
  %v181 = vsel %vm31, %v139, 0.0
  %v182 = vadd.f32 %v180, %v181
  %v183 = vsel %vm31, %v144, 0.0
  %v184 = vadd.f32 %v182, %v183
  %v185 = vsel %vm31, %v149, 0.0
  %v186 = vadd.f32 %v184, %v185
  %v187 = vsel %vm31, %v154, 0.0
  %v188 = vadd.f32 %v186, %v187
  %v189 = vsel %vm31, %v159, 0.0
  %v190 = vadd.f32 %v188, %v189
  %v191 = vsel %vm31, %v164, 0.0
  %v192 = vadd.f32 %v190, %v191
  %v193 = vsel %vm31, %v169, 0.0
  %v194 = vadd.f32 %v192, %v193
  %v195 = vsel %vm31, %v174, 0.0
  %v196 = vadd.f32 %v194, %v195
  %v197 = vrot.slane %v196, 4
  %v198 = vadd.f32 %v196, %v197
  %v199 = vrot.slane %v198, 2
  %v200 = vadd.f32 %v198, %v199
  %v201 = vrot.slane %v200, 1
  %v202 = vadd.f32 %v200, %v201
  %v203 = vadd.f32 %v177, %v202
  %vm204 = vcmask 57344
  %205 = vst.msk [vmem:[%s2] sm:$0x1] %vm204, %v203
  %v206 = vld [vmem:[%s3] sm:$0x1]
  %v207 = vmul.f32 %v129, %v129
  %v208 = vmul.f32 %v134, %v134
  %v209 = vmul.f32 %v139, %v139
  %v210 = vmul.f32 %v144, %v144
  %v211 = vmul.f32 %v149, %v149
  %v212 = vmul.f32 %v154, %v154
  %v213 = vmul.f32 %v159, %v159
  %v214 = vmul.f32 %v164, %v164
  %v215 = vmul.f32 %v169, %v169
  %v216 = vmul.f32 %v174, %v174
  %v217 = vsel %vm31, %v207, 0.0
  %v218 = vsel %vm31, %v208, 0.0
  %v219 = vadd.f32 %v217, %v218
  %v220 = vsel %vm31, %v209, 0.0
  %v221 = vadd.f32 %v219, %v220
  %v222 = vsel %vm31, %v210, 0.0
  %v223 = vadd.f32 %v221, %v222
  %v224 = vsel %vm31, %v211, 0.0
  %v225 = vadd.f32 %v223, %v224
  %v226 = vsel %vm31, %v212, 0.0
  %v227 = vadd.f32 %v225, %v226
  %v228 = vsel %vm31, %v213, 0.0
  %v229 = vadd.f32 %v227, %v228
  %v230 = vsel %vm31, %v214, 0.0
  %v231 = vadd.f32 %v229, %v230
  %v232 = vsel %vm31, %v215, 0.0
  %v233 = vadd.f32 %v231, %v232
  %v234 = vsel %vm31, %v216, 0.0
  %v235 = vadd.f32 %v233, %v234
  %v236 = vrot.slane %v235, 4
  %v237 = vadd.f32 %v235, %v236
  %v238 = vrot.slane %v237, 2
  %v239 = vadd.f32 %v237, %v238
  %v240 = vrot.slane %v239, 1
  %v241 = vadd.f32 %v239, %v240
  %v242 = vadd.f32 %v206, %v241
  %243 = vst.msk [vmem:[%s3] sm:$0x1] %vm204, %v242
  // Predicated region
  $region14: #{ffc_forward.13} parent=0 // pred_check
    _
  $region15: #{ffc_forward.13} parent=0 // pred_check_branch
    %245 = sbr.rel (0) target = $region17
  $region16: #{ffc_forward.13} parent=0 // pred_region
    _
  $region17: #{ffc_forward.13} parent=0 // pred_fallthru
    _
  // Predicated region
  $region18: #{ffc_forward.13} parent=0 // pred_check
    _
  $region19: #{ffc_forward.13} parent=0 // pred_check_branch
    %247 = sbr.rel (0) target = $region21
  $region20: #{ffc_forward.13} parent=0 // pred_region
    _
  $region21: #{ffc_forward.13} parent=0 // pred_fallthru
    _
  // Predicated region
  $region22: #{ffc_forward.13} parent=0 // pred_check
    _
  $region23: #{ffc_forward.13} parent=0 // pred_check_branch
    %249 = sbr.rel (0) target = $region25
  $region24: #{ffc_forward.13} parent=0 // pred_region
    _
  $region25: #{ffc_forward.13} parent=0 // pred_fallthru
    _
  // Predicated region
  $region26: #{ffc_forward.13} parent=0 // pred_check
    _
  $region27: #{ffc_forward.13} parent=0 // pred_check_branch
    %251 = sbr.rel (0) target = $region29
  $region28: #{ffc_forward.13} parent=0 // pred_region
    _
  $region29: #{ffc_forward.13} parent=0 // pred_fallthru
    _

// kernel: reverse.1
$region0: #{reverse.1}
  %s0 = inlined_call_operand.vmem [shape: f32[2,4,8,3], index: 0, kind: input, shape index: {}]
  %s1 = inlined_call_operand.vmem [shape: f32[2,4,8,3], index: 1, kind: output, shape index: {}]
  $region1: #{reverse.1} parent=0
    #allocation0 [shape = 'u8[65536]{0}', space=vmem, size = 0x10000, scoped, tag = 'operand span for operand 0']
    #allocation1 [shape = 'u8[32768]{0}', space=vmem, size = 0x8000, scoped, tag = 'packed  for operand 0']
    #allocation2 [shape = 'u8[32768]{0}', space=vmem, size = 0x8000, scoped, tag = 'operand span for operand 1']
    #allocation3 [shape = 'u8[16384]{0}', space=vmem, size = 0x4000, scoped, tag = 'packed  for operand 1']
    %s2 = scalar_lea.vmem [#allocation1], 4
    // Predicated region
    $region2: #{reverse.1} parent=1 // pred_check
      _
    $region3: #{reverse.1} parent=1 // pred_check_branch
      %4 = sbr.rel (0) target = $region5
    $region4: #{reverse.1} parent=1 // pred_region
      // Predicated region
      $region6: #{reverse.1} parent=4 // pred_check
        _
      $region7: #{reverse.1} parent=4 // pred_check_branch
        %6 = sbr.rel target = $region9
      $region8: #{reverse.1} parent=4 // pred_region
        // Predicated region
        $region21: #{reverse.1} parent=8 // pred_check
          _
        $region22: #{reverse.1} parent=8 // pred_check_branch
          %35 = sbr.rel (0) target = $region24
        $region23: #{reverse.1} parent=8 // pred_region
          loop: start=0, step=1, limit=1
          $region25: #{reverse.1} parent=23 // loop_pre_header
            _
          $region26: #{reverse.1} parent=23 // loop_header
            %s37 = sphi 0, %s41
            %p38 = scmp.ge.s32.totalorder %s37, 1
            %s42 = sphi %s0, %s0
            %s43 = sphi %s2, %s2
          $region27: #{reverse.1} parent=23 // loop_header_branch
            %40 = sbr.rel (%p38) target = $region31
          $region28: #{reverse.1} parent=23 // loop_body
            _
          $region29: #{reverse.1} parent=23 // loop_footer
            %s41 = sadd.s32 1, %s37
          $region30: #{reverse.1} parent=23 // loop_footer_branch
            %36 = sbr.rel target = $region26
          $region31: #{reverse.1} parent=23 // loop_exit
            _
          loop: start=0, step=1, limit=1
          $region32: #{reverse.1} parent=23 // loop_pre_header
            _
          $region33: #{reverse.1} parent=23 // loop_header
            %s46 = sphi 0, %s50
            %p47 = scmp.ge.s32.totalorder %s46, 1
            %s51 = sphi %s0, %s0
            %s52 = sphi %s2, %s2
          $region34: #{reverse.1} parent=23 // loop_header_branch
            %49 = sbr.rel (%p47) target = $region38
          $region35: #{reverse.1} parent=23 // loop_body
            %v53 = vld [vmem:[%s51] sm:$0xf]
            %54 = vst [vmem:[%s52] sm:$0xf] %v53
            %v55 = vld [vmem:[%s51 + $0x4] sm:$0xf]
            %56 = vst [vmem:[%s52 + $0x8] sm:$0xf] %v55
            %v57 = vld [vmem:[%s51 + $0x8] sm:$0xf]
            %58 = vst [vmem:[%s52 + $0x10] sm:$0xf] %v57
            %v59 = vld [vmem:[%s51 + $0xc] sm:$0xf]
            %60 = vst [vmem:[%s52 + $0x18] sm:$0xf] %v59
            %v61 = vld [vmem:[%s51 + $0x10] sm:$0xf]
            %62 = vst [vmem:[%s52 + $0x20] sm:$0xf] %v61
            %v63 = vld [vmem:[%s51 + $0x14] sm:$0xf]
            %64 = vst [vmem:[%s52 + $0x28] sm:$0xf] %v63
            %v65 = vld [vmem:[%s51 + $0x18] sm:$0xf]
            %66 = vst [vmem:[%s52 + $0x30] sm:$0xf] %v65
            %v67 = vld [vmem:[%s51 + $0x1c] sm:$0xf]
            %68 = vst [vmem:[%s52 + $0x38] sm:$0xf] %v67
          $region36: #{reverse.1} parent=23 // loop_footer
            %s50 = sadd.s32 1, %s46
          $region37: #{reverse.1} parent=23 // loop_footer_branch
            %45 = sbr.rel target = $region33
          $region38: #{reverse.1} parent=23 // loop_exit
            _
        $region24: #{reverse.1} parent=8 // pred_fallthru
          _
      $region9: #{reverse.1} parent=4 // pred_fallthru
        _
      // Predicated region
      $region10: #{reverse.1} parent=4 // pred_check
        _
      $region11: #{reverse.1} parent=4 // pred_check_branch
        %8 = sbr.rel (0) target = $region13
      $region12: #{reverse.1} parent=4 // pred_region
        loop: start=0, step=1, limit=1
        $region14: #{reverse.1} parent=12 // loop_pre_header
          _
        $region15: #{reverse.1} parent=12 // loop_header
          %s11 = sphi 0, %s15
          %p12 = scmp.ge.s32.totalorder %s11, 1
          %s16 = sphi %s0, %s0
          %s17 = sphi %s2, %s2
        $region16: #{reverse.1} parent=12 // loop_header_branch
          %14 = sbr.rel (%p12) target = $region20
        $region17: #{reverse.1} parent=12 // loop_body
          %v18 = vld [vmem:[%s16] sm:$0xf]
          %19 = vst [vmem:[%s17] sm:$0xf] %v18
          %v20 = vld [vmem:[%s16 + $0x4] sm:$0xf]
          %21 = vst [vmem:[%s17 + $0x8] sm:$0xf] %v20
          %v22 = vld [vmem:[%s16 + $0x8] sm:$0xf]
          %23 = vst [vmem:[%s17 + $0x10] sm:$0xf] %v22
          %v24 = vld [vmem:[%s16 + $0xc] sm:$0xf]
          %25 = vst [vmem:[%s17 + $0x18] sm:$0xf] %v24
          %v26 = vld [vmem:[%s16 + $0x10] sm:$0xf]
          %27 = vst [vmem:[%s17 + $0x20] sm:$0xf] %v26
          %v28 = vld [vmem:[%s16 + $0x14] sm:$0xf]
          %29 = vst [vmem:[%s17 + $0x28] sm:$0xf] %v28
          %v30 = vld [vmem:[%s16 + $0x18] sm:$0xf]
          %31 = vst [vmem:[%s17 + $0x30] sm:$0xf] %v30
          %v32 = vld [vmem:[%s16 + $0x1c] sm:$0xf]
          %33 = vst [vmem:[%s17 + $0x38] sm:$0xf] %v32
        $region18: #{reverse.1} parent=12 // loop_footer
          %s15 = sadd.s32 1, %s11
        $region19: #{reverse.1} parent=12 // loop_footer_branch
          %10 = sbr.rel target = $region15
        $region20: #{reverse.1} parent=12 // loop_exit
          _
      $region13: #{reverse.1} parent=4 // pred_fallthru
        _
    $region5: #{reverse.1} parent=1 // pred_fallthru
      _
    %69 = vnop
    %s71 = sshllo.u32 0, 4
    %s72 = smul.addr 4, 15
    %s73 = scalar_lea.vmem [#allocation1], %s72
    %v74 = vld [vmem:[%s73] sm:%s71]
    %s75 = scalar_lea.vmem [#allocation0], 120
    %76 = vst [vmem:[%s75] sm:%s71] %v74
    %s77 = smul.addr 4, 14
    %s78 = scalar_lea.vmem [#allocation1], %s77
    %v79 = vld [vmem:[%s78] sm:%s71]
    %s80 = scalar_lea.vmem [#allocation0], 112
    %81 = vst [vmem:[%s80] sm:%s71] %v79
    %s82 = smul.addr 4, 13
    %s83 = scalar_lea.vmem [#allocation1], %s82
    %v84 = vld [vmem:[%s83] sm:%s71]
    %s85 = scalar_lea.vmem [#allocation0], 104
    %86 = vst [vmem:[%s85] sm:%s71] %v84
    %s87 = smul.addr 4, 12
    %s88 = scalar_lea.vmem [#allocation1], %s87
    %v89 = vld [vmem:[%s88] sm:%s71]
    %s90 = scalar_lea.vmem [#allocation0], 96
    %91 = vst [vmem:[%s90] sm:%s71] %v89
    %s92 = smul.addr 4, 11
    %s93 = scalar_lea.vmem [#allocation1], %s92
    %v94 = vld [vmem:[%s93] sm:%s71]
    %s95 = scalar_lea.vmem [#allocation0], 88
    %96 = vst [vmem:[%s95] sm:%s71] %v94
    %s97 = smul.addr 4, 10
    %s98 = scalar_lea.vmem [#allocation1], %s97
    %v99 = vld [vmem:[%s98] sm:%s71]
    %s100 = scalar_lea.vmem [#allocation0], 80
    %101 = vst [vmem:[%s100] sm:%s71] %v99
    %s102 = smul.addr 4, 9
    %s103 = scalar_lea.vmem [#allocation1], %s102
    %v104 = vld [vmem:[%s103] sm:%s71]
    %s105 = scalar_lea.vmem [#allocation0], 72
    %106 = vst [vmem:[%s105] sm:%s71] %v104
    %s107 = smul.addr 4, 8
    %s108 = scalar_lea.vmem [#allocation1], %s107
    %v109 = vld [vmem:[%s108] sm:%s71]
    %s110 = scalar_lea.vmem [#allocation0], 64
    %111 = vst [vmem:[%s110] sm:%s71] %v109
    %s112 = smul.addr 4, 7
    %s113 = scalar_lea.vmem [#allocation1], %s112
    %v114 = vld [vmem:[%s113] sm:%s71]
    %s115 = scalar_lea.vmem [#allocation0], 56
    %116 = vst [vmem:[%s115] sm:%s71] %v114
    %s117 = smul.addr 4, 6
    %s118 = scalar_lea.vmem [#allocation1], %s117
    %v119 = vld [vmem:[%s118] sm:%s71]
    %s120 = scalar_lea.vmem [#allocation0], 48
    %121 = vst [vmem:[%s120] sm:%s71] %v119
    %s122 = smul.addr 4, 5
    %s123 = scalar_lea.vmem [#allocation1], %s122
    %v124 = vld [vmem:[%s123] sm:%s71]
    %s125 = scalar_lea.vmem [#allocation0], 40
    %126 = vst [vmem:[%s125] sm:%s71] %v124
    %s127 = smul.addr 4, 4
    %s128 = scalar_lea.vmem [#allocation1], %s127
    %v129 = vld [vmem:[%s128] sm:%s71]
    %s130 = scalar_lea.vmem [#allocation0], 32
    %131 = vst [vmem:[%s130] sm:%s71] %v129
    %s132 = smul.addr 4, 3
    %s133 = scalar_lea.vmem [#allocation1], %s132
    %v134 = vld [vmem:[%s133] sm:%s71]
    %s135 = scalar_lea.vmem [#allocation0], 24
    %136 = vst [vmem:[%s135] sm:%s71] %v134
    %s137 = smul.addr 4, 2
    %s138 = scalar_lea.vmem [#allocation1], %s137
    %v139 = vld [vmem:[%s138] sm:%s71]
    %s140 = scalar_lea.vmem [#allocation0], 16
    %141 = vst [vmem:[%s140] sm:%s71] %v139
    %s142 = scalar_lea.vmem [#allocation1], 4
    %v143 = vld [vmem:[%s142] sm:%s71]
    %s144 = scalar_lea.vmem [#allocation0], 8
    %145 = vst [vmem:[%s144] sm:%s71] %v143
    %v146 = vld [vmem:[#allocation1] sm:%s71]
    %147 = vst [vmem:[#allocation0] sm:%s71] %v146
    %s148 = scalar_lea.vmem [#allocation0], 7
    %v149 = vld [vmem:[%s148] ss:$-1 sm:$0xff]
    %v150 = vrot.slane %v149, 5
    %151 = vst [vmem:[#allocation2] sm:$0xff] %v150
    %s152 = scalar_lea.vmem [#allocation0], 8
    %s153 = scalar_lea.vmem %s152, 7 [#allocation0]
    %v154 = vld [vmem:[%s153] ss:$-1 sm:$0xff]
    %v155 = vrot.slane %v154, 5
    %v156 = vlaneseq
    %v157 = vshrl.u32 %v156, 7
    %vm158 = vcmp.lt.s32.totalorder %v157, 3
    %159 = vst.msk [vmem:[#allocation2] sm:$0xff] %vm158, %v155
    %s160 = scalar_lea.vmem [#allocation2], 8
    %s161 = scalar_lea.vmem [#allocation0], 16
    %s162 = scalar_lea.vmem %s161, 7 [#allocation0]
    %v163 = vld [vmem:[%s162] ss:$-1 sm:$0xff]
    %v164 = vrot.slane %v163, 5
    %165 = vst [vmem:[%s160] sm:$0xff] %v164
    %s166 = scalar_lea.vmem %s161, 8 [#allocation0]
    %s167 = scalar_lea.vmem %s166, 7 [#allocation0]
    %v168 = vld [vmem:[%s167] ss:$-1 sm:$0xff]
    %v169 = vrot.slane %v168, 5
    %v170 = vlaneseq
    %v171 = vshrl.u32 %v170, 7
    %vm172 = vcmp.lt.s32.totalorder %v171, 3
    %173 = vst.msk [vmem:[%s160] sm:$0xff] %vm172, %v169
    %s174 = scalar_lea.vmem [#allocation2], 16
    %s175 = scalar_lea.vmem [#allocation0], 32
    %s176 = scalar_lea.vmem %s175, 7 [#allocation0]
    %v177 = vld [vmem:[%s176] ss:$-1 sm:$0xff]
    %v178 = vrot.slane %v177, 5
    %179 = vst [vmem:[%s174] sm:$0xff] %v178
    %s180 = scalar_lea.vmem %s175, 8 [#allocation0]
    %s181 = scalar_lea.vmem %s180, 7 [#allocation0]
    %v182 = vld [vmem:[%s181] ss:$-1 sm:$0xff]
    %v183 = vrot.slane %v182, 5
    %v184 = vlaneseq
    %v185 = vshrl.u32 %v184, 7
    %vm186 = vcmp.lt.s32.totalorder %v185, 3
    %187 = vst.msk [vmem:[%s174] sm:$0xff] %vm186, %v183
    %s188 = scalar_lea.vmem [#allocation2], 24
    %s189 = scalar_lea.vmem [#allocation0], 48
    %s190 = scalar_lea.vmem %s189, 7 [#allocation0]
    %v191 = vld [vmem:[%s190] ss:$-1 sm:$0xff]
    %v192 = vrot.slane %v191, 5
    %193 = vst [vmem:[%s188] sm:$0xff] %v192
    %s194 = scalar_lea.vmem %s189, 8 [#allocation0]
    %s195 = scalar_lea.vmem %s194, 7 [#allocation0]
    %v196 = vld [vmem:[%s195] ss:$-1 sm:$0xff]
    %v197 = vrot.slane %v196, 5
    %v198 = vlaneseq
    %v199 = vshrl.u32 %v198, 7
    %vm200 = vcmp.lt.s32.totalorder %v199, 3
    %201 = vst.msk [vmem:[%s188] sm:$0xff] %vm200, %v197
    %s202 = scalar_lea.vmem [#allocation2], 32
    %s203 = scalar_lea.vmem [#allocation0], 64
    %s204 = scalar_lea.vmem %s203, 7 [#allocation0]
    %v205 = vld [vmem:[%s204] ss:$-1 sm:$0xff]
    %v206 = vrot.slane %v205, 5
    %207 = vst [vmem:[%s202] sm:$0xff] %v206
    %s208 = scalar_lea.vmem %s203, 8 [#allocation0]
    %s209 = scalar_lea.vmem %s208, 7 [#allocation0]
    %v210 = vld [vmem:[%s209] ss:$-1 sm:$0xff]
    %v211 = vrot.slane %v210, 5
    %v212 = vlaneseq
    %v213 = vshrl.u32 %v212, 7
    %vm214 = vcmp.lt.s32.totalorder %v213, 3
    %215 = vst.msk [vmem:[%s202] sm:$0xff] %vm214, %v211
    %s216 = scalar_lea.vmem [#allocation2], 40
    %s217 = scalar_lea.vmem [#allocation0], 80
    %s218 = scalar_lea.vmem %s217, 7 [#allocation0]
    %v219 = vld [vmem:[%s218] ss:$-1 sm:$0xff]
    %v220 = vrot.slane %v219, 5
    %221 = vst [vmem:[%s216] sm:$0xff] %v220
    %s222 = scalar_lea.vmem %s217, 8 [#allocation0]
    %s223 = scalar_lea.vmem %s222, 7 [#allocation0]
    %v224 = vld [vmem:[%s223] ss:$-1 sm:$0xff]
    %v225 = vrot.slane %v224, 5
    %v226 = vlaneseq
    %v227 = vshrl.u32 %v226, 7
    %vm228 = vcmp.lt.s32.totalorder %v227, 3
    %229 = vst.msk [vmem:[%s216] sm:$0xff] %vm228, %v225
    %s230 = scalar_lea.vmem [#allocation2], 48
    %s231 = scalar_lea.vmem [#allocation0], 96
    %s232 = scalar_lea.vmem %s231, 7 [#allocation0]
    %v233 = vld [vmem:[%s232] ss:$-1 sm:$0xff]
    %v234 = vrot.slane %v233, 5
    %235 = vst [vmem:[%s230] sm:$0xff] %v234
    %s236 = scalar_lea.vmem %s231, 8 [#allocation0]
    %s237 = scalar_lea.vmem %s236, 7 [#allocation0]
    %v238 = vld [vmem:[%s237] ss:$-1 sm:$0xff]
    %v239 = vrot.slane %v238, 5
    %v240 = vlaneseq
    %v241 = vshrl.u32 %v240, 7
    %vm242 = vcmp.lt.s32.totalorder %v241, 3
    %243 = vst.msk [vmem:[%s230] sm:$0xff] %vm242, %v239
    %s244 = scalar_lea.vmem [#allocation2], 56
    %s245 = scalar_lea.vmem [#allocation0], 112
    %s246 = scalar_lea.vmem %s245, 7 [#allocation0]
    %v247 = vld [vmem:[%s246] ss:$-1 sm:$0xff]
    %v248 = vrot.slane %v247, 5
    %249 = vst [vmem:[%s244] sm:$0xff] %v248
    %s250 = scalar_lea.vmem %s245, 8 [#allocation0]
    %s251 = scalar_lea.vmem %s250, 7 [#allocation0]
    %v252 = vld [vmem:[%s251] ss:$-1 sm:$0xff]
    %v253 = vrot.slane %v252, 5
    %v254 = vlaneseq
    %v255 = vshrl.u32 %v254, 7
    %vm256 = vcmp.lt.s32.totalorder %v255, 3
    %257 = vst.msk [vmem:[%s244] sm:$0xff] %vm256, %v253
    %s259 = sshllo.u32 0, 4
    %v261 = vld [vmem:[#allocation2] sm:%s259]
    %s262 = sshllo.u32 0, 4
    %263 = vst [vmem:[#allocation3] sm:%s262] %v261
    %s264 = scalar_lea.vmem [#allocation2], 8
    %v265 = vld [vmem:[%s264] sm:%s259]
    %s266 = sshllo.u32 0, 4
    %s267 = scalar_lea.vmem [#allocation3], 4
    %268 = vst [vmem:[%s267] sm:%s266] %v265
    %s269 = scalar_lea.vmem [#allocation2], 16
    %v270 = vld [vmem:[%s269] sm:%s259]
    %s271 = sshllo.u32 0, 4
    %s272 = smul.addr 4, 2
    %s273 = scalar_lea.vmem [#allocation3], %s272
    %274 = vst [vmem:[%s273] sm:%s271] %v270
    %s275 = scalar_lea.vmem [#allocation2], 24
    %v276 = vld [vmem:[%s275] sm:%s259]
    %s277 = sshllo.u32 0, 4
    %s278 = smul.addr 4, 3
    %s279 = scalar_lea.vmem [#allocation3], %s278
    %280 = vst [vmem:[%s279] sm:%s277] %v276
    %s281 = scalar_lea.vmem [#allocation2], 32
    %v282 = vld [vmem:[%s281] sm:%s259]
    %s283 = sshllo.u32 0, 4
    %s284 = smul.addr 4, 4
    %s285 = scalar_lea.vmem [#allocation3], %s284
    %286 = vst [vmem:[%s285] sm:%s283] %v282
    %s287 = scalar_lea.vmem [#allocation2], 40
    %v288 = vld [vmem:[%s287] sm:%s259]
    %s289 = sshllo.u32 0, 4
    %s290 = smul.addr 4, 5
    %s291 = scalar_lea.vmem [#allocation3], %s290
    %292 = vst [vmem:[%s291] sm:%s289] %v288
    %s293 = scalar_lea.vmem [#allocation2], 48
    %v294 = vld [vmem:[%s293] sm:%s259]
    %s295 = sshllo.u32 0, 4
    %s296 = smul.addr 4, 6
    %s297 = scalar_lea.vmem [#allocation3], %s296
    %298 = vst [vmem:[%s297] sm:%s295] %v294
    %s299 = scalar_lea.vmem [#allocation2], 56
    %v300 = vld [vmem:[%s299] sm:%s259]
    %s301 = sshllo.u32 0, 4
    %s302 = smul.addr 4, 7
    %s303 = scalar_lea.vmem [#allocation3], %s302
    %304 = vst [vmem:[%s303] sm:%s301] %v300
    // Predicated region
    $region39: #{reverse.1} parent=1 // pred_check
      _
    $region40: #{reverse.1} parent=1 // pred_check_branch
      %306 = sbr.rel (0) target = $region42
    $region41: #{reverse.1} parent=1 // pred_region
      // Predicated region
      $region43: #{reverse.1} parent=41 // pred_check
        _
      $region44: #{reverse.1} parent=41 // pred_check_branch
        %308 = sbr.rel target = $region46
      $region45: #{reverse.1} parent=41 // pred_region
        // Predicated region
        $region58: #{reverse.1} parent=45 // pred_check
          _
        $region59: #{reverse.1} parent=45 // pred_check_branch
          %337 = sbr.rel (0) target = $region61
        $region60: #{reverse.1} parent=45 // pred_region
          loop: start=0, step=1, limit=1
          $region62: #{reverse.1} parent=60 // loop_pre_header
            _
          $region63: #{reverse.1} parent=60 // loop_header
            %s339 = sphi 0, %s343
            %p340 = scmp.ge.s32.totalorder %s339, 1
            %s344 = sphi [#allocation3], [#allocation3]
            %s345 = sphi %s1, %s1
          $region64: #{reverse.1} parent=60 // loop_header_branch
            %342 = sbr.rel (%p340) target = $region68
          $region65: #{reverse.1} parent=60 // loop_body
            _
          $region66: #{reverse.1} parent=60 // loop_footer
            %s343 = sadd.s32 1, %s339
          $region67: #{reverse.1} parent=60 // loop_footer_branch
            %338 = sbr.rel target = $region63
          $region68: #{reverse.1} parent=60 // loop_exit
            _
          loop: start=0, step=1, limit=1
          $region69: #{reverse.1} parent=60 // loop_pre_header
            _
          $region70: #{reverse.1} parent=60 // loop_header
            %s348 = sphi 0, %s352
            %p349 = scmp.ge.s32.totalorder %s348, 1
            %s353 = sphi [#allocation3], [#allocation3]
            %s354 = sphi %s1, %s1
          $region71: #{reverse.1} parent=60 // loop_header_branch
            %351 = sbr.rel (%p349) target = $region75
          $region72: #{reverse.1} parent=60 // loop_body
            %v355 = vld [vmem:[%s353] sm:$0xf]
            %356 = vst [vmem:[%s354] sm:$0xf] %v355
            %v357 = vld [vmem:[%s353 + $0x4] sm:$0xf]
            %358 = vst [vmem:[%s354 + $0x4] sm:$0xf] %v357
            %v359 = vld [vmem:[%s353 + $0x8] sm:$0xf]
            %360 = vst [vmem:[%s354 + $0x8] sm:$0xf] %v359
            %v361 = vld [vmem:[%s353 + $0xc] sm:$0xf]
            %362 = vst [vmem:[%s354 + $0xc] sm:$0xf] %v361
            %v363 = vld [vmem:[%s353 + $0x10] sm:$0xf]
            %364 = vst [vmem:[%s354 + $0x10] sm:$0xf] %v363
            %v365 = vld [vmem:[%s353 + $0x14] sm:$0xf]
            %366 = vst [vmem:[%s354 + $0x14] sm:$0xf] %v365
            %v367 = vld [vmem:[%s353 + $0x18] sm:$0xf]
            %368 = vst [vmem:[%s354 + $0x18] sm:$0xf] %v367
            %v369 = vld [vmem:[%s353 + $0x1c] sm:$0xf]
            %370 = vst [vmem:[%s354 + $0x1c] sm:$0xf] %v369
          $region73: #{reverse.1} parent=60 // loop_footer
            %s352 = sadd.s32 1, %s348
          $region74: #{reverse.1} parent=60 // loop_footer_branch
            %347 = sbr.rel target = $region70
          $region75: #{reverse.1} parent=60 // loop_exit
            _
        $region61: #{reverse.1} parent=45 // pred_fallthru
          _
      $region46: #{reverse.1} parent=41 // pred_fallthru
        _
      // Predicated region
      $region47: #{reverse.1} parent=41 // pred_check
        _
      $region48: #{reverse.1} parent=41 // pred_check_branch
        %310 = sbr.rel (0) target = $region50
      $region49: #{reverse.1} parent=41 // pred_region
        loop: start=0, step=1, limit=1
        $region51: #{reverse.1} parent=49 // loop_pre_header
          _
        $region52: #{reverse.1} parent=49 // loop_header
          %s313 = sphi 0, %s317
          %p314 = scmp.ge.s32.totalorder %s313, 1
          %s318 = sphi [#allocation3], [#allocation3]
          %s319 = sphi %s1, %s1
        $region53: #{reverse.1} parent=49 // loop_header_branch
          %316 = sbr.rel (%p314) target = $region57
        $region54: #{reverse.1} parent=49 // loop_body
          %v320 = vld [vmem:[%s318] sm:$0xf]
          %321 = vst [vmem:[%s319] sm:$0xf] %v320
          %v322 = vld [vmem:[%s318 + $0x4] sm:$0xf]
          %323 = vst [vmem:[%s319 + $0x4] sm:$0xf] %v322
          %v324 = vld [vmem:[%s318 + $0x8] sm:$0xf]
          %325 = vst [vmem:[%s319 + $0x8] sm:$0xf] %v324
          %v326 = vld [vmem:[%s318 + $0xc] sm:$0xf]
          %327 = vst [vmem:[%s319 + $0xc] sm:$0xf] %v326
          %v328 = vld [vmem:[%s318 + $0x10] sm:$0xf]
          %329 = vst [vmem:[%s319 + $0x10] sm:$0xf] %v328
          %v330 = vld [vmem:[%s318 + $0x14] sm:$0xf]
          %331 = vst [vmem:[%s319 + $0x14] sm:$0xf] %v330
          %v332 = vld [vmem:[%s318 + $0x18] sm:$0xf]
          %333 = vst [vmem:[%s319 + $0x18] sm:$0xf] %v332
          %v334 = vld [vmem:[%s318 + $0x1c] sm:$0xf]
          %335 = vst [vmem:[%s319 + $0x1c] sm:$0xf] %v334
        $region55: #{reverse.1} parent=49 // loop_footer
          %s317 = sadd.s32 1, %s313
        $region56: #{reverse.1} parent=49 // loop_footer_branch
          %312 = sbr.rel target = $region52
        $region57: #{reverse.1} parent=49 // loop_exit
          _
      $region50: #{reverse.1} parent=41 // pred_fallthru
        _
    $region42: #{reverse.1} parent=1 // pred_fallthru
      _
    %371 = vnop

// kernel: ffc_forward.15
$region0: #{ffc_forward.15}
  #allocation0 [shape = 'u32[]', space=smem, size = 0x4, offset = 0x4, fixed_abs, tag = 'smem constant byte address 0x4 - core index']
  #allocation1 [shape = 'u32[144,128]{1,0:T(1,128)}', space=vmem, size = 0x12000, scoped, tag = 'internal scratch']
  %s0 = inlined_call_operand.vmem [shape: f32[512,4], index: 0, kind: input, shape index: {}]
  %s1 = inlined_call_operand.vmem [shape: f32[512,4], index: 1, kind: input, shape index: {}]
  %s2 = inlined_call_operand.vmem [shape: f32[512,4], index: 2, kind: input, shape index: {}]
  %s3 = inlined_call_operand.vmem [shape: f32[512,8], index: 3, kind: input, shape index: {}]
  %s4 = inlined_call_operand.vmem [shape: f32[4,8], index: 4, kind: input, shape index: {}]
  %s5 = inlined_call_operand.vmem [shape: f32[512,8], index: 5, kind: output, shape index: {}]
  %s6 = sld [smem:[#allocation0]]
  $region53: #{ffc_forward.15} parent=0
    _
  %s8 = ssub.s32 1, %s6
  %s9 = scalar_select 0, %s8, %s6
  loop: start=0, step=1, limit=6
  $region2: #{ffc_forward.15} parent=0 // loop_pre_header
    _
  $region3: #{ffc_forward.15} parent=0 // loop_header
    %s11 = sphi 0, %s15
    %p12 = scmp.ge.s32.totalorder %s11, 6
    %s21 = sphi 0, %s23
    %s24 = sphi 0, %s21
    %s25 = sphi 0, %s24
    %s41 = sphi 0, %s25
    %s47 = sphi 0, %s49
    %s50 = sphi 0, %s47
    %s51 = sphi 0, %s50
    %s67 = sphi 0, %s51
    %s73 = sphi 0, %s75
    %s76 = sphi 0, %s73
    %s77 = sphi 0, %s76
    %s93 = sphi 0, %s77
    %s99 = sphi 0, %s101
    %s102 = sphi 0, %s99
    %s103 = sphi 0, %s102
    %s119 = sphi 0, %s103
    %s123 = sphi 0, %s123
    %s125 = sphi 0, %s123
    %s126 = sphi 0, %s125
    %s140 = sphi 0, %s126
    %s146 = sphi 0, %s148
    %s149 = sphi 0, %s146
    %s150 = sphi 0, %s149
    %s166 = sphi 0, %s150
  $region4: #{ffc_forward.15} parent=0 // loop_header_branch
    %14 = sbr.rel (%p12) target = $region8
  $region5: #{ffc_forward.15} parent=0 // loop_body
    %s16 = ssub.s32 %s11, 1
    %s17 = ssub.s32 %s11, 2
    %s18 = sadd.s32 %s11, 1
    %s19 = ssub.s32 %s11, %s18
    %p20 = scmp.eq.s32.totalorder %s19, 0
    %s22 = sadd.s32 %s21, 1
    %s23 = scalar_select %p20, %s21, %s22
    %p26 = pneg %p20
    %p27 = scmp.eq.s32.totalorder %s11, 3
    %p28 = por %p26, %p27
    %p29 = scmp.ne.s32.totalorder %s21, %s24
    %p30 = scmp.eq.s32.totalorder %s11, 0
    %p31 = por %p29, %p30
    %p32 = scmp.ne.s32.totalorder %s21, %s24
    %p33 = scmp.eq.s32.totalorder %s16, 3
    %p34 = por %p32, %p33
    %p35 = scmp.ne.s32.totalorder %s24, %s25
    %p36 = scmp.eq.s32.totalorder %s16, 0
    %p37 = por %p35, %p36
    %p38 = scmp.ne.s32.totalorder %s24, %s25
    %p39 = scmp.eq.s32.totalorder %s17, 3
    %p40 = por %p38, %p39
    %p42 = scmp.ne.s32.totalorder %s25, %s41
    %p43 = scmp.eq.s32.totalorder %s17, 0
    %p44 = por %p42, %p43
    %s45 = ssub.s32 %s11, %s18
    %p46 = scmp.eq.s32.totalorder %s45, 0
    %s48 = sadd.s32 %s47, 1
    %s49 = scalar_select %p46, %s47, %s48
    %p52 = pneg %p46
    %p53 = scmp.eq.s32.totalorder %s11, 3
    %p54 = por %p52, %p53
    %p55 = scmp.ne.s32.totalorder %s47, %s50
    %p56 = scmp.eq.s32.totalorder %s11, 0
    %p57 = por %p55, %p56
    %p58 = scmp.ne.s32.totalorder %s47, %s50
    %p59 = scmp.eq.s32.totalorder %s16, 3
    %p60 = por %p58, %p59
    %p61 = scmp.ne.s32.totalorder %s50, %s51
    %p62 = scmp.eq.s32.totalorder %s16, 0
    %p63 = por %p61, %p62
    %p64 = scmp.ne.s32.totalorder %s50, %s51
    %p65 = scmp.eq.s32.totalorder %s17, 3
    %p66 = por %p64, %p65
    %p68 = scmp.ne.s32.totalorder %s51, %s67
    %p69 = scmp.eq.s32.totalorder %s17, 0
    %p70 = por %p68, %p69
    %s71 = ssub.s32 %s11, %s18
    %p72 = scmp.eq.s32.totalorder %s71, 0
    %s74 = sadd.s32 %s73, 1
    %s75 = scalar_select %p72, %s73, %s74
    %p78 = pneg %p72
    %p79 = scmp.eq.s32.totalorder %s11, 3
    %p80 = por %p78, %p79
    %p81 = scmp.ne.s32.totalorder %s73, %s76
    %p82 = scmp.eq.s32.totalorder %s11, 0
    %p83 = por %p81, %p82
    %p84 = scmp.ne.s32.totalorder %s73, %s76
    %p85 = scmp.eq.s32.totalorder %s16, 3
    %p86 = por %p84, %p85
    %p87 = scmp.ne.s32.totalorder %s76, %s77
    %p88 = scmp.eq.s32.totalorder %s16, 0
    %p89 = por %p87, %p88
    %p90 = scmp.ne.s32.totalorder %s76, %s77
    %p91 = scmp.eq.s32.totalorder %s17, 3
    %p92 = por %p90, %p91
    %p94 = scmp.ne.s32.totalorder %s77, %s93
    %p95 = scmp.eq.s32.totalorder %s17, 0
    %p96 = por %p94, %p95
    %s97 = ssub.s32 %s11, %s18
    %p98 = scmp.eq.s32.totalorder %s97, 0
    %s100 = sadd.s32 %s99, 1
    %s101 = scalar_select %p98, %s99, %s100
    %p104 = pneg %p98
    %p105 = scmp.eq.s32.totalorder %s11, 3
    %p106 = por %p104, %p105
    %p107 = scmp.ne.s32.totalorder %s99, %s102
    %p108 = scmp.eq.s32.totalorder %s11, 0
    %p109 = por %p107, %p108
    %p110 = scmp.ne.s32.totalorder %s99, %s102
    %p111 = scmp.eq.s32.totalorder %s16, 3
    %p112 = por %p110, %p111
    %p113 = scmp.ne.s32.totalorder %s102, %s103
    %p114 = scmp.eq.s32.totalorder %s16, 0
    %p115 = por %p113, %p114
    %p116 = scmp.ne.s32.totalorder %s102, %s103
    %p117 = scmp.eq.s32.totalorder %s17, 3
    %p118 = por %p116, %p117
    %p120 = scmp.ne.s32.totalorder %s103, %s119
    %p121 = scmp.eq.s32.totalorder %s17, 0
    %p122 = por %p120, %p121
    %s124 = sadd.s32 %s123, 1
    %p127 = scmp.eq.s32.totalorder %s11, 3
    %p128 = scmp.ne.s32.totalorder %s123, %s125
    %p129 = scmp.eq.s32.totalorder %s11, 0
    %p130 = por %p128, %p129
    %p131 = scmp.ne.s32.totalorder %s123, %s125
    %p132 = scmp.eq.s32.totalorder %s16, 3
    %p133 = por %p131, %p132
    %p134 = scmp.ne.s32.totalorder %s125, %s126
    %p135 = scmp.eq.s32.totalorder %s16, 0
    %p136 = por %p134, %p135
    %p137 = scmp.ne.s32.totalorder %s125, %s126
    %p138 = scmp.eq.s32.totalorder %s17, 3
    %p139 = por %p137, %p138
    %p141 = scmp.ne.s32.totalorder %s126, %s140
    %p142 = scmp.eq.s32.totalorder %s17, 0
    %p143 = por %p141, %p142
    %s144 = ssub.s32 %s11, %s18
    %p145 = scmp.eq.s32.totalorder %s144, 0
    %s147 = sadd.s32 %s146, 1
    %s148 = scalar_select %p145, %s146, %s147
    %p151 = pneg %p145
    %p152 = scmp.eq.s32.totalorder %s11, 3
    %p153 = por %p151, %p152
    %p154 = scmp.ne.s32.totalorder %s146, %s149
    %p155 = scmp.eq.s32.totalorder %s11, 0
    %p156 = por %p154, %p155
    %p157 = scmp.ne.s32.totalorder %s146, %s149
    %p158 = scmp.eq.s32.totalorder %s16, 3
    %p159 = por %p157, %p158
    %p160 = scmp.ne.s32.totalorder %s149, %s150
    %p161 = scmp.eq.s32.totalorder %s16, 0
    %p162 = por %p160, %p161
    %p163 = scmp.ne.s32.totalorder %s149, %s150
    %p164 = scmp.eq.s32.totalorder %s17, 3
    %p165 = por %p163, %p164
    %p167 = scmp.ne.s32.totalorder %s150, %s166
    %p168 = scmp.eq.s32.totalorder %s17, 0
    %p169 = por %p167, %p168
    %p170 = scmp.le.s32.totalorder 1, %s11
    %p171 = scmp.lt.s32.totalorder %s11, 5
    %p172 = pnand %p170, %p171
    %p173 = pneg %p172
    // Predicated region
    $region9: #{ffc_forward.15} parent=5 // pred_check
      _
    $region10: #{ffc_forward.15} parent=5 // pred_check_branch
      %175 = sbr.rel (%p172) target = $region12
    $region11: #{ffc_forward.15} parent=5 // pred_region
      %s176 = ssub.s32 %s11, 1
      // Predicated region
      $region13: #{ffc_forward.15} parent=11 // pred_check
        %p177 = pneg %p136
      $region14: #{ffc_forward.15} parent=11 // pred_check_branch
        %179 = sbr.rel (%p177) target = $region16
      $region15: #{ffc_forward.15} parent=11 // pred_region
        _
      $region16: #{ffc_forward.15} parent=11 // pred_fallthru
        _
    $region12: #{ffc_forward.15} parent=5 // pred_fallthru
      _
    %p180 = scmp.lt.s32.totalorder %s11, 4
    // Predicated region
    $region17: #{ffc_forward.15} parent=5 // pred_check
      %p181 = pneg %p180
    $region18: #{ffc_forward.15} parent=5 // pred_check_branch
      %183 = sbr.rel (%p181) target = $region20
    $region19: #{ffc_forward.15} parent=5 // pred_region
      // Predicated region
      $region21: #{ffc_forward.15} parent=19 // pred_check
        %p184 = pneg %p31
      $region22: #{ffc_forward.15} parent=19 // pred_check_branch
        %186 = sbr.rel (%p184) target = $region24
      $region23: #{ffc_forward.15} parent=19 // pred_region
        %s187 = smul.u32 16, %s11
        %p188 = scmp.lt.s32.totalorder %s187, 63
        %s189 = scalar_select %p188, %s187, 63
        %s190 = smul.addr %s189, 8
        %s191 = scalar_lea.vmem %s0, %s190
        %s192 = smul.u32 16, %s11
      $region24: #{ffc_forward.15} parent=19 // pred_fallthru
        _
      // Predicated region
      $region25: #{ffc_forward.15} parent=19 // pred_check
        %p193 = pneg %p57
      $region26: #{ffc_forward.15} parent=19 // pred_check_branch
        %195 = sbr.rel (%p193) target = $region28
      $region27: #{ffc_forward.15} parent=19 // pred_region
        %s196 = smul.u32 16, %s11
        %p197 = scmp.lt.s32.totalorder %s196, 63
        %s198 = scalar_select %p197, %s196, 63
        %s199 = smul.addr %s198, 8
        %s200 = scalar_lea.vmem %s1, %s199
        %s201 = smul.u32 16, %s11
      $region28: #{ffc_forward.15} parent=19 // pred_fallthru
        _
      // Predicated region
      $region29: #{ffc_forward.15} parent=19 // pred_check
        %p202 = pneg %p83
      $region30: #{ffc_forward.15} parent=19 // pred_check_branch
        %204 = sbr.rel (%p202) target = $region32
      $region31: #{ffc_forward.15} parent=19 // pred_region
        %s205 = smul.u32 16, %s11
        %p206 = scmp.lt.s32.totalorder %s205, 63
        %s207 = scalar_select %p206, %s205, 63
        %s208 = smul.addr %s207, 8
        %s209 = scalar_lea.vmem %s2, %s208
        %s210 = smul.u32 16, %s11
      $region32: #{ffc_forward.15} parent=19 // pred_fallthru
        _
      // Predicated region
      $region33: #{ffc_forward.15} parent=19 // pred_check
        %p211 = pneg %p109
      $region34: #{ffc_forward.15} parent=19 // pred_check_branch
        %213 = sbr.rel (%p211) target = $region36
      $region35: #{ffc_forward.15} parent=19 // pred_region
        %s214 = smul.u32 16, %s11
        %p215 = scmp.lt.s32.totalorder %s214, 63
        %s216 = scalar_select %p215, %s214, 63
        %s217 = smul.addr %s216, 8
        %s218 = scalar_lea.vmem %s3, %s217
        %s219 = smul.u32 16, %s11
      $region36: #{ffc_forward.15} parent=19 // pred_fallthru
        _
    $region20: #{ffc_forward.15} parent=5 // pred_fallthru
      _
    %p220 = scmp.le.s32.totalorder 1, %s11
    %p221 = scmp.lt.s32.totalorder %s11, 5
    %p222 = pnand %p220, %p221
    %p223 = pneg %p222
    // Predicated region
    $region37: #{ffc_forward.15} parent=5 // pred_check
      _
    $region38: #{ffc_forward.15} parent=5 // pred_check_branch
      %225 = sbr.rel (%p222) target = $region40
    $region39: #{ffc_forward.15} parent=5 // pred_region
      %s226 = ssub.s32 %s11, 1
      %s227 = smul.u32 16, %s16
      %p228 = scmp.lt.s32.totalorder %s227, 63
      %s229 = scalar_select %p228, %s227, 63
      %s230 = smul.addr %s229, 8
      %s231 = scalar_lea.vmem %s0, %s230
      %p232 = pneg %p37
      %p233 = pneg %p34
      %s234 = smul.u32 16, %s16
      %p235 = scmp.lt.s32.totalorder %s234, 63
      %s236 = scalar_select %p235, %s234, 63
      %s237 = smul.addr %s236, 8
      %s238 = scalar_lea.vmem %s1, %s237
      %p239 = pneg %p63
      %p240 = pneg %p60
      %s241 = smul.u32 16, %s16
      %p242 = scmp.lt.s32.totalorder %s241, 63
      %s243 = scalar_select %p242, %s241, 63
      %s244 = smul.addr %s243, 8
      %s245 = scalar_lea.vmem %s2, %s244
      %p246 = pneg %p89
      %p247 = pneg %p86
      %s248 = smul.u32 16, %s16
      %p249 = scmp.lt.s32.totalorder %s248, 63
      %s250 = scalar_select %p249, %s248, 63
      %s251 = smul.addr %s250, 8
      %s252 = scalar_lea.vmem %s3, %s251
      %p253 = pneg %p115
      %p254 = pneg %p112
      %p255 = pneg %p136
      %p256 = pneg %p133
      %p257 = pneg %p162
      %p258 = pneg %p159
      %s259 = smul.u32 16, %s16
      %p260 = scmp.lt.s32.totalorder %s259, 63
      %s261 = scalar_select %p260, %s259, 63
      %s262 = smul.addr %s261, 8
      %s263 = scalar_lea.vmem %s5, %s262
      %s264 = smul.u32 16, %s16
      %p265 = scmp.lt.s32.totalorder %s264, 63
      %s266 = scalar_select %p265, %s264, 63
      %s267 = smul.addr %s266, 8
      %s268 = scalar_lea.vmem %s0, %s267
      %s269 = smul.u32 16, %s16
      %s270 = smul.u32 16, %s16
      %p271 = scmp.lt.s32.totalorder %s270, 63
      %s272 = scalar_select %p271, %s270, 63
      %s273 = smul.addr %s272, 8
      %s274 = scalar_lea.vmem %s1, %s273
      %s275 = smul.u32 16, %s16
      %s276 = smul.u32 16, %s16
      %p277 = scmp.lt.s32.totalorder %s276, 63
      %s278 = scalar_select %p277, %s276, 63
      %s279 = smul.addr %s278, 8
      %s280 = scalar_lea.vmem %s2, %s279
      %s281 = smul.u32 16, %s16
      %s282 = smul.u32 16, %s16
      %p283 = scmp.lt.s32.totalorder %s282, 63
      %s284 = scalar_select %p283, %s282, 63
      %s285 = smul.addr %s284, 8
      %s286 = scalar_lea.vmem %s3, %s285
      %s287 = smul.u32 16, %s16
      %s288 = smul.u32 16, %s16
      %p289 = scmp.lt.s32.totalorder %s288, 63
      %s290 = scalar_select %p289, %s288, 63
      %s291 = smul.addr %s290, 8
      %s292 = scalar_lea.vmem %s5, %s291
      %s293 = smul.u32 16, %s16
      %v294 = vld [vmem:[%s268] sm:$0xff]
      %v295 = vld [vmem:[%s268 + $0x8] sm:$0xff]
      %v296 = vld [vmem:[%s268 + $0x10] sm:$0xff]
      %v297 = vld [vmem:[%s268 + $0x18] sm:$0xff]
      %v298 = vld [vmem:[%s268 + $0x20] sm:$0xff]
      %v299 = vld [vmem:[%s268 + $0x28] sm:$0xff]
      %v300 = vld [vmem:[%s268 + $0x30] sm:$0xff]
      %v301 = vld [vmem:[%s268 + $0x38] sm:$0xff]
      %v302 = vld [vmem:[%s268 + $0x40] sm:$0xff]
      %v303 = vld [vmem:[%s268 + $0x48] sm:$0xff]
      %v304 = vld [vmem:[%s268 + $0x50] sm:$0xff]
      %v305 = vld [vmem:[%s268 + $0x58] sm:$0xff]
      %v306 = vld [vmem:[%s268 + $0x60] sm:$0xff]
      %v307 = vld [vmem:[%s268 + $0x68] sm:$0xff]
      %v308 = vld [vmem:[%s268 + $0x70] sm:$0xff]
      %v309 = vld [vmem:[%s268 + $0x78] sm:$0xff]
      %v310 = vld [vmem:[%s274] sm:$0xff]
      %v311 = vld [vmem:[%s274 + $0x8] sm:$0xff]
      %v312 = vld [vmem:[%s274 + $0x10] sm:$0xff]
      %v313 = vld [vmem:[%s274 + $0x18] sm:$0xff]
      %v314 = vld [vmem:[%s274 + $0x20] sm:$0xff]
      %v315 = vld [vmem:[%s274 + $0x28] sm:$0xff]
      %v316 = vld [vmem:[%s274 + $0x30] sm:$0xff]
      %v317 = vld [vmem:[%s274 + $0x38] sm:$0xff]
      %v318 = vld [vmem:[%s274 + $0x40] sm:$0xff]
      %v319 = vld [vmem:[%s274 + $0x48] sm:$0xff]
      %v320 = vld [vmem:[%s274 + $0x50] sm:$0xff]
      %v321 = vld [vmem:[%s274 + $0x58] sm:$0xff]
      %v322 = vld [vmem:[%s274 + $0x60] sm:$0xff]
      %v323 = vld [vmem:[%s274 + $0x68] sm:$0xff]
      %v324 = vld [vmem:[%s274 + $0x70] sm:$0xff]
      %v325 = vld [vmem:[%s274 + $0x78] sm:$0xff]
      %v326 = vadd.f32 %v294, %v310
      %v327 = vadd.f32 %v295, %v311
      %v328 = vadd.f32 %v296, %v312
      %v329 = vadd.f32 %v297, %v313
      %v330 = vadd.f32 %v298, %v314
      %v331 = vadd.f32 %v299, %v315
      %v332 = vadd.f32 %v300, %v316
      %v333 = vadd.f32 %v301, %v317
      %v334 = vadd.f32 %v302, %v318
      %v335 = vadd.f32 %v303, %v319
      %v336 = vadd.f32 %v304, %v320
      %v337 = vadd.f32 %v305, %v321
      %v338 = vadd.f32 %v306, %v322
      %v339 = vadd.f32 %v307, %v323
      %v340 = vadd.f32 %v308, %v324
      %v341 = vadd.f32 %v309, %v325
      %v342 = vld [vmem:[%s280] sm:$0xff]
      %v343 = vld [vmem:[%s280 + $0x8] sm:$0xff]
      %v344 = vld [vmem:[%s280 + $0x10] sm:$0xff]
      %v345 = vld [vmem:[%s280 + $0x18] sm:$0xff]
      %v346 = vld [vmem:[%s280 + $0x20] sm:$0xff]
      %v347 = vld [vmem:[%s280 + $0x28] sm:$0xff]
      %v348 = vld [vmem:[%s280 + $0x30] sm:$0xff]
      %v349 = vld [vmem:[%s280 + $0x38] sm:$0xff]
      %v350 = vld [vmem:[%s280 + $0x40] sm:$0xff]
      %v351 = vld [vmem:[%s280 + $0x48] sm:$0xff]
      %v352 = vld [vmem:[%s280 + $0x50] sm:$0xff]
      %v353 = vld [vmem:[%s280 + $0x58] sm:$0xff]
      %v354 = vld [vmem:[%s280 + $0x60] sm:$0xff]
      %v355 = vld [vmem:[%s280 + $0x68] sm:$0xff]
      %v356 = vld [vmem:[%s280 + $0x70] sm:$0xff]
      %v357 = vld [vmem:[%s280 + $0x78] sm:$0xff]
      %v358 = vadd.f32 %v326, %v342
      %v359 = vadd.f32 %v327, %v343
      %v360 = vadd.f32 %v328, %v344
      %v361 = vadd.f32 %v329, %v345
      %v362 = vadd.f32 %v330, %v346
      %v363 = vadd.f32 %v331, %v347
      %v364 = vadd.f32 %v332, %v348
      %v365 = vadd.f32 %v333, %v349
      %v366 = vadd.f32 %v334, %v350
      %v367 = vadd.f32 %v335, %v351
      %v368 = vadd.f32 %v336, %v352
      %v369 = vadd.f32 %v337, %v353
      %v370 = vadd.f32 %v338, %v354
      %v371 = vadd.f32 %v339, %v355
      %v372 = vadd.f32 %v340, %v356
      %v373 = vadd.f32 %v341, %v357
      %v374 = vld [vmem:[%s4] sm:$0xf]
      %v375 = vld [vmem:[%s286] sm:$0xff]
      %v376 = vld [vmem:[%s286 + $0x8] sm:$0xff]
      %v377 = vld [vmem:[%s286 + $0x10] sm:$0xff]
      %v378 = vld [vmem:[%s286 + $0x18] sm:$0xff]
      %v379 = vld [vmem:[%s286 + $0x20] sm:$0xff]
      %v380 = vld [vmem:[%s286 + $0x28] sm:$0xff]
      %v381 = vld [vmem:[%s286 + $0x30] sm:$0xff]
      %v382 = vld [vmem:[%s286 + $0x38] sm:$0xff]
      %v383 = vld [vmem:[%s286 + $0x40] sm:$0xff]
      %v384 = vld [vmem:[%s286 + $0x48] sm:$0xff]
      %v385 = vld [vmem:[%s286 + $0x50] sm:$0xff]
      %v386 = vld [vmem:[%s286 + $0x58] sm:$0xff]
      %v387 = vld [vmem:[%s286 + $0x60] sm:$0xff]
      %v388 = vld [vmem:[%s286 + $0x68] sm:$0xff]
      %v389 = vld [vmem:[%s286 + $0x70] sm:$0xff]
      %v390 = vld [vmem:[%s286 + $0x78] sm:$0xff]
      %vm391 = vcmask 31744
      %v393 = vsel %vm391, %v358, 0
      %v396 = vsel %vm391, %v359, 0
      %v399 = vsel %vm391, %v360, 0
      %v402 = vsel %vm391, %v361, 0
      %v405 = vsel %vm391, %v362, 0
      %v408 = vsel %vm391, %v363, 0
      %v411 = vsel %vm391, %v364, 0
      %v414 = vsel %vm391, %v365, 0
      %v417 = vsel %vm391, %v366, 0
      %v420 = vsel %vm391, %v367, 0
      %v423 = vsel %vm391, %v368, 0
      %v426 = vsel %vm391, %v369, 0
      %v429 = vsel %vm391, %v370, 0
      %v432 = vsel %vm391, %v371, 0
      %v435 = vsel %vm391, %v372, 0
      %v438 = vsel %vm391, %v373, 0
      %vm440 = vcmask 1043456
      %v442 = vsel %vm440, %v374, 0
      %444 = vmatprep.subr.mxu0 0.0
      %445 = vmatpush1.msra.mxu0 %v442
      %446 = vmatprep.subr.mxu0 0.0
      %447 = vmatpush1.msra.mxu0 0.0
      %448 = vmatprep.subr.mxu0 0.0
      %449 = vmatpush1.msra.mxu0 0.0
      %450 = vmatprep.subr.mxu0 0.0
      %451 = vmatpush1.msra.mxu0 0.0
      %452 = vmatprep.subr.mxu0 0.0
      %453 = vmatpush1.msra.mxu0 0.0
      %454 = vmatprep.subr.mxu0 0.0
      %455 = vmatpush1.msra.mxu0 0.0
      %456 = vmatprep.subr.mxu0 0.0
      %457 = vmatpush1.msra.mxu0 0.0
      %458 = vmatprep.subr.mxu0 0.0
      %459 = vmatpush1.msra.mxu0 0.0
      %460 = vmatprep.subr.mxu0 0.0
      %461 = vmatpush1.msra.mxu0 0.0
      %462 = vmatprep.subr.mxu0 0.0
      %463 = vmatpush1.msra.mxu0 0.0
      %464 = vmatprep.subr.mxu0 0.0
      %465 = vmatpush1.msra.mxu0 0.0
      %466 = vmatprep.subr.mxu0 0.0
      %467 = vmatpush1.msra.mxu0 0.0
      %468 = vmatprep.subr.mxu0 0.0
      %469 = vmatpush1.msra.mxu0 0.0
      %470 = vmatprep.subr.mxu0 0.0
      %471 = vmatpush1.msra.mxu0 0.0
      %472 = vmatprep.subr.mxu0 0.0
      %473 = vmatpush1.msra.mxu0 0.0
      %474 = vmatprep.subr.mxu0 0.0
      %475 = vmatpush1.msra.mxu0 0.0
      %476 = vmatprep.subr.mxu0 0.0
      %477 = vmatpush1.msra.mxu0 0.0
      %478 = vmatprep.subr.mxu0 0.0
      %479 = vmatpush1.msra.mxu0 0.0
      %480 = vmatprep.subr.mxu0 0.0
      %481 = vmatpush1.msra.mxu0 0.0
      %482 = vmatprep.subr.mxu0 0.0
      %483 = vmatpush1.msra.mxu0 0.0
      %484 = vmatprep.subr.mxu0 0.0
      %485 = vmatpush1.msra.mxu0 0.0
      %486 = vmatprep.subr.mxu0 0.0
      %487 = vmatpush1.msra.mxu0 0.0
      %488 = vmatprep.subr.mxu0 0.0
      %489 = vmatpush1.msra.mxu0 0.0
      %490 = vmatprep.subr.mxu0 0.0
      %491 = vmatpush1.msra.mxu0 0.0
      %492 = vmatprep.subr.mxu0 0.0
      %493 = vmatpush1.msra.mxu0 0.0
      %494 = vmatprep.subr.mxu0 0.0
      %495 = vmatpush1.msra.mxu0 0.0
      %496 = vmatprep.subr.mxu0 0.0
      %497 = vmatpush1.msra.mxu0 0.0
      %498 = vmatprep.subr.mxu0 0.0
      %499 = vmatpush1.msra.mxu0 0.0
      %500 = vmatprep.subr.mxu0 0.0
      %501 = vmatpush1.msra.mxu0 0.0
      %502 = vmatprep.subr.mxu0 0.0
      %503 = vmatpush1.msra.mxu0 0.0
      %504 = vmatprep.subr.mxu0 0.0
      %505 = vmatpush1.msra.mxu0 0.0
      %506 = vmatprep.subr.mxu0 0.0
      %507 = vmatpush1.msra.mxu0 0.0
      %508 = vmatprep.mubr.f32.mxu0 0.0
      %509 = vmatmul.mubr.f32.gmra.mrb[0].mxu0 %v393
      %v510 = vpop.f32.mrb[0].mxu0
      %v511 = vadd.f32 %v375, %v510
      %v512 = vpop.f32.mrb[0].mxu0
      %513 = vmatprep.mubr.f32.mxu0 0.0
      %514 = vmatmul.mubr.f32.gmra.mrb[0].mxu0 %v396
      %v515 = vpop.f32.mrb[0].mxu0
      %v516 = vadd.f32 %v376, %v515
      %v517 = vpop.f32.mrb[0].mxu0
      %518 = vmatprep.mubr.f32.mxu0 0.0
      %519 = vmatmul.mubr.f32.gmra.mrb[0].mxu0 %v399
      %v520 = vpop.f32.mrb[0].mxu0
      %v521 = vadd.f32 %v377, %v520
      %v522 = vpop.f32.mrb[0].mxu0
      %523 = vmatprep.mubr.f32.mxu0 0.0
      %524 = vmatmul.mubr.f32.gmra.mrb[0].mxu0 %v402
      %v525 = vpop.f32.mrb[0].mxu0
      %v526 = vadd.f32 %v378, %v525
      %v527 = vpop.f32.mrb[0].mxu0
      %528 = vmatprep.mubr.f32.mxu0 0.0
      %529 = vmatmul.mubr.f32.gmra.mrb[0].mxu0 %v405
      %v530 = vpop.f32.mrb[0].mxu0
      %v531 = vadd.f32 %v379, %v530
      %v532 = vpop.f32.mrb[0].mxu0
      %533 = vmatprep.mubr.f32.mxu0 0.0
      %534 = vmatmul.mubr.f32.gmra.mrb[0].mxu0 %v408
      %v535 = vpop.f32.mrb[0].mxu0
      %v536 = vadd.f32 %v380, %v535
      %v537 = vpop.f32.mrb[0].mxu0
      %538 = vmatprep.mubr.f32.mxu0 0.0
      %539 = vmatmul.mubr.f32.gmra.mrb[0].mxu0 %v411
      %v540 = vpop.f32.mrb[0].mxu0
      %v541 = vadd.f32 %v381, %v540
      %v542 = vpop.f32.mrb[0].mxu0
      %543 = vmatprep.mubr.f32.mxu0 0.0
      %544 = vmatmul.mubr.f32.gmra.mrb[0].mxu0 %v414
      %v545 = vpop.f32.mrb[0].mxu0
      %v546 = vadd.f32 %v382, %v545
      %v547 = vpop.f32.mrb[0].mxu0
      %548 = vmatprep.mubr.f32.mxu0 0.0
      %549 = vmatmul.mubr.f32.gmra.mrb[0].mxu0 %v417
      %v550 = vpop.f32.mrb[0].mxu0
      %v551 = vadd.f32 %v383, %v550
      %v552 = vpop.f32.mrb[0].mxu0
      %553 = vmatprep.mubr.f32.mxu0 0.0
      %554 = vmatmul.mubr.f32.gmra.mrb[0].mxu0 %v420
      %v555 = vpop.f32.mrb[0].mxu0
      %v556 = vadd.f32 %v384, %v555
      %v557 = vpop.f32.mrb[0].mxu0
      %558 = vmatprep.mubr.f32.mxu0 0.0
      %559 = vmatmul.mubr.f32.gmra.mrb[0].mxu0 %v423
      %v560 = vpop.f32.mrb[0].mxu0
      %v561 = vadd.f32 %v385, %v560
      %v562 = vpop.f32.mrb[0].mxu0
      %563 = vmatprep.mubr.f32.mxu0 0.0
      %564 = vmatmul.mubr.f32.gmra.mrb[0].mxu0 %v426
      %v565 = vpop.f32.mrb[0].mxu0
      %v566 = vadd.f32 %v386, %v565
      %v567 = vpop.f32.mrb[0].mxu0
      %568 = vmatprep.mubr.f32.mxu0 0.0
      %569 = vmatmul.mubr.f32.gmra.mrb[0].mxu0 %v429
      %v570 = vpop.f32.mrb[0].mxu0
      %v571 = vadd.f32 %v387, %v570
      %v572 = vpop.f32.mrb[0].mxu0
      %573 = vmatprep.mubr.f32.mxu0 0.0
      %574 = vmatmul.mubr.f32.gmra.mrb[0].mxu0 %v432
      %v575 = vpop.f32.mrb[0].mxu0
      %v576 = vadd.f32 %v388, %v575
      %v577 = vpop.f32.mrb[0].mxu0
      %578 = vmatprep.mubr.f32.mxu0 0.0
      %579 = vmatmul.mubr.f32.gmra.mrb[0].mxu0 %v435
      %v580 = vpop.f32.mrb[0].mxu0
      %v581 = vadd.f32 %v389, %v580
      %v582 = vpop.f32.mrb[0].mxu0
      %583 = vmatprep.mubr.f32.mxu0 0.0
      %584 = vmatmul.mubr.f32.gmra.mrb[0].mxu0 %v438
      %v585 = vpop.f32.mrb[0].mxu0
      %v586 = vadd.f32 %v390, %v585
      %v587 = vpop.f32.mrb[0].mxu0
      %588 = vdwg.mxu0
      %vm589 = vcmask 64512
      %590 = vst.msk [vmem:[%s292] sm:$0xff] %vm589, %v511
      %591 = vst.msk [vmem:[%s292 + $0x8] sm:$0xff] %vm589, %v516
      %592 = vst.msk [vmem:[%s292 + $0x10] sm:$0xff] %vm589, %v521
      %593 = vst.msk [vmem:[%s292 + $0x18] sm:$0xff] %vm589, %v526
      %594 = vst.msk [vmem:[%s292 + $0x20] sm:$0xff] %vm589, %v531
      %595 = vst.msk [vmem:[%s292 + $0x28] sm:$0xff] %vm589, %v536
      %596 = vst.msk [vmem:[%s292 + $0x30] sm:$0xff] %vm589, %v541
      %597 = vst.msk [vmem:[%s292 + $0x38] sm:$0xff] %vm589, %v546
      %598 = vst.msk [vmem:[%s292 + $0x40] sm:$0xff] %vm589, %v551
      %599 = vst.msk [vmem:[%s292 + $0x48] sm:$0xff] %vm589, %v556
      %600 = vst.msk [vmem:[%s292 + $0x50] sm:$0xff] %vm589, %v561
      %601 = vst.msk [vmem:[%s292 + $0x58] sm:$0xff] %vm589, %v566
      %602 = vst.msk [vmem:[%s292 + $0x60] sm:$0xff] %vm589, %v571
      %603 = vst.msk [vmem:[%s292 + $0x68] sm:$0xff] %vm589, %v576
      %604 = vst.msk [vmem:[%s292 + $0x70] sm:$0xff] %vm589, %v581
      %605 = vst.msk [vmem:[%s292 + $0x78] sm:$0xff] %vm589, %v586
      %s606 = smul.u32 16, %s16
      %p607 = scmp.lt.s32.totalorder %s606, 63
      %s608 = scalar_select %p607, %s606, 63
      %s609 = smul.addr %s608, 8
      %s610 = scalar_lea.vmem %s5, %s609
      // Predicated region
      $region41: #{ffc_forward.15} parent=39 // pred_check
        %p611 = pneg %p159
      $region42: #{ffc_forward.15} parent=39 // pred_check_branch
        %613 = sbr.rel (%p611) target = $region44
      $region43: #{ffc_forward.15} parent=39 // pred_region
        %s614 = smul.u32 16, %s16
      $region44: #{ffc_forward.15} parent=39 // pred_fallthru
        _
    $region40: #{ffc_forward.15} parent=5 // pred_fallthru
      _
    %p615 = scmp.le.s32.totalorder 2, %s11
    // Predicated region
    $region45: #{ffc_forward.15} parent=5 // pred_check
      %p616 = pneg %p615
    $region46: #{ffc_forward.15} parent=5 // pred_check_branch
      %618 = sbr.rel (%p616) target = $region48
    $region47: #{ffc_forward.15} parent=5 // pred_region
      %s619 = ssub.s32 %s11, 2
      // Predicated region
      $region49: #{ffc_forward.15} parent=47 // pred_check
        %p620 = pneg %p165
      $region50: #{ffc_forward.15} parent=47 // pred_check_branch
        %622 = sbr.rel (%p620) target = $region52
      $region51: #{ffc_forward.15} parent=47 // pred_region
        %s623 = smul.u32 16, %s17
        %p624 = scmp.lt.s32.totalorder %s623, 63
        %s625 = scalar_select %p624, %s623, 63
        %s626 = smul.addr %s625, 8
        %s627 = scalar_lea.vmem %s5, %s626
      $region52: #{ffc_forward.15} parent=47 // pred_fallthru
        _
    $region48: #{ffc_forward.15} parent=5 // pred_fallthru
      _
  $region6: #{ffc_forward.15} parent=0 // loop_footer
    %s15 = sadd.s32 1, %s11
  $region7: #{ffc_forward.15} parent=0 // loop_footer_branch
    %10 = sbr.rel target = $region3
  $region8: #{ffc_forward.15} parent=0 // loop_exit
    _

</llo_original>
